<compile_context>
chip_gen: v5e
topology: v5e:2x2
jax: 0.10.0
libtpu: 0.0.40
codegen_flags: <defaults>
</compile_context>

<pallas_src>
import functools
import math

import jax
import jax.numpy as jnp
from jax.experimental import pallas as pl
from jax.experimental.pallas import tpu as pltpu


def _round_up(x, m):
    return ((x + m - 1) // m) * m


def _autoencoder_kernel(x_ref,
                        w1_ref, b1_ref,
                        w2_ref, b2_ref,
                        w3_ref, b3_ref,
                        w4_ref, b4_ref,
                        z_ref, xr_ref, *, n_sub):
    """Encoder + decoder forward for one batch tile.

    The tile is processed in `n_sub` static row sub-chunks so the VPU epilogue
    (bias add / ReLU / cast) of one chunk can co-issue with the next chunk's
    MXU matmuls.  All four matmuls accumulate in f32.
    """
    f32 = jnp.float32
    sub = x_ref.shape[0] // n_sub

    # Hoist weight / bias loads out of the sub-chunk loop (grid-invariant).
    w1 = w1_ref[...]
    w2 = w2_ref[...]
    w3 = w3_ref[...]
    w4 = w4_ref[...]
    b1 = b1_ref[...].astype(f32)
    b2 = b2_ref[...].astype(f32)
    b3 = b3_ref[...].astype(f32)
    b4 = b4_ref[...].astype(f32)

    for c in range(n_sub):                      # static unroll
        rows = pl.ds(c * sub, sub)
        x = x_ref[rows, :]

        # --- encoder ---
        h1 = jnp.dot(x.astype(w1.dtype), w1, preferred_element_type=f32)
        h1 = jnp.maximum(h1 + b1, 0.0)
        z = jnp.dot(h1.astype(w2.dtype), w2, preferred_element_type=f32) + b2
        z_out = z.astype(z_ref.dtype)
        z_ref[rows, :] = z_out

        # --- decoder (consumes the stored-dtype embedding so z and x_rec
        #     stay consistent even in reduced-precision runs) ---
        h2 = jnp.dot(z_out, w3, preferred_element_type=f32)
        h2 = jnp.maximum(h2 + b3, 0.0)
        xr = jnp.dot(h2.astype(w4.dtype), w4, preferred_element_type=f32) + b4
        xr_ref[rows, :] = xr.astype(xr_ref.dtype)


def _choose_block_rows(B, block_b):
    """Batch tile: multiple of 128 (MXU M), >=2 grid steps when B > 128."""
    MXU_M = 128
    if B <= MXU_M:
        # Tiny batch: one step covering the whole (full-extent) batch dim.
        return B
    tile = _round_up(min(max(block_b, MXU_M), B), MXU_M)
    if pl.cdiv(B, tile) < 2:
        # Guarantee >= 2 grid steps so v7x's two TensorCores both get work.
        tile = _round_up(pl.cdiv(B, 2), MXU_M)
    return tile


def _choose_n_sub(tile):
    """Largest sub-chunk count in {4,3,2} keeping each sub-chunk 128-aligned."""
    for cand in (4, 3, 2):
        if tile % cand == 0 and (tile // cand) % 128 == 0:
            return cand
    return 1


def contrastive_autoencoder_forward(x, params, *, block_b=512,
                                    single_buffer_weights=True):
    """Pallas forward. x: (B, input_dim). Returns (z, x_reconstructed)."""
    w1, b1, w2, b2, w3, b3, w4, b4 = params
    B, input_dim = x.shape
    hidden_dim = w1.shape[1]
    embedding_dim = w2.shape[1]
    dtype = x.dtype
    itemsize = jnp.dtype(dtype).itemsize

    tile = _choose_block_rows(B, block_b)
    n_sub = _choose_n_sub(tile)
    grid = (pl.cdiv(B, tile),)          # ragged last block handled by Pallas

    # Grid-invariant operands (weights / biases): constant index_map; single
    # buffered so they occupy 1x (not 2x) VMEM.
    def resident_spec(shape):
        ndim = len(shape)
        if single_buffer_weights:
            return pl.BlockSpec(shape, lambda i: (0,) * ndim,
                                pipeline_mode=pl.Buffered(1))
        return pl.BlockSpec(shape, lambda i: (0,) * ndim)

    in_specs = [
        pl.BlockSpec((tile, input_dim), lambda i: (i, 0)),   # x batch tile
        resident_spec(w1.shape), resident_spec(b1.shape),
        resident_spec(w2.shape), resident_spec(b2.shape),
        resident_spec(w3.shape), resident_spec(b3.shape),
        resident_spec(w4.shape), resident_spec(b4.shape),
    ]
    out_specs = (
        pl.BlockSpec((tile, embedding_dim), lambda i: (i, 0)),  # z
        pl.BlockSpec((tile, input_dim), lambda i: (i, 0)),       # x_rec
    )
    out_shape = (
        jax.ShapeDtypeStruct((B, embedding_dim), dtype),
        jax.ShapeDtypeStruct((B, input_dim), dtype),
    )

    # VMEM budget: single-buffered weights + double-buffered x/z/xr tiles +
    # in-kernel f32 temporaries; capped at 48 MiB (headroom on v7x's 64 MiB).
    wbuf = 1 if single_buffer_weights else 2
    weight_bytes = sum(math.prod(p.shape) * p.dtype.itemsize
                       for p in (w1, b1, w2, b2, w3, b3, w4, b4))
    io_bytes = 2 * tile * (2 * input_dim + embedding_dim) * itemsize
    tmp_bytes = 2 * (tile // n_sub) * (2 * hidden_dim + embedding_dim
                                       + input_dim) * 4
    est = wbuf * weight_bytes + io_bytes + tmp_bytes
    vmem_limit = int(min(48 * 1024 * 1024, max(32 * 1024 * 1024, 2 * est)))

    flops = 2 * B * (input_dim * hidden_dim + hidden_dim * embedding_dim
                     + embedding_dim * hidden_dim + hidden_dim * input_dim)
    bytes_accessed = (B * input_dim * itemsize                   # x read
                      + weight_bytes                             # weights read
                      + B * (embedding_dim + input_dim) * itemsize)  # outputs

    z, x_rec = pl.pallas_call(
        functools.partial(_autoencoder_kernel, n_sub=n_sub),
        out_shape=out_shape,
        grid_spec=pltpu.PrefetchScalarGridSpec(
            num_scalar_prefetch=0,
            grid=grid,
            in_specs=in_specs,
            out_specs=out_specs,
        ),
        compiler_params=pltpu.CompilerParams(
            dimension_semantics=("parallel",),
            vmem_limit_bytes=vmem_limit,
        ),
        cost_estimate=pl.CostEstimate(flops=flops, transcendentals=0,
                                      bytes_accessed=bytes_accessed),
    )(x, w1, b1, w2, b2, w3, b3, w4, b4)
    return z, x_rec


def init_params(key, input_dim, hidden_dim, embedding_dim, dtype=jnp.float32):
    """PyTorch-Linear-style init (uniform +-1/sqrt(fan_in)).

    Weights returned already transposed to (in_features, out_features);
    biases as (1, out_features) rows for 2-D TPU-friendly broadcasting.
    Pass dtype=jnp.bfloat16 to halve weight DMA / resident VMEM (the kernel
    still accumulates in f32).
    """
    dims = [
        (input_dim, hidden_dim),       # encoder linear 1
        (hidden_dim, embedding_dim),   # encoder linear 2
        (embedding_dim, hidden_dim),   # decoder linear 1
        (hidden_dim, input_dim),       # decoder linear 2
    ]
    params = []
    for (fan_in, fan_out) in dims:
        key, kw, kb = jax.random.split(key, 3)
        bound = 1.0 / (fan_in ** 0.5)
        w = jax.random.uniform(kw, (fan_in, fan_out), dtype, -bound, bound)
        b = jax.random.uniform(kb, (1, fan_out), dtype, -bound, bound)
        params += [w, b]
    return tuple(params)


def _reference_forward(x, params):
    """Plain-JAX reference (chains the decoder through the stored embedding)."""
    w1, b1, w2, b2, w3, b3, w4, b4 = params
    f32 = jnp.float32
    h1 = jnp.maximum(
        jnp.dot(x.astype(w1.dtype), w1, preferred_element_type=f32)
        + b1.astype(f32), 0.0)
    z = (jnp.dot(h1.astype(w2.dtype), w2, preferred_element_type=f32)
         + b2.astype(f32)).astype(x.dtype)
    h2 = jnp.maximum(
        jnp.dot(z, w3, preferred_element_type=f32) + b3.astype(f32), 0.0)
    xr = (jnp.dot(h2.astype(w4.dtype), w4, preferred_element_type=f32)
          + b4.astype(f32)).astype(x.dtype)
    return z, xr


if __name__ == "__main__":
    # Module-default dims (768 -> 512 -> 256 -> 512 -> 768); a non-128-multiple
    # batch exercises the ragged-last-block path and gives a 2-step parallel
    # grid (both v7x TensorCores busy).
    B, INPUT_DIM, HIDDEN_DIM, EMBEDDING_DIM = 200, 768, 512, 256

    key = jax.random.PRNGKey(0)
    key_x, key_p = jax.random.split(key)

    x = jax.random.normal(key_x, (B, INPUT_DIM), dtype=jnp.float32)
    params = init_params(key_p, INPUT_DIM, HIDDEN_DIM, EMBEDDING_DIM)

    def build(single_buffer_weights):
        return jax.jit(functools.partial(
            contrastive_autoencoder_forward,
            block_b=512,
            single_buffer_weights=single_buffer_weights))

    try:
        z, x_rec = build(True)(x, params)
        jax.block_until_ready((z, x_rec))
    except (TypeError, ValueError, NotImplementedError,
            pltpu.LoweringException):
        # Narrow fallback: only for jax builds that reject
        # pipeline_mode=pl.Buffered(1) on pallas_call BlockSpecs.
        z, x_rec = build(False)(x, params)
        jax.block_until_ready((z, x_rec))

    # Correctness check against the plain-JAX reference.
    z_ref, xr_ref = _reference_forward(x, params)
    assert z.shape == (B, EMBEDDING_DIM) and x_rec.shape == (B, INPUT_DIM)
    assert jnp.allclose(z, z_ref, atol=1e-4, rtol=1e-4)
    assert jnp.allclose(x_rec, xr_ref, atol=1e-4, rtol=1e-4)

    print("KERNEL_OK")
</pallas_src>

<mosaic_0001>
module attributes {stable_mosaic.version = 11 : i64} {
  func.func @_autoencoder_kernel(%arg0: i32, %arg1: memref<128x768xf32, #tpu.memory_space<vmem>>, %arg2: memref<768x512xf32, #tpu.memory_space<vmem>>, %arg3: memref<1x512xf32, #tpu.memory_space<vmem>>, %arg4: memref<512x256xf32, #tpu.memory_space<vmem>>, %arg5: memref<1x256xf32, #tpu.memory_space<vmem>>, %arg6: memref<256x512xf32, #tpu.memory_space<vmem>>, %arg7: memref<1x512xf32, #tpu.memory_space<vmem>>, %arg8: memref<512x768xf32, #tpu.memory_space<vmem>>, %arg9: memref<1x768xf32, #tpu.memory_space<vmem>>, %arg10: memref<128x256xf32, #tpu.memory_space<vmem>>, %arg11: memref<128x768xf32, #tpu.memory_space<vmem>>) attributes {dimension_semantics = [#tpu.dimension_semantics<parallel>], iteration_bounds = array<i64: 2>, scalar_prefetch = 0 : i64, scratch_operands = 0 : i64, tpu.core_type = #tpu.core_type<tc>, window_params = [{transform_indices = @transform_0, window_bounds = array<i64: 128, 768>}, {pipeline_mode = #tpu.pipeline_mode<synchronous>, transform_indices = @transform_1, window_bounds = array<i64: 768, 512>}, {pipeline_mode = #tpu.pipeline_mode<synchronous>, transform_indices = @transform_2, window_bounds = array<i64: 1, 512>}, {pipeline_mode = #tpu.pipeline_mode<synchronous>, transform_indices = @transform_3, window_bounds = array<i64: 512, 256>}, {pipeline_mode = #tpu.pipeline_mode<synchronous>, transform_indices = @transform_4, window_bounds = array<i64: 1, 256>}, {pipeline_mode = #tpu.pipeline_mode<synchronous>, transform_indices = @transform_5, window_bounds = array<i64: 256, 512>}, {pipeline_mode = #tpu.pipeline_mode<synchronous>, transform_indices = @transform_6, window_bounds = array<i64: 1, 512>}, {pipeline_mode = #tpu.pipeline_mode<synchronous>, transform_indices = @transform_7, window_bounds = array<i64: 512, 768>}, {pipeline_mode = #tpu.pipeline_mode<synchronous>, transform_indices = @transform_8, window_bounds = array<i64: 1, 768>}, {transform_indices = @transform_9, window_bounds = array<i64: 128, 256>}, {transform_indices = @transform_10, window_bounds = array<i64: 128, 768>}]} {
    %c0 = arith.constant 0 : index
    %c0_0 = arith.constant 0 : index
    %0 = vector.load %arg2[%c0, %c0_0] : memref<768x512xf32, #tpu.memory_space<vmem>>, vector<768x512xf32>
    %c0_1 = arith.constant 0 : index
    %c0_2 = arith.constant 0 : index
    %1 = vector.load %arg4[%c0_1, %c0_2] : memref<512x256xf32, #tpu.memory_space<vmem>>, vector<512x256xf32>
    %c0_3 = arith.constant 0 : index
    %c0_4 = arith.constant 0 : index
    %2 = vector.load %arg6[%c0_3, %c0_4] : memref<256x512xf32, #tpu.memory_space<vmem>>, vector<256x512xf32>
    %c0_5 = arith.constant 0 : index
    %c0_6 = arith.constant 0 : index
    %3 = vector.load %arg8[%c0_5, %c0_6] : memref<512x768xf32, #tpu.memory_space<vmem>>, vector<512x768xf32>
    %c0_7 = arith.constant 0 : index
    %c0_8 = arith.constant 0 : index
    %4 = vector.load %arg3[%c0_7, %c0_8] : memref<1x512xf32, #tpu.memory_space<vmem>>, vector<1x512xf32>
    %c0_9 = arith.constant 0 : index
    %c0_10 = arith.constant 0 : index
    %5 = vector.load %arg5[%c0_9, %c0_10] : memref<1x256xf32, #tpu.memory_space<vmem>>, vector<1x256xf32>
    %c0_11 = arith.constant 0 : index
    %c0_12 = arith.constant 0 : index
    %6 = vector.load %arg7[%c0_11, %c0_12] : memref<1x512xf32, #tpu.memory_space<vmem>>, vector<1x512xf32>
    %c0_13 = arith.constant 0 : index
    %c0_14 = arith.constant 0 : index
    %7 = vector.load %arg9[%c0_13, %c0_14] : memref<1x768xf32, #tpu.memory_space<vmem>>, vector<1x768xf32>
    %c0_15 = arith.constant 0 : index
    %c0_16 = arith.constant 0 : index
    %8 = vector.load %arg1[%c0_15, %c0_16] : memref<128x768xf32, #tpu.memory_space<vmem>>, vector<128x768xf32>
    %cst = arith.constant dense<0.000000e+00> : vector<128x512xf32>
    %9 = tpu.matmul %8, %0, %cst {dimension_numbers = #tpu.dot_dimension_numbers<[1], [0], [0], [1], [0, 0, 1, 1], [], []>} : vector<128x768xf32>, vector<768x512xf32>, vector<128x512xf32> -> vector<128x512xf32>
    %10 = vector.broadcast %4 : vector<1x512xf32> to vector<128x512xf32>
    %11 = arith.addf %9, %10 : vector<128x512xf32>
    %cst_17 = arith.constant 0.000000e+00 : f32
    %12 = vector.broadcast %cst_17 : f32 to vector<128x512xf32>
    %13 = arith.maximumf %11, %12 : vector<128x512xf32>
    %cst_18 = arith.constant dense<0.000000e+00> : vector<128x256xf32>
    %14 = tpu.matmul %13, %1, %cst_18 {dimension_numbers = #tpu.dot_dimension_numbers<[1], [0], [0], [1], [0, 0, 1, 1], [], []>} : vector<128x512xf32>, vector<512x256xf32>, vector<128x256xf32> -> vector<128x256xf32>
    %15 = vector.broadcast %5 : vector<1x256xf32> to vector<128x256xf32>
    %16 = arith.addf %14, %15 : vector<128x256xf32>
    %c0_19 = arith.constant 0 : index
    %c0_20 = arith.constant 0 : index
    %17 = vector.load %arg10[%c0_19, %c0_20] : memref<128x256xf32, #tpu.memory_space<vmem>>, vector<128x256xf32>
    tpu.vector_store %arg10[%c0_19, %c0_20], %16 {strides = array<i32>} : memref<128x256xf32, #tpu.memory_space<vmem>>, vector<128x256xf32>,
    %cst_21 = arith.constant dense<0.000000e+00> : vector<128x512xf32>
    %18 = tpu.matmul %16, %2, %cst_21 {dimension_numbers = #tpu.dot_dimension_numbers<[1], [0], [0], [1], [0, 0, 1, 1], [], []>} : vector<128x256xf32>, vector<256x512xf32>, vector<128x512xf32> -> vector<128x512xf32>
    %19 = vector.broadcast %6 : vector<1x512xf32> to vector<128x512xf32>
    %20 = arith.addf %18, %19 : vector<128x512xf32>
    %cst_22 = arith.constant 0.000000e+00 : f32
    %21 = vector.broadcast %cst_22 : f32 to vector<128x512xf32>
    %22 = arith.maximumf %20, %21 : vector<128x512xf32>
    %cst_23 = arith.constant dense<0.000000e+00> : vector<128x768xf32>
    %23 = tpu.matmul %22, %3, %cst_23 {dimension_numbers = #tpu.dot_dimension_numbers<[1], [0], [0], [1], [0, 0, 1, 1], [], []>} : vector<128x512xf32>, vector<512x768xf32>, vector<128x768xf32> -> vector<128x768xf32>
    %24 = vector.broadcast %7 : vector<1x768xf32> to vector<128x768xf32>
    %25 = arith.addf %23, %24 : vector<128x768xf32>
    %c0_24 = arith.constant 0 : index
    %c0_25 = arith.constant 0 : index
    %26 = vector.load %arg11[%c0_24, %c0_25] : memref<128x768xf32, #tpu.memory_space<vmem>>, vector<128x768xf32>
    tpu.vector_store %arg11[%c0_24, %c0_25], %25 {strides = array<i32>} : memref<128x768xf32, #tpu.memory_space<vmem>>, vector<128x768xf32>,
    return
  }
  func.func @transform_0(%arg0: i32) -> (i32, i32) {
    %c0_i32 = arith.constant 0 : i32
    %c0_i32_0 = arith.constant 0 : i32
    return %arg0, %c0_i32 : i32, i32
  }
  func.func @transform_1(%arg0: i32) -> (i32, i32) {
    %c0_i32 = arith.constant 0 : i32
    %c0_i32_0 = arith.constant 0 : i32
    %c0_i32_1 = arith.constant 0 : i32
    return %c0_i32, %c0_i32_0 : i32, i32
  }
  func.func @transform_2(%arg0: i32) -> (i32, i32) {
    %c0_i32 = arith.constant 0 : i32
    %c0_i32_0 = arith.constant 0 : i32
    %c0_i32_1 = arith.constant 0 : i32
    return %c0_i32, %c0_i32_0 : i32, i32
  }
  func.func @transform_3(%arg0: i32) -> (i32, i32) {
    %c0_i32 = arith.constant 0 : i32
    %c0_i32_0 = arith.constant 0 : i32
    %c0_i32_1 = arith.constant 0 : i32
    return %c0_i32, %c0_i32_0 : i32, i32
  }
  func.func @transform_4(%arg0: i32) -> (i32, i32) {
    %c0_i32 = arith.constant 0 : i32
    %c0_i32_0 = arith.constant 0 : i32
    %c0_i32_1 = arith.constant 0 : i32
    return %c0_i32, %c0_i32_0 : i32, i32
  }
  func.func @transform_5(%arg0: i32) -> (i32, i32) {
    %c0_i32 = arith.constant 0 : i32
    %c0_i32_0 = arith.constant 0 : i32
    %c0_i32_1 = arith.constant 0 : i32
    return %c0_i32, %c0_i32_0 : i32, i32
  }
  func.func @transform_6(%arg0: i32) -> (i32, i32) {
    %c0_i32 = arith.constant 0 : i32
    %c0_i32_0 = arith.constant 0 : i32
    %c0_i32_1 = arith.constant 0 : i32
    return %c0_i32, %c0_i32_0 : i32, i32
  }
  func.func @transform_7(%arg0: i32) -> (i32, i32) {
    %c0_i32 = arith.constant 0 : i32
    %c0_i32_0 = arith.constant 0 : i32
    %c0_i32_1 = arith.constant 0 : i32
    return %c0_i32, %c0_i32_0 : i32, i32
  }
  func.func @transform_8(%arg0: i32) -> (i32, i32) {
    %c0_i32 = arith.constant 0 : i32
    %c0_i32_0 = arith.constant 0 : i32
    %c0_i32_1 = arith.constant 0 : i32
    return %c0_i32, %c0_i32_0 : i32, i32
  }
  func.func @transform_9(%arg0: i32) -> (i32, i32) {
    %c0_i32 = arith.constant 0 : i32
    %c0_i32_0 = arith.constant 0 : i32
    return %arg0, %c0_i32 : i32, i32
  }
  func.func @transform_10(%arg0: i32) -> (i32, i32) {
    %c0_i32 = arith.constant 0 : i32
    %c0_i32_0 = arith.constant 0 : i32
    return %arg0, %c0_i32 : i32, i32
  }
}

</mosaic_0001>

<llo_original>
// kernel: contrastive_autoencoder_forward.1
$region0: #{contrastive_autoencoder_forward.1}
  #allocation0 [shape = 'u32[]', space=smem, size = 0x4, offset = 0x4, fixed_abs, tag = 'smem constant byte address 0x4 - core index']
  #allocation1 [shape = 'u32[72,128]{1,0:T(1,128)}', space=vmem, size = 0x9000, scoped, tag = 'internal scratch']
  %s0 = inlined_call_operand.hbm [shape: f32[200,768], index: 0, kind: input, shape index: {}]
  %s1 = inlined_call_operand.hbm [shape: f32[768,512], index: 1, kind: input, shape index: {}]
  %s2 = inlined_call_operand.hbm [shape: f32[1,512], index: 2, kind: input, shape index: {}]
  %s3 = inlined_call_operand.hbm [shape: f32[512,256], index: 3, kind: input, shape index: {}]
  %s4 = inlined_call_operand.hbm [shape: f32[1,256], index: 4, kind: input, shape index: {}]
  %s5 = inlined_call_operand.hbm [shape: f32[256,512], index: 5, kind: input, shape index: {}]
  %s6 = inlined_call_operand.hbm [shape: f32[1,512], index: 6, kind: input, shape index: {}]
  %s7 = inlined_call_operand.hbm [shape: f32[512,768], index: 7, kind: input, shape index: {}]
  %s8 = inlined_call_operand.hbm [shape: f32[1,768], index: 8, kind: input, shape index: {}]
  %s9 = inlined_call_operand.hbm [shape: f32[200,256], index: 9, kind: output, shape index: {0}]
  %s10 = inlined_call_operand.hbm [shape: f32[200,768], index: 10, kind: output, shape index: {1}]
  %11 = xla_tuple %s9, %s10
  %s12 = sld [smem:[#allocation0]]
  $region113: #{contrastive_autoencoder_forward.1} parent=0
    _
  %s14 = ssub.s32 1, %s12
  %s15 = scalar_select 0, %s14, %s12
  $region1: #{contrastive_autoencoder_forward.1} parent=0
    #allocation2 [shape = 'u8[786432]{0}', space=vmem, size = 0xc0000, scoped, tag = 'input window, operand 0']
    #allocation3 [shape = 's32[2]{0}', space=sflag, size = 0x8, scoped, tag = 'scoped memory for contrastive_autoencoder_forward.1']
    #allocation4 [shape = 's32[2]{0}', space=sflag, size = 0x8, scoped, tag = 'scoped memory for contrastive_autoencoder_forward.1']
    #allocation5 [shape = 'u8[1572864]{0}', space=vmem, size = 0x180000, scoped, tag = 'input window, operand 1, single buffered']
    #allocation6 [shape = 's32[1]{0}', space=sflag, size = 0x4, scoped, tag = 'scoped memory for contrastive_autoencoder_forward.1']
    #allocation7 [shape = 'u8[2048]{0}', space=vmem, size = 0x800, scoped, tag = 'input window, operand 2, single buffered']
    #allocation8 [shape = 'u8[524288]{0}', space=vmem, size = 0x80000, scoped, tag = 'input window, operand 3, single buffered']
    #allocation9 [shape = 's32[1]{0}', space=sflag, size = 0x4, scoped, tag = 'scoped memory for contrastive_autoencoder_forward.1']
    #allocation10 [shape = 'u8[1024]{0}', space=vmem, size = 0x400, scoped, tag = 'input window, operand 4, single buffered']
    #allocation11 [shape = 'u8[524288]{0}', space=vmem, size = 0x80000, scoped, tag = 'input window, operand 5, single buffered']
    #allocation12 [shape = 's32[1]{0}', space=sflag, size = 0x4, scoped, tag = 'scoped memory for contrastive_autoencoder_forward.1']
    #allocation13 [shape = 'u8[2048]{0}', space=vmem, size = 0x800, scoped, tag = 'input window, operand 6, single buffered']
    #allocation14 [shape = 'u8[1572864]{0}', space=vmem, size = 0x180000, scoped, tag = 'input window, operand 7, single buffered']
    #allocation15 [shape = 's32[1]{0}', space=sflag, size = 0x4, scoped, tag = 'scoped memory for contrastive_autoencoder_forward.1']
    #allocation16 [shape = 'u8[3072]{0}', space=vmem, size = 0xc00, scoped, tag = 'input window, operand 8, single buffered']
    #allocation17 [shape = 'u8[262144]{0}', space=vmem, size = 0x40000, scoped, tag = 'output window, operand 0']
    #allocation18 [shape = 'u8[786432]{0}', space=vmem, size = 0xc0000, scoped, tag = 'output window, operand 1']
    #allocation19 [shape = 's32[2]{0}', space=sflag, size = 0x8, scoped, tag = 'scoped memory for contrastive_autoencoder_forward.1']
    %16 = vsyncpa [#allocation3], 0
    %s17 = scalar_lea.sflag [#allocation3], 1
    %18 = vsyncpa %s17, 0
    %19 = vsyncpa [#allocation6], 0
    %20 = vsyncpa [#allocation9], 0
    %21 = vsyncpa [#allocation12], 0
    %22 = vsyncpa [#allocation15], 0
    %23 = vsyncpa [#allocation4], 0
    %s24 = scalar_lea.sflag [#allocation4], 1
    %25 = vsyncpa %s24, 0
    %26 = vsyncpa [#allocation19], 0
    %s27 = scalar_lea.sflag [#allocation19], 1
    %28 = vsyncpa %s27, 0
    loop: start=0, step=1, limit=4
    $region2: #{contrastive_autoencoder_forward.1} parent=1 // loop_pre_header
      _
    $region3: #{contrastive_autoencoder_forward.1} parent=1 // loop_header
      %s30 = sphi 0, %s34
      %p31 = scmp.ge.s32.totalorder %s30, 4
      %s40 = sphi 0, %s42
      %s43 = sphi 0, %s40
      %s44 = sphi 0, %s43
      %s60 = sphi 0, %s44
      %s64 = sphi 0, %s64
      %s66 = sphi 0, %s64
      %s67 = sphi 0, %s66
      %s81 = sphi 0, %s67
      %s85 = sphi 0, %s85
      %s87 = sphi 0, %s85
      %s88 = sphi 0, %s87
      %s102 = sphi 0, %s88
      %s106 = sphi 0, %s106
      %s108 = sphi 0, %s106
      %s109 = sphi 0, %s108
      %s123 = sphi 0, %s109
      %s127 = sphi 0, %s127
      %s129 = sphi 0, %s127
      %s130 = sphi 0, %s129
      %s144 = sphi 0, %s130
      %s148 = sphi 0, %s148
      %s150 = sphi 0, %s148
      %s151 = sphi 0, %s150
      %s165 = sphi 0, %s151
      %s169 = sphi 0, %s169
      %s171 = sphi 0, %s169
      %s172 = sphi 0, %s171
      %s186 = sphi 0, %s172
      %s190 = sphi 0, %s190
      %s192 = sphi 0, %s190
      %s193 = sphi 0, %s192
      %s207 = sphi 0, %s193
      %s211 = sphi 0, %s211
      %s213 = sphi 0, %s211
      %s214 = sphi 0, %s213
      %s228 = sphi 0, %s214
      %s234 = sphi 0, %s236
      %s237 = sphi 0, %s234
      %s238 = sphi 0, %s237
      %s254 = sphi 0, %s238
      %s260 = sphi 0, %s262
      %s263 = sphi 0, %s260
      %s264 = sphi 0, %s263
      %s280 = sphi 0, %s264
    $region4: #{contrastive_autoencoder_forward.1} parent=1 // loop_header_branch
      %33 = sbr.rel (%p31) target = $region8
    $region5: #{contrastive_autoencoder_forward.1} parent=1 // loop_body
      %s35 = ssub.s32 %s30, 1
      %s36 = ssub.s32 %s30, 2
      %s37 = sadd.s32 %s30, 1
      %s38 = ssub.s32 %s30, %s37
      %p39 = scmp.eq.s32.totalorder %s38, 0
      %s41 = sadd.s32 %s40, 1
      %s42 = scalar_select %p39, %s40, %s41
      %p45 = pneg %p39
      %p46 = scmp.eq.s32.totalorder %s30, 1
      %p47 = por %p45, %p46
      %p48 = scmp.ne.s32.totalorder %s40, %s43
      %p49 = scmp.eq.s32.totalorder %s30, 0
      %p50 = por %p48, %p49
      %p51 = scmp.ne.s32.totalorder %s40, %s43
      %p52 = scmp.eq.s32.totalorder %s35, 1
      %p53 = por %p51, %p52
      %p54 = scmp.ne.s32.totalorder %s43, %s44
      %p55 = scmp.eq.s32.totalorder %s35, 0
      %p56 = por %p54, %p55
      %p57 = scmp.ne.s32.totalorder %s43, %s44
      %p58 = scmp.eq.s32.totalorder %s36, 1
      %p59 = por %p57, %p58
      %p61 = scmp.ne.s32.totalorder %s44, %s60
      %p62 = scmp.eq.s32.totalorder %s36, 0
      %p63 = por %p61, %p62
      %s65 = sadd.s32 %s64, 1
      %p68 = scmp.eq.s32.totalorder %s30, 1
      %p69 = scmp.ne.s32.totalorder %s64, %s66
      %p70 = scmp.eq.s32.totalorder %s30, 0
      %p71 = por %p69, %p70
      %p72 = scmp.ne.s32.totalorder %s64, %s66
      %p73 = scmp.eq.s32.totalorder %s35, 1
      %p74 = por %p72, %p73
      %p75 = scmp.ne.s32.totalorder %s66, %s67
      %p76 = scmp.eq.s32.totalorder %s35, 0
      %p77 = por %p75, %p76
      %p78 = scmp.ne.s32.totalorder %s66, %s67
      %p79 = scmp.eq.s32.totalorder %s36, 1
      %p80 = por %p78, %p79
      %p82 = scmp.ne.s32.totalorder %s67, %s81
      %p83 = scmp.eq.s32.totalorder %s36, 0
      %p84 = por %p82, %p83
      %s86 = sadd.s32 %s85, 1
      %p89 = scmp.eq.s32.totalorder %s30, 1
      %p90 = scmp.ne.s32.totalorder %s85, %s87
      %p91 = scmp.eq.s32.totalorder %s30, 0
      %p92 = por %p90, %p91
      %p93 = scmp.ne.s32.totalorder %s85, %s87
      %p94 = scmp.eq.s32.totalorder %s35, 1
      %p95 = por %p93, %p94
      %p96 = scmp.ne.s32.totalorder %s87, %s88
      %p97 = scmp.eq.s32.totalorder %s35, 0
      %p98 = por %p96, %p97
      %p99 = scmp.ne.s32.totalorder %s87, %s88
      %p100 = scmp.eq.s32.totalorder %s36, 1
      %p101 = por %p99, %p100
      %p103 = scmp.ne.s32.totalorder %s88, %s102
      %p104 = scmp.eq.s32.totalorder %s36, 0
      %p105 = por %p103, %p104
      %s107 = sadd.s32 %s106, 1
      %p110 = scmp.eq.s32.totalorder %s30, 1
      %p111 = scmp.ne.s32.totalorder %s106, %s108
      %p112 = scmp.eq.s32.totalorder %s30, 0
      %p113 = por %p111, %p112
      %p114 = scmp.ne.s32.totalorder %s106, %s108
      %p115 = scmp.eq.s32.totalorder %s35, 1
      %p116 = por %p114, %p115
      %p117 = scmp.ne.s32.totalorder %s108, %s109
      %p118 = scmp.eq.s32.totalorder %s35, 0
      %p119 = por %p117, %p118
      %p120 = scmp.ne.s32.totalorder %s108, %s109
      %p121 = scmp.eq.s32.totalorder %s36, 1
      %p122 = por %p120, %p121
      %p124 = scmp.ne.s32.totalorder %s109, %s123
      %p125 = scmp.eq.s32.totalorder %s36, 0
      %p126 = por %p124, %p125
      %s128 = sadd.s32 %s127, 1
      %p131 = scmp.eq.s32.totalorder %s30, 1
      %p132 = scmp.ne.s32.totalorder %s127, %s129
      %p133 = scmp.eq.s32.totalorder %s30, 0
      %p134 = por %p132, %p133
      %p135 = scmp.ne.s32.totalorder %s127, %s129
      %p136 = scmp.eq.s32.totalorder %s35, 1
      %p137 = por %p135, %p136
      %p138 = scmp.ne.s32.totalorder %s129, %s130
      %p139 = scmp.eq.s32.totalorder %s35, 0
      %p140 = por %p138, %p139
      %p141 = scmp.ne.s32.totalorder %s129, %s130
      %p142 = scmp.eq.s32.totalorder %s36, 1
      %p143 = por %p141, %p142
      %p145 = scmp.ne.s32.totalorder %s130, %s144
      %p146 = scmp.eq.s32.totalorder %s36, 0
      %p147 = por %p145, %p146
      %s149 = sadd.s32 %s148, 1
      %p152 = scmp.eq.s32.totalorder %s30, 1
      %p153 = scmp.ne.s32.totalorder %s148, %s150
      %p154 = scmp.eq.s32.totalorder %s30, 0
      %p155 = por %p153, %p154
      %p156 = scmp.ne.s32.totalorder %s148, %s150
      %p157 = scmp.eq.s32.totalorder %s35, 1
      %p158 = por %p156, %p157
      %p159 = scmp.ne.s32.totalorder %s150, %s151
      %p160 = scmp.eq.s32.totalorder %s35, 0
      %p161 = por %p159, %p160
      %p162 = scmp.ne.s32.totalorder %s150, %s151
      %p163 = scmp.eq.s32.totalorder %s36, 1
      %p164 = por %p162, %p163
      %p166 = scmp.ne.s32.totalorder %s151, %s165
      %p167 = scmp.eq.s32.totalorder %s36, 0
      %p168 = por %p166, %p167
      %s170 = sadd.s32 %s169, 1
      %p173 = scmp.eq.s32.totalorder %s30, 1
      %p174 = scmp.ne.s32.totalorder %s169, %s171
      %p175 = scmp.eq.s32.totalorder %s30, 0
      %p176 = por %p174, %p175
      %p177 = scmp.ne.s32.totalorder %s169, %s171
      %p178 = scmp.eq.s32.totalorder %s35, 1
      %p179 = por %p177, %p178
      %p180 = scmp.ne.s32.totalorder %s171, %s172
      %p181 = scmp.eq.s32.totalorder %s35, 0
      %p182 = por %p180, %p181
      %p183 = scmp.ne.s32.totalorder %s171, %s172
      %p184 = scmp.eq.s32.totalorder %s36, 1
      %p185 = por %p183, %p184
      %p187 = scmp.ne.s32.totalorder %s172, %s186
      %p188 = scmp.eq.s32.totalorder %s36, 0
      %p189 = por %p187, %p188
      %s191 = sadd.s32 %s190, 1
      %p194 = scmp.eq.s32.totalorder %s30, 1
      %p195 = scmp.ne.s32.totalorder %s190, %s192
      %p196 = scmp.eq.s32.totalorder %s30, 0
      %p197 = por %p195, %p196
      %p198 = scmp.ne.s32.totalorder %s190, %s192
      %p199 = scmp.eq.s32.totalorder %s35, 1
      %p200 = por %p198, %p199
      %p201 = scmp.ne.s32.totalorder %s192, %s193
      %p202 = scmp.eq.s32.totalorder %s35, 0
      %p203 = por %p201, %p202
      %p204 = scmp.ne.s32.totalorder %s192, %s193
      %p205 = scmp.eq.s32.totalorder %s36, 1
      %p206 = por %p204, %p205
      %p208 = scmp.ne.s32.totalorder %s193, %s207
      %p209 = scmp.eq.s32.totalorder %s36, 0
      %p210 = por %p208, %p209
      %s212 = sadd.s32 %s211, 1
      %p215 = scmp.eq.s32.totalorder %s30, 1
      %p216 = scmp.ne.s32.totalorder %s211, %s213
      %p217 = scmp.eq.s32.totalorder %s30, 0
      %p218 = por %p216, %p217
      %p219 = scmp.ne.s32.totalorder %s211, %s213
      %p220 = scmp.eq.s32.totalorder %s35, 1
      %p221 = por %p219, %p220
      %p222 = scmp.ne.s32.totalorder %s213, %s214
      %p223 = scmp.eq.s32.totalorder %s35, 0
      %p224 = por %p222, %p223
      %p225 = scmp.ne.s32.totalorder %s213, %s214
      %p226 = scmp.eq.s32.totalorder %s36, 1
      %p227 = por %p225, %p226
      %p229 = scmp.ne.s32.totalorder %s214, %s228
      %p230 = scmp.eq.s32.totalorder %s36, 0
      %p231 = por %p229, %p230
      %s232 = ssub.s32 %s30, %s37
      %p233 = scmp.eq.s32.totalorder %s232, 0
      %s235 = sadd.s32 %s234, 1
      %s236 = scalar_select %p233, %s234, %s235
      %p239 = pneg %p233
      %p240 = scmp.eq.s32.totalorder %s30, 1
      %p241 = por %p239, %p240
      %p242 = scmp.ne.s32.totalorder %s234, %s237
      %p243 = scmp.eq.s32.totalorder %s30, 0
      %p244 = por %p242, %p243
      %p245 = scmp.ne.s32.totalorder %s234, %s237
      %p246 = scmp.eq.s32.totalorder %s35, 1
      %p247 = por %p245, %p246
      %p248 = scmp.ne.s32.totalorder %s237, %s238
      %p249 = scmp.eq.s32.totalorder %s35, 0
      %p250 = por %p248, %p249
      %p251 = scmp.ne.s32.totalorder %s237, %s238
      %p252 = scmp.eq.s32.totalorder %s36, 1
      %p253 = por %p251, %p252
      %p255 = scmp.ne.s32.totalorder %s238, %s254
      %p256 = scmp.eq.s32.totalorder %s36, 0
      %p257 = por %p255, %p256
      %s258 = ssub.s32 %s30, %s37
      %p259 = scmp.eq.s32.totalorder %s258, 0
      %s261 = sadd.s32 %s260, 1
      %s262 = scalar_select %p259, %s260, %s261
      %p265 = pneg %p259
      %p266 = scmp.eq.s32.totalorder %s30, 1
      %p267 = por %p265, %p266
      %p268 = scmp.ne.s32.totalorder %s260, %s263
      %p269 = scmp.eq.s32.totalorder %s30, 0
      %p270 = por %p268, %p269
      %p271 = scmp.ne.s32.totalorder %s260, %s263
      %p272 = scmp.eq.s32.totalorder %s35, 1
      %p273 = por %p271, %p272
      %p274 = scmp.ne.s32.totalorder %s263, %s264
      %p275 = scmp.eq.s32.totalorder %s35, 0
      %p276 = por %p274, %p275
      %p277 = scmp.ne.s32.totalorder %s263, %s264
      %p278 = scmp.eq.s32.totalorder %s36, 1
      %p279 = por %p277, %p278
      %p281 = scmp.ne.s32.totalorder %s264, %s280
      %p282 = scmp.eq.s32.totalorder %s36, 0
      %p283 = por %p281, %p282
      %p284 = scmp.le.s32.totalorder 1, %s30
      %p285 = scmp.lt.s32.totalorder %s30, 3
      %p286 = pnand %p284, %p285
      %p287 = pneg %p286
      // Predicated region
      $region9: #{contrastive_autoencoder_forward.1} parent=5 // pred_check
        _
      $region10: #{contrastive_autoencoder_forward.1} parent=5 // pred_check_branch
        %289 = sbr.rel (%p286) target = $region12
      $region11: #{contrastive_autoencoder_forward.1} parent=5 // pred_region
        %s290 = ssub.s32 %s30, 1
        // Predicated region
        $region13: #{contrastive_autoencoder_forward.1} parent=11 // pred_check
          %p291 = pneg %p77
        $region14: #{contrastive_autoencoder_forward.1} parent=11 // pred_check_branch
          %293 = sbr.rel (%p291) target = $region16
        $region15: #{contrastive_autoencoder_forward.1} parent=11 // pred_region
          %295 = vsyncadd [#allocation6], 0
          %s296 = sshll.u32 %s1, 4
          %s297 = int_to_ptr.hbm [resolvable:$true] %s296
          %s298 = sshll.u32 [#allocation5], 4
          %s299 = int_to_ptr.vmem [resolvable:$true] %s298
          %304 = dma.hbm_to_vmem [thread:$0]  %s297, 49152, %s299, [#allocation6], 512, 512, 32
        $region16: #{contrastive_autoencoder_forward.1} parent=11 // pred_fallthru
          _
        // Predicated region
        $region17: #{contrastive_autoencoder_forward.1} parent=11 // pred_check
          %p305 = pneg %p98
        $region18: #{contrastive_autoencoder_forward.1} parent=11 // pred_check_branch
          %307 = sbr.rel (%p305) target = $region20
        $region19: #{contrastive_autoencoder_forward.1} parent=11 // pred_region
          %309 = vsyncadd [#allocation6], 0
          %s311 = sshll.u32 %s2, 4
          %s312 = int_to_ptr.hbm [resolvable:$true] %s311
          %s313 = sshll.u32 [#allocation7], 4
          %s314 = int_to_ptr.vmem [resolvable:$true] %s313
          %316 = dma.hbm_to_vmem [thread:$0]  %s312, 64, %s314, [#allocation6]
        $region20: #{contrastive_autoencoder_forward.1} parent=11 // pred_fallthru
          _
        // Predicated region
        $region21: #{contrastive_autoencoder_forward.1} parent=11 // pred_check
          %p317 = pneg %p119
        $region22: #{contrastive_autoencoder_forward.1} parent=11 // pred_check_branch
          %319 = sbr.rel (%p317) target = $region24
        $region23: #{contrastive_autoencoder_forward.1} parent=11 // pred_region
          %321 = vsyncadd [#allocation9], 0
          %s322 = sshll.u32 %s3, 4
          %s323 = int_to_ptr.hbm [resolvable:$true] %s322
          %s324 = sshll.u32 [#allocation8], 4
          %s325 = int_to_ptr.vmem [resolvable:$true] %s324
          %330 = dma.hbm_to_vmem [thread:$0]  %s323, 16384, %s325, [#allocation9], 256, 256, 16
        $region24: #{contrastive_autoencoder_forward.1} parent=11 // pred_fallthru
          _
        // Predicated region
        $region25: #{contrastive_autoencoder_forward.1} parent=11 // pred_check
          %p331 = pneg %p140
        $region26: #{contrastive_autoencoder_forward.1} parent=11 // pred_check_branch
          %333 = sbr.rel (%p331) target = $region28
        $region27: #{contrastive_autoencoder_forward.1} parent=11 // pred_region
          %335 = vsyncadd [#allocation9], 0
          %s337 = sshll.u32 %s4, 4
          %s338 = int_to_ptr.hbm [resolvable:$true] %s337
          %s339 = sshll.u32 [#allocation10], 4
          %s340 = int_to_ptr.vmem [resolvable:$true] %s339
          %342 = dma.hbm_to_vmem [thread:$0]  %s338, 32, %s340, [#allocation9]
        $region28: #{contrastive_autoencoder_forward.1} parent=11 // pred_fallthru
          _
        // Predicated region
        $region29: #{contrastive_autoencoder_forward.1} parent=11 // pred_check
          %p343 = pneg %p161
        $region30: #{contrastive_autoencoder_forward.1} parent=11 // pred_check_branch
          %345 = sbr.rel (%p343) target = $region32
        $region31: #{contrastive_autoencoder_forward.1} parent=11 // pred_region
          %347 = vsyncadd [#allocation12], 0
          %s348 = sshll.u32 %s5, 4
          %s349 = int_to_ptr.hbm [resolvable:$true] %s348
          %s350 = sshll.u32 [#allocation11], 4
          %s351 = int_to_ptr.vmem [resolvable:$true] %s350
          %356 = dma.hbm_to_vmem [thread:$0]  %s349, 16384, %s351, [#allocation12], 512, 512, 32
        $region32: #{contrastive_autoencoder_forward.1} parent=11 // pred_fallthru
          _
        // Predicated region
        $region33: #{contrastive_autoencoder_forward.1} parent=11 // pred_check
          %p357 = pneg %p182
        $region34: #{contrastive_autoencoder_forward.1} parent=11 // pred_check_branch
          %359 = sbr.rel (%p357) target = $region36
        $region35: #{contrastive_autoencoder_forward.1} parent=11 // pred_region
          %361 = vsyncadd [#allocation12], 0
          %s363 = sshll.u32 %s6, 4
          %s364 = int_to_ptr.hbm [resolvable:$true] %s363
          %s365 = sshll.u32 [#allocation13], 4
          %s366 = int_to_ptr.vmem [resolvable:$true] %s365
          %368 = dma.hbm_to_vmem [thread:$0]  %s364, 64, %s366, [#allocation12]
        $region36: #{contrastive_autoencoder_forward.1} parent=11 // pred_fallthru
          _
        // Predicated region
        $region37: #{contrastive_autoencoder_forward.1} parent=11 // pred_check
          %p369 = pneg %p203
        $region38: #{contrastive_autoencoder_forward.1} parent=11 // pred_check_branch
          %371 = sbr.rel (%p369) target = $region40
        $region39: #{contrastive_autoencoder_forward.1} parent=11 // pred_region
          %373 = vsyncadd [#allocation15], 0
          %s374 = sshll.u32 %s7, 4
          %s375 = int_to_ptr.hbm [resolvable:$true] %s374
          %s376 = sshll.u32 [#allocation14], 4
          %s377 = int_to_ptr.vmem [resolvable:$true] %s376
          %382 = dma.hbm_to_vmem [thread:$0]  %s375, 49152, %s377, [#allocation15], 768, 768, 48
        $region40: #{contrastive_autoencoder_forward.1} parent=11 // pred_fallthru
          _
        // Predicated region
        $region41: #{contrastive_autoencoder_forward.1} parent=11 // pred_check
          %p383 = pneg %p224
        $region42: #{contrastive_autoencoder_forward.1} parent=11 // pred_check_branch
          %385 = sbr.rel (%p383) target = $region44
        $region43: #{contrastive_autoencoder_forward.1} parent=11 // pred_region
          %387 = vsyncadd [#allocation15], 0
          %s389 = sshll.u32 %s8, 4
          %s390 = int_to_ptr.hbm [resolvable:$true] %s389
          %s391 = sshll.u32 [#allocation16], 4
          %s392 = int_to_ptr.vmem [resolvable:$true] %s391
          %394 = dma.hbm_to_vmem [thread:$0]  %s390, 96, %s392, [#allocation15]
        $region44: #{contrastive_autoencoder_forward.1} parent=11 // pred_fallthru
          _
      $region12: #{contrastive_autoencoder_forward.1} parent=5 // pred_fallthru
        _
      %p395 = scmp.lt.s32.totalorder %s30, 2
      // Predicated region
      $region45: #{contrastive_autoencoder_forward.1} parent=5 // pred_check
        %p396 = pneg %p395
      $region46: #{contrastive_autoencoder_forward.1} parent=5 // pred_check_branch
        %398 = sbr.rel (%p396) target = $region48
      $region47: #{contrastive_autoencoder_forward.1} parent=5 // pred_region
        // Predicated region
        $region49: #{contrastive_autoencoder_forward.1} parent=47 // pred_check
          %p399 = pneg %p50
        $region50: #{contrastive_autoencoder_forward.1} parent=47 // pred_check_branch
          %401 = sbr.rel (%p399) target = $region52
        $region51: #{contrastive_autoencoder_forward.1} parent=47 // pred_region
          %s402 = sand.u32 %s40, 1
          %s403 = scalar_lea.sflag [#allocation3], %s402
          %s404 = sand.u32 %s40, 1
          %s405 = smul.addr %s404, 768
          %s406 = scalar_lea.vmem [#allocation2], %s405
          %s407 = smul.u32 16, %s30
          %s408 = ssub.s32 25, %s407
          %p409 = scmp.lt.s32.totalorder %s408, 16
          %s410 = scalar_select %p409, %s408, 16
          %s411 = smul.u32 8, %s410
          %s412 = smul.u32 %s411, 6
          %s413 = ssub.s32 768, %s412
          %s414 = sshll.u32 %s413, 4
          %415 = vsyncadd %s403, %s414
          %p416 = scmp.ne.s32.totalorder 0, %s412
          %s417 = smul.addr %s407, 6
          %s418 = smul.addr %s417, 8
          %s419 = scalar_lea.hbm %s0, %s418
          %s420 = smul.u32 48, %s410
          %s421 = sshll.u32 %s419, 4
          %s422 = int_to_ptr.hbm [resolvable:$true] %s421
          %s423 = sshll.u32 %s406, 4
          %s424 = int_to_ptr.vmem [resolvable:$true] %s423
          %s425 = sshll.u32 %s420, 4
          %429 = dma.hbm_to_vmem [thread:$0]  (%p416), %s422, %s425, %s424, %s403, 768, 768, 48
        $region52: #{contrastive_autoencoder_forward.1} parent=47 // pred_fallthru
          _
      $region48: #{contrastive_autoencoder_forward.1} parent=5 // pred_fallthru
        _
      %p430 = scmp.le.s32.totalorder 1, %s30
      %p431 = scmp.lt.s32.totalorder %s30, 3
      %p432 = pnand %p430, %p431
      %p433 = pneg %p432
      // Predicated region
      $region53: #{contrastive_autoencoder_forward.1} parent=5 // pred_check
        _
      $region54: #{contrastive_autoencoder_forward.1} parent=5 // pred_check_branch
        %435 = sbr.rel (%p432) target = $region56
      $region55: #{contrastive_autoencoder_forward.1} parent=5 // pred_region
        %s436 = ssub.s32 %s30, 1
        %s437 = sand.u32 %s43, 1
        %s438 = scalar_lea.sflag [#allocation3], %s437
        %s439 = sand.u32 %s43, 1
        %s440 = smul.addr %s439, 768
        %s441 = scalar_lea.vmem [#allocation2], %s440
        // Predicated region
        $region57: #{contrastive_autoencoder_forward.1} parent=55 // pred_check
          %p442 = pneg %p56
        $region58: #{contrastive_autoencoder_forward.1} parent=55 // pred_check_branch
          %444 = sbr.rel (%p442) target = $region60
        $region59: #{contrastive_autoencoder_forward.1} parent=55 // pred_region
          %446 = dma.done %s438, 12288
        $region60: #{contrastive_autoencoder_forward.1} parent=55 // pred_fallthru
          _
        // Predicated region
        $region61: #{contrastive_autoencoder_forward.1} parent=55 // pred_check
          %p447 = pneg %p77
        $region62: #{contrastive_autoencoder_forward.1} parent=55 // pred_check_branch
          %449 = sbr.rel (%p447) target = $region64
        $region63: #{contrastive_autoencoder_forward.1} parent=55 // pred_region
          %451 = dma.done [#allocation6], 49152
        $region64: #{contrastive_autoencoder_forward.1} parent=55 // pred_fallthru
          _
        // Predicated region
        $region65: #{contrastive_autoencoder_forward.1} parent=55 // pred_check
          %p452 = pneg %p98
        $region66: #{contrastive_autoencoder_forward.1} parent=55 // pred_check_branch
          %454 = sbr.rel (%p452) target = $region68
        $region67: #{contrastive_autoencoder_forward.1} parent=55 // pred_region
          %456 = dma.done [#allocation6], 64
        $region68: #{contrastive_autoencoder_forward.1} parent=55 // pred_fallthru
          _
        // Predicated region
        $region69: #{contrastive_autoencoder_forward.1} parent=55 // pred_check
          %p457 = pneg %p119
        $region70: #{contrastive_autoencoder_forward.1} parent=55 // pred_check_branch
          %459 = sbr.rel (%p457) target = $region72
        $region71: #{contrastive_autoencoder_forward.1} parent=55 // pred_region
          %461 = dma.done [#allocation9], 16384
        $region72: #{contrastive_autoencoder_forward.1} parent=55 // pred_fallthru
          _
        // Predicated region
        $region73: #{contrastive_autoencoder_forward.1} parent=55 // pred_check
          %p462 = pneg %p140
        $region74: #{contrastive_autoencoder_forward.1} parent=55 // pred_check_branch
          %464 = sbr.rel (%p462) target = $region76
        $region75: #{contrastive_autoencoder_forward.1} parent=55 // pred_region
          %466 = dma.done [#allocation9], 32
        $region76: #{contrastive_autoencoder_forward.1} parent=55 // pred_fallthru
          _
        // Predicated region
        $region77: #{contrastive_autoencoder_forward.1} parent=55 // pred_check
          %p467 = pneg %p161
        $region78: #{contrastive_autoencoder_forward.1} parent=55 // pred_check_branch
          %469 = sbr.rel (%p467) target = $region80
        $region79: #{contrastive_autoencoder_forward.1} parent=55 // pred_region
          %471 = dma.done [#allocation12], 16384
        $region80: #{contrastive_autoencoder_forward.1} parent=55 // pred_fallthru
          _
        // Predicated region
        $region81: #{contrastive_autoencoder_forward.1} parent=55 // pred_check
          %p472 = pneg %p182
        $region82: #{contrastive_autoencoder_forward.1} parent=55 // pred_check_branch
          %474 = sbr.rel (%p472) target = $region84
        $region83: #{contrastive_autoencoder_forward.1} parent=55 // pred_region
          %476 = dma.done [#allocation12], 64
        $region84: #{contrastive_autoencoder_forward.1} parent=55 // pred_fallthru
          _
        // Predicated region
        $region85: #{contrastive_autoencoder_forward.1} parent=55 // pred_check
          %p477 = pneg %p203
        $region86: #{contrastive_autoencoder_forward.1} parent=55 // pred_check_branch
          %479 = sbr.rel (%p477) target = $region88
        $region87: #{contrastive_autoencoder_forward.1} parent=55 // pred_region
          %481 = dma.done [#allocation15], 49152
        $region88: #{contrastive_autoencoder_forward.1} parent=55 // pred_fallthru
          _
        // Predicated region
        $region89: #{contrastive_autoencoder_forward.1} parent=55 // pred_check
          %p482 = pneg %p224
        $region90: #{contrastive_autoencoder_forward.1} parent=55 // pred_check_branch
          %484 = sbr.rel (%p482) target = $region92
        $region91: #{contrastive_autoencoder_forward.1} parent=55 // pred_region
          %486 = dma.done [#allocation15], 96
        $region92: #{contrastive_autoencoder_forward.1} parent=55 // pred_fallthru
          _
        %s487 = sand.u32 %s43, 1
        %s488 = scalar_lea.sflag [#allocation3], %s487
        %s489 = sand.u32 %s43, 1
        %s490 = smul.addr %s489, 768
        %s491 = scalar_lea.vmem [#allocation2], %s490
        %p492 = pneg %p56
        %p493 = pneg %p53
        %p494 = pneg %p77
        %p495 = pneg %p74
        %p496 = pneg %p98
        %p497 = pneg %p95
        %p498 = pneg %p119
        %p499 = pneg %p116
        %p500 = pneg %p140
        %p501 = pneg %p137
        %p502 = pneg %p161
        %p503 = pneg %p158
        %p504 = pneg %p182
        %p505 = pneg %p179
        %p506 = pneg %p203
        %p507 = pneg %p200
        %p508 = pneg %p224
        %p509 = pneg %p221
        %p510 = pneg %p250
        %p511 = pneg %p247
        %s512 = sand.u32 %s237, 1
        %s513 = scalar_lea.sflag [#allocation4], %s512
        %s514 = sand.u32 %s237, 1
        %s515 = smul.addr %s514, 256
        %s516 = scalar_lea.vmem [#allocation17], %s515
        %p517 = pneg %p276
        %p518 = pneg %p273
        %s519 = sand.u32 %s263, 1
        %s520 = scalar_lea.sflag [#allocation19], %s519
        %s521 = sand.u32 %s263, 1
        %s522 = smul.addr %s521, 768
        %s523 = scalar_lea.vmem [#allocation18], %s522
        %s524 = smul.u32 16, %s35
        %s525 = ssub.s32 25, %s524
        %p526 = scmp.lt.s32.totalorder %s525, 16
        %s527 = scalar_select %p526, %s525, 16
        %s528 = smul.u32 8, %s527
        %s529 = smul.u32 %s528, 6
        %s530 = smul.u32 16, %s35
        %s531 = ssub.s32 25, %s530
        %p532 = scmp.lt.s32.totalorder %s531, 16
        %s533 = scalar_select %p532, %s531, 16
        %s534 = smul.u32 8, %s533
        %s535 = smul.u32 %s534, 2
        %s536 = smul.u32 16, %s35
        %s537 = ssub.s32 25, %s536
        %p538 = scmp.lt.s32.totalorder %s537, 16
        %s539 = scalar_select %p538, %s537, 16
        %s540 = smul.u32 8, %s539
        %s541 = smul.u32 %s540, 6
        %v542 = vld [vmem:[#allocation5] sm:$0xff]
        %v543 = vld [vmem:[#allocation5 + $0x8] sm:$0xff]
        %v544 = vld [vmem:[#allocation5 + $0x10] sm:$0xff]
        %v545 = vld [vmem:[#allocation5 + $0x18] sm:$0xff]
        %v546 = vld [vmem:[#allocation5 + $0x20] sm:$0xff]
        %v547 = vld [vmem:[#allocation5 + $0x28] sm:$0xff]
        %v548 = vld [vmem:[#allocation5 + $0x30] sm:$0xff]
        %v549 = vld [vmem:[#allocation5 + $0x38] sm:$0xff]
        %v550 = vld [vmem:[#allocation5 + $0x40] sm:$0xff]
        %v551 = vld [vmem:[#allocation5 + $0x48] sm:$0xff]
        %v552 = vld [vmem:[#allocation5 + $0x50] sm:$0xff]
        %v553 = vld [vmem:[#allocation5 + $0x58] sm:$0xff]
        %v554 = vld [vmem:[#allocation5 + $0x60] sm:$0xff]
        %v555 = vld [vmem:[#allocation5 + $0x68] sm:$0xff]
        %v556 = vld [vmem:[#allocation5 + $0x70] sm:$0xff]
        %v557 = vld [vmem:[#allocation5 + $0x78] sm:$0xff]
        %v558 = vld [vmem:[#allocation5 + $0x80] sm:$0xff]
        %v559 = vld [vmem:[#allocation5 + $0x88] sm:$0xff]
        %v560 = vld [vmem:[#allocation5 + $0x90] sm:$0xff]
        %v561 = vld [vmem:[#allocation5 + $0x98] sm:$0xff]
        %v562 = vld [vmem:[#allocation5 + $0xa0] sm:$0xff]
        %v563 = vld [vmem:[#allocation5 + $0xa8] sm:$0xff]
        %v564 = vld [vmem:[#allocation5 + $0xb0] sm:$0xff]
        %v565 = vld [vmem:[#allocation5 + $0xb8] sm:$0xff]
        %v566 = vld [vmem:[#allocation5 + $0xc0] sm:$0xff]
        %v567 = vld [vmem:[#allocation5 + $0xc8] sm:$0xff]
        %v568 = vld [vmem:[#allocation5 + $0xd0] sm:$0xff]
        %v569 = vld [vmem:[#allocation5 + $0xd8] sm:$0xff]
        %v570 = vld [vmem:[#allocation5 + $0xe0] sm:$0xff]
        %v571 = vld [vmem:[#allocation5 + $0xe8] sm:$0xff]
        %v572 = vld [vmem:[#allocation5 + $0xf0] sm:$0xff]
        %v573 = vld [vmem:[#allocation5 + $0xf8] sm:$0xff]
        %v574 = vld [vmem:[#allocation5 + $0x100] sm:$0xff]
        %v575 = vld [vmem:[#allocation5 + $0x108] sm:$0xff]
        %v576 = vld [vmem:[#allocation5 + $0x110] sm:$0xff]
        %v577 = vld [vmem:[#allocation5 + $0x118] sm:$0xff]
        %v578 = vld [vmem:[#allocation5 + $0x120] sm:$0xff]
        %v579 = vld [vmem:[#allocation5 + $0x128] sm:$0xff]
        %v580 = vld [vmem:[#allocation5 + $0x130] sm:$0xff]
        %v581 = vld [vmem:[#allocation5 + $0x138] sm:$0xff]
        %v582 = vld [vmem:[#allocation5 + $0x140] sm:$0xff]
        %v583 = vld [vmem:[#allocation5 + $0x148] sm:$0xff]
        %v584 = vld [vmem:[#allocation5 + $0x150] sm:$0xff]
        %v585 = vld [vmem:[#allocation5 + $0x158] sm:$0xff]
        %v586 = vld [vmem:[#allocation5 + $0x160] sm:$0xff]
        %v587 = vld [vmem:[#allocation5 + $0x168] sm:$0xff]
        %v588 = vld [vmem:[#allocation5 + $0x170] sm:$0xff]
        %v589 = vld [vmem:[#allocation5 + $0x178] sm:$0xff]
        %v590 = vld [vmem:[#allocation5 + $0x180] sm:$0xff]
        %v591 = vld [vmem:[#allocation5 + $0x188] sm:$0xff]
        %v592 = vld [vmem:[#allocation5 + $0x190] sm:$0xff]
        %v593 = vld [vmem:[#allocation5 + $0x198] sm:$0xff]
        %v594 = vld [vmem:[#allocation5 + $0x1a0] sm:$0xff]
        %v595 = vld [vmem:[#allocation5 + $0x1a8] sm:$0xff]
        %v596 = vld [vmem:[#allocation5 + $0x1b0] sm:$0xff]
        %v597 = vld [vmem:[#allocation5 + $0x1b8] sm:$0xff]
        %v598 = vld [vmem:[#allocation5 + $0x1c0] sm:$0xff]
        %v599 = vld [vmem:[#allocation5 + $0x1c8] sm:$0xff]
        %v600 = vld [vmem:[#allocation5 + $0x1d0] sm:$0xff]
        %v601 = vld [vmem:[#allocation5 + $0x1d8] sm:$0xff]
        %v602 = vld [vmem:[#allocation5 + $0x1e0] sm:$0xff]
        %v603 = vld [vmem:[#allocation5 + $0x1e8] sm:$0xff]
        %v604 = vld [vmem:[#allocation5 + $0x1f0] sm:$0xff]
        %v605 = vld [vmem:[#allocation5 + $0x1f8] sm:$0xff]
        %v606 = vld [vmem:[#allocation5 + $0x200] sm:$0xff]
        %v607 = vld [vmem:[#allocation5 + $0x208] sm:$0xff]
        %v608 = vld [vmem:[#allocation5 + $0x210] sm:$0xff]
        %v609 = vld [vmem:[#allocation5 + $0x218] sm:$0xff]
        %v610 = vld [vmem:[#allocation5 + $0x220] sm:$0xff]
        %v611 = vld [vmem:[#allocation5 + $0x228] sm:$0xff]
        %v612 = vld [vmem:[#allocation5 + $0x230] sm:$0xff]
        %v613 = vld [vmem:[#allocation5 + $0x238] sm:$0xff]
        %v614 = vld [vmem:[#allocation5 + $0x240] sm:$0xff]
        %v615 = vld [vmem:[#allocation5 + $0x248] sm:$0xff]
        %v616 = vld [vmem:[#allocation5 + $0x250] sm:$0xff]
        %v617 = vld [vmem:[#allocation5 + $0x258] sm:$0xff]
        %v618 = vld [vmem:[#allocation5 + $0x260] sm:$0xff]
        %v619 = vld [vmem:[#allocation5 + $0x268] sm:$0xff]
        %v620 = vld [vmem:[#allocation5 + $0x270] sm:$0xff]
        %v621 = vld [vmem:[#allocation5 + $0x278] sm:$0xff]
        %v622 = vld [vmem:[#allocation5 + $0x280] sm:$0xff]
        %v623 = vld [vmem:[#allocation5 + $0x288] sm:$0xff]
        %v624 = vld [vmem:[#allocation5 + $0x290] sm:$0xff]
        %v625 = vld [vmem:[#allocation5 + $0x298] sm:$0xff]
        %v626 = vld [vmem:[#allocation5 + $0x2a0] sm:$0xff]
        %v627 = vld [vmem:[#allocation5 + $0x2a8] sm:$0xff]
        %v628 = vld [vmem:[#allocation5 + $0x2b0] sm:$0xff]
        %v629 = vld [vmem:[#allocation5 + $0x2b8] sm:$0xff]
        %v630 = vld [vmem:[#allocation5 + $0x2c0] sm:$0xff]
        %v631 = vld [vmem:[#allocation5 + $0x2c8] sm:$0xff]
        %v632 = vld [vmem:[#allocation5 + $0x2d0] sm:$0xff]
        %v633 = vld [vmem:[#allocation5 + $0x2d8] sm:$0xff]
        %v634 = vld [vmem:[#allocation5 + $0x2e0] sm:$0xff]
        %v635 = vld [vmem:[#allocation5 + $0x2e8] sm:$0xff]
        %v636 = vld [vmem:[#allocation5 + $0x2f0] sm:$0xff]
        %v637 = vld [vmem:[#allocation5 + $0x2f8] sm:$0xff]
        %v638 = vld [vmem:[#allocation5 + $0x300] sm:$0xff]
        %v639 = vld [vmem:[#allocation5 + $0x308] sm:$0xff]
        %v640 = vld [vmem:[#allocation5 + $0x310] sm:$0xff]
        %v641 = vld [vmem:[#allocation5 + $0x318] sm:$0xff]
        %v642 = vld [vmem:[#allocation5 + $0x320] sm:$0xff]
        %v643 = vld [vmem:[#allocation5 + $0x328] sm:$0xff]
        %v644 = vld [vmem:[#allocation5 + $0x330] sm:$0xff]
        %v645 = vld [vmem:[#allocation5 + $0x338] sm:$0xff]
        %v646 = vld [vmem:[#allocation5 + $0x340] sm:$0xff]
        %v647 = vld [vmem:[#allocation5 + $0x348] sm:$0xff]
        %v648 = vld [vmem:[#allocation5 + $0x350] sm:$0xff]
        %v649 = vld [vmem:[#allocation5 + $0x358] sm:$0xff]
        %v650 = vld [vmem:[#allocation5 + $0x360] sm:$0xff]
        %v651 = vld [vmem:[#allocation5 + $0x368] sm:$0xff]
        %v652 = vld [vmem:[#allocation5 + $0x370] sm:$0xff]
        %v653 = vld [vmem:[#allocation5 + $0x378] sm:$0xff]
        %v654 = vld [vmem:[#allocation5 + $0x380] sm:$0xff]
        %v655 = vld [vmem:[#allocation5 + $0x388] sm:$0xff]
        %v656 = vld [vmem:[#allocation5 + $0x390] sm:$0xff]
        %v657 = vld [vmem:[#allocation5 + $0x398] sm:$0xff]
        %v658 = vld [vmem:[#allocation5 + $0x3a0] sm:$0xff]
        %v659 = vld [vmem:[#allocation5 + $0x3a8] sm:$0xff]
        %v660 = vld [vmem:[#allocation5 + $0x3b0] sm:$0xff]
        %v661 = vld [vmem:[#allocation5 + $0x3b8] sm:$0xff]
        %v662 = vld [vmem:[#allocation5 + $0x3c0] sm:$0xff]
        %v663 = vld [vmem:[#allocation5 + $0x3c8] sm:$0xff]
        %v664 = vld [vmem:[#allocation5 + $0x3d0] sm:$0xff]
        %v665 = vld [vmem:[#allocation5 + $0x3d8] sm:$0xff]
        %v666 = vld [vmem:[#allocation5 + $0x3e0] sm:$0xff]
        %v667 = vld [vmem:[#allocation5 + $0x3e8] sm:$0xff]
        %v668 = vld [vmem:[#allocation5 + $0x3f0] sm:$0xff]
        %v669 = vld [vmem:[#allocation5 + $0x3f8] sm:$0xff]
        %v670 = vld [vmem:[#allocation5 + $0x400] sm:$0xff]
        %v671 = vld [vmem:[#allocation5 + $0x408] sm:$0xff]
        %v672 = vld [vmem:[#allocation5 + $0x410] sm:$0xff]
        %v673 = vld [vmem:[#allocation5 + $0x418] sm:$0xff]
        %v674 = vld [vmem:[#allocation5 + $0x420] sm:$0xff]
        %v675 = vld [vmem:[#allocation5 + $0x428] sm:$0xff]
        %v676 = vld [vmem:[#allocation5 + $0x430] sm:$0xff]
        %v677 = vld [vmem:[#allocation5 + $0x438] sm:$0xff]
        %v678 = vld [vmem:[#allocation5 + $0x440] sm:$0xff]
        %v679 = vld [vmem:[#allocation5 + $0x448] sm:$0xff]
        %v680 = vld [vmem:[#allocation5 + $0x450] sm:$0xff]
        %v681 = vld [vmem:[#allocation5 + $0x458] sm:$0xff]
        %v682 = vld [vmem:[#allocation5 + $0x460] sm:$0xff]
        %v683 = vld [vmem:[#allocation5 + $0x468] sm:$0xff]
        %v684 = vld [vmem:[#allocation5 + $0x470] sm:$0xff]
        %v685 = vld [vmem:[#allocation5 + $0x478] sm:$0xff]
        %v686 = vld [vmem:[#allocation5 + $0x480] sm:$0xff]
        %v687 = vld [vmem:[#allocation5 + $0x488] sm:$0xff]
        %v688 = vld [vmem:[#allocation5 + $0x490] sm:$0xff]
        %v689 = vld [vmem:[#allocation5 + $0x498] sm:$0xff]
        %v690 = vld [vmem:[#allocation5 + $0x4a0] sm:$0xff]
        %v691 = vld [vmem:[#allocation5 + $0x4a8] sm:$0xff]
        %v692 = vld [vmem:[#allocation5 + $0x4b0] sm:$0xff]
        %v693 = vld [vmem:[#allocation5 + $0x4b8] sm:$0xff]
        %v694 = vld [vmem:[#allocation5 + $0x4c0] sm:$0xff]
        %v695 = vld [vmem:[#allocation5 + $0x4c8] sm:$0xff]
        %v696 = vld [vmem:[#allocation5 + $0x4d0] sm:$0xff]
        %v697 = vld [vmem:[#allocation5 + $0x4d8] sm:$0xff]
        %v698 = vld [vmem:[#allocation5 + $0x4e0] sm:$0xff]
        %v699 = vld [vmem:[#allocation5 + $0x4e8] sm:$0xff]
        %v700 = vld [vmem:[#allocation5 + $0x4f0] sm:$0xff]
        %v701 = vld [vmem:[#allocation5 + $0x4f8] sm:$0xff]
        %v702 = vld [vmem:[#allocation5 + $0x500] sm:$0xff]
        %v703 = vld [vmem:[#allocation5 + $0x508] sm:$0xff]
        %v704 = vld [vmem:[#allocation5 + $0x510] sm:$0xff]
        %v705 = vld [vmem:[#allocation5 + $0x518] sm:$0xff]
        %v706 = vld [vmem:[#allocation5 + $0x520] sm:$0xff]
        %v707 = vld [vmem:[#allocation5 + $0x528] sm:$0xff]
        %v708 = vld [vmem:[#allocation5 + $0x530] sm:$0xff]
        %v709 = vld [vmem:[#allocation5 + $0x538] sm:$0xff]
        %v710 = vld [vmem:[#allocation5 + $0x540] sm:$0xff]
        %v711 = vld [vmem:[#allocation5 + $0x548] sm:$0xff]
        %v712 = vld [vmem:[#allocation5 + $0x550] sm:$0xff]
        %v713 = vld [vmem:[#allocation5 + $0x558] sm:$0xff]
        %v714 = vld [vmem:[#allocation5 + $0x560] sm:$0xff]
        %v715 = vld [vmem:[#allocation5 + $0x568] sm:$0xff]
        %v716 = vld [vmem:[#allocation5 + $0x570] sm:$0xff]
        %v717 = vld [vmem:[#allocation5 + $0x578] sm:$0xff]
        %v718 = vld [vmem:[#allocation5 + $0x580] sm:$0xff]
        %v719 = vld [vmem:[#allocation5 + $0x588] sm:$0xff]
        %v720 = vld [vmem:[#allocation5 + $0x590] sm:$0xff]
        %v721 = vld [vmem:[#allocation5 + $0x598] sm:$0xff]
        %v722 = vld [vmem:[#allocation5 + $0x5a0] sm:$0xff]
        %v723 = vld [vmem:[#allocation5 + $0x5a8] sm:$0xff]
        %v724 = vld [vmem:[#allocation5 + $0x5b0] sm:$0xff]
        %v725 = vld [vmem:[#allocation5 + $0x5b8] sm:$0xff]
        %v726 = vld [vmem:[#allocation5 + $0x5c0] sm:$0xff]
        %v727 = vld [vmem:[#allocation5 + $0x5c8] sm:$0xff]
        %v728 = vld [vmem:[#allocation5 + $0x5d0] sm:$0xff]
        %v729 = vld [vmem:[#allocation5 + $0x5d8] sm:$0xff]
        %v730 = vld [vmem:[#allocation5 + $0x5e0] sm:$0xff]
        %v731 = vld [vmem:[#allocation5 + $0x5e8] sm:$0xff]
        %v732 = vld [vmem:[#allocation5 + $0x5f0] sm:$0xff]
        %v733 = vld [vmem:[#allocation5 + $0x5f8] sm:$0xff]
        %v734 = vld [vmem:[#allocation5 + $0x600] sm:$0xff]
        %v735 = vld [vmem:[#allocation5 + $0x608] sm:$0xff]
        %v736 = vld [vmem:[#allocation5 + $0x610] sm:$0xff]
        %v737 = vld [vmem:[#allocation5 + $0x618] sm:$0xff]
        %v738 = vld [vmem:[#allocation5 + $0x620] sm:$0xff]
        %v739 = vld [vmem:[#allocation5 + $0x628] sm:$0xff]
        %v740 = vld [vmem:[#allocation5 + $0x630] sm:$0xff]
        %v741 = vld [vmem:[#allocation5 + $0x638] sm:$0xff]
        %v742 = vld [vmem:[#allocation5 + $0x640] sm:$0xff]
        %v743 = vld [vmem:[#allocation5 + $0x648] sm:$0xff]
        %v744 = vld [vmem:[#allocation5 + $0x650] sm:$0xff]
        %v745 = vld [vmem:[#allocation5 + $0x658] sm:$0xff]
        %v746 = vld [vmem:[#allocation5 + $0x660] sm:$0xff]
        %v747 = vld [vmem:[#allocation5 + $0x668] sm:$0xff]
        %v748 = vld [vmem:[#allocation5 + $0x670] sm:$0xff]
        %v749 = vld [vmem:[#allocation5 + $0x678] sm:$0xff]
        %v750 = vld [vmem:[#allocation5 + $0x680] sm:$0xff]
        %v751 = vld [vmem:[#allocation5 + $0x688] sm:$0xff]
        %v752 = vld [vmem:[#allocation5 + $0x690] sm:$0xff]
        %v753 = vld [vmem:[#allocation5 + $0x698] sm:$0xff]
        %v754 = vld [vmem:[#allocation5 + $0x6a0] sm:$0xff]
        %v755 = vld [vmem:[#allocation5 + $0x6a8] sm:$0xff]
        %v756 = vld [vmem:[#allocation5 + $0x6b0] sm:$0xff]
        %v757 = vld [vmem:[#allocation5 + $0x6b8] sm:$0xff]
        %v758 = vld [vmem:[#allocation5 + $0x6c0] sm:$0xff]
        %v759 = vld [vmem:[#allocation5 + $0x6c8] sm:$0xff]
        %v760 = vld [vmem:[#allocation5 + $0x6d0] sm:$0xff]
        %v761 = vld [vmem:[#allocation5 + $0x6d8] sm:$0xff]
        %v762 = vld [vmem:[#allocation5 + $0x6e0] sm:$0xff]
        %v763 = vld [vmem:[#allocation5 + $0x6e8] sm:$0xff]
        %v764 = vld [vmem:[#allocation5 + $0x6f0] sm:$0xff]
        %v765 = vld [vmem:[#allocation5 + $0x6f8] sm:$0xff]
        %v766 = vld [vmem:[#allocation5 + $0x700] sm:$0xff]
        %v767 = vld [vmem:[#allocation5 + $0x708] sm:$0xff]
        %v768 = vld [vmem:[#allocation5 + $0x710] sm:$0xff]
        %v769 = vld [vmem:[#allocation5 + $0x718] sm:$0xff]
        %v770 = vld [vmem:[#allocation5 + $0x720] sm:$0xff]
        %v771 = vld [vmem:[#allocation5 + $0x728] sm:$0xff]
        %v772 = vld [vmem:[#allocation5 + $0x730] sm:$0xff]
        %v773 = vld [vmem:[#allocation5 + $0x738] sm:$0xff]
        %v774 = vld [vmem:[#allocation5 + $0x740] sm:$0xff]
        %v775 = vld [vmem:[#allocation5 + $0x748] sm:$0xff]
        %v776 = vld [vmem:[#allocation5 + $0x750] sm:$0xff]
        %v777 = vld [vmem:[#allocation5 + $0x758] sm:$0xff]
        %v778 = vld [vmem:[#allocation5 + $0x760] sm:$0xff]
        %v779 = vld [vmem:[#allocation5 + $0x768] sm:$0xff]
        %v780 = vld [vmem:[#allocation5 + $0x770] sm:$0xff]
        %v781 = vld [vmem:[#allocation5 + $0x778] sm:$0xff]
        %v782 = vld [vmem:[#allocation5 + $0x780] sm:$0xff]
        %v783 = vld [vmem:[#allocation5 + $0x788] sm:$0xff]
        %v784 = vld [vmem:[#allocation5 + $0x790] sm:$0xff]
        %v785 = vld [vmem:[#allocation5 + $0x798] sm:$0xff]
        %v786 = vld [vmem:[#allocation5 + $0x7a0] sm:$0xff]
        %v787 = vld [vmem:[#allocation5 + $0x7a8] sm:$0xff]
        %v788 = vld [vmem:[#allocation5 + $0x7b0] sm:$0xff]
        %v789 = vld [vmem:[#allocation5 + $0x7b8] sm:$0xff]
        %v790 = vld [vmem:[#allocation5 + $0x7c0] sm:$0xff]
        %v791 = vld [vmem:[#allocation5 + $0x7c8] sm:$0xff]
        %v792 = vld [vmem:[#allocation5 + $0x7d0] sm:$0xff]
        %v793 = vld [vmem:[#allocation5 + $0x7d8] sm:$0xff]
        %v794 = vld [vmem:[#allocation5 + $0x7e0] sm:$0xff]
        %v795 = vld [vmem:[#allocation5 + $0x7e8] sm:$0xff]
        %v796 = vld [vmem:[#allocation5 + $0x7f0] sm:$0xff]
        %v797 = vld [vmem:[#allocation5 + $0x7f8] sm:$0xff]
        %v798 = vld [vmem:[#allocation5 + $0x800] sm:$0xff]
        %v799 = vld [vmem:[#allocation5 + $0x808] sm:$0xff]
        %v800 = vld [vmem:[#allocation5 + $0x810] sm:$0xff]
        %v801 = vld [vmem:[#allocation5 + $0x818] sm:$0xff]
        %v802 = vld [vmem:[#allocation5 + $0x820] sm:$0xff]
        %v803 = vld [vmem:[#allocation5 + $0x828] sm:$0xff]
        %v804 = vld [vmem:[#allocation5 + $0x830] sm:$0xff]
        %v805 = vld [vmem:[#allocation5 + $0x838] sm:$0xff]
        %v806 = vld [vmem:[#allocation5 + $0x840] sm:$0xff]
        %v807 = vld [vmem:[#allocation5 + $0x848] sm:$0xff]
        %v808 = vld [vmem:[#allocation5 + $0x850] sm:$0xff]
        %v809 = vld [vmem:[#allocation5 + $0x858] sm:$0xff]
        %v810 = vld [vmem:[#allocation5 + $0x860] sm:$0xff]
        %v811 = vld [vmem:[#allocation5 + $0x868] sm:$0xff]
        %v812 = vld [vmem:[#allocation5 + $0x870] sm:$0xff]
        %v813 = vld [vmem:[#allocation5 + $0x878] sm:$0xff]
        %v814 = vld [vmem:[#allocation5 + $0x880] sm:$0xff]
        %v815 = vld [vmem:[#allocation5 + $0x888] sm:$0xff]
        %v816 = vld [vmem:[#allocation5 + $0x890] sm:$0xff]
        %v817 = vld [vmem:[#allocation5 + $0x898] sm:$0xff]
        %v818 = vld [vmem:[#allocation5 + $0x8a0] sm:$0xff]
        %v819 = vld [vmem:[#allocation5 + $0x8a8] sm:$0xff]
        %v820 = vld [vmem:[#allocation5 + $0x8b0] sm:$0xff]
        %v821 = vld [vmem:[#allocation5 + $0x8b8] sm:$0xff]
        %v822 = vld [vmem:[#allocation5 + $0x8c0] sm:$0xff]
        %v823 = vld [vmem:[#allocation5 + $0x8c8] sm:$0xff]
        %v824 = vld [vmem:[#allocation5 + $0x8d0] sm:$0xff]
        %v825 = vld [vmem:[#allocation5 + $0x8d8] sm:$0xff]
        %v826 = vld [vmem:[#allocation5 + $0x8e0] sm:$0xff]
        %v827 = vld [vmem:[#allocation5 + $0x8e8] sm:$0xff]
        %v828 = vld [vmem:[#allocation5 + $0x8f0] sm:$0xff]
        %v829 = vld [vmem:[#allocation5 + $0x8f8] sm:$0xff]
        %v830 = vld [vmem:[#allocation5 + $0x900] sm:$0xff]
        %v831 = vld [vmem:[#allocation5 + $0x908] sm:$0xff]
        %v832 = vld [vmem:[#allocation5 + $0x910] sm:$0xff]
        %v833 = vld [vmem:[#allocation5 + $0x918] sm:$0xff]
        %v834 = vld [vmem:[#allocation5 + $0x920] sm:$0xff]
        %v835 = vld [vmem:[#allocation5 + $0x928] sm:$0xff]
        %v836 = vld [vmem:[#allocation5 + $0x930] sm:$0xff]
        %v837 = vld [vmem:[#allocation5 + $0x938] sm:$0xff]
        %v838 = vld [vmem:[#allocation5 + $0x940] sm:$0xff]
        %v839 = vld [vmem:[#allocation5 + $0x948] sm:$0xff]
        %v840 = vld [vmem:[#allocation5 + $0x950] sm:$0xff]
        %v841 = vld [vmem:[#allocation5 + $0x958] sm:$0xff]
        %v842 = vld [vmem:[#allocation5 + $0x960] sm:$0xff]
        %v843 = vld [vmem:[#allocation5 + $0x968] sm:$0xff]
        %v844 = vld [vmem:[#allocation5 + $0x970] sm:$0xff]
        %v845 = vld [vmem:[#allocation5 + $0x978] sm:$0xff]
        %v846 = vld [vmem:[#allocation5 + $0x980] sm:$0xff]
        %v847 = vld [vmem:[#allocation5 + $0x988] sm:$0xff]
        %v848 = vld [vmem:[#allocation5 + $0x990] sm:$0xff]
        %v849 = vld [vmem:[#allocation5 + $0x998] sm:$0xff]
        %v850 = vld [vmem:[#allocation5 + $0x9a0] sm:$0xff]
        %v851 = vld [vmem:[#allocation5 + $0x9a8] sm:$0xff]
        %v852 = vld [vmem:[#allocation5 + $0x9b0] sm:$0xff]
        %v853 = vld [vmem:[#allocation5 + $0x9b8] sm:$0xff]
        %v854 = vld [vmem:[#allocation5 + $0x9c0] sm:$0xff]
        %v855 = vld [vmem:[#allocation5 + $0x9c8] sm:$0xff]
        %v856 = vld [vmem:[#allocation5 + $0x9d0] sm:$0xff]
        %v857 = vld [vmem:[#allocation5 + $0x9d8] sm:$0xff]
        %v858 = vld [vmem:[#allocation5 + $0x9e0] sm:$0xff]
        %v859 = vld [vmem:[#allocation5 + $0x9e8] sm:$0xff]
        %v860 = vld [vmem:[#allocation5 + $0x9f0] sm:$0xff]
        %v861 = vld [vmem:[#allocation5 + $0x9f8] sm:$0xff]
        %v862 = vld [vmem:[#allocation5 + $0xa00] sm:$0xff]
        %v863 = vld [vmem:[#allocation5 + $0xa08] sm:$0xff]
        %v864 = vld [vmem:[#allocation5 + $0xa10] sm:$0xff]
        %v865 = vld [vmem:[#allocation5 + $0xa18] sm:$0xff]
        %v866 = vld [vmem:[#allocation5 + $0xa20] sm:$0xff]
        %v867 = vld [vmem:[#allocation5 + $0xa28] sm:$0xff]
        %v868 = vld [vmem:[#allocation5 + $0xa30] sm:$0xff]
        %v869 = vld [vmem:[#allocation5 + $0xa38] sm:$0xff]
        %v870 = vld [vmem:[#allocation5 + $0xa40] sm:$0xff]
        %v871 = vld [vmem:[#allocation5 + $0xa48] sm:$0xff]
        %v872 = vld [vmem:[#allocation5 + $0xa50] sm:$0xff]
        %v873 = vld [vmem:[#allocation5 + $0xa58] sm:$0xff]
        %v874 = vld [vmem:[#allocation5 + $0xa60] sm:$0xff]
        %v875 = vld [vmem:[#allocation5 + $0xa68] sm:$0xff]
        %v876 = vld [vmem:[#allocation5 + $0xa70] sm:$0xff]
        %v877 = vld [vmem:[#allocation5 + $0xa78] sm:$0xff]
        %v878 = vld [vmem:[#allocation5 + $0xa80] sm:$0xff]
        %v879 = vld [vmem:[#allocation5 + $0xa88] sm:$0xff]
        %v880 = vld [vmem:[#allocation5 + $0xa90] sm:$0xff]
        %v881 = vld [vmem:[#allocation5 + $0xa98] sm:$0xff]
        %v882 = vld [vmem:[#allocation5 + $0xaa0] sm:$0xff]
        %v883 = vld [vmem:[#allocation5 + $0xaa8] sm:$0xff]
        %v884 = vld [vmem:[#allocation5 + $0xab0] sm:$0xff]
        %v885 = vld [vmem:[#allocation5 + $0xab8] sm:$0xff]
        %v886 = vld [vmem:[#allocation5 + $0xac0] sm:$0xff]
        %v887 = vld [vmem:[#allocation5 + $0xac8] sm:$0xff]
        %v888 = vld [vmem:[#allocation5 + $0xad0] sm:$0xff]
        %v889 = vld [vmem:[#allocation5 + $0xad8] sm:$0xff]
        %v890 = vld [vmem:[#allocation5 + $0xae0] sm:$0xff]
        %v891 = vld [vmem:[#allocation5 + $0xae8] sm:$0xff]
        %v892 = vld [vmem:[#allocation5 + $0xaf0] sm:$0xff]
        %v893 = vld [vmem:[#allocation5 + $0xaf8] sm:$0xff]
        %v894 = vld [vmem:[#allocation5 + $0xb00] sm:$0xff]
        %v895 = vld [vmem:[#allocation5 + $0xb08] sm:$0xff]
        %v896 = vld [vmem:[#allocation5 + $0xb10] sm:$0xff]
        %v897 = vld [vmem:[#allocation5 + $0xb18] sm:$0xff]
        %v898 = vld [vmem:[#allocation5 + $0xb20] sm:$0xff]
        %v899 = vld [vmem:[#allocation5 + $0xb28] sm:$0xff]
        %v900 = vld [vmem:[#allocation5 + $0xb30] sm:$0xff]
        %v901 = vld [vmem:[#allocation5 + $0xb38] sm:$0xff]
        %v902 = vld [vmem:[#allocation5 + $0xb40] sm:$0xff]
        %v903 = vld [vmem:[#allocation5 + $0xb48] sm:$0xff]
        %v904 = vld [vmem:[#allocation5 + $0xb50] sm:$0xff]
        %v905 = vld [vmem:[#allocation5 + $0xb58] sm:$0xff]
        %v906 = vld [vmem:[#allocation5 + $0xb60] sm:$0xff]
        %v907 = vld [vmem:[#allocation5 + $0xb68] sm:$0xff]
        %v908 = vld [vmem:[#allocation5 + $0xb70] sm:$0xff]
        %v909 = vld [vmem:[#allocation5 + $0xb78] sm:$0xff]
        %v910 = vld [vmem:[#allocation5 + $0xb80] sm:$0xff]
        %v911 = vld [vmem:[#allocation5 + $0xb88] sm:$0xff]
        %v912 = vld [vmem:[#allocation5 + $0xb90] sm:$0xff]
        %v913 = vld [vmem:[#allocation5 + $0xb98] sm:$0xff]
        %v914 = vld [vmem:[#allocation5 + $0xba0] sm:$0xff]
        %v915 = vld [vmem:[#allocation5 + $0xba8] sm:$0xff]
        %v916 = vld [vmem:[#allocation5 + $0xbb0] sm:$0xff]
        %v917 = vld [vmem:[#allocation5 + $0xbb8] sm:$0xff]
        %v918 = vld [vmem:[#allocation5 + $0xbc0] sm:$0xff]
        %v919 = vld [vmem:[#allocation5 + $0xbc8] sm:$0xff]
        %v920 = vld [vmem:[#allocation5 + $0xbd0] sm:$0xff]
        %v921 = vld [vmem:[#allocation5 + $0xbd8] sm:$0xff]
        %v922 = vld [vmem:[#allocation5 + $0xbe0] sm:$0xff]
        %v923 = vld [vmem:[#allocation5 + $0xbe8] sm:$0xff]
        %v924 = vld [vmem:[#allocation5 + $0xbf0] sm:$0xff]
        %v925 = vld [vmem:[#allocation5 + $0xbf8] sm:$0xff]
        %v926 = vld [vmem:[#allocation8] sm:$0xff]
        %v927 = vld [vmem:[#allocation8 + $0x8] sm:$0xff]
        %v928 = vld [vmem:[#allocation8 + $0x10] sm:$0xff]
        %v929 = vld [vmem:[#allocation8 + $0x18] sm:$0xff]
        %v930 = vld [vmem:[#allocation8 + $0x20] sm:$0xff]
        %v931 = vld [vmem:[#allocation8 + $0x28] sm:$0xff]
        %v932 = vld [vmem:[#allocation8 + $0x30] sm:$0xff]
        %v933 = vld [vmem:[#allocation8 + $0x38] sm:$0xff]
        %v934 = vld [vmem:[#allocation8 + $0x40] sm:$0xff]
        %v935 = vld [vmem:[#allocation8 + $0x48] sm:$0xff]
        %v936 = vld [vmem:[#allocation8 + $0x50] sm:$0xff]
        %v937 = vld [vmem:[#allocation8 + $0x58] sm:$0xff]
        %v938 = vld [vmem:[#allocation8 + $0x60] sm:$0xff]
        %v939 = vld [vmem:[#allocation8 + $0x68] sm:$0xff]
        %v940 = vld [vmem:[#allocation8 + $0x70] sm:$0xff]
        %v941 = vld [vmem:[#allocation8 + $0x78] sm:$0xff]
        %v942 = vld [vmem:[#allocation8 + $0x80] sm:$0xff]
        %v943 = vld [vmem:[#allocation8 + $0x88] sm:$0xff]
        %v944 = vld [vmem:[#allocation8 + $0x90] sm:$0xff]
        %v945 = vld [vmem:[#allocation8 + $0x98] sm:$0xff]
        %v946 = vld [vmem:[#allocation8 + $0xa0] sm:$0xff]
        %v947 = vld [vmem:[#allocation8 + $0xa8] sm:$0xff]
        %v948 = vld [vmem:[#allocation8 + $0xb0] sm:$0xff]
        %v949 = vld [vmem:[#allocation8 + $0xb8] sm:$0xff]
        %v950 = vld [vmem:[#allocation8 + $0xc0] sm:$0xff]
        %v951 = vld [vmem:[#allocation8 + $0xc8] sm:$0xff]
        %v952 = vld [vmem:[#allocation8 + $0xd0] sm:$0xff]
        %v953 = vld [vmem:[#allocation8 + $0xd8] sm:$0xff]
        %v954 = vld [vmem:[#allocation8 + $0xe0] sm:$0xff]
        %v955 = vld [vmem:[#allocation8 + $0xe8] sm:$0xff]
        %v956 = vld [vmem:[#allocation8 + $0xf0] sm:$0xff]
        %v957 = vld [vmem:[#allocation8 + $0xf8] sm:$0xff]
        %v958 = vld [vmem:[#allocation8 + $0x100] sm:$0xff]
        %v959 = vld [vmem:[#allocation8 + $0x108] sm:$0xff]
        %v960 = vld [vmem:[#allocation8 + $0x110] sm:$0xff]
        %v961 = vld [vmem:[#allocation8 + $0x118] sm:$0xff]
        %v962 = vld [vmem:[#allocation8 + $0x120] sm:$0xff]
        %v963 = vld [vmem:[#allocation8 + $0x128] sm:$0xff]
        %v964 = vld [vmem:[#allocation8 + $0x130] sm:$0xff]
        %v965 = vld [vmem:[#allocation8 + $0x138] sm:$0xff]
        %v966 = vld [vmem:[#allocation8 + $0x140] sm:$0xff]
        %v967 = vld [vmem:[#allocation8 + $0x148] sm:$0xff]
        %v968 = vld [vmem:[#allocation8 + $0x150] sm:$0xff]
        %v969 = vld [vmem:[#allocation8 + $0x158] sm:$0xff]
        %v970 = vld [vmem:[#allocation8 + $0x160] sm:$0xff]
        %v971 = vld [vmem:[#allocation8 + $0x168] sm:$0xff]
        %v972 = vld [vmem:[#allocation8 + $0x170] sm:$0xff]
        %v973 = vld [vmem:[#allocation8 + $0x178] sm:$0xff]
        %v974 = vld [vmem:[#allocation8 + $0x180] sm:$0xff]
        %v975 = vld [vmem:[#allocation8 + $0x188] sm:$0xff]
        %v976 = vld [vmem:[#allocation8 + $0x190] sm:$0xff]
        %v977 = vld [vmem:[#allocation8 + $0x198] sm:$0xff]
        %v978 = vld [vmem:[#allocation8 + $0x1a0] sm:$0xff]
        %v979 = vld [vmem:[#allocation8 + $0x1a8] sm:$0xff]
        %v980 = vld [vmem:[#allocation8 + $0x1b0] sm:$0xff]
        %v981 = vld [vmem:[#allocation8 + $0x1b8] sm:$0xff]
        %v982 = vld [vmem:[#allocation8 + $0x1c0] sm:$0xff]
        %v983 = vld [vmem:[#allocation8 + $0x1c8] sm:$0xff]
        %v984 = vld [vmem:[#allocation8 + $0x1d0] sm:$0xff]
        %v985 = vld [vmem:[#allocation8 + $0x1d8] sm:$0xff]
        %v986 = vld [vmem:[#allocation8 + $0x1e0] sm:$0xff]
        %v987 = vld [vmem:[#allocation8 + $0x1e8] sm:$0xff]
        %v988 = vld [vmem:[#allocation8 + $0x1f0] sm:$0xff]
        %v989 = vld [vmem:[#allocation8 + $0x1f8] sm:$0xff]
        %v990 = vld [vmem:[#allocation8 + $0x200] sm:$0xff]
        %v991 = vld [vmem:[#allocation8 + $0x208] sm:$0xff]
        %v992 = vld [vmem:[#allocation8 + $0x210] sm:$0xff]
        %v993 = vld [vmem:[#allocation8 + $0x218] sm:$0xff]
        %v994 = vld [vmem:[#allocation8 + $0x220] sm:$0xff]
        %v995 = vld [vmem:[#allocation8 + $0x228] sm:$0xff]
        %v996 = vld [vmem:[#allocation8 + $0x230] sm:$0xff]
        %v997 = vld [vmem:[#allocation8 + $0x238] sm:$0xff]
        %v998 = vld [vmem:[#allocation8 + $0x240] sm:$0xff]
        %v999 = vld [vmem:[#allocation8 + $0x248] sm:$0xff]
        %v1000 = vld [vmem:[#allocation8 + $0x250] sm:$0xff]
        %v1001 = vld [vmem:[#allocation8 + $0x258] sm:$0xff]
        %v1002 = vld [vmem:[#allocation8 + $0x260] sm:$0xff]
        %v1003 = vld [vmem:[#allocation8 + $0x268] sm:$0xff]
        %v1004 = vld [vmem:[#allocation8 + $0x270] sm:$0xff]
        %v1005 = vld [vmem:[#allocation8 + $0x278] sm:$0xff]
        %v1006 = vld [vmem:[#allocation8 + $0x280] sm:$0xff]
        %v1007 = vld [vmem:[#allocation8 + $0x288] sm:$0xff]
        %v1008 = vld [vmem:[#allocation8 + $0x290] sm:$0xff]
        %v1009 = vld [vmem:[#allocation8 + $0x298] sm:$0xff]
        %v1010 = vld [vmem:[#allocation8 + $0x2a0] sm:$0xff]
        %v1011 = vld [vmem:[#allocation8 + $0x2a8] sm:$0xff]
        %v1012 = vld [vmem:[#allocation8 + $0x2b0] sm:$0xff]
        %v1013 = vld [vmem:[#allocation8 + $0x2b8] sm:$0xff]
        %v1014 = vld [vmem:[#allocation8 + $0x2c0] sm:$0xff]
        %v1015 = vld [vmem:[#allocation8 + $0x2c8] sm:$0xff]
        %v1016 = vld [vmem:[#allocation8 + $0x2d0] sm:$0xff]
        %v1017 = vld [vmem:[#allocation8 + $0x2d8] sm:$0xff]
        %v1018 = vld [vmem:[#allocation8 + $0x2e0] sm:$0xff]
        %v1019 = vld [vmem:[#allocation8 + $0x2e8] sm:$0xff]
        %v1020 = vld [vmem:[#allocation8 + $0x2f0] sm:$0xff]
        %v1021 = vld [vmem:[#allocation8 + $0x2f8] sm:$0xff]
        %v1022 = vld [vmem:[#allocation8 + $0x300] sm:$0xff]
        %v1023 = vld [vmem:[#allocation8 + $0x308] sm:$0xff]
        %v1024 = vld [vmem:[#allocation8 + $0x310] sm:$0xff]
        %v1025 = vld [vmem:[#allocation8 + $0x318] sm:$0xff]
        %v1026 = vld [vmem:[#allocation8 + $0x320] sm:$0xff]
        %v1027 = vld [vmem:[#allocation8 + $0x328] sm:$0xff]
        %v1028 = vld [vmem:[#allocation8 + $0x330] sm:$0xff]
        %v1029 = vld [vmem:[#allocation8 + $0x338] sm:$0xff]
        %v1030 = vld [vmem:[#allocation8 + $0x340] sm:$0xff]
        %v1031 = vld [vmem:[#allocation8 + $0x348] sm:$0xff]
        %v1032 = vld [vmem:[#allocation8 + $0x350] sm:$0xff]
        %v1033 = vld [vmem:[#allocation8 + $0x358] sm:$0xff]
        %v1034 = vld [vmem:[#allocation8 + $0x360] sm:$0xff]
        %v1035 = vld [vmem:[#allocation8 + $0x368] sm:$0xff]
        %v1036 = vld [vmem:[#allocation8 + $0x370] sm:$0xff]
        %v1037 = vld [vmem:[#allocation8 + $0x378] sm:$0xff]
        %v1038 = vld [vmem:[#allocation8 + $0x380] sm:$0xff]
        %v1039 = vld [vmem:[#allocation8 + $0x388] sm:$0xff]
        %v1040 = vld [vmem:[#allocation8 + $0x390] sm:$0xff]
        %v1041 = vld [vmem:[#allocation8 + $0x398] sm:$0xff]
        %v1042 = vld [vmem:[#allocation8 + $0x3a0] sm:$0xff]
        %v1043 = vld [vmem:[#allocation8 + $0x3a8] sm:$0xff]
        %v1044 = vld [vmem:[#allocation8 + $0x3b0] sm:$0xff]
        %v1045 = vld [vmem:[#allocation8 + $0x3b8] sm:$0xff]
        %v1046 = vld [vmem:[#allocation8 + $0x3c0] sm:$0xff]
        %v1047 = vld [vmem:[#allocation8 + $0x3c8] sm:$0xff]
        %v1048 = vld [vmem:[#allocation8 + $0x3d0] sm:$0xff]
        %v1049 = vld [vmem:[#allocation8 + $0x3d8] sm:$0xff]
        %v1050 = vld [vmem:[#allocation8 + $0x3e0] sm:$0xff]
        %v1051 = vld [vmem:[#allocation8 + $0x3e8] sm:$0xff]
        %v1052 = vld [vmem:[#allocation8 + $0x3f0] sm:$0xff]
        %v1053 = vld [vmem:[#allocation8 + $0x3f8] sm:$0xff]
        %v1054 = vld [vmem:[#allocation11] sm:$0xff]
        %v1055 = vld [vmem:[#allocation11 + $0x8] sm:$0xff]
        %v1056 = vld [vmem:[#allocation11 + $0x10] sm:$0xff]
        %v1057 = vld [vmem:[#allocation11 + $0x18] sm:$0xff]
        %v1058 = vld [vmem:[#allocation11 + $0x20] sm:$0xff]
        %v1059 = vld [vmem:[#allocation11 + $0x28] sm:$0xff]
        %v1060 = vld [vmem:[#allocation11 + $0x30] sm:$0xff]
        %v1061 = vld [vmem:[#allocation11 + $0x38] sm:$0xff]
        %v1062 = vld [vmem:[#allocation11 + $0x40] sm:$0xff]
        %v1063 = vld [vmem:[#allocation11 + $0x48] sm:$0xff]
        %v1064 = vld [vmem:[#allocation11 + $0x50] sm:$0xff]
        %v1065 = vld [vmem:[#allocation11 + $0x58] sm:$0xff]
        %v1066 = vld [vmem:[#allocation11 + $0x60] sm:$0xff]
        %v1067 = vld [vmem:[#allocation11 + $0x68] sm:$0xff]
        %v1068 = vld [vmem:[#allocation11 + $0x70] sm:$0xff]
        %v1069 = vld [vmem:[#allocation11 + $0x78] sm:$0xff]
        %v1070 = vld [vmem:[#allocation11 + $0x80] sm:$0xff]
        %v1071 = vld [vmem:[#allocation11 + $0x88] sm:$0xff]
        %v1072 = vld [vmem:[#allocation11 + $0x90] sm:$0xff]
        %v1073 = vld [vmem:[#allocation11 + $0x98] sm:$0xff]
        %v1074 = vld [vmem:[#allocation11 + $0xa0] sm:$0xff]
        %v1075 = vld [vmem:[#allocation11 + $0xa8] sm:$0xff]
        %v1076 = vld [vmem:[#allocation11 + $0xb0] sm:$0xff]
        %v1077 = vld [vmem:[#allocation11 + $0xb8] sm:$0xff]
        %v1078 = vld [vmem:[#allocation11 + $0xc0] sm:$0xff]
        %v1079 = vld [vmem:[#allocation11 + $0xc8] sm:$0xff]
        %v1080 = vld [vmem:[#allocation11 + $0xd0] sm:$0xff]
        %v1081 = vld [vmem:[#allocation11 + $0xd8] sm:$0xff]
        %v1082 = vld [vmem:[#allocation11 + $0xe0] sm:$0xff]
        %v1083 = vld [vmem:[#allocation11 + $0xe8] sm:$0xff]
        %v1084 = vld [vmem:[#allocation11 + $0xf0] sm:$0xff]
        %v1085 = vld [vmem:[#allocation11 + $0xf8] sm:$0xff]
        %v1086 = vld [vmem:[#allocation11 + $0x100] sm:$0xff]
        %v1087 = vld [vmem:[#allocation11 + $0x108] sm:$0xff]
        %v1088 = vld [vmem:[#allocation11 + $0x110] sm:$0xff]
        %v1089 = vld [vmem:[#allocation11 + $0x118] sm:$0xff]
        %v1090 = vld [vmem:[#allocation11 + $0x120] sm:$0xff]
        %v1091 = vld [vmem:[#allocation11 + $0x128] sm:$0xff]
        %v1092 = vld [vmem:[#allocation11 + $0x130] sm:$0xff]
        %v1093 = vld [vmem:[#allocation11 + $0x138] sm:$0xff]
        %v1094 = vld [vmem:[#allocation11 + $0x140] sm:$0xff]
        %v1095 = vld [vmem:[#allocation11 + $0x148] sm:$0xff]
        %v1096 = vld [vmem:[#allocation11 + $0x150] sm:$0xff]
        %v1097 = vld [vmem:[#allocation11 + $0x158] sm:$0xff]
        %v1098 = vld [vmem:[#allocation11 + $0x160] sm:$0xff]
        %v1099 = vld [vmem:[#allocation11 + $0x168] sm:$0xff]
        %v1100 = vld [vmem:[#allocation11 + $0x170] sm:$0xff]
        %v1101 = vld [vmem:[#allocation11 + $0x178] sm:$0xff]
        %v1102 = vld [vmem:[#allocation11 + $0x180] sm:$0xff]
        %v1103 = vld [vmem:[#allocation11 + $0x188] sm:$0xff]
        %v1104 = vld [vmem:[#allocation11 + $0x190] sm:$0xff]
        %v1105 = vld [vmem:[#allocation11 + $0x198] sm:$0xff]
        %v1106 = vld [vmem:[#allocation11 + $0x1a0] sm:$0xff]
        %v1107 = vld [vmem:[#allocation11 + $0x1a8] sm:$0xff]
        %v1108 = vld [vmem:[#allocation11 + $0x1b0] sm:$0xff]
        %v1109 = vld [vmem:[#allocation11 + $0x1b8] sm:$0xff]
        %v1110 = vld [vmem:[#allocation11 + $0x1c0] sm:$0xff]
        %v1111 = vld [vmem:[#allocation11 + $0x1c8] sm:$0xff]
        %v1112 = vld [vmem:[#allocation11 + $0x1d0] sm:$0xff]
        %v1113 = vld [vmem:[#allocation11 + $0x1d8] sm:$0xff]
        %v1114 = vld [vmem:[#allocation11 + $0x1e0] sm:$0xff]
        %v1115 = vld [vmem:[#allocation11 + $0x1e8] sm:$0xff]
        %v1116 = vld [vmem:[#allocation11 + $0x1f0] sm:$0xff]
        %v1117 = vld [vmem:[#allocation11 + $0x1f8] sm:$0xff]
        %v1118 = vld [vmem:[#allocation11 + $0x200] sm:$0xff]
        %v1119 = vld [vmem:[#allocation11 + $0x208] sm:$0xff]
        %v1120 = vld [vmem:[#allocation11 + $0x210] sm:$0xff]
        %v1121 = vld [vmem:[#allocation11 + $0x218] sm:$0xff]
        %v1122 = vld [vmem:[#allocation11 + $0x220] sm:$0xff]
        %v1123 = vld [vmem:[#allocation11 + $0x228] sm:$0xff]
        %v1124 = vld [vmem:[#allocation11 + $0x230] sm:$0xff]
        %v1125 = vld [vmem:[#allocation11 + $0x238] sm:$0xff]
        %v1126 = vld [vmem:[#allocation11 + $0x240] sm:$0xff]
        %v1127 = vld [vmem:[#allocation11 + $0x248] sm:$0xff]
        %v1128 = vld [vmem:[#allocation11 + $0x250] sm:$0xff]
        %v1129 = vld [vmem:[#allocation11 + $0x258] sm:$0xff]
        %v1130 = vld [vmem:[#allocation11 + $0x260] sm:$0xff]
        %v1131 = vld [vmem:[#allocation11 + $0x268] sm:$0xff]
        %v1132 = vld [vmem:[#allocation11 + $0x270] sm:$0xff]
        %v1133 = vld [vmem:[#allocation11 + $0x278] sm:$0xff]
        %v1134 = vld [vmem:[#allocation11 + $0x280] sm:$0xff]
        %v1135 = vld [vmem:[#allocation11 + $0x288] sm:$0xff]
        %v1136 = vld [vmem:[#allocation11 + $0x290] sm:$0xff]
        %v1137 = vld [vmem:[#allocation11 + $0x298] sm:$0xff]
        %v1138 = vld [vmem:[#allocation11 + $0x2a0] sm:$0xff]
        %v1139 = vld [vmem:[#allocation11 + $0x2a8] sm:$0xff]
        %v1140 = vld [vmem:[#allocation11 + $0x2b0] sm:$0xff]
        %v1141 = vld [vmem:[#allocation11 + $0x2b8] sm:$0xff]
        %v1142 = vld [vmem:[#allocation11 + $0x2c0] sm:$0xff]
        %v1143 = vld [vmem:[#allocation11 + $0x2c8] sm:$0xff]
        %v1144 = vld [vmem:[#allocation11 + $0x2d0] sm:$0xff]
        %v1145 = vld [vmem:[#allocation11 + $0x2d8] sm:$0xff]
        %v1146 = vld [vmem:[#allocation11 + $0x2e0] sm:$0xff]
        %v1147 = vld [vmem:[#allocation11 + $0x2e8] sm:$0xff]
        %v1148 = vld [vmem:[#allocation11 + $0x2f0] sm:$0xff]
        %v1149 = vld [vmem:[#allocation11 + $0x2f8] sm:$0xff]
        %v1150 = vld [vmem:[#allocation11 + $0x300] sm:$0xff]
        %v1151 = vld [vmem:[#allocation11 + $0x308] sm:$0xff]
        %v1152 = vld [vmem:[#allocation11 + $0x310] sm:$0xff]
        %v1153 = vld [vmem:[#allocation11 + $0x318] sm:$0xff]
        %v1154 = vld [vmem:[#allocation11 + $0x320] sm:$0xff]
        %v1155 = vld [vmem:[#allocation11 + $0x328] sm:$0xff]
        %v1156 = vld [vmem:[#allocation11 + $0x330] sm:$0xff]
        %v1157 = vld [vmem:[#allocation11 + $0x338] sm:$0xff]
        %v1158 = vld [vmem:[#allocation11 + $0x340] sm:$0xff]
        %v1159 = vld [vmem:[#allocation11 + $0x348] sm:$0xff]
        %v1160 = vld [vmem:[#allocation11 + $0x350] sm:$0xff]
        %v1161 = vld [vmem:[#allocation11 + $0x358] sm:$0xff]
        %v1162 = vld [vmem:[#allocation11 + $0x360] sm:$0xff]
        %v1163 = vld [vmem:[#allocation11 + $0x368] sm:$0xff]
        %v1164 = vld [vmem:[#allocation11 + $0x370] sm:$0xff]
        %v1165 = vld [vmem:[#allocation11 + $0x378] sm:$0xff]
        %v1166 = vld [vmem:[#allocation11 + $0x380] sm:$0xff]
        %v1167 = vld [vmem:[#allocation11 + $0x388] sm:$0xff]
        %v1168 = vld [vmem:[#allocation11 + $0x390] sm:$0xff]
        %v1169 = vld [vmem:[#allocation11 + $0x398] sm:$0xff]
        %v1170 = vld [vmem:[#allocation11 + $0x3a0] sm:$0xff]
        %v1171 = vld [vmem:[#allocation11 + $0x3a8] sm:$0xff]
        %v1172 = vld [vmem:[#allocation11 + $0x3b0] sm:$0xff]
        %v1173 = vld [vmem:[#allocation11 + $0x3b8] sm:$0xff]
        %v1174 = vld [vmem:[#allocation11 + $0x3c0] sm:$0xff]
        %v1175 = vld [vmem:[#allocation11 + $0x3c8] sm:$0xff]
        %v1176 = vld [vmem:[#allocation11 + $0x3d0] sm:$0xff]
        %v1177 = vld [vmem:[#allocation11 + $0x3d8] sm:$0xff]
        %v1178 = vld [vmem:[#allocation11 + $0x3e0] sm:$0xff]
        %v1179 = vld [vmem:[#allocation11 + $0x3e8] sm:$0xff]
        %v1180 = vld [vmem:[#allocation11 + $0x3f0] sm:$0xff]
        %v1181 = vld [vmem:[#allocation11 + $0x3f8] sm:$0xff]
        %v1182 = vld [vmem:[#allocation14] sm:$0xff]
        %v1183 = vld [vmem:[#allocation14 + $0x8] sm:$0xff]
        %v1184 = vld [vmem:[#allocation14 + $0x10] sm:$0xff]
        %v1185 = vld [vmem:[#allocation14 + $0x18] sm:$0xff]
        %v1186 = vld [vmem:[#allocation14 + $0x20] sm:$0xff]
        %v1187 = vld [vmem:[#allocation14 + $0x28] sm:$0xff]
        %v1188 = vld [vmem:[#allocation14 + $0x30] sm:$0xff]
        %v1189 = vld [vmem:[#allocation14 + $0x38] sm:$0xff]
        %v1190 = vld [vmem:[#allocation14 + $0x40] sm:$0xff]
        %v1191 = vld [vmem:[#allocation14 + $0x48] sm:$0xff]
        %v1192 = vld [vmem:[#allocation14 + $0x50] sm:$0xff]
        %v1193 = vld [vmem:[#allocation14 + $0x58] sm:$0xff]
        %v1194 = vld [vmem:[#allocation14 + $0x60] sm:$0xff]
        %v1195 = vld [vmem:[#allocation14 + $0x68] sm:$0xff]
        %v1196 = vld [vmem:[#allocation14 + $0x70] sm:$0xff]
        %v1197 = vld [vmem:[#allocation14 + $0x78] sm:$0xff]
        %v1198 = vld [vmem:[#allocation14 + $0x80] sm:$0xff]
        %v1199 = vld [vmem:[#allocation14 + $0x88] sm:$0xff]
        %v1200 = vld [vmem:[#allocation14 + $0x90] sm:$0xff]
        %v1201 = vld [vmem:[#allocation14 + $0x98] sm:$0xff]
        %v1202 = vld [vmem:[#allocation14 + $0xa0] sm:$0xff]
        %v1203 = vld [vmem:[#allocation14 + $0xa8] sm:$0xff]
        %v1204 = vld [vmem:[#allocation14 + $0xb0] sm:$0xff]
        %v1205 = vld [vmem:[#allocation14 + $0xb8] sm:$0xff]
        %v1206 = vld [vmem:[#allocation14 + $0xc0] sm:$0xff]
        %v1207 = vld [vmem:[#allocation14 + $0xc8] sm:$0xff]
        %v1208 = vld [vmem:[#allocation14 + $0xd0] sm:$0xff]
        %v1209 = vld [vmem:[#allocation14 + $0xd8] sm:$0xff]
        %v1210 = vld [vmem:[#allocation14 + $0xe0] sm:$0xff]
        %v1211 = vld [vmem:[#allocation14 + $0xe8] sm:$0xff]
        %v1212 = vld [vmem:[#allocation14 + $0xf0] sm:$0xff]
        %v1213 = vld [vmem:[#allocation14 + $0xf8] sm:$0xff]
        %v1214 = vld [vmem:[#allocation14 + $0x100] sm:$0xff]
        %v1215 = vld [vmem:[#allocation14 + $0x108] sm:$0xff]
        %v1216 = vld [vmem:[#allocation14 + $0x110] sm:$0xff]
        %v1217 = vld [vmem:[#allocation14 + $0x118] sm:$0xff]
        %v1218 = vld [vmem:[#allocation14 + $0x120] sm:$0xff]
        %v1219 = vld [vmem:[#allocation14 + $0x128] sm:$0xff]
        %v1220 = vld [vmem:[#allocation14 + $0x130] sm:$0xff]
        %v1221 = vld [vmem:[#allocation14 + $0x138] sm:$0xff]
        %v1222 = vld [vmem:[#allocation14 + $0x140] sm:$0xff]
        %v1223 = vld [vmem:[#allocation14 + $0x148] sm:$0xff]
        %v1224 = vld [vmem:[#allocation14 + $0x150] sm:$0xff]
        %v1225 = vld [vmem:[#allocation14 + $0x158] sm:$0xff]
        %v1226 = vld [vmem:[#allocation14 + $0x160] sm:$0xff]
        %v1227 = vld [vmem:[#allocation14 + $0x168] sm:$0xff]
        %v1228 = vld [vmem:[#allocation14 + $0x170] sm:$0xff]
        %v1229 = vld [vmem:[#allocation14 + $0x178] sm:$0xff]
        %v1230 = vld [vmem:[#allocation14 + $0x180] sm:$0xff]
        %v1231 = vld [vmem:[#allocation14 + $0x188] sm:$0xff]
        %v1232 = vld [vmem:[#allocation14 + $0x190] sm:$0xff]
        %v1233 = vld [vmem:[#allocation14 + $0x198] sm:$0xff]
        %v1234 = vld [vmem:[#allocation14 + $0x1a0] sm:$0xff]
        %v1235 = vld [vmem:[#allocation14 + $0x1a8] sm:$0xff]
        %v1236 = vld [vmem:[#allocation14 + $0x1b0] sm:$0xff]
        %v1237 = vld [vmem:[#allocation14 + $0x1b8] sm:$0xff]
        %v1238 = vld [vmem:[#allocation14 + $0x1c0] sm:$0xff]
        %v1239 = vld [vmem:[#allocation14 + $0x1c8] sm:$0xff]
        %v1240 = vld [vmem:[#allocation14 + $0x1d0] sm:$0xff]
        %v1241 = vld [vmem:[#allocation14 + $0x1d8] sm:$0xff]
        %v1242 = vld [vmem:[#allocation14 + $0x1e0] sm:$0xff]
        %v1243 = vld [vmem:[#allocation14 + $0x1e8] sm:$0xff]
        %v1244 = vld [vmem:[#allocation14 + $0x1f0] sm:$0xff]
        %v1245 = vld [vmem:[#allocation14 + $0x1f8] sm:$0xff]
        %v1246 = vld [vmem:[#allocation14 + $0x200] sm:$0xff]
        %v1247 = vld [vmem:[#allocation14 + $0x208] sm:$0xff]
        %v1248 = vld [vmem:[#allocation14 + $0x210] sm:$0xff]
        %v1249 = vld [vmem:[#allocation14 + $0x218] sm:$0xff]
        %v1250 = vld [vmem:[#allocation14 + $0x220] sm:$0xff]
        %v1251 = vld [vmem:[#allocation14 + $0x228] sm:$0xff]
        %v1252 = vld [vmem:[#allocation14 + $0x230] sm:$0xff]
        %v1253 = vld [vmem:[#allocation14 + $0x238] sm:$0xff]
        %v1254 = vld [vmem:[#allocation14 + $0x240] sm:$0xff]
        %v1255 = vld [vmem:[#allocation14 + $0x248] sm:$0xff]
        %v1256 = vld [vmem:[#allocation14 + $0x250] sm:$0xff]
        %v1257 = vld [vmem:[#allocation14 + $0x258] sm:$0xff]
        %v1258 = vld [vmem:[#allocation14 + $0x260] sm:$0xff]
        %v1259 = vld [vmem:[#allocation14 + $0x268] sm:$0xff]
        %v1260 = vld [vmem:[#allocation14 + $0x270] sm:$0xff]
        %v1261 = vld [vmem:[#allocation14 + $0x278] sm:$0xff]
        %v1262 = vld [vmem:[#allocation14 + $0x280] sm:$0xff]
        %v1263 = vld [vmem:[#allocation14 + $0x288] sm:$0xff]
        %v1264 = vld [vmem:[#allocation14 + $0x290] sm:$0xff]
        %v1265 = vld [vmem:[#allocation14 + $0x298] sm:$0xff]
        %v1266 = vld [vmem:[#allocation14 + $0x2a0] sm:$0xff]
        %v1267 = vld [vmem:[#allocation14 + $0x2a8] sm:$0xff]
        %v1268 = vld [vmem:[#allocation14 + $0x2b0] sm:$0xff]
        %v1269 = vld [vmem:[#allocation14 + $0x2b8] sm:$0xff]
        %v1270 = vld [vmem:[#allocation14 + $0x2c0] sm:$0xff]
        %v1271 = vld [vmem:[#allocation14 + $0x2c8] sm:$0xff]
        %v1272 = vld [vmem:[#allocation14 + $0x2d0] sm:$0xff]
        %v1273 = vld [vmem:[#allocation14 + $0x2d8] sm:$0xff]
        %v1274 = vld [vmem:[#allocation14 + $0x2e0] sm:$0xff]
        %v1275 = vld [vmem:[#allocation14 + $0x2e8] sm:$0xff]
        %v1276 = vld [vmem:[#allocation14 + $0x2f0] sm:$0xff]
        %v1277 = vld [vmem:[#allocation14 + $0x2f8] sm:$0xff]
        %v1278 = vld [vmem:[#allocation14 + $0x300] sm:$0xff]
        %v1279 = vld [vmem:[#allocation14 + $0x308] sm:$0xff]
        %v1280 = vld [vmem:[#allocation14 + $0x310] sm:$0xff]
        %v1281 = vld [vmem:[#allocation14 + $0x318] sm:$0xff]
        %v1282 = vld [vmem:[#allocation14 + $0x320] sm:$0xff]
        %v1283 = vld [vmem:[#allocation14 + $0x328] sm:$0xff]
        %v1284 = vld [vmem:[#allocation14 + $0x330] sm:$0xff]
        %v1285 = vld [vmem:[#allocation14 + $0x338] sm:$0xff]
        %v1286 = vld [vmem:[#allocation14 + $0x340] sm:$0xff]
        %v1287 = vld [vmem:[#allocation14 + $0x348] sm:$0xff]
        %v1288 = vld [vmem:[#allocation14 + $0x350] sm:$0xff]
        %v1289 = vld [vmem:[#allocation14 + $0x358] sm:$0xff]
        %v1290 = vld [vmem:[#allocation14 + $0x360] sm:$0xff]
        %v1291 = vld [vmem:[#allocation14 + $0x368] sm:$0xff]
        %v1292 = vld [vmem:[#allocation14 + $0x370] sm:$0xff]
        %v1293 = vld [vmem:[#allocation14 + $0x378] sm:$0xff]
        %v1294 = vld [vmem:[#allocation14 + $0x380] sm:$0xff]
        %v1295 = vld [vmem:[#allocation14 + $0x388] sm:$0xff]
        %v1296 = vld [vmem:[#allocation14 + $0x390] sm:$0xff]
        %v1297 = vld [vmem:[#allocation14 + $0x398] sm:$0xff]
        %v1298 = vld [vmem:[#allocation14 + $0x3a0] sm:$0xff]
        %v1299 = vld [vmem:[#allocation14 + $0x3a8] sm:$0xff]
        %v1300 = vld [vmem:[#allocation14 + $0x3b0] sm:$0xff]
        %v1301 = vld [vmem:[#allocation14 + $0x3b8] sm:$0xff]
        %v1302 = vld [vmem:[#allocation14 + $0x3c0] sm:$0xff]
        %v1303 = vld [vmem:[#allocation14 + $0x3c8] sm:$0xff]
        %v1304 = vld [vmem:[#allocation14 + $0x3d0] sm:$0xff]
        %v1305 = vld [vmem:[#allocation14 + $0x3d8] sm:$0xff]
        %v1306 = vld [vmem:[#allocation14 + $0x3e0] sm:$0xff]
        %v1307 = vld [vmem:[#allocation14 + $0x3e8] sm:$0xff]
        %v1308 = vld [vmem:[#allocation14 + $0x3f0] sm:$0xff]
        %v1309 = vld [vmem:[#allocation14 + $0x3f8] sm:$0xff]
        %v1310 = vld [vmem:[#allocation14 + $0x400] sm:$0xff]
        %v1311 = vld [vmem:[#allocation14 + $0x408] sm:$0xff]
        %v1312 = vld [vmem:[#allocation14 + $0x410] sm:$0xff]
        %v1313 = vld [vmem:[#allocation14 + $0x418] sm:$0xff]
        %v1314 = vld [vmem:[#allocation14 + $0x420] sm:$0xff]
        %v1315 = vld [vmem:[#allocation14 + $0x428] sm:$0xff]
        %v1316 = vld [vmem:[#allocation14 + $0x430] sm:$0xff]
        %v1317 = vld [vmem:[#allocation14 + $0x438] sm:$0xff]
        %v1318 = vld [vmem:[#allocation14 + $0x440] sm:$0xff]
        %v1319 = vld [vmem:[#allocation14 + $0x448] sm:$0xff]
        %v1320 = vld [vmem:[#allocation14 + $0x450] sm:$0xff]
        %v1321 = vld [vmem:[#allocation14 + $0x458] sm:$0xff]
        %v1322 = vld [vmem:[#allocation14 + $0x460] sm:$0xff]
        %v1323 = vld [vmem:[#allocation14 + $0x468] sm:$0xff]
        %v1324 = vld [vmem:[#allocation14 + $0x470] sm:$0xff]
        %v1325 = vld [vmem:[#allocation14 + $0x478] sm:$0xff]
        %v1326 = vld [vmem:[#allocation14 + $0x480] sm:$0xff]
        %v1327 = vld [vmem:[#allocation14 + $0x488] sm:$0xff]
        %v1328 = vld [vmem:[#allocation14 + $0x490] sm:$0xff]
        %v1329 = vld [vmem:[#allocation14 + $0x498] sm:$0xff]
        %v1330 = vld [vmem:[#allocation14 + $0x4a0] sm:$0xff]
        %v1331 = vld [vmem:[#allocation14 + $0x4a8] sm:$0xff]
        %v1332 = vld [vmem:[#allocation14 + $0x4b0] sm:$0xff]
        %v1333 = vld [vmem:[#allocation14 + $0x4b8] sm:$0xff]
        %v1334 = vld [vmem:[#allocation14 + $0x4c0] sm:$0xff]
        %v1335 = vld [vmem:[#allocation14 + $0x4c8] sm:$0xff]
        %v1336 = vld [vmem:[#allocation14 + $0x4d0] sm:$0xff]
        %v1337 = vld [vmem:[#allocation14 + $0x4d8] sm:$0xff]
        %v1338 = vld [vmem:[#allocation14 + $0x4e0] sm:$0xff]
        %v1339 = vld [vmem:[#allocation14 + $0x4e8] sm:$0xff]
        %v1340 = vld [vmem:[#allocation14 + $0x4f0] sm:$0xff]
        %v1341 = vld [vmem:[#allocation14 + $0x4f8] sm:$0xff]
        %v1342 = vld [vmem:[#allocation14 + $0x500] sm:$0xff]
        %v1343 = vld [vmem:[#allocation14 + $0x508] sm:$0xff]
        %v1344 = vld [vmem:[#allocation14 + $0x510] sm:$0xff]
        %v1345 = vld [vmem:[#allocation14 + $0x518] sm:$0xff]
        %v1346 = vld [vmem:[#allocation14 + $0x520] sm:$0xff]
        %v1347 = vld [vmem:[#allocation14 + $0x528] sm:$0xff]
        %v1348 = vld [vmem:[#allocation14 + $0x530] sm:$0xff]
        %v1349 = vld [vmem:[#allocation14 + $0x538] sm:$0xff]
        %v1350 = vld [vmem:[#allocation14 + $0x540] sm:$0xff]
        %v1351 = vld [vmem:[#allocation14 + $0x548] sm:$0xff]
        %v1352 = vld [vmem:[#allocation14 + $0x550] sm:$0xff]
        %v1353 = vld [vmem:[#allocation14 + $0x558] sm:$0xff]
        %v1354 = vld [vmem:[#allocation14 + $0x560] sm:$0xff]
        %v1355 = vld [vmem:[#allocation14 + $0x568] sm:$0xff]
        %v1356 = vld [vmem:[#allocation14 + $0x570] sm:$0xff]
        %v1357 = vld [vmem:[#allocation14 + $0x578] sm:$0xff]
        %v1358 = vld [vmem:[#allocation14 + $0x580] sm:$0xff]
        %v1359 = vld [vmem:[#allocation14 + $0x588] sm:$0xff]
        %v1360 = vld [vmem:[#allocation14 + $0x590] sm:$0xff]
        %v1361 = vld [vmem:[#allocation14 + $0x598] sm:$0xff]
        %v1362 = vld [vmem:[#allocation14 + $0x5a0] sm:$0xff]
        %v1363 = vld [vmem:[#allocation14 + $0x5a8] sm:$0xff]
        %v1364 = vld [vmem:[#allocation14 + $0x5b0] sm:$0xff]
        %v1365 = vld [vmem:[#allocation14 + $0x5b8] sm:$0xff]
        %v1366 = vld [vmem:[#allocation14 + $0x5c0] sm:$0xff]
        %v1367 = vld [vmem:[#allocation14 + $0x5c8] sm:$0xff]
        %v1368 = vld [vmem:[#allocation14 + $0x5d0] sm:$0xff]
        %v1369 = vld [vmem:[#allocation14 + $0x5d8] sm:$0xff]
        %v1370 = vld [vmem:[#allocation14 + $0x5e0] sm:$0xff]
        %v1371 = vld [vmem:[#allocation14 + $0x5e8] sm:$0xff]
        %v1372 = vld [vmem:[#allocation14 + $0x5f0] sm:$0xff]
        %v1373 = vld [vmem:[#allocation14 + $0x5f8] sm:$0xff]
        %v1374 = vld [vmem:[#allocation14 + $0x600] sm:$0xff]
        %v1375 = vld [vmem:[#allocation14 + $0x608] sm:$0xff]
        %v1376 = vld [vmem:[#allocation14 + $0x610] sm:$0xff]
        %v1377 = vld [vmem:[#allocation14 + $0x618] sm:$0xff]
        %v1378 = vld [vmem:[#allocation14 + $0x620] sm:$0xff]
        %v1379 = vld [vmem:[#allocation14 + $0x628] sm:$0xff]
        %v1380 = vld [vmem:[#allocation14 + $0x630] sm:$0xff]
        %v1381 = vld [vmem:[#allocation14 + $0x638] sm:$0xff]
        %v1382 = vld [vmem:[#allocation14 + $0x640] sm:$0xff]
        %v1383 = vld [vmem:[#allocation14 + $0x648] sm:$0xff]
        %v1384 = vld [vmem:[#allocation14 + $0x650] sm:$0xff]
        %v1385 = vld [vmem:[#allocation14 + $0x658] sm:$0xff]
        %v1386 = vld [vmem:[#allocation14 + $0x660] sm:$0xff]
        %v1387 = vld [vmem:[#allocation14 + $0x668] sm:$0xff]
        %v1388 = vld [vmem:[#allocation14 + $0x670] sm:$0xff]
        %v1389 = vld [vmem:[#allocation14 + $0x678] sm:$0xff]
        %v1390 = vld [vmem:[#allocation14 + $0x680] sm:$0xff]
        %v1391 = vld [vmem:[#allocation14 + $0x688] sm:$0xff]
        %v1392 = vld [vmem:[#allocation14 + $0x690] sm:$0xff]
        %v1393 = vld [vmem:[#allocation14 + $0x698] sm:$0xff]
        %v1394 = vld [vmem:[#allocation14 + $0x6a0] sm:$0xff]
        %v1395 = vld [vmem:[#allocation14 + $0x6a8] sm:$0xff]
        %v1396 = vld [vmem:[#allocation14 + $0x6b0] sm:$0xff]
        %v1397 = vld [vmem:[#allocation14 + $0x6b8] sm:$0xff]
        %v1398 = vld [vmem:[#allocation14 + $0x6c0] sm:$0xff]
        %v1399 = vld [vmem:[#allocation14 + $0x6c8] sm:$0xff]
        %v1400 = vld [vmem:[#allocation14 + $0x6d0] sm:$0xff]
        %v1401 = vld [vmem:[#allocation14 + $0x6d8] sm:$0xff]
        %v1402 = vld [vmem:[#allocation14 + $0x6e0] sm:$0xff]
        %v1403 = vld [vmem:[#allocation14 + $0x6e8] sm:$0xff]
        %v1404 = vld [vmem:[#allocation14 + $0x6f0] sm:$0xff]
        %v1405 = vld [vmem:[#allocation14 + $0x6f8] sm:$0xff]
        %v1406 = vld [vmem:[#allocation14 + $0x700] sm:$0xff]
        %v1407 = vld [vmem:[#allocation14 + $0x708] sm:$0xff]
        %v1408 = vld [vmem:[#allocation14 + $0x710] sm:$0xff]
        %v1409 = vld [vmem:[#allocation14 + $0x718] sm:$0xff]
        %v1410 = vld [vmem:[#allocation14 + $0x720] sm:$0xff]
        %v1411 = vld [vmem:[#allocation14 + $0x728] sm:$0xff]
        %v1412 = vld [vmem:[#allocation14 + $0x730] sm:$0xff]
        %v1413 = vld [vmem:[#allocation14 + $0x738] sm:$0xff]
        %v1414 = vld [vmem:[#allocation14 + $0x740] sm:$0xff]
        %v1415 = vld [vmem:[#allocation14 + $0x748] sm:$0xff]
        %v1416 = vld [vmem:[#allocation14 + $0x750] sm:$0xff]
        %v1417 = vld [vmem:[#allocation14 + $0x758] sm:$0xff]
        %v1418 = vld [vmem:[#allocation14 + $0x760] sm:$0xff]
        %v1419 = vld [vmem:[#allocation14 + $0x768] sm:$0xff]
        %v1420 = vld [vmem:[#allocation14 + $0x770] sm:$0xff]
        %v1421 = vld [vmem:[#allocation14 + $0x778] sm:$0xff]
        %v1422 = vld [vmem:[#allocation14 + $0x780] sm:$0xff]
        %v1423 = vld [vmem:[#allocation14 + $0x788] sm:$0xff]
        %v1424 = vld [vmem:[#allocation14 + $0x790] sm:$0xff]
        %v1425 = vld [vmem:[#allocation14 + $0x798] sm:$0xff]
        %v1426 = vld [vmem:[#allocation14 + $0x7a0] sm:$0xff]
        %v1427 = vld [vmem:[#allocation14 + $0x7a8] sm:$0xff]
        %v1428 = vld [vmem:[#allocation14 + $0x7b0] sm:$0xff]
        %v1429 = vld [vmem:[#allocation14 + $0x7b8] sm:$0xff]
        %v1430 = vld [vmem:[#allocation14 + $0x7c0] sm:$0xff]
        %v1431 = vld [vmem:[#allocation14 + $0x7c8] sm:$0xff]
        %v1432 = vld [vmem:[#allocation14 + $0x7d0] sm:$0xff]
        %v1433 = vld [vmem:[#allocation14 + $0x7d8] sm:$0xff]
        %v1434 = vld [vmem:[#allocation14 + $0x7e0] sm:$0xff]
        %v1435 = vld [vmem:[#allocation14 + $0x7e8] sm:$0xff]
        %v1436 = vld [vmem:[#allocation14 + $0x7f0] sm:$0xff]
        %v1437 = vld [vmem:[#allocation14 + $0x7f8] sm:$0xff]
        %v1438 = vld [vmem:[#allocation14 + $0x800] sm:$0xff]
        %v1439 = vld [vmem:[#allocation14 + $0x808] sm:$0xff]
        %v1440 = vld [vmem:[#allocation14 + $0x810] sm:$0xff]
        %v1441 = vld [vmem:[#allocation14 + $0x818] sm:$0xff]
        %v1442 = vld [vmem:[#allocation14 + $0x820] sm:$0xff]
        %v1443 = vld [vmem:[#allocation14 + $0x828] sm:$0xff]
        %v1444 = vld [vmem:[#allocation14 + $0x830] sm:$0xff]
        %v1445 = vld [vmem:[#allocation14 + $0x838] sm:$0xff]
        %v1446 = vld [vmem:[#allocation14 + $0x840] sm:$0xff]
        %v1447 = vld [vmem:[#allocation14 + $0x848] sm:$0xff]
        %v1448 = vld [vmem:[#allocation14 + $0x850] sm:$0xff]
        %v1449 = vld [vmem:[#allocation14 + $0x858] sm:$0xff]
        %v1450 = vld [vmem:[#allocation14 + $0x860] sm:$0xff]
        %v1451 = vld [vmem:[#allocation14 + $0x868] sm:$0xff]
        %v1452 = vld [vmem:[#allocation14 + $0x870] sm:$0xff]
        %v1453 = vld [vmem:[#allocation14 + $0x878] sm:$0xff]
        %v1454 = vld [vmem:[#allocation14 + $0x880] sm:$0xff]
        %v1455 = vld [vmem:[#allocation14 + $0x888] sm:$0xff]
        %v1456 = vld [vmem:[#allocation14 + $0x890] sm:$0xff]
        %v1457 = vld [vmem:[#allocation14 + $0x898] sm:$0xff]
        %v1458 = vld [vmem:[#allocation14 + $0x8a0] sm:$0xff]
        %v1459 = vld [vmem:[#allocation14 + $0x8a8] sm:$0xff]
        %v1460 = vld [vmem:[#allocation14 + $0x8b0] sm:$0xff]
        %v1461 = vld [vmem:[#allocation14 + $0x8b8] sm:$0xff]
        %v1462 = vld [vmem:[#allocation14 + $0x8c0] sm:$0xff]
        %v1463 = vld [vmem:[#allocation14 + $0x8c8] sm:$0xff]
        %v1464 = vld [vmem:[#allocation14 + $0x8d0] sm:$0xff]
        %v1465 = vld [vmem:[#allocation14 + $0x8d8] sm:$0xff]
        %v1466 = vld [vmem:[#allocation14 + $0x8e0] sm:$0xff]
        %v1467 = vld [vmem:[#allocation14 + $0x8e8] sm:$0xff]
        %v1468 = vld [vmem:[#allocation14 + $0x8f0] sm:$0xff]
        %v1469 = vld [vmem:[#allocation14 + $0x8f8] sm:$0xff]
        %v1470 = vld [vmem:[#allocation14 + $0x900] sm:$0xff]
        %v1471 = vld [vmem:[#allocation14 + $0x908] sm:$0xff]
        %v1472 = vld [vmem:[#allocation14 + $0x910] sm:$0xff]
        %v1473 = vld [vmem:[#allocation14 + $0x918] sm:$0xff]
        %v1474 = vld [vmem:[#allocation14 + $0x920] sm:$0xff]
        %v1475 = vld [vmem:[#allocation14 + $0x928] sm:$0xff]
        %v1476 = vld [vmem:[#allocation14 + $0x930] sm:$0xff]
        %v1477 = vld [vmem:[#allocation14 + $0x938] sm:$0xff]
        %v1478 = vld [vmem:[#allocation14 + $0x940] sm:$0xff]
        %v1479 = vld [vmem:[#allocation14 + $0x948] sm:$0xff]
        %v1480 = vld [vmem:[#allocation14 + $0x950] sm:$0xff]
        %v1481 = vld [vmem:[#allocation14 + $0x958] sm:$0xff]
        %v1482 = vld [vmem:[#allocation14 + $0x960] sm:$0xff]
        %v1483 = vld [vmem:[#allocation14 + $0x968] sm:$0xff]
        %v1484 = vld [vmem:[#allocation14 + $0x970] sm:$0xff]
        %v1485 = vld [vmem:[#allocation14 + $0x978] sm:$0xff]
        %v1486 = vld [vmem:[#allocation14 + $0x980] sm:$0xff]
        %v1487 = vld [vmem:[#allocation14 + $0x988] sm:$0xff]
        %v1488 = vld [vmem:[#allocation14 + $0x990] sm:$0xff]
        %v1489 = vld [vmem:[#allocation14 + $0x998] sm:$0xff]
        %v1490 = vld [vmem:[#allocation14 + $0x9a0] sm:$0xff]
        %v1491 = vld [vmem:[#allocation14 + $0x9a8] sm:$0xff]
        %v1492 = vld [vmem:[#allocation14 + $0x9b0] sm:$0xff]
        %v1493 = vld [vmem:[#allocation14 + $0x9b8] sm:$0xff]
        %v1494 = vld [vmem:[#allocation14 + $0x9c0] sm:$0xff]
        %v1495 = vld [vmem:[#allocation14 + $0x9c8] sm:$0xff]
        %v1496 = vld [vmem:[#allocation14 + $0x9d0] sm:$0xff]
        %v1497 = vld [vmem:[#allocation14 + $0x9d8] sm:$0xff]
        %v1498 = vld [vmem:[#allocation14 + $0x9e0] sm:$0xff]
        %v1499 = vld [vmem:[#allocation14 + $0x9e8] sm:$0xff]
        %v1500 = vld [vmem:[#allocation14 + $0x9f0] sm:$0xff]
        %v1501 = vld [vmem:[#allocation14 + $0x9f8] sm:$0xff]
        %v1502 = vld [vmem:[#allocation14 + $0xa00] sm:$0xff]
        %v1503 = vld [vmem:[#allocation14 + $0xa08] sm:$0xff]
        %v1504 = vld [vmem:[#allocation14 + $0xa10] sm:$0xff]
        %v1505 = vld [vmem:[#allocation14 + $0xa18] sm:$0xff]
        %v1506 = vld [vmem:[#allocation14 + $0xa20] sm:$0xff]
        %v1507 = vld [vmem:[#allocation14 + $0xa28] sm:$0xff]
        %v1508 = vld [vmem:[#allocation14 + $0xa30] sm:$0xff]
        %v1509 = vld [vmem:[#allocation14 + $0xa38] sm:$0xff]
        %v1510 = vld [vmem:[#allocation14 + $0xa40] sm:$0xff]
        %v1511 = vld [vmem:[#allocation14 + $0xa48] sm:$0xff]
        %v1512 = vld [vmem:[#allocation14 + $0xa50] sm:$0xff]
        %v1513 = vld [vmem:[#allocation14 + $0xa58] sm:$0xff]
        %v1514 = vld [vmem:[#allocation14 + $0xa60] sm:$0xff]
        %v1515 = vld [vmem:[#allocation14 + $0xa68] sm:$0xff]
        %v1516 = vld [vmem:[#allocation14 + $0xa70] sm:$0xff]
        %v1517 = vld [vmem:[#allocation14 + $0xa78] sm:$0xff]
        %v1518 = vld [vmem:[#allocation14 + $0xa80] sm:$0xff]
        %v1519 = vld [vmem:[#allocation14 + $0xa88] sm:$0xff]
        %v1520 = vld [vmem:[#allocation14 + $0xa90] sm:$0xff]
        %v1521 = vld [vmem:[#allocation14 + $0xa98] sm:$0xff]
        %v1522 = vld [vmem:[#allocation14 + $0xaa0] sm:$0xff]
        %v1523 = vld [vmem:[#allocation14 + $0xaa8] sm:$0xff]
        %v1524 = vld [vmem:[#allocation14 + $0xab0] sm:$0xff]
        %v1525 = vld [vmem:[#allocation14 + $0xab8] sm:$0xff]
        %v1526 = vld [vmem:[#allocation14 + $0xac0] sm:$0xff]
        %v1527 = vld [vmem:[#allocation14 + $0xac8] sm:$0xff]
        %v1528 = vld [vmem:[#allocation14 + $0xad0] sm:$0xff]
        %v1529 = vld [vmem:[#allocation14 + $0xad8] sm:$0xff]
        %v1530 = vld [vmem:[#allocation14 + $0xae0] sm:$0xff]
        %v1531 = vld [vmem:[#allocation14 + $0xae8] sm:$0xff]
        %v1532 = vld [vmem:[#allocation14 + $0xaf0] sm:$0xff]
        %v1533 = vld [vmem:[#allocation14 + $0xaf8] sm:$0xff]
        %v1534 = vld [vmem:[#allocation14 + $0xb00] sm:$0xff]
        %v1535 = vld [vmem:[#allocation14 + $0xb08] sm:$0xff]
        %v1536 = vld [vmem:[#allocation14 + $0xb10] sm:$0xff]
        %v1537 = vld [vmem:[#allocation14 + $0xb18] sm:$0xff]
        %v1538 = vld [vmem:[#allocation14 + $0xb20] sm:$0xff]
        %v1539 = vld [vmem:[#allocation14 + $0xb28] sm:$0xff]
        %v1540 = vld [vmem:[#allocation14 + $0xb30] sm:$0xff]
        %v1541 = vld [vmem:[#allocation14 + $0xb38] sm:$0xff]
        %v1542 = vld [vmem:[#allocation14 + $0xb40] sm:$0xff]
        %v1543 = vld [vmem:[#allocation14 + $0xb48] sm:$0xff]
        %v1544 = vld [vmem:[#allocation14 + $0xb50] sm:$0xff]
        %v1545 = vld [vmem:[#allocation14 + $0xb58] sm:$0xff]
        %v1546 = vld [vmem:[#allocation14 + $0xb60] sm:$0xff]
        %v1547 = vld [vmem:[#allocation14 + $0xb68] sm:$0xff]
        %v1548 = vld [vmem:[#allocation14 + $0xb70] sm:$0xff]
        %v1549 = vld [vmem:[#allocation14 + $0xb78] sm:$0xff]
        %v1550 = vld [vmem:[#allocation14 + $0xb80] sm:$0xff]
        %v1551 = vld [vmem:[#allocation14 + $0xb88] sm:$0xff]
        %v1552 = vld [vmem:[#allocation14 + $0xb90] sm:$0xff]
        %v1553 = vld [vmem:[#allocation14 + $0xb98] sm:$0xff]
        %v1554 = vld [vmem:[#allocation14 + $0xba0] sm:$0xff]
        %v1555 = vld [vmem:[#allocation14 + $0xba8] sm:$0xff]
        %v1556 = vld [vmem:[#allocation14 + $0xbb0] sm:$0xff]
        %v1557 = vld [vmem:[#allocation14 + $0xbb8] sm:$0xff]
        %v1558 = vld [vmem:[#allocation14 + $0xbc0] sm:$0xff]
        %v1559 = vld [vmem:[#allocation14 + $0xbc8] sm:$0xff]
        %v1560 = vld [vmem:[#allocation14 + $0xbd0] sm:$0xff]
        %v1561 = vld [vmem:[#allocation14 + $0xbd8] sm:$0xff]
        %v1562 = vld [vmem:[#allocation14 + $0xbe0] sm:$0xff]
        %v1563 = vld [vmem:[#allocation14 + $0xbe8] sm:$0xff]
        %v1564 = vld [vmem:[#allocation14 + $0xbf0] sm:$0xff]
        %v1565 = vld [vmem:[#allocation14 + $0xbf8] sm:$0xff]
        %v1566 = vld [vmem:[#allocation7] sm:$0xf]
        %v1567 = vld [vmem:[#allocation10] sm:$0x3]
        %v1568 = vld [vmem:[#allocation13] sm:$0xf]
        %v1569 = vld [vmem:[#allocation16] sm:$0x3f]
        %v1570 = vld [vmem:[%s441] sm:$0xff]
        %v1571 = vld [vmem:[%s441 + $0x8] sm:$0xff]
        %v1572 = vld [vmem:[%s441 + $0x10] sm:$0xff]
        %v1573 = vld [vmem:[%s441 + $0x18] sm:$0xff]
        %v1574 = vld [vmem:[%s441 + $0x20] sm:$0xff]
        %v1575 = vld [vmem:[%s441 + $0x28] sm:$0xff]
        %v1576 = vld [vmem:[%s441 + $0x30] sm:$0xff]
        %v1577 = vld [vmem:[%s441 + $0x38] sm:$0xff]
        %v1578 = vld [vmem:[%s441 + $0x40] sm:$0xff]
        %v1579 = vld [vmem:[%s441 + $0x48] sm:$0xff]
        %v1580 = vld [vmem:[%s441 + $0x50] sm:$0xff]
        %v1581 = vld [vmem:[%s441 + $0x58] sm:$0xff]
        %v1582 = vld [vmem:[%s441 + $0x60] sm:$0xff]
        %v1583 = vld [vmem:[%s441 + $0x68] sm:$0xff]
        %v1584 = vld [vmem:[%s441 + $0x70] sm:$0xff]
        %v1585 = vld [vmem:[%s441 + $0x78] sm:$0xff]
        %v1586 = vld [vmem:[%s441 + $0x80] sm:$0xff]
        %v1587 = vld [vmem:[%s441 + $0x88] sm:$0xff]
        %v1588 = vld [vmem:[%s441 + $0x90] sm:$0xff]
        %v1589 = vld [vmem:[%s441 + $0x98] sm:$0xff]
        %v1590 = vld [vmem:[%s441 + $0xa0] sm:$0xff]
        %v1591 = vld [vmem:[%s441 + $0xa8] sm:$0xff]
        %v1592 = vld [vmem:[%s441 + $0xb0] sm:$0xff]
        %v1593 = vld [vmem:[%s441 + $0xb8] sm:$0xff]
        %v1594 = vld [vmem:[%s441 + $0xc0] sm:$0xff]
        %v1595 = vld [vmem:[%s441 + $0xc8] sm:$0xff]
        %v1596 = vld [vmem:[%s441 + $0xd0] sm:$0xff]
        %v1597 = vld [vmem:[%s441 + $0xd8] sm:$0xff]
        %v1598 = vld [vmem:[%s441 + $0xe0] sm:$0xff]
        %v1599 = vld [vmem:[%s441 + $0xe8] sm:$0xff]
        %v1600 = vld [vmem:[%s441 + $0xf0] sm:$0xff]
        %v1601 = vld [vmem:[%s441 + $0xf8] sm:$0xff]
        %v1602 = vld [vmem:[%s441 + $0x100] sm:$0xff]
        %v1603 = vld [vmem:[%s441 + $0x108] sm:$0xff]
        %v1604 = vld [vmem:[%s441 + $0x110] sm:$0xff]
        %v1605 = vld [vmem:[%s441 + $0x118] sm:$0xff]
        %v1606 = vld [vmem:[%s441 + $0x120] sm:$0xff]
        %v1607 = vld [vmem:[%s441 + $0x128] sm:$0xff]
        %v1608 = vld [vmem:[%s441 + $0x130] sm:$0xff]
        %v1609 = vld [vmem:[%s441 + $0x138] sm:$0xff]
        %v1610 = vld [vmem:[%s441 + $0x140] sm:$0xff]
        %v1611 = vld [vmem:[%s441 + $0x148] sm:$0xff]
        %v1612 = vld [vmem:[%s441 + $0x150] sm:$0xff]
        %v1613 = vld [vmem:[%s441 + $0x158] sm:$0xff]
        %v1614 = vld [vmem:[%s441 + $0x160] sm:$0xff]
        %v1615 = vld [vmem:[%s441 + $0x168] sm:$0xff]
        %v1616 = vld [vmem:[%s441 + $0x170] sm:$0xff]
        %v1617 = vld [vmem:[%s441 + $0x178] sm:$0xff]
        %v1618 = vld [vmem:[%s441 + $0x180] sm:$0xff]
        %v1619 = vld [vmem:[%s441 + $0x188] sm:$0xff]
        %v1620 = vld [vmem:[%s441 + $0x190] sm:$0xff]
        %v1621 = vld [vmem:[%s441 + $0x198] sm:$0xff]
        %v1622 = vld [vmem:[%s441 + $0x1a0] sm:$0xff]
        %v1623 = vld [vmem:[%s441 + $0x1a8] sm:$0xff]
        %v1624 = vld [vmem:[%s441 + $0x1b0] sm:$0xff]
        %v1625 = vld [vmem:[%s441 + $0x1b8] sm:$0xff]
        %v1626 = vld [vmem:[%s441 + $0x1c0] sm:$0xff]
        %v1627 = vld [vmem:[%s441 + $0x1c8] sm:$0xff]
        %v1628 = vld [vmem:[%s441 + $0x1d0] sm:$0xff]
        %v1629 = vld [vmem:[%s441 + $0x1d8] sm:$0xff]
        %v1630 = vld [vmem:[%s441 + $0x1e0] sm:$0xff]
        %v1631 = vld [vmem:[%s441 + $0x1e8] sm:$0xff]
        %v1632 = vld [vmem:[%s441 + $0x1f0] sm:$0xff]
        %v1633 = vld [vmem:[%s441 + $0x1f8] sm:$0xff]
        %v1634 = vld [vmem:[%s441 + $0x200] sm:$0xff]
        %v1635 = vld [vmem:[%s441 + $0x208] sm:$0xff]
        %v1636 = vld [vmem:[%s441 + $0x210] sm:$0xff]
        %v1637 = vld [vmem:[%s441 + $0x218] sm:$0xff]
        %v1638 = vld [vmem:[%s441 + $0x220] sm:$0xff]
        %v1639 = vld [vmem:[%s441 + $0x228] sm:$0xff]
        %v1640 = vld [vmem:[%s441 + $0x230] sm:$0xff]
        %v1641 = vld [vmem:[%s441 + $0x238] sm:$0xff]
        %v1642 = vld [vmem:[%s441 + $0x240] sm:$0xff]
        %v1643 = vld [vmem:[%s441 + $0x248] sm:$0xff]
        %v1644 = vld [vmem:[%s441 + $0x250] sm:$0xff]
        %v1645 = vld [vmem:[%s441 + $0x258] sm:$0xff]
        %v1646 = vld [vmem:[%s441 + $0x260] sm:$0xff]
        %v1647 = vld [vmem:[%s441 + $0x268] sm:$0xff]
        %v1648 = vld [vmem:[%s441 + $0x270] sm:$0xff]
        %v1649 = vld [vmem:[%s441 + $0x278] sm:$0xff]
        %v1650 = vld [vmem:[%s441 + $0x280] sm:$0xff]
        %v1651 = vld [vmem:[%s441 + $0x288] sm:$0xff]
        %v1652 = vld [vmem:[%s441 + $0x290] sm:$0xff]
        %v1653 = vld [vmem:[%s441 + $0x298] sm:$0xff]
        %v1654 = vld [vmem:[%s441 + $0x2a0] sm:$0xff]
        %v1655 = vld [vmem:[%s441 + $0x2a8] sm:$0xff]
        %v1656 = vld [vmem:[%s441 + $0x2b0] sm:$0xff]
        %v1657 = vld [vmem:[%s441 + $0x2b8] sm:$0xff]
        %v1658 = vld [vmem:[%s441 + $0x2c0] sm:$0xff]
        %v1659 = vld [vmem:[%s441 + $0x2c8] sm:$0xff]
        %v1660 = vld [vmem:[%s441 + $0x2d0] sm:$0xff]
        %v1661 = vld [vmem:[%s441 + $0x2d8] sm:$0xff]
        %v1662 = vld [vmem:[%s441 + $0x2e0] sm:$0xff]
        %v1663 = vld [vmem:[%s441 + $0x2e8] sm:$0xff]
        %v1664 = vld [vmem:[%s441 + $0x2f0] sm:$0xff]
        %v1665 = vld [vmem:[%s441 + $0x2f8] sm:$0xff]
        %v1667 = vperm.slane %v1566, 0
        %v1668 = vperm.slane %v1566, 1
        %v1669 = vperm.slane %v1566, 2
        %v1670 = vperm.slane %v1566, 3
        %1675 = vmatpush.msra.mxu0 %v602
        %1676 = vmatpush.msra.mxu0 %v598
        %1677 = vmatpush.msra.mxu0 %v594
        %1678 = vmatpush.msra.mxu0 %v590
        %1679 = vmatpush.msra.mxu0 %v586
        %1680 = vmatpush.msra.mxu0 %v582
        %1681 = vmatpush.msra.mxu0 %v578
        %1682 = vmatpush.msra.mxu0 %v574
        %1683 = vmatpush.msra.mxu0 %v570
        %1684 = vmatpush.msra.mxu0 %v566
        %1685 = vmatpush.msra.mxu0 %v562
        %1686 = vmatpush.msra.mxu0 %v558
        %1687 = vmatpush.msra.mxu0 %v554
        %1688 = vmatpush.msra.mxu0 %v550
        %1689 = vmatpush.msra.mxu0 %v546
        %1690 = vmatpush.msra.mxu0 %v542
        %1691 = vmatmul.f32.gmra.mxu0 %v1570
        %v1692 = vpop.f32.mrf.mxu0
        %v1693 = vadd.f32 %v1667, %v1692
        %1694 = vmatmul.f32.gmra.mxu0 %v1576
        %v1695 = vpop.f32.mrf.mxu0
        %v1696 = vadd.f32 %v1667, %v1695
        %1697 = vmatmul.f32.gmra.mxu0 %v1582
        %v1698 = vpop.f32.mrf.mxu0
        %v1699 = vadd.f32 %v1667, %v1698
        %1700 = vmatmul.f32.gmra.mxu0 %v1588
        %v1701 = vpop.f32.mrf.mxu0
        %v1702 = vadd.f32 %v1667, %v1701
        %1703 = vmatmul.f32.gmra.mxu0 %v1594
        %v1704 = vpop.f32.mrf.mxu0
        %v1705 = vadd.f32 %v1667, %v1704
        %1706 = vmatmul.f32.gmra.mxu0 %v1600
        %v1707 = vpop.f32.mrf.mxu0
        %v1708 = vadd.f32 %v1667, %v1707
        %1709 = vmatmul.f32.gmra.mxu0 %v1606
        %v1710 = vpop.f32.mrf.mxu0
        %v1711 = vadd.f32 %v1667, %v1710
        %1712 = vmatmul.f32.gmra.mxu0 %v1612
        %v1713 = vpop.f32.mrf.mxu0
        %v1714 = vadd.f32 %v1667, %v1713
        %1715 = vmatmul.f32.gmra.mxu0 %v1618
        %v1716 = vpop.f32.mrf.mxu0
        %v1717 = vadd.f32 %v1667, %v1716
        %1718 = vmatmul.f32.gmra.mxu0 %v1624
        %v1719 = vpop.f32.mrf.mxu0
        %v1720 = vadd.f32 %v1667, %v1719
        %1721 = vmatmul.f32.gmra.mxu0 %v1630
        %v1722 = vpop.f32.mrf.mxu0
        %v1723 = vadd.f32 %v1667, %v1722
        %1724 = vmatmul.f32.gmra.mxu0 %v1636
        %v1725 = vpop.f32.mrf.mxu0
        %v1726 = vadd.f32 %v1667, %v1725
        %1727 = vmatmul.f32.gmra.mxu0 %v1642
        %v1728 = vpop.f32.mrf.mxu0
        %v1729 = vadd.f32 %v1667, %v1728
        %1730 = vmatmul.f32.gmra.mxu0 %v1648
        %v1731 = vpop.f32.mrf.mxu0
        %v1732 = vadd.f32 %v1667, %v1731
        %1733 = vmatmul.f32.gmra.mxu0 %v1654
        %v1734 = vpop.f32.mrf.mxu0
        %v1735 = vadd.f32 %v1667, %v1734
        %1736 = vmatmul.f32.gmra.mxu0 %v1660
        %v1737 = vpop.f32.mrf.mxu0
        %v1738 = vadd.f32 %v1667, %v1737
        %1739 = vdwg.mxu0
        %1740 = vmatpush.msra.mxu0 %v666
        %1741 = vmatpush.msra.mxu0 %v662
        %1742 = vmatpush.msra.mxu0 %v658
        %1743 = vmatpush.msra.mxu0 %v654
        %1744 = vmatpush.msra.mxu0 %v650
        %1745 = vmatpush.msra.mxu0 %v646
        %1746 = vmatpush.msra.mxu0 %v642
        %1747 = vmatpush.msra.mxu0 %v638
        %1748 = vmatpush.msra.mxu0 %v634
        %1749 = vmatpush.msra.mxu0 %v630
        %1750 = vmatpush.msra.mxu0 %v626
        %1751 = vmatpush.msra.mxu0 %v622
        %1752 = vmatpush.msra.mxu0 %v618
        %1753 = vmatpush.msra.mxu0 %v614
        %1754 = vmatpush.msra.mxu0 %v610
        %1755 = vmatpush.msra.mxu0 %v606
        %1756 = vmatmul.f32.gmra.mxu0 %v1571
        %v1757 = vpop.f32.mrf.mxu0
        %v1758 = vadd.f32 %v1693, %v1757
        %1759 = vmatmul.f32.gmra.mxu0 %v1577
        %v1760 = vpop.f32.mrf.mxu0
        %v1761 = vadd.f32 %v1696, %v1760
        %1762 = vmatmul.f32.gmra.mxu0 %v1583
        %v1763 = vpop.f32.mrf.mxu0
        %v1764 = vadd.f32 %v1699, %v1763
        %1765 = vmatmul.f32.gmra.mxu0 %v1589
        %v1766 = vpop.f32.mrf.mxu0
        %v1767 = vadd.f32 %v1702, %v1766
        %1768 = vmatmul.f32.gmra.mxu0 %v1595
        %v1769 = vpop.f32.mrf.mxu0
        %v1770 = vadd.f32 %v1705, %v1769
        %1771 = vmatmul.f32.gmra.mxu0 %v1601
        %v1772 = vpop.f32.mrf.mxu0
        %v1773 = vadd.f32 %v1708, %v1772
        %1774 = vmatmul.f32.gmra.mxu0 %v1607
        %v1775 = vpop.f32.mrf.mxu0
        %v1776 = vadd.f32 %v1711, %v1775
        %1777 = vmatmul.f32.gmra.mxu0 %v1613
        %v1778 = vpop.f32.mrf.mxu0
        %v1779 = vadd.f32 %v1714, %v1778
        %1780 = vmatmul.f32.gmra.mxu0 %v1619
        %v1781 = vpop.f32.mrf.mxu0
        %v1782 = vadd.f32 %v1717, %v1781
        %1783 = vmatmul.f32.gmra.mxu0 %v1625
        %v1784 = vpop.f32.mrf.mxu0
        %v1785 = vadd.f32 %v1720, %v1784
        %1786 = vmatmul.f32.gmra.mxu0 %v1631
        %v1787 = vpop.f32.mrf.mxu0
        %v1788 = vadd.f32 %v1723, %v1787
        %1789 = vmatmul.f32.gmra.mxu0 %v1637
        %v1790 = vpop.f32.mrf.mxu0
        %v1791 = vadd.f32 %v1726, %v1790
        %1792 = vmatmul.f32.gmra.mxu0 %v1643
        %v1793 = vpop.f32.mrf.mxu0
        %v1794 = vadd.f32 %v1729, %v1793
        %1795 = vmatmul.f32.gmra.mxu0 %v1649
        %v1796 = vpop.f32.mrf.mxu0
        %v1797 = vadd.f32 %v1732, %v1796
        %1798 = vmatmul.f32.gmra.mxu0 %v1655
        %v1799 = vpop.f32.mrf.mxu0
        %v1800 = vadd.f32 %v1735, %v1799
        %1801 = vmatmul.f32.gmra.mxu0 %v1661
        %v1802 = vpop.f32.mrf.mxu0
        %v1803 = vadd.f32 %v1738, %v1802
        %1804 = vdwg.mxu0
        %1805 = vmatpush.msra.mxu0 %v730
        %1806 = vmatpush.msra.mxu0 %v726
        %1807 = vmatpush.msra.mxu0 %v722
        %1808 = vmatpush.msra.mxu0 %v718
        %1809 = vmatpush.msra.mxu0 %v714
        %1810 = vmatpush.msra.mxu0 %v710
        %1811 = vmatpush.msra.mxu0 %v706
        %1812 = vmatpush.msra.mxu0 %v702
        %1813 = vmatpush.msra.mxu0 %v698
        %1814 = vmatpush.msra.mxu0 %v694
        %1815 = vmatpush.msra.mxu0 %v690
        %1816 = vmatpush.msra.mxu0 %v686
        %1817 = vmatpush.msra.mxu0 %v682
        %1818 = vmatpush.msra.mxu0 %v678
        %1819 = vmatpush.msra.mxu0 %v674
        %1820 = vmatpush.msra.mxu0 %v670
        %1821 = vmatmul.f32.gmra.mxu0 %v1572
        %v1822 = vpop.f32.mrf.mxu0
        %v1823 = vadd.f32 %v1758, %v1822
        %1824 = vmatmul.f32.gmra.mxu0 %v1578
        %v1825 = vpop.f32.mrf.mxu0
        %v1826 = vadd.f32 %v1761, %v1825
        %1827 = vmatmul.f32.gmra.mxu0 %v1584
        %v1828 = vpop.f32.mrf.mxu0
        %v1829 = vadd.f32 %v1764, %v1828
        %1830 = vmatmul.f32.gmra.mxu0 %v1590
        %v1831 = vpop.f32.mrf.mxu0
        %v1832 = vadd.f32 %v1767, %v1831
        %1833 = vmatmul.f32.gmra.mxu0 %v1596
        %v1834 = vpop.f32.mrf.mxu0
        %v1835 = vadd.f32 %v1770, %v1834
        %1836 = vmatmul.f32.gmra.mxu0 %v1602
        %v1837 = vpop.f32.mrf.mxu0
        %v1838 = vadd.f32 %v1773, %v1837
        %1839 = vmatmul.f32.gmra.mxu0 %v1608
        %v1840 = vpop.f32.mrf.mxu0
        %v1841 = vadd.f32 %v1776, %v1840
        %1842 = vmatmul.f32.gmra.mxu0 %v1614
        %v1843 = vpop.f32.mrf.mxu0
        %v1844 = vadd.f32 %v1779, %v1843
        %1845 = vmatmul.f32.gmra.mxu0 %v1620
        %v1846 = vpop.f32.mrf.mxu0
        %v1847 = vadd.f32 %v1782, %v1846
        %1848 = vmatmul.f32.gmra.mxu0 %v1626
        %v1849 = vpop.f32.mrf.mxu0
        %v1850 = vadd.f32 %v1785, %v1849
        %1851 = vmatmul.f32.gmra.mxu0 %v1632
        %v1852 = vpop.f32.mrf.mxu0
        %v1853 = vadd.f32 %v1788, %v1852
        %1854 = vmatmul.f32.gmra.mxu0 %v1638
        %v1855 = vpop.f32.mrf.mxu0
        %v1856 = vadd.f32 %v1791, %v1855
        %1857 = vmatmul.f32.gmra.mxu0 %v1644
        %v1858 = vpop.f32.mrf.mxu0
        %v1859 = vadd.f32 %v1794, %v1858
        %1860 = vmatmul.f32.gmra.mxu0 %v1650
        %v1861 = vpop.f32.mrf.mxu0
        %v1862 = vadd.f32 %v1797, %v1861
        %1863 = vmatmul.f32.gmra.mxu0 %v1656
        %v1864 = vpop.f32.mrf.mxu0
        %v1865 = vadd.f32 %v1800, %v1864
        %1866 = vmatmul.f32.gmra.mxu0 %v1662
        %v1867 = vpop.f32.mrf.mxu0
        %v1868 = vadd.f32 %v1803, %v1867
        %1869 = vdwg.mxu0
        %1870 = vmatpush.msra.mxu0 %v794
        %1871 = vmatpush.msra.mxu0 %v790
        %1872 = vmatpush.msra.mxu0 %v786
        %1873 = vmatpush.msra.mxu0 %v782
        %1874 = vmatpush.msra.mxu0 %v778
        %1875 = vmatpush.msra.mxu0 %v774
        %1876 = vmatpush.msra.mxu0 %v770
        %1877 = vmatpush.msra.mxu0 %v766
        %1878 = vmatpush.msra.mxu0 %v762
        %1879 = vmatpush.msra.mxu0 %v758
        %1880 = vmatpush.msra.mxu0 %v754
        %1881 = vmatpush.msra.mxu0 %v750
        %1882 = vmatpush.msra.mxu0 %v746
        %1883 = vmatpush.msra.mxu0 %v742
        %1884 = vmatpush.msra.mxu0 %v738
        %1885 = vmatpush.msra.mxu0 %v734
        %1886 = vmatmul.f32.gmra.mxu0 %v1573
        %v1887 = vpop.f32.mrf.mxu0
        %v1888 = vadd.f32 %v1823, %v1887
        %1889 = vmatmul.f32.gmra.mxu0 %v1579
        %v1890 = vpop.f32.mrf.mxu0
        %v1891 = vadd.f32 %v1826, %v1890
        %1892 = vmatmul.f32.gmra.mxu0 %v1585
        %v1893 = vpop.f32.mrf.mxu0
        %v1894 = vadd.f32 %v1829, %v1893
        %1895 = vmatmul.f32.gmra.mxu0 %v1591
        %v1896 = vpop.f32.mrf.mxu0
        %v1897 = vadd.f32 %v1832, %v1896
        %1898 = vmatmul.f32.gmra.mxu0 %v1597
        %v1899 = vpop.f32.mrf.mxu0
        %v1900 = vadd.f32 %v1835, %v1899
        %1901 = vmatmul.f32.gmra.mxu0 %v1603
        %v1902 = vpop.f32.mrf.mxu0
        %v1903 = vadd.f32 %v1838, %v1902
        %1904 = vmatmul.f32.gmra.mxu0 %v1609
        %v1905 = vpop.f32.mrf.mxu0
        %v1906 = vadd.f32 %v1841, %v1905
        %1907 = vmatmul.f32.gmra.mxu0 %v1615
        %v1908 = vpop.f32.mrf.mxu0
        %v1909 = vadd.f32 %v1844, %v1908
        %1910 = vmatmul.f32.gmra.mxu0 %v1621
        %v1911 = vpop.f32.mrf.mxu0
        %v1912 = vadd.f32 %v1847, %v1911
        %1913 = vmatmul.f32.gmra.mxu0 %v1627
        %v1914 = vpop.f32.mrf.mxu0
        %v1915 = vadd.f32 %v1850, %v1914
        %1916 = vmatmul.f32.gmra.mxu0 %v1633
        %v1917 = vpop.f32.mrf.mxu0
        %v1918 = vadd.f32 %v1853, %v1917
        %1919 = vmatmul.f32.gmra.mxu0 %v1639
        %v1920 = vpop.f32.mrf.mxu0
        %v1921 = vadd.f32 %v1856, %v1920
        %1922 = vmatmul.f32.gmra.mxu0 %v1645
        %v1923 = vpop.f32.mrf.mxu0
        %v1924 = vadd.f32 %v1859, %v1923
        %1925 = vmatmul.f32.gmra.mxu0 %v1651
        %v1926 = vpop.f32.mrf.mxu0
        %v1927 = vadd.f32 %v1862, %v1926
        %1928 = vmatmul.f32.gmra.mxu0 %v1657
        %v1929 = vpop.f32.mrf.mxu0
        %v1930 = vadd.f32 %v1865, %v1929
        %1931 = vmatmul.f32.gmra.mxu0 %v1663
        %v1932 = vpop.f32.mrf.mxu0
        %v1933 = vadd.f32 %v1868, %v1932
        %1934 = vdwg.mxu0
        %1935 = vmatpush.msra.mxu0 %v858
        %1936 = vmatpush.msra.mxu0 %v854
        %1937 = vmatpush.msra.mxu0 %v850
        %1938 = vmatpush.msra.mxu0 %v846
        %1939 = vmatpush.msra.mxu0 %v842
        %1940 = vmatpush.msra.mxu0 %v838
        %1941 = vmatpush.msra.mxu0 %v834
        %1942 = vmatpush.msra.mxu0 %v830
        %1943 = vmatpush.msra.mxu0 %v826
        %1944 = vmatpush.msra.mxu0 %v822
        %1945 = vmatpush.msra.mxu0 %v818
        %1946 = vmatpush.msra.mxu0 %v814
        %1947 = vmatpush.msra.mxu0 %v810
        %1948 = vmatpush.msra.mxu0 %v806
        %1949 = vmatpush.msra.mxu0 %v802
        %1950 = vmatpush.msra.mxu0 %v798
        %1951 = vmatmul.f32.gmra.mxu0 %v1574
        %v1952 = vpop.f32.mrf.mxu0
        %v1953 = vadd.f32 %v1888, %v1952
        %1954 = vmatmul.f32.gmra.mxu0 %v1580
        %v1955 = vpop.f32.mrf.mxu0
        %v1956 = vadd.f32 %v1891, %v1955
        %1957 = vmatmul.f32.gmra.mxu0 %v1586
        %v1958 = vpop.f32.mrf.mxu0
        %v1959 = vadd.f32 %v1894, %v1958
        %1960 = vmatmul.f32.gmra.mxu0 %v1592
        %v1961 = vpop.f32.mrf.mxu0
        %v1962 = vadd.f32 %v1897, %v1961
        %1963 = vmatmul.f32.gmra.mxu0 %v1598
        %v1964 = vpop.f32.mrf.mxu0
        %v1965 = vadd.f32 %v1900, %v1964
        %1966 = vmatmul.f32.gmra.mxu0 %v1604
        %v1967 = vpop.f32.mrf.mxu0
        %v1968 = vadd.f32 %v1903, %v1967
        %1969 = vmatmul.f32.gmra.mxu0 %v1610
        %v1970 = vpop.f32.mrf.mxu0
        %v1971 = vadd.f32 %v1906, %v1970
        %1972 = vmatmul.f32.gmra.mxu0 %v1616
        %v1973 = vpop.f32.mrf.mxu0
        %v1974 = vadd.f32 %v1909, %v1973
        %1975 = vmatmul.f32.gmra.mxu0 %v1622
        %v1976 = vpop.f32.mrf.mxu0
        %v1977 = vadd.f32 %v1912, %v1976
        %1978 = vmatmul.f32.gmra.mxu0 %v1628
        %v1979 = vpop.f32.mrf.mxu0
        %v1980 = vadd.f32 %v1915, %v1979
        %1981 = vmatmul.f32.gmra.mxu0 %v1634
        %v1982 = vpop.f32.mrf.mxu0
        %v1983 = vadd.f32 %v1918, %v1982
        %1984 = vmatmul.f32.gmra.mxu0 %v1640
        %v1985 = vpop.f32.mrf.mxu0
        %v1986 = vadd.f32 %v1921, %v1985
        %1987 = vmatmul.f32.gmra.mxu0 %v1646
        %v1988 = vpop.f32.mrf.mxu0
        %v1989 = vadd.f32 %v1924, %v1988
        %1990 = vmatmul.f32.gmra.mxu0 %v1652
        %v1991 = vpop.f32.mrf.mxu0
        %v1992 = vadd.f32 %v1927, %v1991
        %1993 = vmatmul.f32.gmra.mxu0 %v1658
        %v1994 = vpop.f32.mrf.mxu0
        %v1995 = vadd.f32 %v1930, %v1994
        %1996 = vmatmul.f32.gmra.mxu0 %v1664
        %v1997 = vpop.f32.mrf.mxu0
        %v1998 = vadd.f32 %v1933, %v1997
        %1999 = vdwg.mxu0
        %2000 = vmatpush.msra.mxu0 %v922
        %2001 = vmatpush.msra.mxu0 %v918
        %2002 = vmatpush.msra.mxu0 %v914
        %2003 = vmatpush.msra.mxu0 %v910
        %2004 = vmatpush.msra.mxu0 %v906
        %2005 = vmatpush.msra.mxu0 %v902
        %2006 = vmatpush.msra.mxu0 %v898
        %2007 = vmatpush.msra.mxu0 %v894
        %2008 = vmatpush.msra.mxu0 %v890
        %2009 = vmatpush.msra.mxu0 %v886
        %2010 = vmatpush.msra.mxu0 %v882
        %2011 = vmatpush.msra.mxu0 %v878
        %2012 = vmatpush.msra.mxu0 %v874
        %2013 = vmatpush.msra.mxu0 %v870
        %2014 = vmatpush.msra.mxu0 %v866
        %2015 = vmatpush.msra.mxu0 %v862
        %2016 = vmatmul.f32.gmra.mxu0 %v1575
        %v2017 = vpop.f32.mrf.mxu0
        %v2018 = vadd.f32 %v1953, %v2017
        %2019 = vmatmul.f32.gmra.mxu0 %v1581
        %v2020 = vpop.f32.mrf.mxu0
        %v2021 = vadd.f32 %v1956, %v2020
        %2022 = vmatmul.f32.gmra.mxu0 %v1587
        %v2023 = vpop.f32.mrf.mxu0
        %v2024 = vadd.f32 %v1959, %v2023
        %2025 = vmatmul.f32.gmra.mxu0 %v1593
        %v2026 = vpop.f32.mrf.mxu0
        %v2027 = vadd.f32 %v1962, %v2026
        %2028 = vmatmul.f32.gmra.mxu0 %v1599
        %v2029 = vpop.f32.mrf.mxu0
        %v2030 = vadd.f32 %v1965, %v2029
        %2031 = vmatmul.f32.gmra.mxu0 %v1605
        %v2032 = vpop.f32.mrf.mxu0
        %v2033 = vadd.f32 %v1968, %v2032
        %2034 = vmatmul.f32.gmra.mxu0 %v1611
        %v2035 = vpop.f32.mrf.mxu0
        %v2036 = vadd.f32 %v1971, %v2035
        %2037 = vmatmul.f32.gmra.mxu0 %v1617
        %v2038 = vpop.f32.mrf.mxu0
        %v2039 = vadd.f32 %v1974, %v2038
        %2040 = vmatmul.f32.gmra.mxu0 %v1623
        %v2041 = vpop.f32.mrf.mxu0
        %v2042 = vadd.f32 %v1977, %v2041
        %2043 = vmatmul.f32.gmra.mxu0 %v1629
        %v2044 = vpop.f32.mrf.mxu0
        %v2045 = vadd.f32 %v1980, %v2044
        %2046 = vmatmul.f32.gmra.mxu0 %v1635
        %v2047 = vpop.f32.mrf.mxu0
        %v2048 = vadd.f32 %v1983, %v2047
        %2049 = vmatmul.f32.gmra.mxu0 %v1641
        %v2050 = vpop.f32.mrf.mxu0
        %v2051 = vadd.f32 %v1986, %v2050
        %2052 = vmatmul.f32.gmra.mxu0 %v1647
        %v2053 = vpop.f32.mrf.mxu0
        %v2054 = vadd.f32 %v1989, %v2053
        %2055 = vmatmul.f32.gmra.mxu0 %v1653
        %v2056 = vpop.f32.mrf.mxu0
        %v2057 = vadd.f32 %v1992, %v2056
        %2058 = vmatmul.f32.gmra.mxu0 %v1659
        %v2059 = vpop.f32.mrf.mxu0
        %v2060 = vadd.f32 %v1995, %v2059
        %2061 = vmatmul.f32.gmra.mxu0 %v1665
        %v2062 = vpop.f32.mrf.mxu0
        %v2063 = vadd.f32 %v1998, %v2062
        %2064 = vdwg.mxu0
        %2065 = vmatpush.msra.mxu0 %v603
        %2066 = vmatpush.msra.mxu0 %v599
        %2067 = vmatpush.msra.mxu0 %v595
        %2068 = vmatpush.msra.mxu0 %v591
        %2069 = vmatpush.msra.mxu0 %v587
        %2070 = vmatpush.msra.mxu0 %v583
        %2071 = vmatpush.msra.mxu0 %v579
        %2072 = vmatpush.msra.mxu0 %v575
        %2073 = vmatpush.msra.mxu0 %v571
        %2074 = vmatpush.msra.mxu0 %v567
        %2075 = vmatpush.msra.mxu0 %v563
        %2076 = vmatpush.msra.mxu0 %v559
        %2077 = vmatpush.msra.mxu0 %v555
        %2078 = vmatpush.msra.mxu0 %v551
        %2079 = vmatpush.msra.mxu0 %v547
        %2080 = vmatpush.msra.mxu0 %v543
        %2081 = vmatmul.f32.gmra.mxu0 %v1570
        %v2082 = vpop.f32.mrf.mxu0
        %v2083 = vadd.f32 %v1668, %v2082
        %2084 = vmatmul.f32.gmra.mxu0 %v1576
        %v2085 = vpop.f32.mrf.mxu0
        %v2086 = vadd.f32 %v1668, %v2085
        %2087 = vmatmul.f32.gmra.mxu0 %v1582
        %v2088 = vpop.f32.mrf.mxu0
        %v2089 = vadd.f32 %v1668, %v2088
        %2090 = vmatmul.f32.gmra.mxu0 %v1588
        %v2091 = vpop.f32.mrf.mxu0
        %v2092 = vadd.f32 %v1668, %v2091
        %2093 = vmatmul.f32.gmra.mxu0 %v1594
        %v2094 = vpop.f32.mrf.mxu0
        %v2095 = vadd.f32 %v1668, %v2094
        %2096 = vmatmul.f32.gmra.mxu0 %v1600
        %v2097 = vpop.f32.mrf.mxu0
        %v2098 = vadd.f32 %v1668, %v2097
        %2099 = vmatmul.f32.gmra.mxu0 %v1606
        %v2100 = vpop.f32.mrf.mxu0
        %v2101 = vadd.f32 %v1668, %v2100
        %2102 = vmatmul.f32.gmra.mxu0 %v1612
        %v2103 = vpop.f32.mrf.mxu0
        %v2104 = vadd.f32 %v1668, %v2103
        %2105 = vmatmul.f32.gmra.mxu0 %v1618
        %v2106 = vpop.f32.mrf.mxu0
        %v2107 = vadd.f32 %v1668, %v2106
        %2108 = vmatmul.f32.gmra.mxu0 %v1624
        %v2109 = vpop.f32.mrf.mxu0
        %v2110 = vadd.f32 %v1668, %v2109
        %2111 = vmatmul.f32.gmra.mxu0 %v1630
        %v2112 = vpop.f32.mrf.mxu0
        %v2113 = vadd.f32 %v1668, %v2112
        %2114 = vmatmul.f32.gmra.mxu0 %v1636
        %v2115 = vpop.f32.mrf.mxu0
        %v2116 = vadd.f32 %v1668, %v2115
        %2117 = vmatmul.f32.gmra.mxu0 %v1642
        %v2118 = vpop.f32.mrf.mxu0
        %v2119 = vadd.f32 %v1668, %v2118
        %2120 = vmatmul.f32.gmra.mxu0 %v1648
        %v2121 = vpop.f32.mrf.mxu0
        %v2122 = vadd.f32 %v1668, %v2121
        %2123 = vmatmul.f32.gmra.mxu0 %v1654
        %v2124 = vpop.f32.mrf.mxu0
        %v2125 = vadd.f32 %v1668, %v2124
        %2126 = vmatmul.f32.gmra.mxu0 %v1660
        %v2127 = vpop.f32.mrf.mxu0
        %v2128 = vadd.f32 %v1668, %v2127
        %2129 = vdwg.mxu0
        %2130 = vmatpush.msra.mxu0 %v667
        %2131 = vmatpush.msra.mxu0 %v663
        %2132 = vmatpush.msra.mxu0 %v659
        %2133 = vmatpush.msra.mxu0 %v655
        %2134 = vmatpush.msra.mxu0 %v651
        %2135 = vmatpush.msra.mxu0 %v647
        %2136 = vmatpush.msra.mxu0 %v643
        %2137 = vmatpush.msra.mxu0 %v639
        %2138 = vmatpush.msra.mxu0 %v635
        %2139 = vmatpush.msra.mxu0 %v631
        %2140 = vmatpush.msra.mxu0 %v627
        %2141 = vmatpush.msra.mxu0 %v623
        %2142 = vmatpush.msra.mxu0 %v619
        %2143 = vmatpush.msra.mxu0 %v615
        %2144 = vmatpush.msra.mxu0 %v611
        %2145 = vmatpush.msra.mxu0 %v607
        %2146 = vmatmul.f32.gmra.mxu0 %v1571
        %v2147 = vpop.f32.mrf.mxu0
        %v2148 = vadd.f32 %v2083, %v2147
        %2149 = vmatmul.f32.gmra.mxu0 %v1577
        %v2150 = vpop.f32.mrf.mxu0
        %v2151 = vadd.f32 %v2086, %v2150
        %2152 = vmatmul.f32.gmra.mxu0 %v1583
        %v2153 = vpop.f32.mrf.mxu0
        %v2154 = vadd.f32 %v2089, %v2153
        %2155 = vmatmul.f32.gmra.mxu0 %v1589
        %v2156 = vpop.f32.mrf.mxu0
        %v2157 = vadd.f32 %v2092, %v2156
        %2158 = vmatmul.f32.gmra.mxu0 %v1595
        %v2159 = vpop.f32.mrf.mxu0
        %v2160 = vadd.f32 %v2095, %v2159
        %2161 = vmatmul.f32.gmra.mxu0 %v1601
        %v2162 = vpop.f32.mrf.mxu0
        %v2163 = vadd.f32 %v2098, %v2162
        %2164 = vmatmul.f32.gmra.mxu0 %v1607
        %v2165 = vpop.f32.mrf.mxu0
        %v2166 = vadd.f32 %v2101, %v2165
        %2167 = vmatmul.f32.gmra.mxu0 %v1613
        %v2168 = vpop.f32.mrf.mxu0
        %v2169 = vadd.f32 %v2104, %v2168
        %2170 = vmatmul.f32.gmra.mxu0 %v1619
        %v2171 = vpop.f32.mrf.mxu0
        %v2172 = vadd.f32 %v2107, %v2171
        %2173 = vmatmul.f32.gmra.mxu0 %v1625
        %v2174 = vpop.f32.mrf.mxu0
        %v2175 = vadd.f32 %v2110, %v2174
        %2176 = vmatmul.f32.gmra.mxu0 %v1631
        %v2177 = vpop.f32.mrf.mxu0
        %v2178 = vadd.f32 %v2113, %v2177
        %2179 = vmatmul.f32.gmra.mxu0 %v1637
        %v2180 = vpop.f32.mrf.mxu0
        %v2181 = vadd.f32 %v2116, %v2180
        %2182 = vmatmul.f32.gmra.mxu0 %v1643
        %v2183 = vpop.f32.mrf.mxu0
        %v2184 = vadd.f32 %v2119, %v2183
        %2185 = vmatmul.f32.gmra.mxu0 %v1649
        %v2186 = vpop.f32.mrf.mxu0
        %v2187 = vadd.f32 %v2122, %v2186
        %2188 = vmatmul.f32.gmra.mxu0 %v1655
        %v2189 = vpop.f32.mrf.mxu0
        %v2190 = vadd.f32 %v2125, %v2189
        %2191 = vmatmul.f32.gmra.mxu0 %v1661
        %v2192 = vpop.f32.mrf.mxu0
        %v2193 = vadd.f32 %v2128, %v2192
        %2194 = vdwg.mxu0
        %2195 = vmatpush.msra.mxu0 %v731
        %2196 = vmatpush.msra.mxu0 %v727
        %2197 = vmatpush.msra.mxu0 %v723
        %2198 = vmatpush.msra.mxu0 %v719
        %2199 = vmatpush.msra.mxu0 %v715
        %2200 = vmatpush.msra.mxu0 %v711
        %2201 = vmatpush.msra.mxu0 %v707
        %2202 = vmatpush.msra.mxu0 %v703
        %2203 = vmatpush.msra.mxu0 %v699
        %2204 = vmatpush.msra.mxu0 %v695
        %2205 = vmatpush.msra.mxu0 %v691
        %2206 = vmatpush.msra.mxu0 %v687
        %2207 = vmatpush.msra.mxu0 %v683
        %2208 = vmatpush.msra.mxu0 %v679
        %2209 = vmatpush.msra.mxu0 %v675
        %2210 = vmatpush.msra.mxu0 %v671
        %2211 = vmatmul.f32.gmra.mxu0 %v1572
        %v2212 = vpop.f32.mrf.mxu0
        %v2213 = vadd.f32 %v2148, %v2212
        %2214 = vmatmul.f32.gmra.mxu0 %v1578
        %v2215 = vpop.f32.mrf.mxu0
        %v2216 = vadd.f32 %v2151, %v2215
        %2217 = vmatmul.f32.gmra.mxu0 %v1584
        %v2218 = vpop.f32.mrf.mxu0
        %v2219 = vadd.f32 %v2154, %v2218
        %2220 = vmatmul.f32.gmra.mxu0 %v1590
        %v2221 = vpop.f32.mrf.mxu0
        %v2222 = vadd.f32 %v2157, %v2221
        %2223 = vmatmul.f32.gmra.mxu0 %v1596
        %v2224 = vpop.f32.mrf.mxu0
        %v2225 = vadd.f32 %v2160, %v2224
        %2226 = vmatmul.f32.gmra.mxu0 %v1602
        %v2227 = vpop.f32.mrf.mxu0
        %v2228 = vadd.f32 %v2163, %v2227
        %2229 = vmatmul.f32.gmra.mxu0 %v1608
        %v2230 = vpop.f32.mrf.mxu0
        %v2231 = vadd.f32 %v2166, %v2230
        %2232 = vmatmul.f32.gmra.mxu0 %v1614
        %v2233 = vpop.f32.mrf.mxu0
        %v2234 = vadd.f32 %v2169, %v2233
        %2235 = vmatmul.f32.gmra.mxu0 %v1620
        %v2236 = vpop.f32.mrf.mxu0
        %v2237 = vadd.f32 %v2172, %v2236
        %2238 = vmatmul.f32.gmra.mxu0 %v1626
        %v2239 = vpop.f32.mrf.mxu0
        %v2240 = vadd.f32 %v2175, %v2239
        %2241 = vmatmul.f32.gmra.mxu0 %v1632
        %v2242 = vpop.f32.mrf.mxu0
        %v2243 = vadd.f32 %v2178, %v2242
        %2244 = vmatmul.f32.gmra.mxu0 %v1638
        %v2245 = vpop.f32.mrf.mxu0
        %v2246 = vadd.f32 %v2181, %v2245
        %2247 = vmatmul.f32.gmra.mxu0 %v1644
        %v2248 = vpop.f32.mrf.mxu0
        %v2249 = vadd.f32 %v2184, %v2248
        %2250 = vmatmul.f32.gmra.mxu0 %v1650
        %v2251 = vpop.f32.mrf.mxu0
        %v2252 = vadd.f32 %v2187, %v2251
        %2253 = vmatmul.f32.gmra.mxu0 %v1656
        %v2254 = vpop.f32.mrf.mxu0
        %v2255 = vadd.f32 %v2190, %v2254
        %2256 = vmatmul.f32.gmra.mxu0 %v1662
        %v2257 = vpop.f32.mrf.mxu0
        %v2258 = vadd.f32 %v2193, %v2257
        %2259 = vdwg.mxu0
        %2260 = vmatpush.msra.mxu0 %v795
        %2261 = vmatpush.msra.mxu0 %v791
        %2262 = vmatpush.msra.mxu0 %v787
        %2263 = vmatpush.msra.mxu0 %v783
        %2264 = vmatpush.msra.mxu0 %v779
        %2265 = vmatpush.msra.mxu0 %v775
        %2266 = vmatpush.msra.mxu0 %v771
        %2267 = vmatpush.msra.mxu0 %v767
        %2268 = vmatpush.msra.mxu0 %v763
        %2269 = vmatpush.msra.mxu0 %v759
        %2270 = vmatpush.msra.mxu0 %v755
        %2271 = vmatpush.msra.mxu0 %v751
        %2272 = vmatpush.msra.mxu0 %v747
        %2273 = vmatpush.msra.mxu0 %v743
        %2274 = vmatpush.msra.mxu0 %v739
        %2275 = vmatpush.msra.mxu0 %v735
        %2276 = vmatmul.f32.gmra.mxu0 %v1573
        %v2277 = vpop.f32.mrf.mxu0
        %v2278 = vadd.f32 %v2213, %v2277
        %2279 = vmatmul.f32.gmra.mxu0 %v1579
        %v2280 = vpop.f32.mrf.mxu0
        %v2281 = vadd.f32 %v2216, %v2280
        %2282 = vmatmul.f32.gmra.mxu0 %v1585
        %v2283 = vpop.f32.mrf.mxu0
        %v2284 = vadd.f32 %v2219, %v2283
        %2285 = vmatmul.f32.gmra.mxu0 %v1591
        %v2286 = vpop.f32.mrf.mxu0
        %v2287 = vadd.f32 %v2222, %v2286
        %2288 = vmatmul.f32.gmra.mxu0 %v1597
        %v2289 = vpop.f32.mrf.mxu0
        %v2290 = vadd.f32 %v2225, %v2289
        %2291 = vmatmul.f32.gmra.mxu0 %v1603
        %v2292 = vpop.f32.mrf.mxu0
        %v2293 = vadd.f32 %v2228, %v2292
        %2294 = vmatmul.f32.gmra.mxu0 %v1609
        %v2295 = vpop.f32.mrf.mxu0
        %v2296 = vadd.f32 %v2231, %v2295
        %2297 = vmatmul.f32.gmra.mxu0 %v1615
        %v2298 = vpop.f32.mrf.mxu0
        %v2299 = vadd.f32 %v2234, %v2298
        %2300 = vmatmul.f32.gmra.mxu0 %v1621
        %v2301 = vpop.f32.mrf.mxu0
        %v2302 = vadd.f32 %v2237, %v2301
        %2303 = vmatmul.f32.gmra.mxu0 %v1627
        %v2304 = vpop.f32.mrf.mxu0
        %v2305 = vadd.f32 %v2240, %v2304
        %2306 = vmatmul.f32.gmra.mxu0 %v1633
        %v2307 = vpop.f32.mrf.mxu0
        %v2308 = vadd.f32 %v2243, %v2307
        %2309 = vmatmul.f32.gmra.mxu0 %v1639
        %v2310 = vpop.f32.mrf.mxu0
        %v2311 = vadd.f32 %v2246, %v2310
        %2312 = vmatmul.f32.gmra.mxu0 %v1645
        %v2313 = vpop.f32.mrf.mxu0
        %v2314 = vadd.f32 %v2249, %v2313
        %2315 = vmatmul.f32.gmra.mxu0 %v1651
        %v2316 = vpop.f32.mrf.mxu0
        %v2317 = vadd.f32 %v2252, %v2316
        %2318 = vmatmul.f32.gmra.mxu0 %v1657
        %v2319 = vpop.f32.mrf.mxu0
        %v2320 = vadd.f32 %v2255, %v2319
        %2321 = vmatmul.f32.gmra.mxu0 %v1663
        %v2322 = vpop.f32.mrf.mxu0
        %v2323 = vadd.f32 %v2258, %v2322
        %2324 = vdwg.mxu0
        %2325 = vmatpush.msra.mxu0 %v859
        %2326 = vmatpush.msra.mxu0 %v855
        %2327 = vmatpush.msra.mxu0 %v851
        %2328 = vmatpush.msra.mxu0 %v847
        %2329 = vmatpush.msra.mxu0 %v843
        %2330 = vmatpush.msra.mxu0 %v839
        %2331 = vmatpush.msra.mxu0 %v835
        %2332 = vmatpush.msra.mxu0 %v831
        %2333 = vmatpush.msra.mxu0 %v827
        %2334 = vmatpush.msra.mxu0 %v823
        %2335 = vmatpush.msra.mxu0 %v819
        %2336 = vmatpush.msra.mxu0 %v815
        %2337 = vmatpush.msra.mxu0 %v811
        %2338 = vmatpush.msra.mxu0 %v807
        %2339 = vmatpush.msra.mxu0 %v803
        %2340 = vmatpush.msra.mxu0 %v799
        %2341 = vmatmul.f32.gmra.mxu0 %v1574
        %v2342 = vpop.f32.mrf.mxu0
        %v2343 = vadd.f32 %v2278, %v2342
        %2344 = vmatmul.f32.gmra.mxu0 %v1580
        %v2345 = vpop.f32.mrf.mxu0
        %v2346 = vadd.f32 %v2281, %v2345
        %2347 = vmatmul.f32.gmra.mxu0 %v1586
        %v2348 = vpop.f32.mrf.mxu0
        %v2349 = vadd.f32 %v2284, %v2348
        %2350 = vmatmul.f32.gmra.mxu0 %v1592
        %v2351 = vpop.f32.mrf.mxu0
        %v2352 = vadd.f32 %v2287, %v2351
        %2353 = vmatmul.f32.gmra.mxu0 %v1598
        %v2354 = vpop.f32.mrf.mxu0
        %v2355 = vadd.f32 %v2290, %v2354
        %2356 = vmatmul.f32.gmra.mxu0 %v1604
        %v2357 = vpop.f32.mrf.mxu0
        %v2358 = vadd.f32 %v2293, %v2357
        %2359 = vmatmul.f32.gmra.mxu0 %v1610
        %v2360 = vpop.f32.mrf.mxu0
        %v2361 = vadd.f32 %v2296, %v2360
        %2362 = vmatmul.f32.gmra.mxu0 %v1616
        %v2363 = vpop.f32.mrf.mxu0
        %v2364 = vadd.f32 %v2299, %v2363
        %2365 = vmatmul.f32.gmra.mxu0 %v1622
        %v2366 = vpop.f32.mrf.mxu0
        %v2367 = vadd.f32 %v2302, %v2366
        %2368 = vmatmul.f32.gmra.mxu0 %v1628
        %v2369 = vpop.f32.mrf.mxu0
        %v2370 = vadd.f32 %v2305, %v2369
        %2371 = vmatmul.f32.gmra.mxu0 %v1634
        %v2372 = vpop.f32.mrf.mxu0
        %v2373 = vadd.f32 %v2308, %v2372
        %2374 = vmatmul.f32.gmra.mxu0 %v1640
        %v2375 = vpop.f32.mrf.mxu0
        %v2376 = vadd.f32 %v2311, %v2375
        %2377 = vmatmul.f32.gmra.mxu0 %v1646
        %v2378 = vpop.f32.mrf.mxu0
        %v2379 = vadd.f32 %v2314, %v2378
        %2380 = vmatmul.f32.gmra.mxu0 %v1652
        %v2381 = vpop.f32.mrf.mxu0
        %v2382 = vadd.f32 %v2317, %v2381
        %2383 = vmatmul.f32.gmra.mxu0 %v1658
        %v2384 = vpop.f32.mrf.mxu0
        %v2385 = vadd.f32 %v2320, %v2384
        %2386 = vmatmul.f32.gmra.mxu0 %v1664
        %v2387 = vpop.f32.mrf.mxu0
        %v2388 = vadd.f32 %v2323, %v2387
        %2389 = vdwg.mxu0
        %2390 = vmatpush.msra.mxu0 %v923
        %2391 = vmatpush.msra.mxu0 %v919
        %2392 = vmatpush.msra.mxu0 %v915
        %2393 = vmatpush.msra.mxu0 %v911
        %2394 = vmatpush.msra.mxu0 %v907
        %2395 = vmatpush.msra.mxu0 %v903
        %2396 = vmatpush.msra.mxu0 %v899
        %2397 = vmatpush.msra.mxu0 %v895
        %2398 = vmatpush.msra.mxu0 %v891
        %2399 = vmatpush.msra.mxu0 %v887
        %2400 = vmatpush.msra.mxu0 %v883
        %2401 = vmatpush.msra.mxu0 %v879
        %2402 = vmatpush.msra.mxu0 %v875
        %2403 = vmatpush.msra.mxu0 %v871
        %2404 = vmatpush.msra.mxu0 %v867
        %2405 = vmatpush.msra.mxu0 %v863
        %2406 = vmatmul.f32.gmra.mxu0 %v1575
        %v2407 = vpop.f32.mrf.mxu0
        %v2408 = vadd.f32 %v2343, %v2407
        %2409 = vmatmul.f32.gmra.mxu0 %v1581
        %v2410 = vpop.f32.mrf.mxu0
        %v2411 = vadd.f32 %v2346, %v2410
        %2412 = vmatmul.f32.gmra.mxu0 %v1587
        %v2413 = vpop.f32.mrf.mxu0
        %v2414 = vadd.f32 %v2349, %v2413
        %2415 = vmatmul.f32.gmra.mxu0 %v1593
        %v2416 = vpop.f32.mrf.mxu0
        %v2417 = vadd.f32 %v2352, %v2416
        %2418 = vmatmul.f32.gmra.mxu0 %v1599
        %v2419 = vpop.f32.mrf.mxu0
        %v2420 = vadd.f32 %v2355, %v2419
        %2421 = vmatmul.f32.gmra.mxu0 %v1605
        %v2422 = vpop.f32.mrf.mxu0
        %v2423 = vadd.f32 %v2358, %v2422
        %2424 = vmatmul.f32.gmra.mxu0 %v1611
        %v2425 = vpop.f32.mrf.mxu0
        %v2426 = vadd.f32 %v2361, %v2425
        %2427 = vmatmul.f32.gmra.mxu0 %v1617
        %v2428 = vpop.f32.mrf.mxu0
        %v2429 = vadd.f32 %v2364, %v2428
        %2430 = vmatmul.f32.gmra.mxu0 %v1623
        %v2431 = vpop.f32.mrf.mxu0
        %v2432 = vadd.f32 %v2367, %v2431
        %2433 = vmatmul.f32.gmra.mxu0 %v1629
        %v2434 = vpop.f32.mrf.mxu0
        %v2435 = vadd.f32 %v2370, %v2434
        %2436 = vmatmul.f32.gmra.mxu0 %v1635
        %v2437 = vpop.f32.mrf.mxu0
        %v2438 = vadd.f32 %v2373, %v2437
        %2439 = vmatmul.f32.gmra.mxu0 %v1641
        %v2440 = vpop.f32.mrf.mxu0
        %v2441 = vadd.f32 %v2376, %v2440
        %2442 = vmatmul.f32.gmra.mxu0 %v1647
        %v2443 = vpop.f32.mrf.mxu0
        %v2444 = vadd.f32 %v2379, %v2443
        %2445 = vmatmul.f32.gmra.mxu0 %v1653
        %v2446 = vpop.f32.mrf.mxu0
        %v2447 = vadd.f32 %v2382, %v2446
        %2448 = vmatmul.f32.gmra.mxu0 %v1659
        %v2449 = vpop.f32.mrf.mxu0
        %v2450 = vadd.f32 %v2385, %v2449
        %2451 = vmatmul.f32.gmra.mxu0 %v1665
        %v2452 = vpop.f32.mrf.mxu0
        %v2453 = vadd.f32 %v2388, %v2452
        %2454 = vdwg.mxu0
        %2455 = vmatpush.msra.mxu0 %v604
        %2456 = vmatpush.msra.mxu0 %v600
        %2457 = vmatpush.msra.mxu0 %v596
        %2458 = vmatpush.msra.mxu0 %v592
        %2459 = vmatpush.msra.mxu0 %v588
        %2460 = vmatpush.msra.mxu0 %v584
        %2461 = vmatpush.msra.mxu0 %v580
        %2462 = vmatpush.msra.mxu0 %v576
        %2463 = vmatpush.msra.mxu0 %v572
        %2464 = vmatpush.msra.mxu0 %v568
        %2465 = vmatpush.msra.mxu0 %v564
        %2466 = vmatpush.msra.mxu0 %v560
        %2467 = vmatpush.msra.mxu0 %v556
        %2468 = vmatpush.msra.mxu0 %v552
        %2469 = vmatpush.msra.mxu0 %v548
        %2470 = vmatpush.msra.mxu0 %v544
        %2471 = vmatmul.f32.gmra.mxu0 %v1570
        %v2472 = vpop.f32.mrf.mxu0
        %v2473 = vadd.f32 %v1669, %v2472
        %2474 = vmatmul.f32.gmra.mxu0 %v1576
        %v2475 = vpop.f32.mrf.mxu0
        %v2476 = vadd.f32 %v1669, %v2475
        %2477 = vmatmul.f32.gmra.mxu0 %v1582
        %v2478 = vpop.f32.mrf.mxu0
        %v2479 = vadd.f32 %v1669, %v2478
        %2480 = vmatmul.f32.gmra.mxu0 %v1588
        %v2481 = vpop.f32.mrf.mxu0
        %v2482 = vadd.f32 %v1669, %v2481
        %2483 = vmatmul.f32.gmra.mxu0 %v1594
        %v2484 = vpop.f32.mrf.mxu0
        %v2485 = vadd.f32 %v1669, %v2484
        %2486 = vmatmul.f32.gmra.mxu0 %v1600
        %v2487 = vpop.f32.mrf.mxu0
        %v2488 = vadd.f32 %v1669, %v2487
        %2489 = vmatmul.f32.gmra.mxu0 %v1606
        %v2490 = vpop.f32.mrf.mxu0
        %v2491 = vadd.f32 %v1669, %v2490
        %2492 = vmatmul.f32.gmra.mxu0 %v1612
        %v2493 = vpop.f32.mrf.mxu0
        %v2494 = vadd.f32 %v1669, %v2493
        %2495 = vmatmul.f32.gmra.mxu0 %v1618
        %v2496 = vpop.f32.mrf.mxu0
        %v2497 = vadd.f32 %v1669, %v2496
        %2498 = vmatmul.f32.gmra.mxu0 %v1624
        %v2499 = vpop.f32.mrf.mxu0
        %v2500 = vadd.f32 %v1669, %v2499
        %2501 = vmatmul.f32.gmra.mxu0 %v1630
        %v2502 = vpop.f32.mrf.mxu0
        %v2503 = vadd.f32 %v1669, %v2502
        %2504 = vmatmul.f32.gmra.mxu0 %v1636
        %v2505 = vpop.f32.mrf.mxu0
        %v2506 = vadd.f32 %v1669, %v2505
        %2507 = vmatmul.f32.gmra.mxu0 %v1642
        %v2508 = vpop.f32.mrf.mxu0
        %v2509 = vadd.f32 %v1669, %v2508
        %2510 = vmatmul.f32.gmra.mxu0 %v1648
        %v2511 = vpop.f32.mrf.mxu0
        %v2512 = vadd.f32 %v1669, %v2511
        %2513 = vmatmul.f32.gmra.mxu0 %v1654
        %v2514 = vpop.f32.mrf.mxu0
        %v2515 = vadd.f32 %v1669, %v2514
        %2516 = vmatmul.f32.gmra.mxu0 %v1660
        %v2517 = vpop.f32.mrf.mxu0
        %v2518 = vadd.f32 %v1669, %v2517
        %2519 = vdwg.mxu0
        %2520 = vmatpush.msra.mxu0 %v668
        %2521 = vmatpush.msra.mxu0 %v664
        %2522 = vmatpush.msra.mxu0 %v660
        %2523 = vmatpush.msra.mxu0 %v656
        %2524 = vmatpush.msra.mxu0 %v652
        %2525 = vmatpush.msra.mxu0 %v648
        %2526 = vmatpush.msra.mxu0 %v644
        %2527 = vmatpush.msra.mxu0 %v640
        %2528 = vmatpush.msra.mxu0 %v636
        %2529 = vmatpush.msra.mxu0 %v632
        %2530 = vmatpush.msra.mxu0 %v628
        %2531 = vmatpush.msra.mxu0 %v624
        %2532 = vmatpush.msra.mxu0 %v620
        %2533 = vmatpush.msra.mxu0 %v616
        %2534 = vmatpush.msra.mxu0 %v612
        %2535 = vmatpush.msra.mxu0 %v608
        %2536 = vmatmul.f32.gmra.mxu0 %v1571
        %v2537 = vpop.f32.mrf.mxu0
        %v2538 = vadd.f32 %v2473, %v2537
        %2539 = vmatmul.f32.gmra.mxu0 %v1577
        %v2540 = vpop.f32.mrf.mxu0
        %v2541 = vadd.f32 %v2476, %v2540
        %2542 = vmatmul.f32.gmra.mxu0 %v1583
        %v2543 = vpop.f32.mrf.mxu0
        %v2544 = vadd.f32 %v2479, %v2543
        %2545 = vmatmul.f32.gmra.mxu0 %v1589
        %v2546 = vpop.f32.mrf.mxu0
        %v2547 = vadd.f32 %v2482, %v2546
        %2548 = vmatmul.f32.gmra.mxu0 %v1595
        %v2549 = vpop.f32.mrf.mxu0
        %v2550 = vadd.f32 %v2485, %v2549
        %2551 = vmatmul.f32.gmra.mxu0 %v1601
        %v2552 = vpop.f32.mrf.mxu0
        %v2553 = vadd.f32 %v2488, %v2552
        %2554 = vmatmul.f32.gmra.mxu0 %v1607
        %v2555 = vpop.f32.mrf.mxu0
        %v2556 = vadd.f32 %v2491, %v2555
        %2557 = vmatmul.f32.gmra.mxu0 %v1613
        %v2558 = vpop.f32.mrf.mxu0
        %v2559 = vadd.f32 %v2494, %v2558
        %2560 = vmatmul.f32.gmra.mxu0 %v1619
        %v2561 = vpop.f32.mrf.mxu0
        %v2562 = vadd.f32 %v2497, %v2561
        %2563 = vmatmul.f32.gmra.mxu0 %v1625
        %v2564 = vpop.f32.mrf.mxu0
        %v2565 = vadd.f32 %v2500, %v2564
        %2566 = vmatmul.f32.gmra.mxu0 %v1631
        %v2567 = vpop.f32.mrf.mxu0
        %v2568 = vadd.f32 %v2503, %v2567
        %2569 = vmatmul.f32.gmra.mxu0 %v1637
        %v2570 = vpop.f32.mrf.mxu0
        %v2571 = vadd.f32 %v2506, %v2570
        %2572 = vmatmul.f32.gmra.mxu0 %v1643
        %v2573 = vpop.f32.mrf.mxu0
        %v2574 = vadd.f32 %v2509, %v2573
        %2575 = vmatmul.f32.gmra.mxu0 %v1649
        %v2576 = vpop.f32.mrf.mxu0
        %v2577 = vadd.f32 %v2512, %v2576
        %2578 = vmatmul.f32.gmra.mxu0 %v1655
        %v2579 = vpop.f32.mrf.mxu0
        %v2580 = vadd.f32 %v2515, %v2579
        %2581 = vmatmul.f32.gmra.mxu0 %v1661
        %v2582 = vpop.f32.mrf.mxu0
        %v2583 = vadd.f32 %v2518, %v2582
        %2584 = vdwg.mxu0
        %2585 = vmatpush.msra.mxu0 %v732
        %2586 = vmatpush.msra.mxu0 %v728
        %2587 = vmatpush.msra.mxu0 %v724
        %2588 = vmatpush.msra.mxu0 %v720
        %2589 = vmatpush.msra.mxu0 %v716
        %2590 = vmatpush.msra.mxu0 %v712
        %2591 = vmatpush.msra.mxu0 %v708
        %2592 = vmatpush.msra.mxu0 %v704
        %2593 = vmatpush.msra.mxu0 %v700
        %2594 = vmatpush.msra.mxu0 %v696
        %2595 = vmatpush.msra.mxu0 %v692
        %2596 = vmatpush.msra.mxu0 %v688
        %2597 = vmatpush.msra.mxu0 %v684
        %2598 = vmatpush.msra.mxu0 %v680
        %2599 = vmatpush.msra.mxu0 %v676
        %2600 = vmatpush.msra.mxu0 %v672
        %2601 = vmatmul.f32.gmra.mxu0 %v1572
        %v2602 = vpop.f32.mrf.mxu0
        %v2603 = vadd.f32 %v2538, %v2602
        %2604 = vmatmul.f32.gmra.mxu0 %v1578
        %v2605 = vpop.f32.mrf.mxu0
        %v2606 = vadd.f32 %v2541, %v2605
        %2607 = vmatmul.f32.gmra.mxu0 %v1584
        %v2608 = vpop.f32.mrf.mxu0
        %v2609 = vadd.f32 %v2544, %v2608
        %2610 = vmatmul.f32.gmra.mxu0 %v1590
        %v2611 = vpop.f32.mrf.mxu0
        %v2612 = vadd.f32 %v2547, %v2611
        %2613 = vmatmul.f32.gmra.mxu0 %v1596
        %v2614 = vpop.f32.mrf.mxu0
        %v2615 = vadd.f32 %v2550, %v2614
        %2616 = vmatmul.f32.gmra.mxu0 %v1602
        %v2617 = vpop.f32.mrf.mxu0
        %v2618 = vadd.f32 %v2553, %v2617
        %2619 = vmatmul.f32.gmra.mxu0 %v1608
        %v2620 = vpop.f32.mrf.mxu0
        %v2621 = vadd.f32 %v2556, %v2620
        %2622 = vmatmul.f32.gmra.mxu0 %v1614
        %v2623 = vpop.f32.mrf.mxu0
        %v2624 = vadd.f32 %v2559, %v2623
        %2625 = vmatmul.f32.gmra.mxu0 %v1620
        %v2626 = vpop.f32.mrf.mxu0
        %v2627 = vadd.f32 %v2562, %v2626
        %2628 = vmatmul.f32.gmra.mxu0 %v1626
        %v2629 = vpop.f32.mrf.mxu0
        %v2630 = vadd.f32 %v2565, %v2629
        %2631 = vmatmul.f32.gmra.mxu0 %v1632
        %v2632 = vpop.f32.mrf.mxu0
        %v2633 = vadd.f32 %v2568, %v2632
        %2634 = vmatmul.f32.gmra.mxu0 %v1638
        %v2635 = vpop.f32.mrf.mxu0
        %v2636 = vadd.f32 %v2571, %v2635
        %2637 = vmatmul.f32.gmra.mxu0 %v1644
        %v2638 = vpop.f32.mrf.mxu0
        %v2639 = vadd.f32 %v2574, %v2638
        %2640 = vmatmul.f32.gmra.mxu0 %v1650
        %v2641 = vpop.f32.mrf.mxu0
        %v2642 = vadd.f32 %v2577, %v2641
        %2643 = vmatmul.f32.gmra.mxu0 %v1656
        %v2644 = vpop.f32.mrf.mxu0
        %v2645 = vadd.f32 %v2580, %v2644
        %2646 = vmatmul.f32.gmra.mxu0 %v1662
        %v2647 = vpop.f32.mrf.mxu0
        %v2648 = vadd.f32 %v2583, %v2647
        %2649 = vdwg.mxu0
        %2650 = vmatpush.msra.mxu0 %v796
        %2651 = vmatpush.msra.mxu0 %v792
        %2652 = vmatpush.msra.mxu0 %v788
        %2653 = vmatpush.msra.mxu0 %v784
        %2654 = vmatpush.msra.mxu0 %v780
        %2655 = vmatpush.msra.mxu0 %v776
        %2656 = vmatpush.msra.mxu0 %v772
        %2657 = vmatpush.msra.mxu0 %v768
        %2658 = vmatpush.msra.mxu0 %v764
        %2659 = vmatpush.msra.mxu0 %v760
        %2660 = vmatpush.msra.mxu0 %v756
        %2661 = vmatpush.msra.mxu0 %v752
        %2662 = vmatpush.msra.mxu0 %v748
        %2663 = vmatpush.msra.mxu0 %v744
        %2664 = vmatpush.msra.mxu0 %v740
        %2665 = vmatpush.msra.mxu0 %v736
        %2666 = vmatmul.f32.gmra.mxu0 %v1573
        %v2667 = vpop.f32.mrf.mxu0
        %v2668 = vadd.f32 %v2603, %v2667
        %2669 = vmatmul.f32.gmra.mxu0 %v1579
        %v2670 = vpop.f32.mrf.mxu0
        %v2671 = vadd.f32 %v2606, %v2670
        %2672 = vmatmul.f32.gmra.mxu0 %v1585
        %v2673 = vpop.f32.mrf.mxu0
        %v2674 = vadd.f32 %v2609, %v2673
        %2675 = vmatmul.f32.gmra.mxu0 %v1591
        %v2676 = vpop.f32.mrf.mxu0
        %v2677 = vadd.f32 %v2612, %v2676
        %2678 = vmatmul.f32.gmra.mxu0 %v1597
        %v2679 = vpop.f32.mrf.mxu0
        %v2680 = vadd.f32 %v2615, %v2679
        %2681 = vmatmul.f32.gmra.mxu0 %v1603
        %v2682 = vpop.f32.mrf.mxu0
        %v2683 = vadd.f32 %v2618, %v2682
        %2684 = vmatmul.f32.gmra.mxu0 %v1609
        %v2685 = vpop.f32.mrf.mxu0
        %v2686 = vadd.f32 %v2621, %v2685
        %2687 = vmatmul.f32.gmra.mxu0 %v1615
        %v2688 = vpop.f32.mrf.mxu0
        %v2689 = vadd.f32 %v2624, %v2688
        %2690 = vmatmul.f32.gmra.mxu0 %v1621
        %v2691 = vpop.f32.mrf.mxu0
        %v2692 = vadd.f32 %v2627, %v2691
        %2693 = vmatmul.f32.gmra.mxu0 %v1627
        %v2694 = vpop.f32.mrf.mxu0
        %v2695 = vadd.f32 %v2630, %v2694
        %2696 = vmatmul.f32.gmra.mxu0 %v1633
        %v2697 = vpop.f32.mrf.mxu0
        %v2698 = vadd.f32 %v2633, %v2697
        %2699 = vmatmul.f32.gmra.mxu0 %v1639
        %v2700 = vpop.f32.mrf.mxu0
        %v2701 = vadd.f32 %v2636, %v2700
        %2702 = vmatmul.f32.gmra.mxu0 %v1645
        %v2703 = vpop.f32.mrf.mxu0
        %v2704 = vadd.f32 %v2639, %v2703
        %2705 = vmatmul.f32.gmra.mxu0 %v1651
        %v2706 = vpop.f32.mrf.mxu0
        %v2707 = vadd.f32 %v2642, %v2706
        %2708 = vmatmul.f32.gmra.mxu0 %v1657
        %v2709 = vpop.f32.mrf.mxu0
        %v2710 = vadd.f32 %v2645, %v2709
        %2711 = vmatmul.f32.gmra.mxu0 %v1663
        %v2712 = vpop.f32.mrf.mxu0
        %v2713 = vadd.f32 %v2648, %v2712
        %2714 = vdwg.mxu0
        %2715 = vmatpush.msra.mxu0 %v860
        %2716 = vmatpush.msra.mxu0 %v856
        %2717 = vmatpush.msra.mxu0 %v852
        %2718 = vmatpush.msra.mxu0 %v848
        %2719 = vmatpush.msra.mxu0 %v844
        %2720 = vmatpush.msra.mxu0 %v840
        %2721 = vmatpush.msra.mxu0 %v836
        %2722 = vmatpush.msra.mxu0 %v832
        %2723 = vmatpush.msra.mxu0 %v828
        %2724 = vmatpush.msra.mxu0 %v824
        %2725 = vmatpush.msra.mxu0 %v820
        %2726 = vmatpush.msra.mxu0 %v816
        %2727 = vmatpush.msra.mxu0 %v812
        %2728 = vmatpush.msra.mxu0 %v808
        %2729 = vmatpush.msra.mxu0 %v804
        %2730 = vmatpush.msra.mxu0 %v800
        %2731 = vmatmul.f32.gmra.mxu0 %v1574
        %v2732 = vpop.f32.mrf.mxu0
        %v2733 = vadd.f32 %v2668, %v2732
        %2734 = vmatmul.f32.gmra.mxu0 %v1580
        %v2735 = vpop.f32.mrf.mxu0
        %v2736 = vadd.f32 %v2671, %v2735
        %2737 = vmatmul.f32.gmra.mxu0 %v1586
        %v2738 = vpop.f32.mrf.mxu0
        %v2739 = vadd.f32 %v2674, %v2738
        %2740 = vmatmul.f32.gmra.mxu0 %v1592
        %v2741 = vpop.f32.mrf.mxu0
        %v2742 = vadd.f32 %v2677, %v2741
        %2743 = vmatmul.f32.gmra.mxu0 %v1598
        %v2744 = vpop.f32.mrf.mxu0
        %v2745 = vadd.f32 %v2680, %v2744
        %2746 = vmatmul.f32.gmra.mxu0 %v1604
        %v2747 = vpop.f32.mrf.mxu0
        %v2748 = vadd.f32 %v2683, %v2747
        %2749 = vmatmul.f32.gmra.mxu0 %v1610
        %v2750 = vpop.f32.mrf.mxu0
        %v2751 = vadd.f32 %v2686, %v2750
        %2752 = vmatmul.f32.gmra.mxu0 %v1616
        %v2753 = vpop.f32.mrf.mxu0
        %v2754 = vadd.f32 %v2689, %v2753
        %2755 = vmatmul.f32.gmra.mxu0 %v1622
        %v2756 = vpop.f32.mrf.mxu0
        %v2757 = vadd.f32 %v2692, %v2756
        %2758 = vmatmul.f32.gmra.mxu0 %v1628
        %v2759 = vpop.f32.mrf.mxu0
        %v2760 = vadd.f32 %v2695, %v2759
        %2761 = vmatmul.f32.gmra.mxu0 %v1634
        %v2762 = vpop.f32.mrf.mxu0
        %v2763 = vadd.f32 %v2698, %v2762
        %2764 = vmatmul.f32.gmra.mxu0 %v1640
        %v2765 = vpop.f32.mrf.mxu0
        %v2766 = vadd.f32 %v2701, %v2765
        %2767 = vmatmul.f32.gmra.mxu0 %v1646
        %v2768 = vpop.f32.mrf.mxu0
        %v2769 = vadd.f32 %v2704, %v2768
        %2770 = vmatmul.f32.gmra.mxu0 %v1652
        %v2771 = vpop.f32.mrf.mxu0
        %v2772 = vadd.f32 %v2707, %v2771
        %2773 = vmatmul.f32.gmra.mxu0 %v1658
        %v2774 = vpop.f32.mrf.mxu0
        %v2775 = vadd.f32 %v2710, %v2774
        %2776 = vmatmul.f32.gmra.mxu0 %v1664
        %v2777 = vpop.f32.mrf.mxu0
        %v2778 = vadd.f32 %v2713, %v2777
        %2779 = vdwg.mxu0
        %2780 = vmatpush.msra.mxu0 %v924
        %2781 = vmatpush.msra.mxu0 %v920
        %2782 = vmatpush.msra.mxu0 %v916
        %2783 = vmatpush.msra.mxu0 %v912
        %2784 = vmatpush.msra.mxu0 %v908
        %2785 = vmatpush.msra.mxu0 %v904
        %2786 = vmatpush.msra.mxu0 %v900
        %2787 = vmatpush.msra.mxu0 %v896
        %2788 = vmatpush.msra.mxu0 %v892
        %2789 = vmatpush.msra.mxu0 %v888
        %2790 = vmatpush.msra.mxu0 %v884
        %2791 = vmatpush.msra.mxu0 %v880
        %2792 = vmatpush.msra.mxu0 %v876
        %2793 = vmatpush.msra.mxu0 %v872
        %2794 = vmatpush.msra.mxu0 %v868
        %2795 = vmatpush.msra.mxu0 %v864
        %2796 = vmatmul.f32.gmra.mxu0 %v1575
        %v2797 = vpop.f32.mrf.mxu0
        %v2798 = vadd.f32 %v2733, %v2797
        %2799 = vmatmul.f32.gmra.mxu0 %v1581
        %v2800 = vpop.f32.mrf.mxu0
        %v2801 = vadd.f32 %v2736, %v2800
        %2802 = vmatmul.f32.gmra.mxu0 %v1587
        %v2803 = vpop.f32.mrf.mxu0
        %v2804 = vadd.f32 %v2739, %v2803
        %2805 = vmatmul.f32.gmra.mxu0 %v1593
        %v2806 = vpop.f32.mrf.mxu0
        %v2807 = vadd.f32 %v2742, %v2806
        %2808 = vmatmul.f32.gmra.mxu0 %v1599
        %v2809 = vpop.f32.mrf.mxu0
        %v2810 = vadd.f32 %v2745, %v2809
        %2811 = vmatmul.f32.gmra.mxu0 %v1605
        %v2812 = vpop.f32.mrf.mxu0
        %v2813 = vadd.f32 %v2748, %v2812
        %2814 = vmatmul.f32.gmra.mxu0 %v1611
        %v2815 = vpop.f32.mrf.mxu0
        %v2816 = vadd.f32 %v2751, %v2815
        %2817 = vmatmul.f32.gmra.mxu0 %v1617
        %v2818 = vpop.f32.mrf.mxu0
        %v2819 = vadd.f32 %v2754, %v2818
        %2820 = vmatmul.f32.gmra.mxu0 %v1623
        %v2821 = vpop.f32.mrf.mxu0
        %v2822 = vadd.f32 %v2757, %v2821
        %2823 = vmatmul.f32.gmra.mxu0 %v1629
        %v2824 = vpop.f32.mrf.mxu0
        %v2825 = vadd.f32 %v2760, %v2824
        %2826 = vmatmul.f32.gmra.mxu0 %v1635
        %v2827 = vpop.f32.mrf.mxu0
        %v2828 = vadd.f32 %v2763, %v2827
        %2829 = vmatmul.f32.gmra.mxu0 %v1641
        %v2830 = vpop.f32.mrf.mxu0
        %v2831 = vadd.f32 %v2766, %v2830
        %2832 = vmatmul.f32.gmra.mxu0 %v1647
        %v2833 = vpop.f32.mrf.mxu0
        %v2834 = vadd.f32 %v2769, %v2833
        %2835 = vmatmul.f32.gmra.mxu0 %v1653
        %v2836 = vpop.f32.mrf.mxu0
        %v2837 = vadd.f32 %v2772, %v2836
        %2838 = vmatmul.f32.gmra.mxu0 %v1659
        %v2839 = vpop.f32.mrf.mxu0
        %v2840 = vadd.f32 %v2775, %v2839
        %2841 = vmatmul.f32.gmra.mxu0 %v1665
        %v2842 = vpop.f32.mrf.mxu0
        %v2843 = vadd.f32 %v2778, %v2842
        %2844 = vdwg.mxu0
        %2845 = vmatpush.msra.mxu0 %v605
        %2846 = vmatpush.msra.mxu0 %v601
        %2847 = vmatpush.msra.mxu0 %v597
        %2848 = vmatpush.msra.mxu0 %v593
        %2849 = vmatpush.msra.mxu0 %v589
        %2850 = vmatpush.msra.mxu0 %v585
        %2851 = vmatpush.msra.mxu0 %v581
        %2852 = vmatpush.msra.mxu0 %v577
        %2853 = vmatpush.msra.mxu0 %v573
        %2854 = vmatpush.msra.mxu0 %v569
        %2855 = vmatpush.msra.mxu0 %v565
        %2856 = vmatpush.msra.mxu0 %v561
        %2857 = vmatpush.msra.mxu0 %v557
        %2858 = vmatpush.msra.mxu0 %v553
        %2859 = vmatpush.msra.mxu0 %v549
        %2860 = vmatpush.msra.mxu0 %v545
        %2861 = vmatmul.f32.gmra.mxu0 %v1570
        %v2862 = vpop.f32.mrf.mxu0
        %v2863 = vadd.f32 %v1670, %v2862
        %2864 = vmatmul.f32.gmra.mxu0 %v1576
        %v2865 = vpop.f32.mrf.mxu0
        %v2866 = vadd.f32 %v1670, %v2865
        %2867 = vmatmul.f32.gmra.mxu0 %v1582
        %v2868 = vpop.f32.mrf.mxu0
        %v2869 = vadd.f32 %v1670, %v2868
        %2870 = vmatmul.f32.gmra.mxu0 %v1588
        %v2871 = vpop.f32.mrf.mxu0
        %v2872 = vadd.f32 %v1670, %v2871
        %2873 = vmatmul.f32.gmra.mxu0 %v1594
        %v2874 = vpop.f32.mrf.mxu0
        %v2875 = vadd.f32 %v1670, %v2874
        %2876 = vmatmul.f32.gmra.mxu0 %v1600
        %v2877 = vpop.f32.mrf.mxu0
        %v2878 = vadd.f32 %v1670, %v2877
        %2879 = vmatmul.f32.gmra.mxu0 %v1606
        %v2880 = vpop.f32.mrf.mxu0
        %v2881 = vadd.f32 %v1670, %v2880
        %2882 = vmatmul.f32.gmra.mxu0 %v1612
        %v2883 = vpop.f32.mrf.mxu0
        %v2884 = vadd.f32 %v1670, %v2883
        %2885 = vmatmul.f32.gmra.mxu0 %v1618
        %v2886 = vpop.f32.mrf.mxu0
        %v2887 = vadd.f32 %v1670, %v2886
        %2888 = vmatmul.f32.gmra.mxu0 %v1624
        %v2889 = vpop.f32.mrf.mxu0
        %v2890 = vadd.f32 %v1670, %v2889
        %2891 = vmatmul.f32.gmra.mxu0 %v1630
        %v2892 = vpop.f32.mrf.mxu0
        %v2893 = vadd.f32 %v1670, %v2892
        %2894 = vmatmul.f32.gmra.mxu0 %v1636
        %v2895 = vpop.f32.mrf.mxu0
        %v2896 = vadd.f32 %v1670, %v2895
        %2897 = vmatmul.f32.gmra.mxu0 %v1642
        %v2898 = vpop.f32.mrf.mxu0
        %v2899 = vadd.f32 %v1670, %v2898
        %2900 = vmatmul.f32.gmra.mxu0 %v1648
        %v2901 = vpop.f32.mrf.mxu0
        %v2902 = vadd.f32 %v1670, %v2901
        %2903 = vmatmul.f32.gmra.mxu0 %v1654
        %v2904 = vpop.f32.mrf.mxu0
        %v2905 = vadd.f32 %v1670, %v2904
        %2906 = vmatmul.f32.gmra.mxu0 %v1660
        %v2907 = vpop.f32.mrf.mxu0
        %v2908 = vadd.f32 %v1670, %v2907
        %2909 = vdwg.mxu0
        %2910 = vmatpush.msra.mxu0 %v669
        %2911 = vmatpush.msra.mxu0 %v665
        %2912 = vmatpush.msra.mxu0 %v661
        %2913 = vmatpush.msra.mxu0 %v657
        %2914 = vmatpush.msra.mxu0 %v653
        %2915 = vmatpush.msra.mxu0 %v649
        %2916 = vmatpush.msra.mxu0 %v645
        %2917 = vmatpush.msra.mxu0 %v641
        %2918 = vmatpush.msra.mxu0 %v637
        %2919 = vmatpush.msra.mxu0 %v633
        %2920 = vmatpush.msra.mxu0 %v629
        %2921 = vmatpush.msra.mxu0 %v625
        %2922 = vmatpush.msra.mxu0 %v621
        %2923 = vmatpush.msra.mxu0 %v617
        %2924 = vmatpush.msra.mxu0 %v613
        %2925 = vmatpush.msra.mxu0 %v609
        %2926 = vmatmul.f32.gmra.mxu0 %v1571
        %v2927 = vpop.f32.mrf.mxu0
        %v2928 = vadd.f32 %v2863, %v2927
        %2929 = vmatmul.f32.gmra.mxu0 %v1577
        %v2930 = vpop.f32.mrf.mxu0
        %v2931 = vadd.f32 %v2866, %v2930
        %2932 = vmatmul.f32.gmra.mxu0 %v1583
        %v2933 = vpop.f32.mrf.mxu0
        %v2934 = vadd.f32 %v2869, %v2933
        %2935 = vmatmul.f32.gmra.mxu0 %v1589
        %v2936 = vpop.f32.mrf.mxu0
        %v2937 = vadd.f32 %v2872, %v2936
        %2938 = vmatmul.f32.gmra.mxu0 %v1595
        %v2939 = vpop.f32.mrf.mxu0
        %v2940 = vadd.f32 %v2875, %v2939
        %2941 = vmatmul.f32.gmra.mxu0 %v1601
        %v2942 = vpop.f32.mrf.mxu0
        %v2943 = vadd.f32 %v2878, %v2942
        %2944 = vmatmul.f32.gmra.mxu0 %v1607
        %v2945 = vpop.f32.mrf.mxu0
        %v2946 = vadd.f32 %v2881, %v2945
        %2947 = vmatmul.f32.gmra.mxu0 %v1613
        %v2948 = vpop.f32.mrf.mxu0
        %v2949 = vadd.f32 %v2884, %v2948
        %2950 = vmatmul.f32.gmra.mxu0 %v1619
        %v2951 = vpop.f32.mrf.mxu0
        %v2952 = vadd.f32 %v2887, %v2951
        %2953 = vmatmul.f32.gmra.mxu0 %v1625
        %v2954 = vpop.f32.mrf.mxu0
        %v2955 = vadd.f32 %v2890, %v2954
        %2956 = vmatmul.f32.gmra.mxu0 %v1631
        %v2957 = vpop.f32.mrf.mxu0
        %v2958 = vadd.f32 %v2893, %v2957
        %2959 = vmatmul.f32.gmra.mxu0 %v1637
        %v2960 = vpop.f32.mrf.mxu0
        %v2961 = vadd.f32 %v2896, %v2960
        %2962 = vmatmul.f32.gmra.mxu0 %v1643
        %v2963 = vpop.f32.mrf.mxu0
        %v2964 = vadd.f32 %v2899, %v2963
        %2965 = vmatmul.f32.gmra.mxu0 %v1649
        %v2966 = vpop.f32.mrf.mxu0
        %v2967 = vadd.f32 %v2902, %v2966
        %2968 = vmatmul.f32.gmra.mxu0 %v1655
        %v2969 = vpop.f32.mrf.mxu0
        %v2970 = vadd.f32 %v2905, %v2969
        %2971 = vmatmul.f32.gmra.mxu0 %v1661
        %v2972 = vpop.f32.mrf.mxu0
        %v2973 = vadd.f32 %v2908, %v2972
        %2974 = vdwg.mxu0
        %2975 = vmatpush.msra.mxu0 %v733
        %2976 = vmatpush.msra.mxu0 %v729
        %2977 = vmatpush.msra.mxu0 %v725
        %2978 = vmatpush.msra.mxu0 %v721
        %2979 = vmatpush.msra.mxu0 %v717
        %2980 = vmatpush.msra.mxu0 %v713
        %2981 = vmatpush.msra.mxu0 %v709
        %2982 = vmatpush.msra.mxu0 %v705
        %2983 = vmatpush.msra.mxu0 %v701
        %2984 = vmatpush.msra.mxu0 %v697
        %2985 = vmatpush.msra.mxu0 %v693
        %2986 = vmatpush.msra.mxu0 %v689
        %2987 = vmatpush.msra.mxu0 %v685
        %2988 = vmatpush.msra.mxu0 %v681
        %2989 = vmatpush.msra.mxu0 %v677
        %2990 = vmatpush.msra.mxu0 %v673
        %2991 = vmatmul.f32.gmra.mxu0 %v1572
        %v2992 = vpop.f32.mrf.mxu0
        %v2993 = vadd.f32 %v2928, %v2992
        %2994 = vmatmul.f32.gmra.mxu0 %v1578
        %v2995 = vpop.f32.mrf.mxu0
        %v2996 = vadd.f32 %v2931, %v2995
        %2997 = vmatmul.f32.gmra.mxu0 %v1584
        %v2998 = vpop.f32.mrf.mxu0
        %v2999 = vadd.f32 %v2934, %v2998
        %3000 = vmatmul.f32.gmra.mxu0 %v1590
        %v3001 = vpop.f32.mrf.mxu0
        %v3002 = vadd.f32 %v2937, %v3001
        %3003 = vmatmul.f32.gmra.mxu0 %v1596
        %v3004 = vpop.f32.mrf.mxu0
        %v3005 = vadd.f32 %v2940, %v3004
        %3006 = vmatmul.f32.gmra.mxu0 %v1602
        %v3007 = vpop.f32.mrf.mxu0
        %v3008 = vadd.f32 %v2943, %v3007
        %3009 = vmatmul.f32.gmra.mxu0 %v1608
        %v3010 = vpop.f32.mrf.mxu0
        %v3011 = vadd.f32 %v2946, %v3010
        %3012 = vmatmul.f32.gmra.mxu0 %v1614
        %v3013 = vpop.f32.mrf.mxu0
        %v3014 = vadd.f32 %v2949, %v3013
        %3015 = vmatmul.f32.gmra.mxu0 %v1620
        %v3016 = vpop.f32.mrf.mxu0
        %v3017 = vadd.f32 %v2952, %v3016
        %3018 = vmatmul.f32.gmra.mxu0 %v1626
        %v3019 = vpop.f32.mrf.mxu0
        %v3020 = vadd.f32 %v2955, %v3019
        %3021 = vmatmul.f32.gmra.mxu0 %v1632
        %v3022 = vpop.f32.mrf.mxu0
        %v3023 = vadd.f32 %v2958, %v3022
        %3024 = vmatmul.f32.gmra.mxu0 %v1638
        %v3025 = vpop.f32.mrf.mxu0
        %v3026 = vadd.f32 %v2961, %v3025
        %3027 = vmatmul.f32.gmra.mxu0 %v1644
        %v3028 = vpop.f32.mrf.mxu0
        %v3029 = vadd.f32 %v2964, %v3028
        %3030 = vmatmul.f32.gmra.mxu0 %v1650
        %v3031 = vpop.f32.mrf.mxu0
        %v3032 = vadd.f32 %v2967, %v3031
        %3033 = vmatmul.f32.gmra.mxu0 %v1656
        %v3034 = vpop.f32.mrf.mxu0
        %v3035 = vadd.f32 %v2970, %v3034
        %3036 = vmatmul.f32.gmra.mxu0 %v1662
        %v3037 = vpop.f32.mrf.mxu0
        %v3038 = vadd.f32 %v2973, %v3037
        %3039 = vdwg.mxu0
        %3040 = vmatpush.msra.mxu0 %v797
        %3041 = vmatpush.msra.mxu0 %v793
        %3042 = vmatpush.msra.mxu0 %v789
        %3043 = vmatpush.msra.mxu0 %v785
        %3044 = vmatpush.msra.mxu0 %v781
        %3045 = vmatpush.msra.mxu0 %v777
        %3046 = vmatpush.msra.mxu0 %v773
        %3047 = vmatpush.msra.mxu0 %v769
        %3048 = vmatpush.msra.mxu0 %v765
        %3049 = vmatpush.msra.mxu0 %v761
        %3050 = vmatpush.msra.mxu0 %v757
        %3051 = vmatpush.msra.mxu0 %v753
        %3052 = vmatpush.msra.mxu0 %v749
        %3053 = vmatpush.msra.mxu0 %v745
        %3054 = vmatpush.msra.mxu0 %v741
        %3055 = vmatpush.msra.mxu0 %v737
        %3056 = vmatmul.f32.gmra.mxu0 %v1573
        %v3057 = vpop.f32.mrf.mxu0
        %v3058 = vadd.f32 %v2993, %v3057
        %3059 = vmatmul.f32.gmra.mxu0 %v1579
        %v3060 = vpop.f32.mrf.mxu0
        %v3061 = vadd.f32 %v2996, %v3060
        %3062 = vmatmul.f32.gmra.mxu0 %v1585
        %v3063 = vpop.f32.mrf.mxu0
        %v3064 = vadd.f32 %v2999, %v3063
        %3065 = vmatmul.f32.gmra.mxu0 %v1591
        %v3066 = vpop.f32.mrf.mxu0
        %v3067 = vadd.f32 %v3002, %v3066
        %3068 = vmatmul.f32.gmra.mxu0 %v1597
        %v3069 = vpop.f32.mrf.mxu0
        %v3070 = vadd.f32 %v3005, %v3069
        %3071 = vmatmul.f32.gmra.mxu0 %v1603
        %v3072 = vpop.f32.mrf.mxu0
        %v3073 = vadd.f32 %v3008, %v3072
        %3074 = vmatmul.f32.gmra.mxu0 %v1609
        %v3075 = vpop.f32.mrf.mxu0
        %v3076 = vadd.f32 %v3011, %v3075
        %3077 = vmatmul.f32.gmra.mxu0 %v1615
        %v3078 = vpop.f32.mrf.mxu0
        %v3079 = vadd.f32 %v3014, %v3078
        %3080 = vmatmul.f32.gmra.mxu0 %v1621
        %v3081 = vpop.f32.mrf.mxu0
        %v3082 = vadd.f32 %v3017, %v3081
        %3083 = vmatmul.f32.gmra.mxu0 %v1627
        %v3084 = vpop.f32.mrf.mxu0
        %v3085 = vadd.f32 %v3020, %v3084
        %3086 = vmatmul.f32.gmra.mxu0 %v1633
        %v3087 = vpop.f32.mrf.mxu0
        %v3088 = vadd.f32 %v3023, %v3087
        %3089 = vmatmul.f32.gmra.mxu0 %v1639
        %v3090 = vpop.f32.mrf.mxu0
        %v3091 = vadd.f32 %v3026, %v3090
        %3092 = vmatmul.f32.gmra.mxu0 %v1645
        %v3093 = vpop.f32.mrf.mxu0
        %v3094 = vadd.f32 %v3029, %v3093
        %3095 = vmatmul.f32.gmra.mxu0 %v1651
        %v3096 = vpop.f32.mrf.mxu0
        %v3097 = vadd.f32 %v3032, %v3096
        %3098 = vmatmul.f32.gmra.mxu0 %v1657
        %v3099 = vpop.f32.mrf.mxu0
        %v3100 = vadd.f32 %v3035, %v3099
        %3101 = vmatmul.f32.gmra.mxu0 %v1663
        %v3102 = vpop.f32.mrf.mxu0
        %v3103 = vadd.f32 %v3038, %v3102
        %3104 = vdwg.mxu0
        %3105 = vmatpush.msra.mxu0 %v861
        %3106 = vmatpush.msra.mxu0 %v857
        %3107 = vmatpush.msra.mxu0 %v853
        %3108 = vmatpush.msra.mxu0 %v849
        %3109 = vmatpush.msra.mxu0 %v845
        %3110 = vmatpush.msra.mxu0 %v841
        %3111 = vmatpush.msra.mxu0 %v837
        %3112 = vmatpush.msra.mxu0 %v833
        %3113 = vmatpush.msra.mxu0 %v829
        %3114 = vmatpush.msra.mxu0 %v825
        %3115 = vmatpush.msra.mxu0 %v821
        %3116 = vmatpush.msra.mxu0 %v817
        %3117 = vmatpush.msra.mxu0 %v813
        %3118 = vmatpush.msra.mxu0 %v809
        %3119 = vmatpush.msra.mxu0 %v805
        %3120 = vmatpush.msra.mxu0 %v801
        %3121 = vmatmul.f32.gmra.mxu0 %v1574
        %v3122 = vpop.f32.mrf.mxu0
        %v3123 = vadd.f32 %v3058, %v3122
        %3124 = vmatmul.f32.gmra.mxu0 %v1580
        %v3125 = vpop.f32.mrf.mxu0
        %v3126 = vadd.f32 %v3061, %v3125
        %3127 = vmatmul.f32.gmra.mxu0 %v1586
        %v3128 = vpop.f32.mrf.mxu0
        %v3129 = vadd.f32 %v3064, %v3128
        %3130 = vmatmul.f32.gmra.mxu0 %v1592
        %v3131 = vpop.f32.mrf.mxu0
        %v3132 = vadd.f32 %v3067, %v3131
        %3133 = vmatmul.f32.gmra.mxu0 %v1598
        %v3134 = vpop.f32.mrf.mxu0
        %v3135 = vadd.f32 %v3070, %v3134
        %3136 = vmatmul.f32.gmra.mxu0 %v1604
        %v3137 = vpop.f32.mrf.mxu0
        %v3138 = vadd.f32 %v3073, %v3137
        %3139 = vmatmul.f32.gmra.mxu0 %v1610
        %v3140 = vpop.f32.mrf.mxu0
        %v3141 = vadd.f32 %v3076, %v3140
        %3142 = vmatmul.f32.gmra.mxu0 %v1616
        %v3143 = vpop.f32.mrf.mxu0
        %v3144 = vadd.f32 %v3079, %v3143
        %3145 = vmatmul.f32.gmra.mxu0 %v1622
        %v3146 = vpop.f32.mrf.mxu0
        %v3147 = vadd.f32 %v3082, %v3146
        %3148 = vmatmul.f32.gmra.mxu0 %v1628
        %v3149 = vpop.f32.mrf.mxu0
        %v3150 = vadd.f32 %v3085, %v3149
        %3151 = vmatmul.f32.gmra.mxu0 %v1634
        %v3152 = vpop.f32.mrf.mxu0
        %v3153 = vadd.f32 %v3088, %v3152
        %3154 = vmatmul.f32.gmra.mxu0 %v1640
        %v3155 = vpop.f32.mrf.mxu0
        %v3156 = vadd.f32 %v3091, %v3155
        %3157 = vmatmul.f32.gmra.mxu0 %v1646
        %v3158 = vpop.f32.mrf.mxu0
        %v3159 = vadd.f32 %v3094, %v3158
        %3160 = vmatmul.f32.gmra.mxu0 %v1652
        %v3161 = vpop.f32.mrf.mxu0
        %v3162 = vadd.f32 %v3097, %v3161
        %3163 = vmatmul.f32.gmra.mxu0 %v1658
        %v3164 = vpop.f32.mrf.mxu0
        %v3165 = vadd.f32 %v3100, %v3164
        %3166 = vmatmul.f32.gmra.mxu0 %v1664
        %v3167 = vpop.f32.mrf.mxu0
        %v3168 = vadd.f32 %v3103, %v3167
        %3169 = vdwg.mxu0
        %3170 = vmatpush.msra.mxu0 %v925
        %3171 = vmatpush.msra.mxu0 %v921
        %3172 = vmatpush.msra.mxu0 %v917
        %3173 = vmatpush.msra.mxu0 %v913
        %3174 = vmatpush.msra.mxu0 %v909
        %3175 = vmatpush.msra.mxu0 %v905
        %3176 = vmatpush.msra.mxu0 %v901
        %3177 = vmatpush.msra.mxu0 %v897
        %3178 = vmatpush.msra.mxu0 %v893
        %3179 = vmatpush.msra.mxu0 %v889
        %3180 = vmatpush.msra.mxu0 %v885
        %3181 = vmatpush.msra.mxu0 %v881
        %3182 = vmatpush.msra.mxu0 %v877
        %3183 = vmatpush.msra.mxu0 %v873
        %3184 = vmatpush.msra.mxu0 %v869
        %3185 = vmatpush.msra.mxu0 %v865
        %3186 = vmatmul.f32.gmra.mxu0 %v1575
        %v3187 = vpop.f32.mrf.mxu0
        %v3188 = vadd.f32 %v3123, %v3187
        %3189 = vmatmul.f32.gmra.mxu0 %v1581
        %v3190 = vpop.f32.mrf.mxu0
        %v3191 = vadd.f32 %v3126, %v3190
        %3192 = vmatmul.f32.gmra.mxu0 %v1587
        %v3193 = vpop.f32.mrf.mxu0
        %v3194 = vadd.f32 %v3129, %v3193
        %3195 = vmatmul.f32.gmra.mxu0 %v1593
        %v3196 = vpop.f32.mrf.mxu0
        %v3197 = vadd.f32 %v3132, %v3196
        %3198 = vmatmul.f32.gmra.mxu0 %v1599
        %v3199 = vpop.f32.mrf.mxu0
        %v3200 = vadd.f32 %v3135, %v3199
        %3201 = vmatmul.f32.gmra.mxu0 %v1605
        %v3202 = vpop.f32.mrf.mxu0
        %v3203 = vadd.f32 %v3138, %v3202
        %3204 = vmatmul.f32.gmra.mxu0 %v1611
        %v3205 = vpop.f32.mrf.mxu0
        %v3206 = vadd.f32 %v3141, %v3205
        %3207 = vmatmul.f32.gmra.mxu0 %v1617
        %v3208 = vpop.f32.mrf.mxu0
        %v3209 = vadd.f32 %v3144, %v3208
        %3210 = vmatmul.f32.gmra.mxu0 %v1623
        %v3211 = vpop.f32.mrf.mxu0
        %v3212 = vadd.f32 %v3147, %v3211
        %3213 = vmatmul.f32.gmra.mxu0 %v1629
        %v3214 = vpop.f32.mrf.mxu0
        %v3215 = vadd.f32 %v3150, %v3214
        %3216 = vmatmul.f32.gmra.mxu0 %v1635
        %v3217 = vpop.f32.mrf.mxu0
        %v3218 = vadd.f32 %v3153, %v3217
        %3219 = vmatmul.f32.gmra.mxu0 %v1641
        %v3220 = vpop.f32.mrf.mxu0
        %v3221 = vadd.f32 %v3156, %v3220
        %3222 = vmatmul.f32.gmra.mxu0 %v1647
        %v3223 = vpop.f32.mrf.mxu0
        %v3224 = vadd.f32 %v3159, %v3223
        %3225 = vmatmul.f32.gmra.mxu0 %v1653
        %v3226 = vpop.f32.mrf.mxu0
        %v3227 = vadd.f32 %v3162, %v3226
        %3228 = vmatmul.f32.gmra.mxu0 %v1659
        %v3229 = vpop.f32.mrf.mxu0
        %v3230 = vadd.f32 %v3165, %v3229
        %3231 = vmatmul.f32.gmra.mxu0 %v1665
        %v3232 = vpop.f32.mrf.mxu0
        %v3233 = vadd.f32 %v3168, %v3232
        %3234 = vdwg.mxu0
        %v3235 = vmax.f32 %v2018, 0.0
        %v3236 = vmax.f32 %v2408, 0.0
        %v3237 = vmax.f32 %v2798, 0.0
        %v3238 = vmax.f32 %v3188, 0.0
        %v3239 = vmax.f32 %v2021, 0.0
        %v3240 = vmax.f32 %v2411, 0.0
        %v3241 = vmax.f32 %v2801, 0.0
        %v3242 = vmax.f32 %v3191, 0.0
        %v3243 = vmax.f32 %v2024, 0.0
        %v3244 = vmax.f32 %v2414, 0.0
        %v3245 = vmax.f32 %v2804, 0.0
        %v3246 = vmax.f32 %v3194, 0.0
        %v3247 = vmax.f32 %v2027, 0.0
        %v3248 = vmax.f32 %v2417, 0.0
        %v3249 = vmax.f32 %v2807, 0.0
        %v3250 = vmax.f32 %v3197, 0.0
        %v3251 = vmax.f32 %v2030, 0.0
        %v3252 = vmax.f32 %v2420, 0.0
        %v3253 = vmax.f32 %v2810, 0.0
        %v3254 = vmax.f32 %v3200, 0.0
        %v3255 = vmax.f32 %v2033, 0.0
        %v3256 = vmax.f32 %v2423, 0.0
        %v3257 = vmax.f32 %v2813, 0.0
        %v3258 = vmax.f32 %v3203, 0.0
        %v3259 = vmax.f32 %v2036, 0.0
        %v3260 = vmax.f32 %v2426, 0.0
        %v3261 = vmax.f32 %v2816, 0.0
        %v3262 = vmax.f32 %v3206, 0.0
        %v3263 = vmax.f32 %v2039, 0.0
        %v3264 = vmax.f32 %v2429, 0.0
        %v3265 = vmax.f32 %v2819, 0.0
        %v3266 = vmax.f32 %v3209, 0.0
        %v3267 = vmax.f32 %v2042, 0.0
        %v3268 = vmax.f32 %v2432, 0.0
        %v3269 = vmax.f32 %v2822, 0.0
        %v3270 = vmax.f32 %v3212, 0.0
        %v3271 = vmax.f32 %v2045, 0.0
        %v3272 = vmax.f32 %v2435, 0.0
        %v3273 = vmax.f32 %v2825, 0.0
        %v3274 = vmax.f32 %v3215, 0.0
        %v3275 = vmax.f32 %v2048, 0.0
        %v3276 = vmax.f32 %v2438, 0.0
        %v3277 = vmax.f32 %v2828, 0.0
        %v3278 = vmax.f32 %v3218, 0.0
        %v3279 = vmax.f32 %v2051, 0.0
        %v3280 = vmax.f32 %v2441, 0.0
        %v3281 = vmax.f32 %v2831, 0.0
        %v3282 = vmax.f32 %v3221, 0.0
        %v3283 = vmax.f32 %v2054, 0.0
        %v3284 = vmax.f32 %v2444, 0.0
        %v3285 = vmax.f32 %v2834, 0.0
        %v3286 = vmax.f32 %v3224, 0.0
        %v3287 = vmax.f32 %v2057, 0.0
        %v3288 = vmax.f32 %v2447, 0.0
        %v3289 = vmax.f32 %v2837, 0.0
        %v3290 = vmax.f32 %v3227, 0.0
        %v3291 = vmax.f32 %v2060, 0.0
        %v3292 = vmax.f32 %v2450, 0.0
        %v3293 = vmax.f32 %v2840, 0.0
        %v3294 = vmax.f32 %v3230, 0.0
        %v3295 = vmax.f32 %v2063, 0.0
        %v3296 = vmax.f32 %v2453, 0.0
        %v3297 = vmax.f32 %v2843, 0.0
        %v3298 = vmax.f32 %v3233, 0.0
        %v3300 = vperm.slane %v1567, 0
        %v3301 = vperm.slane %v1567, 1
        %3304 = vmatpush.msra.mxu0 %v956
        %3305 = vmatpush.msra.mxu0 %v954
        %3306 = vmatpush.msra.mxu0 %v952
        %3307 = vmatpush.msra.mxu0 %v950
        %3308 = vmatpush.msra.mxu0 %v948
        %3309 = vmatpush.msra.mxu0 %v946
        %3310 = vmatpush.msra.mxu0 %v944
        %3311 = vmatpush.msra.mxu0 %v942
        %3312 = vmatpush.msra.mxu0 %v940
        %3313 = vmatpush.msra.mxu0 %v938
        %3314 = vmatpush.msra.mxu0 %v936
        %3315 = vmatpush.msra.mxu0 %v934
        %3316 = vmatpush.msra.mxu0 %v932
        %3317 = vmatpush.msra.mxu0 %v930
        %3318 = vmatpush.msra.mxu0 %v928
        %3319 = vmatpush.msra.mxu0 %v926
        %3320 = vmatmul.f32.gmra.mxu0 %v3235
        %v3321 = vpop.f32.mrf.mxu0
        %v3322 = vadd.f32 %v3300, %v3321
        %3323 = vmatmul.f32.gmra.mxu0 %v3239
        %v3324 = vpop.f32.mrf.mxu0
        %v3325 = vadd.f32 %v3300, %v3324
        %3326 = vmatmul.f32.gmra.mxu0 %v3243
        %v3327 = vpop.f32.mrf.mxu0
        %v3328 = vadd.f32 %v3300, %v3327
        %3329 = vmatmul.f32.gmra.mxu0 %v3247
        %v3330 = vpop.f32.mrf.mxu0
        %v3331 = vadd.f32 %v3300, %v3330
        %3332 = vmatmul.f32.gmra.mxu0 %v3251
        %v3333 = vpop.f32.mrf.mxu0
        %v3334 = vadd.f32 %v3300, %v3333
        %3335 = vmatmul.f32.gmra.mxu0 %v3255
        %v3336 = vpop.f32.mrf.mxu0
        %v3337 = vadd.f32 %v3300, %v3336
        %3338 = vmatmul.f32.gmra.mxu0 %v3259
        %v3339 = vpop.f32.mrf.mxu0
        %v3340 = vadd.f32 %v3300, %v3339
        %3341 = vmatmul.f32.gmra.mxu0 %v3263
        %v3342 = vpop.f32.mrf.mxu0
        %v3343 = vadd.f32 %v3300, %v3342
        %3344 = vmatmul.f32.gmra.mxu0 %v3267
        %v3345 = vpop.f32.mrf.mxu0
        %v3346 = vadd.f32 %v3300, %v3345
        %3347 = vmatmul.f32.gmra.mxu0 %v3271
        %v3348 = vpop.f32.mrf.mxu0
        %v3349 = vadd.f32 %v3300, %v3348
        %3350 = vmatmul.f32.gmra.mxu0 %v3275
        %v3351 = vpop.f32.mrf.mxu0
        %v3352 = vadd.f32 %v3300, %v3351
        %3353 = vmatmul.f32.gmra.mxu0 %v3279
        %v3354 = vpop.f32.mrf.mxu0
        %v3355 = vadd.f32 %v3300, %v3354
        %3356 = vmatmul.f32.gmra.mxu0 %v3283
        %v3357 = vpop.f32.mrf.mxu0
        %v3358 = vadd.f32 %v3300, %v3357
        %3359 = vmatmul.f32.gmra.mxu0 %v3287
        %v3360 = vpop.f32.mrf.mxu0
        %v3361 = vadd.f32 %v3300, %v3360
        %3362 = vmatmul.f32.gmra.mxu0 %v3291
        %v3363 = vpop.f32.mrf.mxu0
        %v3364 = vadd.f32 %v3300, %v3363
        %3365 = vmatmul.f32.gmra.mxu0 %v3295
        %v3366 = vpop.f32.mrf.mxu0
        %v3367 = vadd.f32 %v3300, %v3366
        %3368 = vdwg.mxu0
        %3369 = vmatpush.msra.mxu0 %v988
        %3370 = vmatpush.msra.mxu0 %v986
        %3371 = vmatpush.msra.mxu0 %v984
        %3372 = vmatpush.msra.mxu0 %v982
        %3373 = vmatpush.msra.mxu0 %v980
        %3374 = vmatpush.msra.mxu0 %v978
        %3375 = vmatpush.msra.mxu0 %v976
        %3376 = vmatpush.msra.mxu0 %v974
        %3377 = vmatpush.msra.mxu0 %v972
        %3378 = vmatpush.msra.mxu0 %v970
        %3379 = vmatpush.msra.mxu0 %v968
        %3380 = vmatpush.msra.mxu0 %v966
        %3381 = vmatpush.msra.mxu0 %v964
        %3382 = vmatpush.msra.mxu0 %v962
        %3383 = vmatpush.msra.mxu0 %v960
        %3384 = vmatpush.msra.mxu0 %v958
        %3385 = vmatmul.f32.gmra.mxu0 %v3236
        %v3386 = vpop.f32.mrf.mxu0
        %v3387 = vadd.f32 %v3322, %v3386
        %3388 = vmatmul.f32.gmra.mxu0 %v3240
        %v3389 = vpop.f32.mrf.mxu0
        %v3390 = vadd.f32 %v3325, %v3389
        %3391 = vmatmul.f32.gmra.mxu0 %v3244
        %v3392 = vpop.f32.mrf.mxu0
        %v3393 = vadd.f32 %v3328, %v3392
        %3394 = vmatmul.f32.gmra.mxu0 %v3248
        %v3395 = vpop.f32.mrf.mxu0
        %v3396 = vadd.f32 %v3331, %v3395
        %3397 = vmatmul.f32.gmra.mxu0 %v3252
        %v3398 = vpop.f32.mrf.mxu0
        %v3399 = vadd.f32 %v3334, %v3398
        %3400 = vmatmul.f32.gmra.mxu0 %v3256
        %v3401 = vpop.f32.mrf.mxu0
        %v3402 = vadd.f32 %v3337, %v3401
        %3403 = vmatmul.f32.gmra.mxu0 %v3260
        %v3404 = vpop.f32.mrf.mxu0
        %v3405 = vadd.f32 %v3340, %v3404
        %3406 = vmatmul.f32.gmra.mxu0 %v3264
        %v3407 = vpop.f32.mrf.mxu0
        %v3408 = vadd.f32 %v3343, %v3407
        %3409 = vmatmul.f32.gmra.mxu0 %v3268
        %v3410 = vpop.f32.mrf.mxu0
        %v3411 = vadd.f32 %v3346, %v3410
        %3412 = vmatmul.f32.gmra.mxu0 %v3272
        %v3413 = vpop.f32.mrf.mxu0
        %v3414 = vadd.f32 %v3349, %v3413
        %3415 = vmatmul.f32.gmra.mxu0 %v3276
        %v3416 = vpop.f32.mrf.mxu0
        %v3417 = vadd.f32 %v3352, %v3416
        %3418 = vmatmul.f32.gmra.mxu0 %v3280
        %v3419 = vpop.f32.mrf.mxu0
        %v3420 = vadd.f32 %v3355, %v3419
        %3421 = vmatmul.f32.gmra.mxu0 %v3284
        %v3422 = vpop.f32.mrf.mxu0
        %v3423 = vadd.f32 %v3358, %v3422
        %3424 = vmatmul.f32.gmra.mxu0 %v3288
        %v3425 = vpop.f32.mrf.mxu0
        %v3426 = vadd.f32 %v3361, %v3425
        %3427 = vmatmul.f32.gmra.mxu0 %v3292
        %v3428 = vpop.f32.mrf.mxu0
        %v3429 = vadd.f32 %v3364, %v3428
        %3430 = vmatmul.f32.gmra.mxu0 %v3296
        %v3431 = vpop.f32.mrf.mxu0
        %v3432 = vadd.f32 %v3367, %v3431
        %3433 = vdwg.mxu0
        %3434 = vmatpush.msra.mxu0 %v1020
        %3435 = vmatpush.msra.mxu0 %v1018
        %3436 = vmatpush.msra.mxu0 %v1016
        %3437 = vmatpush.msra.mxu0 %v1014
        %3438 = vmatpush.msra.mxu0 %v1012
        %3439 = vmatpush.msra.mxu0 %v1010
        %3440 = vmatpush.msra.mxu0 %v1008
        %3441 = vmatpush.msra.mxu0 %v1006
        %3442 = vmatpush.msra.mxu0 %v1004
        %3443 = vmatpush.msra.mxu0 %v1002
        %3444 = vmatpush.msra.mxu0 %v1000
        %3445 = vmatpush.msra.mxu0 %v998
        %3446 = vmatpush.msra.mxu0 %v996
        %3447 = vmatpush.msra.mxu0 %v994
        %3448 = vmatpush.msra.mxu0 %v992
        %3449 = vmatpush.msra.mxu0 %v990
        %3450 = vmatmul.f32.gmra.mxu0 %v3237
        %v3451 = vpop.f32.mrf.mxu0
        %v3452 = vadd.f32 %v3387, %v3451
        %3453 = vmatmul.f32.gmra.mxu0 %v3241
        %v3454 = vpop.f32.mrf.mxu0
        %v3455 = vadd.f32 %v3390, %v3454
        %3456 = vmatmul.f32.gmra.mxu0 %v3245
        %v3457 = vpop.f32.mrf.mxu0
        %v3458 = vadd.f32 %v3393, %v3457
        %3459 = vmatmul.f32.gmra.mxu0 %v3249
        %v3460 = vpop.f32.mrf.mxu0
        %v3461 = vadd.f32 %v3396, %v3460
        %3462 = vmatmul.f32.gmra.mxu0 %v3253
        %v3463 = vpop.f32.mrf.mxu0
        %v3464 = vadd.f32 %v3399, %v3463
        %3465 = vmatmul.f32.gmra.mxu0 %v3257
        %v3466 = vpop.f32.mrf.mxu0
        %v3467 = vadd.f32 %v3402, %v3466
        %3468 = vmatmul.f32.gmra.mxu0 %v3261
        %v3469 = vpop.f32.mrf.mxu0
        %v3470 = vadd.f32 %v3405, %v3469
        %3471 = vmatmul.f32.gmra.mxu0 %v3265
        %v3472 = vpop.f32.mrf.mxu0
        %v3473 = vadd.f32 %v3408, %v3472
        %3474 = vmatmul.f32.gmra.mxu0 %v3269
        %v3475 = vpop.f32.mrf.mxu0
        %v3476 = vadd.f32 %v3411, %v3475
        %3477 = vmatmul.f32.gmra.mxu0 %v3273
        %v3478 = vpop.f32.mrf.mxu0
        %v3479 = vadd.f32 %v3414, %v3478
        %3480 = vmatmul.f32.gmra.mxu0 %v3277
        %v3481 = vpop.f32.mrf.mxu0
        %v3482 = vadd.f32 %v3417, %v3481
        %3483 = vmatmul.f32.gmra.mxu0 %v3281
        %v3484 = vpop.f32.mrf.mxu0
        %v3485 = vadd.f32 %v3420, %v3484
        %3486 = vmatmul.f32.gmra.mxu0 %v3285
        %v3487 = vpop.f32.mrf.mxu0
        %v3488 = vadd.f32 %v3423, %v3487
        %3489 = vmatmul.f32.gmra.mxu0 %v3289
        %v3490 = vpop.f32.mrf.mxu0
        %v3491 = vadd.f32 %v3426, %v3490
        %3492 = vmatmul.f32.gmra.mxu0 %v3293
        %v3493 = vpop.f32.mrf.mxu0
        %v3494 = vadd.f32 %v3429, %v3493
        %3495 = vmatmul.f32.gmra.mxu0 %v3297
        %v3496 = vpop.f32.mrf.mxu0
        %v3497 = vadd.f32 %v3432, %v3496
        %3498 = vdwg.mxu0
        %3499 = vmatpush.msra.mxu0 %v1052
        %3500 = vmatpush.msra.mxu0 %v1050
        %3501 = vmatpush.msra.mxu0 %v1048
        %3502 = vmatpush.msra.mxu0 %v1046
        %3503 = vmatpush.msra.mxu0 %v1044
        %3504 = vmatpush.msra.mxu0 %v1042
        %3505 = vmatpush.msra.mxu0 %v1040
        %3506 = vmatpush.msra.mxu0 %v1038
        %3507 = vmatpush.msra.mxu0 %v1036
        %3508 = vmatpush.msra.mxu0 %v1034
        %3509 = vmatpush.msra.mxu0 %v1032
        %3510 = vmatpush.msra.mxu0 %v1030
        %3511 = vmatpush.msra.mxu0 %v1028
        %3512 = vmatpush.msra.mxu0 %v1026
        %3513 = vmatpush.msra.mxu0 %v1024
        %3514 = vmatpush.msra.mxu0 %v1022
        %3515 = vmatmul.f32.gmra.mxu0 %v3238
        %v3516 = vpop.f32.mrf.mxu0
        %v3517 = vadd.f32 %v3452, %v3516
        %3518 = vmatmul.f32.gmra.mxu0 %v3242
        %v3519 = vpop.f32.mrf.mxu0
        %v3520 = vadd.f32 %v3455, %v3519
        %3521 = vmatmul.f32.gmra.mxu0 %v3246
        %v3522 = vpop.f32.mrf.mxu0
        %v3523 = vadd.f32 %v3458, %v3522
        %3524 = vmatmul.f32.gmra.mxu0 %v3250
        %v3525 = vpop.f32.mrf.mxu0
        %v3526 = vadd.f32 %v3461, %v3525
        %3527 = vmatmul.f32.gmra.mxu0 %v3254
        %v3528 = vpop.f32.mrf.mxu0
        %v3529 = vadd.f32 %v3464, %v3528
        %3530 = vmatmul.f32.gmra.mxu0 %v3258
        %v3531 = vpop.f32.mrf.mxu0
        %v3532 = vadd.f32 %v3467, %v3531
        %3533 = vmatmul.f32.gmra.mxu0 %v3262
        %v3534 = vpop.f32.mrf.mxu0
        %v3535 = vadd.f32 %v3470, %v3534
        %3536 = vmatmul.f32.gmra.mxu0 %v3266
        %v3537 = vpop.f32.mrf.mxu0
        %v3538 = vadd.f32 %v3473, %v3537
        %3539 = vmatmul.f32.gmra.mxu0 %v3270
        %v3540 = vpop.f32.mrf.mxu0
        %v3541 = vadd.f32 %v3476, %v3540
        %3542 = vmatmul.f32.gmra.mxu0 %v3274
        %v3543 = vpop.f32.mrf.mxu0
        %v3544 = vadd.f32 %v3479, %v3543
        %3545 = vmatmul.f32.gmra.mxu0 %v3278
        %v3546 = vpop.f32.mrf.mxu0
        %v3547 = vadd.f32 %v3482, %v3546
        %3548 = vmatmul.f32.gmra.mxu0 %v3282
        %v3549 = vpop.f32.mrf.mxu0
        %v3550 = vadd.f32 %v3485, %v3549
        %3551 = vmatmul.f32.gmra.mxu0 %v3286
        %v3552 = vpop.f32.mrf.mxu0
        %v3553 = vadd.f32 %v3488, %v3552
        %3554 = vmatmul.f32.gmra.mxu0 %v3290
        %v3555 = vpop.f32.mrf.mxu0
        %v3556 = vadd.f32 %v3491, %v3555
        %3557 = vmatmul.f32.gmra.mxu0 %v3294
        %v3558 = vpop.f32.mrf.mxu0
        %v3559 = vadd.f32 %v3494, %v3558
        %3560 = vmatmul.f32.gmra.mxu0 %v3298
        %v3561 = vpop.f32.mrf.mxu0
        %v3562 = vadd.f32 %v3497, %v3561
        %3563 = vdwg.mxu0
        %3564 = vmatpush.msra.mxu0 %v957
        %3565 = vmatpush.msra.mxu0 %v955
        %3566 = vmatpush.msra.mxu0 %v953
        %3567 = vmatpush.msra.mxu0 %v951
        %3568 = vmatpush.msra.mxu0 %v949
        %3569 = vmatpush.msra.mxu0 %v947
        %3570 = vmatpush.msra.mxu0 %v945
        %3571 = vmatpush.msra.mxu0 %v943
        %3572 = vmatpush.msra.mxu0 %v941
        %3573 = vmatpush.msra.mxu0 %v939
        %3574 = vmatpush.msra.mxu0 %v937
        %3575 = vmatpush.msra.mxu0 %v935
        %3576 = vmatpush.msra.mxu0 %v933
        %3577 = vmatpush.msra.mxu0 %v931
        %3578 = vmatpush.msra.mxu0 %v929
        %3579 = vmatpush.msra.mxu0 %v927
        %3580 = vmatmul.f32.gmra.mxu0 %v3235
        %v3581 = vpop.f32.mrf.mxu0
        %v3582 = vadd.f32 %v3301, %v3581
        %3583 = vmatmul.f32.gmra.mxu0 %v3239
        %v3584 = vpop.f32.mrf.mxu0
        %v3585 = vadd.f32 %v3301, %v3584
        %3586 = vmatmul.f32.gmra.mxu0 %v3243
        %v3587 = vpop.f32.mrf.mxu0
        %v3588 = vadd.f32 %v3301, %v3587
        %3589 = vmatmul.f32.gmra.mxu0 %v3247
        %v3590 = vpop.f32.mrf.mxu0
        %v3591 = vadd.f32 %v3301, %v3590
        %3592 = vmatmul.f32.gmra.mxu0 %v3251
        %v3593 = vpop.f32.mrf.mxu0
        %v3594 = vadd.f32 %v3301, %v3593
        %3595 = vmatmul.f32.gmra.mxu0 %v3255
        %v3596 = vpop.f32.mrf.mxu0
        %v3597 = vadd.f32 %v3301, %v3596
        %3598 = vmatmul.f32.gmra.mxu0 %v3259
        %v3599 = vpop.f32.mrf.mxu0
        %v3600 = vadd.f32 %v3301, %v3599
        %3601 = vmatmul.f32.gmra.mxu0 %v3263
        %v3602 = vpop.f32.mrf.mxu0
        %v3603 = vadd.f32 %v3301, %v3602
        %3604 = vmatmul.f32.gmra.mxu0 %v3267
        %v3605 = vpop.f32.mrf.mxu0
        %v3606 = vadd.f32 %v3301, %v3605
        %3607 = vmatmul.f32.gmra.mxu0 %v3271
        %v3608 = vpop.f32.mrf.mxu0
        %v3609 = vadd.f32 %v3301, %v3608
        %3610 = vmatmul.f32.gmra.mxu0 %v3275
        %v3611 = vpop.f32.mrf.mxu0
        %v3612 = vadd.f32 %v3301, %v3611
        %3613 = vmatmul.f32.gmra.mxu0 %v3279
        %v3614 = vpop.f32.mrf.mxu0
        %v3615 = vadd.f32 %v3301, %v3614
        %3616 = vmatmul.f32.gmra.mxu0 %v3283
        %v3617 = vpop.f32.mrf.mxu0
        %v3618 = vadd.f32 %v3301, %v3617
        %3619 = vmatmul.f32.gmra.mxu0 %v3287
        %v3620 = vpop.f32.mrf.mxu0
        %v3621 = vadd.f32 %v3301, %v3620
        %3622 = vmatmul.f32.gmra.mxu0 %v3291
        %v3623 = vpop.f32.mrf.mxu0
        %v3624 = vadd.f32 %v3301, %v3623
        %3625 = vmatmul.f32.gmra.mxu0 %v3295
        %v3626 = vpop.f32.mrf.mxu0
        %v3627 = vadd.f32 %v3301, %v3626
        %3628 = vdwg.mxu0
        %3629 = vmatpush.msra.mxu0 %v989
        %3630 = vmatpush.msra.mxu0 %v987
        %3631 = vmatpush.msra.mxu0 %v985
        %3632 = vmatpush.msra.mxu0 %v983
        %3633 = vmatpush.msra.mxu0 %v981
        %3634 = vmatpush.msra.mxu0 %v979
        %3635 = vmatpush.msra.mxu0 %v977
        %3636 = vmatpush.msra.mxu0 %v975
        %3637 = vmatpush.msra.mxu0 %v973
        %3638 = vmatpush.msra.mxu0 %v971
        %3639 = vmatpush.msra.mxu0 %v969
        %3640 = vmatpush.msra.mxu0 %v967
        %3641 = vmatpush.msra.mxu0 %v965
        %3642 = vmatpush.msra.mxu0 %v963
        %3643 = vmatpush.msra.mxu0 %v961
        %3644 = vmatpush.msra.mxu0 %v959
        %3645 = vmatmul.f32.gmra.mxu0 %v3236
        %v3646 = vpop.f32.mrf.mxu0
        %v3647 = vadd.f32 %v3582, %v3646
        %3648 = vmatmul.f32.gmra.mxu0 %v3240
        %v3649 = vpop.f32.mrf.mxu0
        %v3650 = vadd.f32 %v3585, %v3649
        %3651 = vmatmul.f32.gmra.mxu0 %v3244
        %v3652 = vpop.f32.mrf.mxu0
        %v3653 = vadd.f32 %v3588, %v3652
        %3654 = vmatmul.f32.gmra.mxu0 %v3248
        %v3655 = vpop.f32.mrf.mxu0
        %v3656 = vadd.f32 %v3591, %v3655
        %3657 = vmatmul.f32.gmra.mxu0 %v3252
        %v3658 = vpop.f32.mrf.mxu0
        %v3659 = vadd.f32 %v3594, %v3658
        %3660 = vmatmul.f32.gmra.mxu0 %v3256
        %v3661 = vpop.f32.mrf.mxu0
        %v3662 = vadd.f32 %v3597, %v3661
        %3663 = vmatmul.f32.gmra.mxu0 %v3260
        %v3664 = vpop.f32.mrf.mxu0
        %v3665 = vadd.f32 %v3600, %v3664
        %3666 = vmatmul.f32.gmra.mxu0 %v3264
        %v3667 = vpop.f32.mrf.mxu0
        %v3668 = vadd.f32 %v3603, %v3667
        %3669 = vmatmul.f32.gmra.mxu0 %v3268
        %v3670 = vpop.f32.mrf.mxu0
        %v3671 = vadd.f32 %v3606, %v3670
        %3672 = vmatmul.f32.gmra.mxu0 %v3272
        %v3673 = vpop.f32.mrf.mxu0
        %v3674 = vadd.f32 %v3609, %v3673
        %3675 = vmatmul.f32.gmra.mxu0 %v3276
        %v3676 = vpop.f32.mrf.mxu0
        %v3677 = vadd.f32 %v3612, %v3676
        %3678 = vmatmul.f32.gmra.mxu0 %v3280
        %v3679 = vpop.f32.mrf.mxu0
        %v3680 = vadd.f32 %v3615, %v3679
        %3681 = vmatmul.f32.gmra.mxu0 %v3284
        %v3682 = vpop.f32.mrf.mxu0
        %v3683 = vadd.f32 %v3618, %v3682
        %3684 = vmatmul.f32.gmra.mxu0 %v3288
        %v3685 = vpop.f32.mrf.mxu0
        %v3686 = vadd.f32 %v3621, %v3685
        %3687 = vmatmul.f32.gmra.mxu0 %v3292
        %v3688 = vpop.f32.mrf.mxu0
        %v3689 = vadd.f32 %v3624, %v3688
        %3690 = vmatmul.f32.gmra.mxu0 %v3296
        %v3691 = vpop.f32.mrf.mxu0
        %v3692 = vadd.f32 %v3627, %v3691
        %3693 = vdwg.mxu0
        %3694 = vmatpush.msra.mxu0 %v1021
        %3695 = vmatpush.msra.mxu0 %v1019
        %3696 = vmatpush.msra.mxu0 %v1017
        %3697 = vmatpush.msra.mxu0 %v1015
        %3698 = vmatpush.msra.mxu0 %v1013
        %3699 = vmatpush.msra.mxu0 %v1011
        %3700 = vmatpush.msra.mxu0 %v1009
        %3701 = vmatpush.msra.mxu0 %v1007
        %3702 = vmatpush.msra.mxu0 %v1005
        %3703 = vmatpush.msra.mxu0 %v1003
        %3704 = vmatpush.msra.mxu0 %v1001
        %3705 = vmatpush.msra.mxu0 %v999
        %3706 = vmatpush.msra.mxu0 %v997
        %3707 = vmatpush.msra.mxu0 %v995
        %3708 = vmatpush.msra.mxu0 %v993
        %3709 = vmatpush.msra.mxu0 %v991
        %3710 = vmatmul.f32.gmra.mxu0 %v3237
        %v3711 = vpop.f32.mrf.mxu0
        %v3712 = vadd.f32 %v3647, %v3711
        %3713 = vmatmul.f32.gmra.mxu0 %v3241
        %v3714 = vpop.f32.mrf.mxu0
        %v3715 = vadd.f32 %v3650, %v3714
        %3716 = vmatmul.f32.gmra.mxu0 %v3245
        %v3717 = vpop.f32.mrf.mxu0
        %v3718 = vadd.f32 %v3653, %v3717
        %3719 = vmatmul.f32.gmra.mxu0 %v3249
        %v3720 = vpop.f32.mrf.mxu0
        %v3721 = vadd.f32 %v3656, %v3720
        %3722 = vmatmul.f32.gmra.mxu0 %v3253
        %v3723 = vpop.f32.mrf.mxu0
        %v3724 = vadd.f32 %v3659, %v3723
        %3725 = vmatmul.f32.gmra.mxu0 %v3257
        %v3726 = vpop.f32.mrf.mxu0
        %v3727 = vadd.f32 %v3662, %v3726
        %3728 = vmatmul.f32.gmra.mxu0 %v3261
        %v3729 = vpop.f32.mrf.mxu0
        %v3730 = vadd.f32 %v3665, %v3729
        %3731 = vmatmul.f32.gmra.mxu0 %v3265
        %v3732 = vpop.f32.mrf.mxu0
        %v3733 = vadd.f32 %v3668, %v3732
        %3734 = vmatmul.f32.gmra.mxu0 %v3269
        %v3735 = vpop.f32.mrf.mxu0
        %v3736 = vadd.f32 %v3671, %v3735
        %3737 = vmatmul.f32.gmra.mxu0 %v3273
        %v3738 = vpop.f32.mrf.mxu0
        %v3739 = vadd.f32 %v3674, %v3738
        %3740 = vmatmul.f32.gmra.mxu0 %v3277
        %v3741 = vpop.f32.mrf.mxu0
        %v3742 = vadd.f32 %v3677, %v3741
        %3743 = vmatmul.f32.gmra.mxu0 %v3281
        %v3744 = vpop.f32.mrf.mxu0
        %v3745 = vadd.f32 %v3680, %v3744
        %3746 = vmatmul.f32.gmra.mxu0 %v3285
        %v3747 = vpop.f32.mrf.mxu0
        %v3748 = vadd.f32 %v3683, %v3747
        %3749 = vmatmul.f32.gmra.mxu0 %v3289
        %v3750 = vpop.f32.mrf.mxu0
        %v3751 = vadd.f32 %v3686, %v3750
        %3752 = vmatmul.f32.gmra.mxu0 %v3293
        %v3753 = vpop.f32.mrf.mxu0
        %v3754 = vadd.f32 %v3689, %v3753
        %3755 = vmatmul.f32.gmra.mxu0 %v3297
        %v3756 = vpop.f32.mrf.mxu0
        %v3757 = vadd.f32 %v3692, %v3756
        %3758 = vdwg.mxu0
        %3759 = vmatpush.msra.mxu0 %v1053
        %3760 = vmatpush.msra.mxu0 %v1051
        %3761 = vmatpush.msra.mxu0 %v1049
        %3762 = vmatpush.msra.mxu0 %v1047
        %3763 = vmatpush.msra.mxu0 %v1045
        %3764 = vmatpush.msra.mxu0 %v1043
        %3765 = vmatpush.msra.mxu0 %v1041
        %3766 = vmatpush.msra.mxu0 %v1039
        %3767 = vmatpush.msra.mxu0 %v1037
        %3768 = vmatpush.msra.mxu0 %v1035
        %3769 = vmatpush.msra.mxu0 %v1033
        %3770 = vmatpush.msra.mxu0 %v1031
        %3771 = vmatpush.msra.mxu0 %v1029
        %3772 = vmatpush.msra.mxu0 %v1027
        %3773 = vmatpush.msra.mxu0 %v1025
        %3774 = vmatpush.msra.mxu0 %v1023
        %3775 = vmatmul.f32.gmra.mxu0 %v3238
        %v3776 = vpop.f32.mrf.mxu0
        %v3777 = vadd.f32 %v3712, %v3776
        %3778 = vmatmul.f32.gmra.mxu0 %v3242
        %v3779 = vpop.f32.mrf.mxu0
        %v3780 = vadd.f32 %v3715, %v3779
        %3781 = vmatmul.f32.gmra.mxu0 %v3246
        %v3782 = vpop.f32.mrf.mxu0
        %v3783 = vadd.f32 %v3718, %v3782
        %3784 = vmatmul.f32.gmra.mxu0 %v3250
        %v3785 = vpop.f32.mrf.mxu0
        %v3786 = vadd.f32 %v3721, %v3785
        %3787 = vmatmul.f32.gmra.mxu0 %v3254
        %v3788 = vpop.f32.mrf.mxu0
        %v3789 = vadd.f32 %v3724, %v3788
        %3790 = vmatmul.f32.gmra.mxu0 %v3258
        %v3791 = vpop.f32.mrf.mxu0
        %v3792 = vadd.f32 %v3727, %v3791
        %3793 = vmatmul.f32.gmra.mxu0 %v3262
        %v3794 = vpop.f32.mrf.mxu0
        %v3795 = vadd.f32 %v3730, %v3794
        %3796 = vmatmul.f32.gmra.mxu0 %v3266
        %v3797 = vpop.f32.mrf.mxu0
        %v3798 = vadd.f32 %v3733, %v3797
        %3799 = vmatmul.f32.gmra.mxu0 %v3270
        %v3800 = vpop.f32.mrf.mxu0
        %v3801 = vadd.f32 %v3736, %v3800
        %3802 = vmatmul.f32.gmra.mxu0 %v3274
        %v3803 = vpop.f32.mrf.mxu0
        %v3804 = vadd.f32 %v3739, %v3803
        %3805 = vmatmul.f32.gmra.mxu0 %v3278
        %v3806 = vpop.f32.mrf.mxu0
        %v3807 = vadd.f32 %v3742, %v3806
        %3808 = vmatmul.f32.gmra.mxu0 %v3282
        %v3809 = vpop.f32.mrf.mxu0
        %v3810 = vadd.f32 %v3745, %v3809
        %3811 = vmatmul.f32.gmra.mxu0 %v3286
        %v3812 = vpop.f32.mrf.mxu0
        %v3813 = vadd.f32 %v3748, %v3812
        %3814 = vmatmul.f32.gmra.mxu0 %v3290
        %v3815 = vpop.f32.mrf.mxu0
        %v3816 = vadd.f32 %v3751, %v3815
        %3817 = vmatmul.f32.gmra.mxu0 %v3294
        %v3818 = vpop.f32.mrf.mxu0
        %v3819 = vadd.f32 %v3754, %v3818
        %3820 = vmatmul.f32.gmra.mxu0 %v3298
        %v3821 = vpop.f32.mrf.mxu0
        %v3822 = vadd.f32 %v3757, %v3821
        %3823 = vdwg.mxu0
        %3824 = vst [vmem:[%s516] sm:$0xff] %v3517
        %3825 = vst [vmem:[%s516 + $0x8] sm:$0xff] %v3777
        %3826 = vst [vmem:[%s516 + $0x10] sm:$0xff] %v3520
        %3827 = vst [vmem:[%s516 + $0x18] sm:$0xff] %v3780
        %3828 = vst [vmem:[%s516 + $0x20] sm:$0xff] %v3523
        %3829 = vst [vmem:[%s516 + $0x28] sm:$0xff] %v3783
        %3830 = vst [vmem:[%s516 + $0x30] sm:$0xff] %v3526
        %3831 = vst [vmem:[%s516 + $0x38] sm:$0xff] %v3786
        %3832 = vst [vmem:[%s516 + $0x40] sm:$0xff] %v3529
        %3833 = vst [vmem:[%s516 + $0x48] sm:$0xff] %v3789
        %3834 = vst [vmem:[%s516 + $0x50] sm:$0xff] %v3532
        %3835 = vst [vmem:[%s516 + $0x58] sm:$0xff] %v3792
        %3836 = vst [vmem:[%s516 + $0x60] sm:$0xff] %v3535
        %3837 = vst [vmem:[%s516 + $0x68] sm:$0xff] %v3795
        %3838 = vst [vmem:[%s516 + $0x70] sm:$0xff] %v3538
        %3839 = vst [vmem:[%s516 + $0x78] sm:$0xff] %v3798
        %3840 = vst [vmem:[%s516 + $0x80] sm:$0xff] %v3541
        %3841 = vst [vmem:[%s516 + $0x88] sm:$0xff] %v3801
        %3842 = vst [vmem:[%s516 + $0x90] sm:$0xff] %v3544
        %3843 = vst [vmem:[%s516 + $0x98] sm:$0xff] %v3804
        %3844 = vst [vmem:[%s516 + $0xa0] sm:$0xff] %v3547
        %3845 = vst [vmem:[%s516 + $0xa8] sm:$0xff] %v3807
        %3846 = vst [vmem:[%s516 + $0xb0] sm:$0xff] %v3550
        %3847 = vst [vmem:[%s516 + $0xb8] sm:$0xff] %v3810
        %3848 = vst [vmem:[%s516 + $0xc0] sm:$0xff] %v3553
        %3849 = vst [vmem:[%s516 + $0xc8] sm:$0xff] %v3813
        %3850 = vst [vmem:[%s516 + $0xd0] sm:$0xff] %v3556
        %3851 = vst [vmem:[%s516 + $0xd8] sm:$0xff] %v3816
        %3852 = vst [vmem:[%s516 + $0xe0] sm:$0xff] %v3559
        %3853 = vst [vmem:[%s516 + $0xe8] sm:$0xff] %v3819
        %3854 = vst [vmem:[%s516 + $0xf0] sm:$0xff] %v3562
        %3855 = vst [vmem:[%s516 + $0xf8] sm:$0xff] %v3822
        %v3857 = vperm.slane %v1568, 0
        %v3858 = vperm.slane %v1568, 1
        %v3859 = vperm.slane %v1568, 2
        %v3860 = vperm.slane %v1568, 3
        %3865 = vmatpush.msra.mxu0 %v1114
        %3866 = vmatpush.msra.mxu0 %v1110
        %3867 = vmatpush.msra.mxu0 %v1106
        %3868 = vmatpush.msra.mxu0 %v1102
        %3869 = vmatpush.msra.mxu0 %v1098
        %3870 = vmatpush.msra.mxu0 %v1094
        %3871 = vmatpush.msra.mxu0 %v1090
        %3872 = vmatpush.msra.mxu0 %v1086
        %3873 = vmatpush.msra.mxu0 %v1082
        %3874 = vmatpush.msra.mxu0 %v1078
        %3875 = vmatpush.msra.mxu0 %v1074
        %3876 = vmatpush.msra.mxu0 %v1070
        %3877 = vmatpush.msra.mxu0 %v1066
        %3878 = vmatpush.msra.mxu0 %v1062
        %3879 = vmatpush.msra.mxu0 %v1058
        %3880 = vmatpush.msra.mxu0 %v1054
        %3881 = vmatmul.f32.gmra.mxu0 %v3517
        %v3882 = vpop.f32.mrf.mxu0
        %v3883 = vadd.f32 %v3857, %v3882
        %3884 = vmatmul.f32.gmra.mxu0 %v3520
        %v3885 = vpop.f32.mrf.mxu0
        %v3886 = vadd.f32 %v3857, %v3885
        %3887 = vmatmul.f32.gmra.mxu0 %v3523
        %v3888 = vpop.f32.mrf.mxu0
        %v3889 = vadd.f32 %v3857, %v3888
        %3890 = vmatmul.f32.gmra.mxu0 %v3526
        %v3891 = vpop.f32.mrf.mxu0
        %v3892 = vadd.f32 %v3857, %v3891
        %3893 = vmatmul.f32.gmra.mxu0 %v3529
        %v3894 = vpop.f32.mrf.mxu0
        %v3895 = vadd.f32 %v3857, %v3894
        %3896 = vmatmul.f32.gmra.mxu0 %v3532
        %v3897 = vpop.f32.mrf.mxu0
        %v3898 = vadd.f32 %v3857, %v3897
        %3899 = vmatmul.f32.gmra.mxu0 %v3535
        %v3900 = vpop.f32.mrf.mxu0
        %v3901 = vadd.f32 %v3857, %v3900
        %3902 = vmatmul.f32.gmra.mxu0 %v3538
        %v3903 = vpop.f32.mrf.mxu0
        %v3904 = vadd.f32 %v3857, %v3903
        %3905 = vmatmul.f32.gmra.mxu0 %v3541
        %v3906 = vpop.f32.mrf.mxu0
        %v3907 = vadd.f32 %v3857, %v3906
        %3908 = vmatmul.f32.gmra.mxu0 %v3544
        %v3909 = vpop.f32.mrf.mxu0
        %v3910 = vadd.f32 %v3857, %v3909
        %3911 = vmatmul.f32.gmra.mxu0 %v3547
        %v3912 = vpop.f32.mrf.mxu0
        %v3913 = vadd.f32 %v3857, %v3912
        %3914 = vmatmul.f32.gmra.mxu0 %v3550
        %v3915 = vpop.f32.mrf.mxu0
        %v3916 = vadd.f32 %v3857, %v3915
        %3917 = vmatmul.f32.gmra.mxu0 %v3553
        %v3918 = vpop.f32.mrf.mxu0
        %v3919 = vadd.f32 %v3857, %v3918
        %3920 = vmatmul.f32.gmra.mxu0 %v3556
        %v3921 = vpop.f32.mrf.mxu0
        %v3922 = vadd.f32 %v3857, %v3921
        %3923 = vmatmul.f32.gmra.mxu0 %v3559
        %v3924 = vpop.f32.mrf.mxu0
        %v3925 = vadd.f32 %v3857, %v3924
        %3926 = vmatmul.f32.gmra.mxu0 %v3562
        %v3927 = vpop.f32.mrf.mxu0
        %v3928 = vadd.f32 %v3857, %v3927
        %3929 = vdwg.mxu0
        %3930 = vmatpush.msra.mxu0 %v1178
        %3931 = vmatpush.msra.mxu0 %v1174
        %3932 = vmatpush.msra.mxu0 %v1170
        %3933 = vmatpush.msra.mxu0 %v1166
        %3934 = vmatpush.msra.mxu0 %v1162
        %3935 = vmatpush.msra.mxu0 %v1158
        %3936 = vmatpush.msra.mxu0 %v1154
        %3937 = vmatpush.msra.mxu0 %v1150
        %3938 = vmatpush.msra.mxu0 %v1146
        %3939 = vmatpush.msra.mxu0 %v1142
        %3940 = vmatpush.msra.mxu0 %v1138
        %3941 = vmatpush.msra.mxu0 %v1134
        %3942 = vmatpush.msra.mxu0 %v1130
        %3943 = vmatpush.msra.mxu0 %v1126
        %3944 = vmatpush.msra.mxu0 %v1122
        %3945 = vmatpush.msra.mxu0 %v1118
        %3946 = vmatmul.f32.gmra.mxu0 %v3777
        %v3947 = vpop.f32.mrf.mxu0
        %v3948 = vadd.f32 %v3883, %v3947
        %3949 = vmatmul.f32.gmra.mxu0 %v3780
        %v3950 = vpop.f32.mrf.mxu0
        %v3951 = vadd.f32 %v3886, %v3950
        %3952 = vmatmul.f32.gmra.mxu0 %v3783
        %v3953 = vpop.f32.mrf.mxu0
        %v3954 = vadd.f32 %v3889, %v3953
        %3955 = vmatmul.f32.gmra.mxu0 %v3786
        %v3956 = vpop.f32.mrf.mxu0
        %v3957 = vadd.f32 %v3892, %v3956
        %3958 = vmatmul.f32.gmra.mxu0 %v3789
        %v3959 = vpop.f32.mrf.mxu0
        %v3960 = vadd.f32 %v3895, %v3959
        %3961 = vmatmul.f32.gmra.mxu0 %v3792
        %v3962 = vpop.f32.mrf.mxu0
        %v3963 = vadd.f32 %v3898, %v3962
        %3964 = vmatmul.f32.gmra.mxu0 %v3795
        %v3965 = vpop.f32.mrf.mxu0
        %v3966 = vadd.f32 %v3901, %v3965
        %3967 = vmatmul.f32.gmra.mxu0 %v3798
        %v3968 = vpop.f32.mrf.mxu0
        %v3969 = vadd.f32 %v3904, %v3968
        %3970 = vmatmul.f32.gmra.mxu0 %v3801
        %v3971 = vpop.f32.mrf.mxu0
        %v3972 = vadd.f32 %v3907, %v3971
        %3973 = vmatmul.f32.gmra.mxu0 %v3804
        %v3974 = vpop.f32.mrf.mxu0
        %v3975 = vadd.f32 %v3910, %v3974
        %3976 = vmatmul.f32.gmra.mxu0 %v3807
        %v3977 = vpop.f32.mrf.mxu0
        %v3978 = vadd.f32 %v3913, %v3977
        %3979 = vmatmul.f32.gmra.mxu0 %v3810
        %v3980 = vpop.f32.mrf.mxu0
        %v3981 = vadd.f32 %v3916, %v3980
        %3982 = vmatmul.f32.gmra.mxu0 %v3813
        %v3983 = vpop.f32.mrf.mxu0
        %v3984 = vadd.f32 %v3919, %v3983
        %3985 = vmatmul.f32.gmra.mxu0 %v3816
        %v3986 = vpop.f32.mrf.mxu0
        %v3987 = vadd.f32 %v3922, %v3986
        %3988 = vmatmul.f32.gmra.mxu0 %v3819
        %v3989 = vpop.f32.mrf.mxu0
        %v3990 = vadd.f32 %v3925, %v3989
        %3991 = vmatmul.f32.gmra.mxu0 %v3822
        %v3992 = vpop.f32.mrf.mxu0
        %v3993 = vadd.f32 %v3928, %v3992
        %3994 = vdwg.mxu0
        %3995 = vmatpush.msra.mxu0 %v1115
        %3996 = vmatpush.msra.mxu0 %v1111
        %3997 = vmatpush.msra.mxu0 %v1107
        %3998 = vmatpush.msra.mxu0 %v1103
        %3999 = vmatpush.msra.mxu0 %v1099
        %4000 = vmatpush.msra.mxu0 %v1095
        %4001 = vmatpush.msra.mxu0 %v1091
        %4002 = vmatpush.msra.mxu0 %v1087
        %4003 = vmatpush.msra.mxu0 %v1083
        %4004 = vmatpush.msra.mxu0 %v1079
        %4005 = vmatpush.msra.mxu0 %v1075
        %4006 = vmatpush.msra.mxu0 %v1071
        %4007 = vmatpush.msra.mxu0 %v1067
        %4008 = vmatpush.msra.mxu0 %v1063
        %4009 = vmatpush.msra.mxu0 %v1059
        %4010 = vmatpush.msra.mxu0 %v1055
        %4011 = vmatmul.f32.gmra.mxu0 %v3517
        %v4012 = vpop.f32.mrf.mxu0
        %v4013 = vadd.f32 %v3858, %v4012
        %4014 = vmatmul.f32.gmra.mxu0 %v3520
        %v4015 = vpop.f32.mrf.mxu0
        %v4016 = vadd.f32 %v3858, %v4015
        %4017 = vmatmul.f32.gmra.mxu0 %v3523
        %v4018 = vpop.f32.mrf.mxu0
        %v4019 = vadd.f32 %v3858, %v4018
        %4020 = vmatmul.f32.gmra.mxu0 %v3526
        %v4021 = vpop.f32.mrf.mxu0
        %v4022 = vadd.f32 %v3858, %v4021
        %4023 = vmatmul.f32.gmra.mxu0 %v3529
        %v4024 = vpop.f32.mrf.mxu0
        %v4025 = vadd.f32 %v3858, %v4024
        %4026 = vmatmul.f32.gmra.mxu0 %v3532
        %v4027 = vpop.f32.mrf.mxu0
        %v4028 = vadd.f32 %v3858, %v4027
        %4029 = vmatmul.f32.gmra.mxu0 %v3535
        %v4030 = vpop.f32.mrf.mxu0
        %v4031 = vadd.f32 %v3858, %v4030
        %4032 = vmatmul.f32.gmra.mxu0 %v3538
        %v4033 = vpop.f32.mrf.mxu0
        %v4034 = vadd.f32 %v3858, %v4033
        %4035 = vmatmul.f32.gmra.mxu0 %v3541
        %v4036 = vpop.f32.mrf.mxu0
        %v4037 = vadd.f32 %v3858, %v4036
        %4038 = vmatmul.f32.gmra.mxu0 %v3544
        %v4039 = vpop.f32.mrf.mxu0
        %v4040 = vadd.f32 %v3858, %v4039
        %4041 = vmatmul.f32.gmra.mxu0 %v3547
        %v4042 = vpop.f32.mrf.mxu0
        %v4043 = vadd.f32 %v3858, %v4042
        %4044 = vmatmul.f32.gmra.mxu0 %v3550
        %v4045 = vpop.f32.mrf.mxu0
        %v4046 = vadd.f32 %v3858, %v4045
        %4047 = vmatmul.f32.gmra.mxu0 %v3553
        %v4048 = vpop.f32.mrf.mxu0
        %v4049 = vadd.f32 %v3858, %v4048
        %4050 = vmatmul.f32.gmra.mxu0 %v3556
        %v4051 = vpop.f32.mrf.mxu0
        %v4052 = vadd.f32 %v3858, %v4051
        %4053 = vmatmul.f32.gmra.mxu0 %v3559
        %v4054 = vpop.f32.mrf.mxu0
        %v4055 = vadd.f32 %v3858, %v4054
        %4056 = vmatmul.f32.gmra.mxu0 %v3562
        %v4057 = vpop.f32.mrf.mxu0
        %v4058 = vadd.f32 %v3858, %v4057
        %4059 = vdwg.mxu0
        %4060 = vmatpush.msra.mxu0 %v1179
        %4061 = vmatpush.msra.mxu0 %v1175
        %4062 = vmatpush.msra.mxu0 %v1171
        %4063 = vmatpush.msra.mxu0 %v1167
        %4064 = vmatpush.msra.mxu0 %v1163
        %4065 = vmatpush.msra.mxu0 %v1159
        %4066 = vmatpush.msra.mxu0 %v1155
        %4067 = vmatpush.msra.mxu0 %v1151
        %4068 = vmatpush.msra.mxu0 %v1147
        %4069 = vmatpush.msra.mxu0 %v1143
        %4070 = vmatpush.msra.mxu0 %v1139
        %4071 = vmatpush.msra.mxu0 %v1135
        %4072 = vmatpush.msra.mxu0 %v1131
        %4073 = vmatpush.msra.mxu0 %v1127
        %4074 = vmatpush.msra.mxu0 %v1123
        %4075 = vmatpush.msra.mxu0 %v1119
        %4076 = vmatmul.f32.gmra.mxu0 %v3777
        %v4077 = vpop.f32.mrf.mxu0
        %v4078 = vadd.f32 %v4013, %v4077
        %4079 = vmatmul.f32.gmra.mxu0 %v3780
        %v4080 = vpop.f32.mrf.mxu0
        %v4081 = vadd.f32 %v4016, %v4080
        %4082 = vmatmul.f32.gmra.mxu0 %v3783
        %v4083 = vpop.f32.mrf.mxu0
        %v4084 = vadd.f32 %v4019, %v4083
        %4085 = vmatmul.f32.gmra.mxu0 %v3786
        %v4086 = vpop.f32.mrf.mxu0
        %v4087 = vadd.f32 %v4022, %v4086
        %4088 = vmatmul.f32.gmra.mxu0 %v3789
        %v4089 = vpop.f32.mrf.mxu0
        %v4090 = vadd.f32 %v4025, %v4089
        %4091 = vmatmul.f32.gmra.mxu0 %v3792
        %v4092 = vpop.f32.mrf.mxu0
        %v4093 = vadd.f32 %v4028, %v4092
        %4094 = vmatmul.f32.gmra.mxu0 %v3795
        %v4095 = vpop.f32.mrf.mxu0
        %v4096 = vadd.f32 %v4031, %v4095
        %4097 = vmatmul.f32.gmra.mxu0 %v3798
        %v4098 = vpop.f32.mrf.mxu0
        %v4099 = vadd.f32 %v4034, %v4098
        %4100 = vmatmul.f32.gmra.mxu0 %v3801
        %v4101 = vpop.f32.mrf.mxu0
        %v4102 = vadd.f32 %v4037, %v4101
        %4103 = vmatmul.f32.gmra.mxu0 %v3804
        %v4104 = vpop.f32.mrf.mxu0
        %v4105 = vadd.f32 %v4040, %v4104
        %4106 = vmatmul.f32.gmra.mxu0 %v3807
        %v4107 = vpop.f32.mrf.mxu0
        %v4108 = vadd.f32 %v4043, %v4107
        %4109 = vmatmul.f32.gmra.mxu0 %v3810
        %v4110 = vpop.f32.mrf.mxu0
        %v4111 = vadd.f32 %v4046, %v4110
        %4112 = vmatmul.f32.gmra.mxu0 %v3813
        %v4113 = vpop.f32.mrf.mxu0
        %v4114 = vadd.f32 %v4049, %v4113
        %4115 = vmatmul.f32.gmra.mxu0 %v3816
        %v4116 = vpop.f32.mrf.mxu0
        %v4117 = vadd.f32 %v4052, %v4116
        %4118 = vmatmul.f32.gmra.mxu0 %v3819
        %v4119 = vpop.f32.mrf.mxu0
        %v4120 = vadd.f32 %v4055, %v4119
        %4121 = vmatmul.f32.gmra.mxu0 %v3822
        %v4122 = vpop.f32.mrf.mxu0
        %v4123 = vadd.f32 %v4058, %v4122
        %4124 = vdwg.mxu0
        %4125 = vmatpush.msra.mxu0 %v1116
        %4126 = vmatpush.msra.mxu0 %v1112
        %4127 = vmatpush.msra.mxu0 %v1108
        %4128 = vmatpush.msra.mxu0 %v1104
        %4129 = vmatpush.msra.mxu0 %v1100
        %4130 = vmatpush.msra.mxu0 %v1096
        %4131 = vmatpush.msra.mxu0 %v1092
        %4132 = vmatpush.msra.mxu0 %v1088
        %4133 = vmatpush.msra.mxu0 %v1084
        %4134 = vmatpush.msra.mxu0 %v1080
        %4135 = vmatpush.msra.mxu0 %v1076
        %4136 = vmatpush.msra.mxu0 %v1072
        %4137 = vmatpush.msra.mxu0 %v1068
        %4138 = vmatpush.msra.mxu0 %v1064
        %4139 = vmatpush.msra.mxu0 %v1060
        %4140 = vmatpush.msra.mxu0 %v1056
        %4141 = vmatmul.f32.gmra.mxu0 %v3517
        %v4142 = vpop.f32.mrf.mxu0
        %v4143 = vadd.f32 %v3859, %v4142
        %4144 = vmatmul.f32.gmra.mxu0 %v3520
        %v4145 = vpop.f32.mrf.mxu0
        %v4146 = vadd.f32 %v3859, %v4145
        %4147 = vmatmul.f32.gmra.mxu0 %v3523
        %v4148 = vpop.f32.mrf.mxu0
        %v4149 = vadd.f32 %v3859, %v4148
        %4150 = vmatmul.f32.gmra.mxu0 %v3526
        %v4151 = vpop.f32.mrf.mxu0
        %v4152 = vadd.f32 %v3859, %v4151
        %4153 = vmatmul.f32.gmra.mxu0 %v3529
        %v4154 = vpop.f32.mrf.mxu0
        %v4155 = vadd.f32 %v3859, %v4154
        %4156 = vmatmul.f32.gmra.mxu0 %v3532
        %v4157 = vpop.f32.mrf.mxu0
        %v4158 = vadd.f32 %v3859, %v4157
        %4159 = vmatmul.f32.gmra.mxu0 %v3535
        %v4160 = vpop.f32.mrf.mxu0
        %v4161 = vadd.f32 %v3859, %v4160
        %4162 = vmatmul.f32.gmra.mxu0 %v3538
        %v4163 = vpop.f32.mrf.mxu0
        %v4164 = vadd.f32 %v3859, %v4163
        %4165 = vmatmul.f32.gmra.mxu0 %v3541
        %v4166 = vpop.f32.mrf.mxu0
        %v4167 = vadd.f32 %v3859, %v4166
        %4168 = vmatmul.f32.gmra.mxu0 %v3544
        %v4169 = vpop.f32.mrf.mxu0
        %v4170 = vadd.f32 %v3859, %v4169
        %4171 = vmatmul.f32.gmra.mxu0 %v3547
        %v4172 = vpop.f32.mrf.mxu0
        %v4173 = vadd.f32 %v3859, %v4172
        %4174 = vmatmul.f32.gmra.mxu0 %v3550
        %v4175 = vpop.f32.mrf.mxu0
        %v4176 = vadd.f32 %v3859, %v4175
        %4177 = vmatmul.f32.gmra.mxu0 %v3553
        %v4178 = vpop.f32.mrf.mxu0
        %v4179 = vadd.f32 %v3859, %v4178
        %4180 = vmatmul.f32.gmra.mxu0 %v3556
        %v4181 = vpop.f32.mrf.mxu0
        %v4182 = vadd.f32 %v3859, %v4181
        %4183 = vmatmul.f32.gmra.mxu0 %v3559
        %v4184 = vpop.f32.mrf.mxu0
        %v4185 = vadd.f32 %v3859, %v4184
        %4186 = vmatmul.f32.gmra.mxu0 %v3562
        %v4187 = vpop.f32.mrf.mxu0
        %v4188 = vadd.f32 %v3859, %v4187
        %4189 = vdwg.mxu0
        %4190 = vmatpush.msra.mxu0 %v1180
        %4191 = vmatpush.msra.mxu0 %v1176
        %4192 = vmatpush.msra.mxu0 %v1172
        %4193 = vmatpush.msra.mxu0 %v1168
        %4194 = vmatpush.msra.mxu0 %v1164
        %4195 = vmatpush.msra.mxu0 %v1160
        %4196 = vmatpush.msra.mxu0 %v1156
        %4197 = vmatpush.msra.mxu0 %v1152
        %4198 = vmatpush.msra.mxu0 %v1148
        %4199 = vmatpush.msra.mxu0 %v1144
        %4200 = vmatpush.msra.mxu0 %v1140
        %4201 = vmatpush.msra.mxu0 %v1136
        %4202 = vmatpush.msra.mxu0 %v1132
        %4203 = vmatpush.msra.mxu0 %v1128
        %4204 = vmatpush.msra.mxu0 %v1124
        %4205 = vmatpush.msra.mxu0 %v1120
        %4206 = vmatmul.f32.gmra.mxu0 %v3777
        %v4207 = vpop.f32.mrf.mxu0
        %v4208 = vadd.f32 %v4143, %v4207
        %4209 = vmatmul.f32.gmra.mxu0 %v3780
        %v4210 = vpop.f32.mrf.mxu0
        %v4211 = vadd.f32 %v4146, %v4210
        %4212 = vmatmul.f32.gmra.mxu0 %v3783
        %v4213 = vpop.f32.mrf.mxu0
        %v4214 = vadd.f32 %v4149, %v4213
        %4215 = vmatmul.f32.gmra.mxu0 %v3786
        %v4216 = vpop.f32.mrf.mxu0
        %v4217 = vadd.f32 %v4152, %v4216
        %4218 = vmatmul.f32.gmra.mxu0 %v3789
        %v4219 = vpop.f32.mrf.mxu0
        %v4220 = vadd.f32 %v4155, %v4219
        %4221 = vmatmul.f32.gmra.mxu0 %v3792
        %v4222 = vpop.f32.mrf.mxu0
        %v4223 = vadd.f32 %v4158, %v4222
        %4224 = vmatmul.f32.gmra.mxu0 %v3795
        %v4225 = vpop.f32.mrf.mxu0
        %v4226 = vadd.f32 %v4161, %v4225
        %4227 = vmatmul.f32.gmra.mxu0 %v3798
        %v4228 = vpop.f32.mrf.mxu0
        %v4229 = vadd.f32 %v4164, %v4228
        %4230 = vmatmul.f32.gmra.mxu0 %v3801
        %v4231 = vpop.f32.mrf.mxu0
        %v4232 = vadd.f32 %v4167, %v4231
        %4233 = vmatmul.f32.gmra.mxu0 %v3804
        %v4234 = vpop.f32.mrf.mxu0
        %v4235 = vadd.f32 %v4170, %v4234
        %4236 = vmatmul.f32.gmra.mxu0 %v3807
        %v4237 = vpop.f32.mrf.mxu0
        %v4238 = vadd.f32 %v4173, %v4237
        %4239 = vmatmul.f32.gmra.mxu0 %v3810
        %v4240 = vpop.f32.mrf.mxu0
        %v4241 = vadd.f32 %v4176, %v4240
        %4242 = vmatmul.f32.gmra.mxu0 %v3813
        %v4243 = vpop.f32.mrf.mxu0
        %v4244 = vadd.f32 %v4179, %v4243
        %4245 = vmatmul.f32.gmra.mxu0 %v3816
        %v4246 = vpop.f32.mrf.mxu0
        %v4247 = vadd.f32 %v4182, %v4246
        %4248 = vmatmul.f32.gmra.mxu0 %v3819
        %v4249 = vpop.f32.mrf.mxu0
        %v4250 = vadd.f32 %v4185, %v4249
        %4251 = vmatmul.f32.gmra.mxu0 %v3822
        %v4252 = vpop.f32.mrf.mxu0
        %v4253 = vadd.f32 %v4188, %v4252
        %4254 = vdwg.mxu0
        %4255 = vmatpush.msra.mxu0 %v1117
        %4256 = vmatpush.msra.mxu0 %v1113
        %4257 = vmatpush.msra.mxu0 %v1109
        %4258 = vmatpush.msra.mxu0 %v1105
        %4259 = vmatpush.msra.mxu0 %v1101
        %4260 = vmatpush.msra.mxu0 %v1097
        %4261 = vmatpush.msra.mxu0 %v1093
        %4262 = vmatpush.msra.mxu0 %v1089
        %4263 = vmatpush.msra.mxu0 %v1085
        %4264 = vmatpush.msra.mxu0 %v1081
        %4265 = vmatpush.msra.mxu0 %v1077
        %4266 = vmatpush.msra.mxu0 %v1073
        %4267 = vmatpush.msra.mxu0 %v1069
        %4268 = vmatpush.msra.mxu0 %v1065
        %4269 = vmatpush.msra.mxu0 %v1061
        %4270 = vmatpush.msra.mxu0 %v1057
        %4271 = vmatmul.f32.gmra.mxu0 %v3517
        %v4272 = vpop.f32.mrf.mxu0
        %v4273 = vadd.f32 %v3860, %v4272
        %4274 = vmatmul.f32.gmra.mxu0 %v3520
        %v4275 = vpop.f32.mrf.mxu0
        %v4276 = vadd.f32 %v3860, %v4275
        %4277 = vmatmul.f32.gmra.mxu0 %v3523
        %v4278 = vpop.f32.mrf.mxu0
        %v4279 = vadd.f32 %v3860, %v4278
        %4280 = vmatmul.f32.gmra.mxu0 %v3526
        %v4281 = vpop.f32.mrf.mxu0
        %v4282 = vadd.f32 %v3860, %v4281
        %4283 = vmatmul.f32.gmra.mxu0 %v3529
        %v4284 = vpop.f32.mrf.mxu0
        %v4285 = vadd.f32 %v3860, %v4284
        %4286 = vmatmul.f32.gmra.mxu0 %v3532
        %v4287 = vpop.f32.mrf.mxu0
        %v4288 = vadd.f32 %v3860, %v4287
        %4289 = vmatmul.f32.gmra.mxu0 %v3535
        %v4290 = vpop.f32.mrf.mxu0
        %v4291 = vadd.f32 %v3860, %v4290
        %4292 = vmatmul.f32.gmra.mxu0 %v3538
        %v4293 = vpop.f32.mrf.mxu0
        %v4294 = vadd.f32 %v3860, %v4293
        %4295 = vmatmul.f32.gmra.mxu0 %v3541
        %v4296 = vpop.f32.mrf.mxu0
        %v4297 = vadd.f32 %v3860, %v4296
        %4298 = vmatmul.f32.gmra.mxu0 %v3544
        %v4299 = vpop.f32.mrf.mxu0
        %v4300 = vadd.f32 %v3860, %v4299
        %4301 = vmatmul.f32.gmra.mxu0 %v3547
        %v4302 = vpop.f32.mrf.mxu0
        %v4303 = vadd.f32 %v3860, %v4302
        %4304 = vmatmul.f32.gmra.mxu0 %v3550
        %v4305 = vpop.f32.mrf.mxu0
        %v4306 = vadd.f32 %v3860, %v4305
        %4307 = vmatmul.f32.gmra.mxu0 %v3553
        %v4308 = vpop.f32.mrf.mxu0
        %v4309 = vadd.f32 %v3860, %v4308
        %4310 = vmatmul.f32.gmra.mxu0 %v3556
        %v4311 = vpop.f32.mrf.mxu0
        %v4312 = vadd.f32 %v3860, %v4311
        %4313 = vmatmul.f32.gmra.mxu0 %v3559
        %v4314 = vpop.f32.mrf.mxu0
        %v4315 = vadd.f32 %v3860, %v4314
        %4316 = vmatmul.f32.gmra.mxu0 %v3562
        %v4317 = vpop.f32.mrf.mxu0
        %v4318 = vadd.f32 %v3860, %v4317
        %4319 = vdwg.mxu0
        %4320 = vmatpush.msra.mxu0 %v1181
        %4321 = vmatpush.msra.mxu0 %v1177
        %4322 = vmatpush.msra.mxu0 %v1173
        %4323 = vmatpush.msra.mxu0 %v1169
        %4324 = vmatpush.msra.mxu0 %v1165
        %4325 = vmatpush.msra.mxu0 %v1161
        %4326 = vmatpush.msra.mxu0 %v1157
        %4327 = vmatpush.msra.mxu0 %v1153
        %4328 = vmatpush.msra.mxu0 %v1149
        %4329 = vmatpush.msra.mxu0 %v1145
        %4330 = vmatpush.msra.mxu0 %v1141
        %4331 = vmatpush.msra.mxu0 %v1137
        %4332 = vmatpush.msra.mxu0 %v1133
        %4333 = vmatpush.msra.mxu0 %v1129
        %4334 = vmatpush.msra.mxu0 %v1125
        %4335 = vmatpush.msra.mxu0 %v1121
        %4336 = vmatmul.f32.gmra.mxu0 %v3777
        %v4337 = vpop.f32.mrf.mxu0
        %v4338 = vadd.f32 %v4273, %v4337
        %4339 = vmatmul.f32.gmra.mxu0 %v3780
        %v4340 = vpop.f32.mrf.mxu0
        %v4341 = vadd.f32 %v4276, %v4340
        %4342 = vmatmul.f32.gmra.mxu0 %v3783
        %v4343 = vpop.f32.mrf.mxu0
        %v4344 = vadd.f32 %v4279, %v4343
        %4345 = vmatmul.f32.gmra.mxu0 %v3786
        %v4346 = vpop.f32.mrf.mxu0
        %v4347 = vadd.f32 %v4282, %v4346
        %4348 = vmatmul.f32.gmra.mxu0 %v3789
        %v4349 = vpop.f32.mrf.mxu0
        %v4350 = vadd.f32 %v4285, %v4349
        %4351 = vmatmul.f32.gmra.mxu0 %v3792
        %v4352 = vpop.f32.mrf.mxu0
        %v4353 = vadd.f32 %v4288, %v4352
        %4354 = vmatmul.f32.gmra.mxu0 %v3795
        %v4355 = vpop.f32.mrf.mxu0
        %v4356 = vadd.f32 %v4291, %v4355
        %4357 = vmatmul.f32.gmra.mxu0 %v3798
        %v4358 = vpop.f32.mrf.mxu0
        %v4359 = vadd.f32 %v4294, %v4358
        %4360 = vmatmul.f32.gmra.mxu0 %v3801
        %v4361 = vpop.f32.mrf.mxu0
        %v4362 = vadd.f32 %v4297, %v4361
        %4363 = vmatmul.f32.gmra.mxu0 %v3804
        %v4364 = vpop.f32.mrf.mxu0
        %v4365 = vadd.f32 %v4300, %v4364
        %4366 = vmatmul.f32.gmra.mxu0 %v3807
        %v4367 = vpop.f32.mrf.mxu0
        %v4368 = vadd.f32 %v4303, %v4367
        %4369 = vmatmul.f32.gmra.mxu0 %v3810
        %v4370 = vpop.f32.mrf.mxu0
        %v4371 = vadd.f32 %v4306, %v4370
        %4372 = vmatmul.f32.gmra.mxu0 %v3813
        %v4373 = vpop.f32.mrf.mxu0
        %v4374 = vadd.f32 %v4309, %v4373
        %4375 = vmatmul.f32.gmra.mxu0 %v3816
        %v4376 = vpop.f32.mrf.mxu0
        %v4377 = vadd.f32 %v4312, %v4376
        %4378 = vmatmul.f32.gmra.mxu0 %v3819
        %v4379 = vpop.f32.mrf.mxu0
        %v4380 = vadd.f32 %v4315, %v4379
        %4381 = vmatmul.f32.gmra.mxu0 %v3822
        %v4382 = vpop.f32.mrf.mxu0
        %v4383 = vadd.f32 %v4318, %v4382
        %4384 = vdwg.mxu0
        %v4385 = vmax.f32 %v3948, 0.0
        %v4386 = vmax.f32 %v4078, 0.0
        %v4387 = vmax.f32 %v4208, 0.0
        %v4388 = vmax.f32 %v4338, 0.0
        %v4389 = vmax.f32 %v3951, 0.0
        %v4390 = vmax.f32 %v4081, 0.0
        %v4391 = vmax.f32 %v4211, 0.0
        %v4392 = vmax.f32 %v4341, 0.0
        %v4393 = vmax.f32 %v3954, 0.0
        %v4394 = vmax.f32 %v4084, 0.0
        %v4395 = vmax.f32 %v4214, 0.0
        %v4396 = vmax.f32 %v4344, 0.0
        %v4397 = vmax.f32 %v3957, 0.0
        %v4398 = vmax.f32 %v4087, 0.0
        %v4399 = vmax.f32 %v4217, 0.0
        %v4400 = vmax.f32 %v4347, 0.0
        %v4401 = vmax.f32 %v3960, 0.0
        %v4402 = vmax.f32 %v4090, 0.0
        %v4403 = vmax.f32 %v4220, 0.0
        %v4404 = vmax.f32 %v4350, 0.0
        %v4405 = vmax.f32 %v3963, 0.0
        %v4406 = vmax.f32 %v4093, 0.0
        %v4407 = vmax.f32 %v4223, 0.0
        %v4408 = vmax.f32 %v4353, 0.0
        %v4409 = vmax.f32 %v3966, 0.0
        %v4410 = vmax.f32 %v4096, 0.0
        %v4411 = vmax.f32 %v4226, 0.0
        %v4412 = vmax.f32 %v4356, 0.0
        %v4413 = vmax.f32 %v3969, 0.0
        %v4414 = vmax.f32 %v4099, 0.0
        %v4415 = vmax.f32 %v4229, 0.0
        %v4416 = vmax.f32 %v4359, 0.0
        %v4417 = vmax.f32 %v3972, 0.0
        %v4418 = vmax.f32 %v4102, 0.0
        %v4419 = vmax.f32 %v4232, 0.0
        %v4420 = vmax.f32 %v4362, 0.0
        %v4421 = vmax.f32 %v3975, 0.0
        %v4422 = vmax.f32 %v4105, 0.0
        %v4423 = vmax.f32 %v4235, 0.0
        %v4424 = vmax.f32 %v4365, 0.0
        %v4425 = vmax.f32 %v3978, 0.0
        %v4426 = vmax.f32 %v4108, 0.0
        %v4427 = vmax.f32 %v4238, 0.0
        %v4428 = vmax.f32 %v4368, 0.0
        %v4429 = vmax.f32 %v3981, 0.0
        %v4430 = vmax.f32 %v4111, 0.0
        %v4431 = vmax.f32 %v4241, 0.0
        %v4432 = vmax.f32 %v4371, 0.0
        %v4433 = vmax.f32 %v3984, 0.0
        %v4434 = vmax.f32 %v4114, 0.0
        %v4435 = vmax.f32 %v4244, 0.0
        %v4436 = vmax.f32 %v4374, 0.0
        %v4437 = vmax.f32 %v3987, 0.0
        %v4438 = vmax.f32 %v4117, 0.0
        %v4439 = vmax.f32 %v4247, 0.0
        %v4440 = vmax.f32 %v4377, 0.0
        %v4441 = vmax.f32 %v3990, 0.0
        %v4442 = vmax.f32 %v4120, 0.0
        %v4443 = vmax.f32 %v4250, 0.0
        %v4444 = vmax.f32 %v4380, 0.0
        %v4445 = vmax.f32 %v3993, 0.0
        %v4446 = vmax.f32 %v4123, 0.0
        %v4447 = vmax.f32 %v4253, 0.0
        %v4448 = vmax.f32 %v4383, 0.0
        %v4450 = vperm.slane %v1569, 0
        %v4451 = vperm.slane %v1569, 1
        %v4452 = vperm.slane %v1569, 2
        %v4453 = vperm.slane %v1569, 3
        %v4454 = vperm.slane %v1569, 4
        %v4455 = vperm.slane %v1569, 5
        %4462 = vmatpush.msra.mxu0 %v1272
        %4463 = vmatpush.msra.mxu0 %v1266
        %4464 = vmatpush.msra.mxu0 %v1260
        %4465 = vmatpush.msra.mxu0 %v1254
        %4466 = vmatpush.msra.mxu0 %v1248
        %4467 = vmatpush.msra.mxu0 %v1242
        %4468 = vmatpush.msra.mxu0 %v1236
        %4469 = vmatpush.msra.mxu0 %v1230
        %4470 = vmatpush.msra.mxu0 %v1224
        %4471 = vmatpush.msra.mxu0 %v1218
        %4472 = vmatpush.msra.mxu0 %v1212
        %4473 = vmatpush.msra.mxu0 %v1206
        %4474 = vmatpush.msra.mxu0 %v1200
        %4475 = vmatpush.msra.mxu0 %v1194
        %4476 = vmatpush.msra.mxu0 %v1188
        %4477 = vmatpush.msra.mxu0 %v1182
        %4478 = vmatmul.f32.gmra.mxu0 %v4385
        %v4479 = vpop.f32.mrf.mxu0
        %v4480 = vadd.f32 %v4450, %v4479
        %4481 = vmatmul.f32.gmra.mxu0 %v4389
        %v4482 = vpop.f32.mrf.mxu0
        %v4483 = vadd.f32 %v4450, %v4482
        %4484 = vmatmul.f32.gmra.mxu0 %v4393
        %v4485 = vpop.f32.mrf.mxu0
        %v4486 = vadd.f32 %v4450, %v4485
        %4487 = vmatmul.f32.gmra.mxu0 %v4397
        %v4488 = vpop.f32.mrf.mxu0
        %v4489 = vadd.f32 %v4450, %v4488
        %4490 = vmatmul.f32.gmra.mxu0 %v4401
        %v4491 = vpop.f32.mrf.mxu0
        %v4492 = vadd.f32 %v4450, %v4491
        %4493 = vmatmul.f32.gmra.mxu0 %v4405
        %v4494 = vpop.f32.mrf.mxu0
        %v4495 = vadd.f32 %v4450, %v4494
        %4496 = vmatmul.f32.gmra.mxu0 %v4409
        %v4497 = vpop.f32.mrf.mxu0
        %v4498 = vadd.f32 %v4450, %v4497
        %4499 = vmatmul.f32.gmra.mxu0 %v4413
        %v4500 = vpop.f32.mrf.mxu0
        %v4501 = vadd.f32 %v4450, %v4500
        %4502 = vmatmul.f32.gmra.mxu0 %v4417
        %v4503 = vpop.f32.mrf.mxu0
        %v4504 = vadd.f32 %v4450, %v4503
        %4505 = vmatmul.f32.gmra.mxu0 %v4421
        %v4506 = vpop.f32.mrf.mxu0
        %v4507 = vadd.f32 %v4450, %v4506
        %4508 = vmatmul.f32.gmra.mxu0 %v4425
        %v4509 = vpop.f32.mrf.mxu0
        %v4510 = vadd.f32 %v4450, %v4509
        %4511 = vmatmul.f32.gmra.mxu0 %v4429
        %v4512 = vpop.f32.mrf.mxu0
        %v4513 = vadd.f32 %v4450, %v4512
        %4514 = vmatmul.f32.gmra.mxu0 %v4433
        %v4515 = vpop.f32.mrf.mxu0
        %v4516 = vadd.f32 %v4450, %v4515
        %4517 = vmatmul.f32.gmra.mxu0 %v4437
        %v4518 = vpop.f32.mrf.mxu0
        %v4519 = vadd.f32 %v4450, %v4518
        %4520 = vmatmul.f32.gmra.mxu0 %v4441
        %v4521 = vpop.f32.mrf.mxu0
        %v4522 = vadd.f32 %v4450, %v4521
        %4523 = vmatmul.f32.gmra.mxu0 %v4445
        %v4524 = vpop.f32.mrf.mxu0
        %v4525 = vadd.f32 %v4450, %v4524
        %4526 = vdwg.mxu0
        %4527 = vmatpush.msra.mxu0 %v1368
        %4528 = vmatpush.msra.mxu0 %v1362
        %4529 = vmatpush.msra.mxu0 %v1356
        %4530 = vmatpush.msra.mxu0 %v1350
        %4531 = vmatpush.msra.mxu0 %v1344
        %4532 = vmatpush.msra.mxu0 %v1338
        %4533 = vmatpush.msra.mxu0 %v1332
        %4534 = vmatpush.msra.mxu0 %v1326
        %4535 = vmatpush.msra.mxu0 %v1320
        %4536 = vmatpush.msra.mxu0 %v1314
        %4537 = vmatpush.msra.mxu0 %v1308
        %4538 = vmatpush.msra.mxu0 %v1302
        %4539 = vmatpush.msra.mxu0 %v1296
        %4540 = vmatpush.msra.mxu0 %v1290
        %4541 = vmatpush.msra.mxu0 %v1284
        %4542 = vmatpush.msra.mxu0 %v1278
        %4543 = vmatmul.f32.gmra.mxu0 %v4386
        %v4544 = vpop.f32.mrf.mxu0
        %v4545 = vadd.f32 %v4480, %v4544
        %4546 = vmatmul.f32.gmra.mxu0 %v4390
        %v4547 = vpop.f32.mrf.mxu0
        %v4548 = vadd.f32 %v4483, %v4547
        %4549 = vmatmul.f32.gmra.mxu0 %v4394
        %v4550 = vpop.f32.mrf.mxu0
        %v4551 = vadd.f32 %v4486, %v4550
        %4552 = vmatmul.f32.gmra.mxu0 %v4398
        %v4553 = vpop.f32.mrf.mxu0
        %v4554 = vadd.f32 %v4489, %v4553
        %4555 = vmatmul.f32.gmra.mxu0 %v4402
        %v4556 = vpop.f32.mrf.mxu0
        %v4557 = vadd.f32 %v4492, %v4556
        %4558 = vmatmul.f32.gmra.mxu0 %v4406
        %v4559 = vpop.f32.mrf.mxu0
        %v4560 = vadd.f32 %v4495, %v4559
        %4561 = vmatmul.f32.gmra.mxu0 %v4410
        %v4562 = vpop.f32.mrf.mxu0
        %v4563 = vadd.f32 %v4498, %v4562
        %4564 = vmatmul.f32.gmra.mxu0 %v4414
        %v4565 = vpop.f32.mrf.mxu0
        %v4566 = vadd.f32 %v4501, %v4565
        %4567 = vmatmul.f32.gmra.mxu0 %v4418
        %v4568 = vpop.f32.mrf.mxu0
        %v4569 = vadd.f32 %v4504, %v4568
        %4570 = vmatmul.f32.gmra.mxu0 %v4422
        %v4571 = vpop.f32.mrf.mxu0
        %v4572 = vadd.f32 %v4507, %v4571
        %4573 = vmatmul.f32.gmra.mxu0 %v4426
        %v4574 = vpop.f32.mrf.mxu0
        %v4575 = vadd.f32 %v4510, %v4574
        %4576 = vmatmul.f32.gmra.mxu0 %v4430
        %v4577 = vpop.f32.mrf.mxu0
        %v4578 = vadd.f32 %v4513, %v4577
        %4579 = vmatmul.f32.gmra.mxu0 %v4434
        %v4580 = vpop.f32.mrf.mxu0
        %v4581 = vadd.f32 %v4516, %v4580
        %4582 = vmatmul.f32.gmra.mxu0 %v4438
        %v4583 = vpop.f32.mrf.mxu0
        %v4584 = vadd.f32 %v4519, %v4583
        %4585 = vmatmul.f32.gmra.mxu0 %v4442
        %v4586 = vpop.f32.mrf.mxu0
        %v4587 = vadd.f32 %v4522, %v4586
        %4588 = vmatmul.f32.gmra.mxu0 %v4446
        %v4589 = vpop.f32.mrf.mxu0
        %v4590 = vadd.f32 %v4525, %v4589
        %4591 = vdwg.mxu0
        %4592 = vmatpush.msra.mxu0 %v1464
        %4593 = vmatpush.msra.mxu0 %v1458
        %4594 = vmatpush.msra.mxu0 %v1452
        %4595 = vmatpush.msra.mxu0 %v1446
        %4596 = vmatpush.msra.mxu0 %v1440
        %4597 = vmatpush.msra.mxu0 %v1434
        %4598 = vmatpush.msra.mxu0 %v1428
        %4599 = vmatpush.msra.mxu0 %v1422
        %4600 = vmatpush.msra.mxu0 %v1416
        %4601 = vmatpush.msra.mxu0 %v1410
        %4602 = vmatpush.msra.mxu0 %v1404
        %4603 = vmatpush.msra.mxu0 %v1398
        %4604 = vmatpush.msra.mxu0 %v1392
        %4605 = vmatpush.msra.mxu0 %v1386
        %4606 = vmatpush.msra.mxu0 %v1380
        %4607 = vmatpush.msra.mxu0 %v1374
        %4608 = vmatmul.f32.gmra.mxu0 %v4387
        %v4609 = vpop.f32.mrf.mxu0
        %v4610 = vadd.f32 %v4545, %v4609
        %4611 = vmatmul.f32.gmra.mxu0 %v4391
        %v4612 = vpop.f32.mrf.mxu0
        %v4613 = vadd.f32 %v4548, %v4612
        %4614 = vmatmul.f32.gmra.mxu0 %v4395
        %v4615 = vpop.f32.mrf.mxu0
        %v4616 = vadd.f32 %v4551, %v4615
        %4617 = vmatmul.f32.gmra.mxu0 %v4399
        %v4618 = vpop.f32.mrf.mxu0
        %v4619 = vadd.f32 %v4554, %v4618
        %4620 = vmatmul.f32.gmra.mxu0 %v4403
        %v4621 = vpop.f32.mrf.mxu0
        %v4622 = vadd.f32 %v4557, %v4621
        %4623 = vmatmul.f32.gmra.mxu0 %v4407
        %v4624 = vpop.f32.mrf.mxu0
        %v4625 = vadd.f32 %v4560, %v4624
        %4626 = vmatmul.f32.gmra.mxu0 %v4411
        %v4627 = vpop.f32.mrf.mxu0
        %v4628 = vadd.f32 %v4563, %v4627
        %4629 = vmatmul.f32.gmra.mxu0 %v4415
        %v4630 = vpop.f32.mrf.mxu0
        %v4631 = vadd.f32 %v4566, %v4630
        %4632 = vmatmul.f32.gmra.mxu0 %v4419
        %v4633 = vpop.f32.mrf.mxu0
        %v4634 = vadd.f32 %v4569, %v4633
        %4635 = vmatmul.f32.gmra.mxu0 %v4423
        %v4636 = vpop.f32.mrf.mxu0
        %v4637 = vadd.f32 %v4572, %v4636
        %4638 = vmatmul.f32.gmra.mxu0 %v4427
        %v4639 = vpop.f32.mrf.mxu0
        %v4640 = vadd.f32 %v4575, %v4639
        %4641 = vmatmul.f32.gmra.mxu0 %v4431
        %v4642 = vpop.f32.mrf.mxu0
        %v4643 = vadd.f32 %v4578, %v4642
        %4644 = vmatmul.f32.gmra.mxu0 %v4435
        %v4645 = vpop.f32.mrf.mxu0
        %v4646 = vadd.f32 %v4581, %v4645
        %4647 = vmatmul.f32.gmra.mxu0 %v4439
        %v4648 = vpop.f32.mrf.mxu0
        %v4649 = vadd.f32 %v4584, %v4648
        %4650 = vmatmul.f32.gmra.mxu0 %v4443
        %v4651 = vpop.f32.mrf.mxu0
        %v4652 = vadd.f32 %v4587, %v4651
        %4653 = vmatmul.f32.gmra.mxu0 %v4447
        %v4654 = vpop.f32.mrf.mxu0
        %v4655 = vadd.f32 %v4590, %v4654
        %4656 = vdwg.mxu0
        %4657 = vmatpush.msra.mxu0 %v1560
        %4658 = vmatpush.msra.mxu0 %v1554
        %4659 = vmatpush.msra.mxu0 %v1548
        %4660 = vmatpush.msra.mxu0 %v1542
        %4661 = vmatpush.msra.mxu0 %v1536
        %4662 = vmatpush.msra.mxu0 %v1530
        %4663 = vmatpush.msra.mxu0 %v1524
        %4664 = vmatpush.msra.mxu0 %v1518
        %4665 = vmatpush.msra.mxu0 %v1512
        %4666 = vmatpush.msra.mxu0 %v1506
        %4667 = vmatpush.msra.mxu0 %v1500
        %4668 = vmatpush.msra.mxu0 %v1494
        %4669 = vmatpush.msra.mxu0 %v1488
        %4670 = vmatpush.msra.mxu0 %v1482
        %4671 = vmatpush.msra.mxu0 %v1476
        %4672 = vmatpush.msra.mxu0 %v1470
        %4673 = vmatmul.f32.gmra.mxu0 %v4388
        %v4674 = vpop.f32.mrf.mxu0
        %v4675 = vadd.f32 %v4610, %v4674
        %4676 = vmatmul.f32.gmra.mxu0 %v4392
        %v4677 = vpop.f32.mrf.mxu0
        %v4678 = vadd.f32 %v4613, %v4677
        %4679 = vmatmul.f32.gmra.mxu0 %v4396
        %v4680 = vpop.f32.mrf.mxu0
        %v4681 = vadd.f32 %v4616, %v4680
        %4682 = vmatmul.f32.gmra.mxu0 %v4400
        %v4683 = vpop.f32.mrf.mxu0
        %v4684 = vadd.f32 %v4619, %v4683
        %4685 = vmatmul.f32.gmra.mxu0 %v4404
        %v4686 = vpop.f32.mrf.mxu0
        %v4687 = vadd.f32 %v4622, %v4686
        %4688 = vmatmul.f32.gmra.mxu0 %v4408
        %v4689 = vpop.f32.mrf.mxu0
        %v4690 = vadd.f32 %v4625, %v4689
        %4691 = vmatmul.f32.gmra.mxu0 %v4412
        %v4692 = vpop.f32.mrf.mxu0
        %v4693 = vadd.f32 %v4628, %v4692
        %4694 = vmatmul.f32.gmra.mxu0 %v4416
        %v4695 = vpop.f32.mrf.mxu0
        %v4696 = vadd.f32 %v4631, %v4695
        %4697 = vmatmul.f32.gmra.mxu0 %v4420
        %v4698 = vpop.f32.mrf.mxu0
        %v4699 = vadd.f32 %v4634, %v4698
        %4700 = vmatmul.f32.gmra.mxu0 %v4424
        %v4701 = vpop.f32.mrf.mxu0
        %v4702 = vadd.f32 %v4637, %v4701
        %4703 = vmatmul.f32.gmra.mxu0 %v4428
        %v4704 = vpop.f32.mrf.mxu0
        %v4705 = vadd.f32 %v4640, %v4704
        %4706 = vmatmul.f32.gmra.mxu0 %v4432
        %v4707 = vpop.f32.mrf.mxu0
        %v4708 = vadd.f32 %v4643, %v4707
        %4709 = vmatmul.f32.gmra.mxu0 %v4436
        %v4710 = vpop.f32.mrf.mxu0
        %v4711 = vadd.f32 %v4646, %v4710
        %4712 = vmatmul.f32.gmra.mxu0 %v4440
        %v4713 = vpop.f32.mrf.mxu0
        %v4714 = vadd.f32 %v4649, %v4713
        %4715 = vmatmul.f32.gmra.mxu0 %v4444
        %v4716 = vpop.f32.mrf.mxu0
        %v4717 = vadd.f32 %v4652, %v4716
        %4718 = vmatmul.f32.gmra.mxu0 %v4448
        %v4719 = vpop.f32.mrf.mxu0
        %v4720 = vadd.f32 %v4655, %v4719
        %4721 = vdwg.mxu0
        %4722 = vmatpush.msra.mxu0 %v1273
        %4723 = vmatpush.msra.mxu0 %v1267
        %4724 = vmatpush.msra.mxu0 %v1261
        %4725 = vmatpush.msra.mxu0 %v1255
        %4726 = vmatpush.msra.mxu0 %v1249
        %4727 = vmatpush.msra.mxu0 %v1243
        %4728 = vmatpush.msra.mxu0 %v1237
        %4729 = vmatpush.msra.mxu0 %v1231
        %4730 = vmatpush.msra.mxu0 %v1225
        %4731 = vmatpush.msra.mxu0 %v1219
        %4732 = vmatpush.msra.mxu0 %v1213
        %4733 = vmatpush.msra.mxu0 %v1207
        %4734 = vmatpush.msra.mxu0 %v1201
        %4735 = vmatpush.msra.mxu0 %v1195
        %4736 = vmatpush.msra.mxu0 %v1189
        %4737 = vmatpush.msra.mxu0 %v1183
        %4738 = vmatmul.f32.gmra.mxu0 %v4385
        %v4739 = vpop.f32.mrf.mxu0
        %v4740 = vadd.f32 %v4451, %v4739
        %4741 = vmatmul.f32.gmra.mxu0 %v4389
        %v4742 = vpop.f32.mrf.mxu0
        %v4743 = vadd.f32 %v4451, %v4742
        %4744 = vmatmul.f32.gmra.mxu0 %v4393
        %v4745 = vpop.f32.mrf.mxu0
        %v4746 = vadd.f32 %v4451, %v4745
        %4747 = vmatmul.f32.gmra.mxu0 %v4397
        %v4748 = vpop.f32.mrf.mxu0
        %v4749 = vadd.f32 %v4451, %v4748
        %4750 = vmatmul.f32.gmra.mxu0 %v4401
        %v4751 = vpop.f32.mrf.mxu0
        %v4752 = vadd.f32 %v4451, %v4751
        %4753 = vmatmul.f32.gmra.mxu0 %v4405
        %v4754 = vpop.f32.mrf.mxu0
        %v4755 = vadd.f32 %v4451, %v4754
        %4756 = vmatmul.f32.gmra.mxu0 %v4409
        %v4757 = vpop.f32.mrf.mxu0
        %v4758 = vadd.f32 %v4451, %v4757
        %4759 = vmatmul.f32.gmra.mxu0 %v4413
        %v4760 = vpop.f32.mrf.mxu0
        %v4761 = vadd.f32 %v4451, %v4760
        %4762 = vmatmul.f32.gmra.mxu0 %v4417
        %v4763 = vpop.f32.mrf.mxu0
        %v4764 = vadd.f32 %v4451, %v4763
        %4765 = vmatmul.f32.gmra.mxu0 %v4421
        %v4766 = vpop.f32.mrf.mxu0
        %v4767 = vadd.f32 %v4451, %v4766
        %4768 = vmatmul.f32.gmra.mxu0 %v4425
        %v4769 = vpop.f32.mrf.mxu0
        %v4770 = vadd.f32 %v4451, %v4769
        %4771 = vmatmul.f32.gmra.mxu0 %v4429
        %v4772 = vpop.f32.mrf.mxu0
        %v4773 = vadd.f32 %v4451, %v4772
        %4774 = vmatmul.f32.gmra.mxu0 %v4433
        %v4775 = vpop.f32.mrf.mxu0
        %v4776 = vadd.f32 %v4451, %v4775
        %4777 = vmatmul.f32.gmra.mxu0 %v4437
        %v4778 = vpop.f32.mrf.mxu0
        %v4779 = vadd.f32 %v4451, %v4778
        %4780 = vmatmul.f32.gmra.mxu0 %v4441
        %v4781 = vpop.f32.mrf.mxu0
        %v4782 = vadd.f32 %v4451, %v4781
        %4783 = vmatmul.f32.gmra.mxu0 %v4445
        %v4784 = vpop.f32.mrf.mxu0
        %v4785 = vadd.f32 %v4451, %v4784
        %4786 = vdwg.mxu0
        %4787 = vmatpush.msra.mxu0 %v1369
        %4788 = vmatpush.msra.mxu0 %v1363
        %4789 = vmatpush.msra.mxu0 %v1357
        %4790 = vmatpush.msra.mxu0 %v1351
        %4791 = vmatpush.msra.mxu0 %v1345
        %4792 = vmatpush.msra.mxu0 %v1339
        %4793 = vmatpush.msra.mxu0 %v1333
        %4794 = vmatpush.msra.mxu0 %v1327
        %4795 = vmatpush.msra.mxu0 %v1321
        %4796 = vmatpush.msra.mxu0 %v1315
        %4797 = vmatpush.msra.mxu0 %v1309
        %4798 = vmatpush.msra.mxu0 %v1303
        %4799 = vmatpush.msra.mxu0 %v1297
        %4800 = vmatpush.msra.mxu0 %v1291
        %4801 = vmatpush.msra.mxu0 %v1285
        %4802 = vmatpush.msra.mxu0 %v1279
        %4803 = vmatmul.f32.gmra.mxu0 %v4386
        %v4804 = vpop.f32.mrf.mxu0
        %v4805 = vadd.f32 %v4740, %v4804
        %4806 = vmatmul.f32.gmra.mxu0 %v4390
        %v4807 = vpop.f32.mrf.mxu0
        %v4808 = vadd.f32 %v4743, %v4807
        %4809 = vmatmul.f32.gmra.mxu0 %v4394
        %v4810 = vpop.f32.mrf.mxu0
        %v4811 = vadd.f32 %v4746, %v4810
        %4812 = vmatmul.f32.gmra.mxu0 %v4398
        %v4813 = vpop.f32.mrf.mxu0
        %v4814 = vadd.f32 %v4749, %v4813
        %4815 = vmatmul.f32.gmra.mxu0 %v4402
        %v4816 = vpop.f32.mrf.mxu0
        %v4817 = vadd.f32 %v4752, %v4816
        %4818 = vmatmul.f32.gmra.mxu0 %v4406
        %v4819 = vpop.f32.mrf.mxu0
        %v4820 = vadd.f32 %v4755, %v4819
        %4821 = vmatmul.f32.gmra.mxu0 %v4410
        %v4822 = vpop.f32.mrf.mxu0
        %v4823 = vadd.f32 %v4758, %v4822
        %4824 = vmatmul.f32.gmra.mxu0 %v4414
        %v4825 = vpop.f32.mrf.mxu0
        %v4826 = vadd.f32 %v4761, %v4825
        %4827 = vmatmul.f32.gmra.mxu0 %v4418
        %v4828 = vpop.f32.mrf.mxu0
        %v4829 = vadd.f32 %v4764, %v4828
        %4830 = vmatmul.f32.gmra.mxu0 %v4422
        %v4831 = vpop.f32.mrf.mxu0
        %v4832 = vadd.f32 %v4767, %v4831
        %4833 = vmatmul.f32.gmra.mxu0 %v4426
        %v4834 = vpop.f32.mrf.mxu0
        %v4835 = vadd.f32 %v4770, %v4834
        %4836 = vmatmul.f32.gmra.mxu0 %v4430
        %v4837 = vpop.f32.mrf.mxu0
        %v4838 = vadd.f32 %v4773, %v4837
        %4839 = vmatmul.f32.gmra.mxu0 %v4434
        %v4840 = vpop.f32.mrf.mxu0
        %v4841 = vadd.f32 %v4776, %v4840
        %4842 = vmatmul.f32.gmra.mxu0 %v4438
        %v4843 = vpop.f32.mrf.mxu0
        %v4844 = vadd.f32 %v4779, %v4843
        %4845 = vmatmul.f32.gmra.mxu0 %v4442
        %v4846 = vpop.f32.mrf.mxu0
        %v4847 = vadd.f32 %v4782, %v4846
        %4848 = vmatmul.f32.gmra.mxu0 %v4446
        %v4849 = vpop.f32.mrf.mxu0
        %v4850 = vadd.f32 %v4785, %v4849
        %4851 = vdwg.mxu0
        %4852 = vmatpush.msra.mxu0 %v1465
        %4853 = vmatpush.msra.mxu0 %v1459
        %4854 = vmatpush.msra.mxu0 %v1453
        %4855 = vmatpush.msra.mxu0 %v1447
        %4856 = vmatpush.msra.mxu0 %v1441
        %4857 = vmatpush.msra.mxu0 %v1435
        %4858 = vmatpush.msra.mxu0 %v1429
        %4859 = vmatpush.msra.mxu0 %v1423
        %4860 = vmatpush.msra.mxu0 %v1417
        %4861 = vmatpush.msra.mxu0 %v1411
        %4862 = vmatpush.msra.mxu0 %v1405
        %4863 = vmatpush.msra.mxu0 %v1399
        %4864 = vmatpush.msra.mxu0 %v1393
        %4865 = vmatpush.msra.mxu0 %v1387
        %4866 = vmatpush.msra.mxu0 %v1381
        %4867 = vmatpush.msra.mxu0 %v1375
        %4868 = vmatmul.f32.gmra.mxu0 %v4387
        %v4869 = vpop.f32.mrf.mxu0
        %v4870 = vadd.f32 %v4805, %v4869
        %4871 = vmatmul.f32.gmra.mxu0 %v4391
        %v4872 = vpop.f32.mrf.mxu0
        %v4873 = vadd.f32 %v4808, %v4872
        %4874 = vmatmul.f32.gmra.mxu0 %v4395
        %v4875 = vpop.f32.mrf.mxu0
        %v4876 = vadd.f32 %v4811, %v4875
        %4877 = vmatmul.f32.gmra.mxu0 %v4399
        %v4878 = vpop.f32.mrf.mxu0
        %v4879 = vadd.f32 %v4814, %v4878
        %4880 = vmatmul.f32.gmra.mxu0 %v4403
        %v4881 = vpop.f32.mrf.mxu0
        %v4882 = vadd.f32 %v4817, %v4881
        %4883 = vmatmul.f32.gmra.mxu0 %v4407
        %v4884 = vpop.f32.mrf.mxu0
        %v4885 = vadd.f32 %v4820, %v4884
        %4886 = vmatmul.f32.gmra.mxu0 %v4411
        %v4887 = vpop.f32.mrf.mxu0
        %v4888 = vadd.f32 %v4823, %v4887
        %4889 = vmatmul.f32.gmra.mxu0 %v4415
        %v4890 = vpop.f32.mrf.mxu0
        %v4891 = vadd.f32 %v4826, %v4890
        %4892 = vmatmul.f32.gmra.mxu0 %v4419
        %v4893 = vpop.f32.mrf.mxu0
        %v4894 = vadd.f32 %v4829, %v4893
        %4895 = vmatmul.f32.gmra.mxu0 %v4423
        %v4896 = vpop.f32.mrf.mxu0
        %v4897 = vadd.f32 %v4832, %v4896
        %4898 = vmatmul.f32.gmra.mxu0 %v4427
        %v4899 = vpop.f32.mrf.mxu0
        %v4900 = vadd.f32 %v4835, %v4899
        %4901 = vmatmul.f32.gmra.mxu0 %v4431
        %v4902 = vpop.f32.mrf.mxu0
        %v4903 = vadd.f32 %v4838, %v4902
        %4904 = vmatmul.f32.gmra.mxu0 %v4435
        %v4905 = vpop.f32.mrf.mxu0
        %v4906 = vadd.f32 %v4841, %v4905
        %4907 = vmatmul.f32.gmra.mxu0 %v4439
        %v4908 = vpop.f32.mrf.mxu0
        %v4909 = vadd.f32 %v4844, %v4908
        %4910 = vmatmul.f32.gmra.mxu0 %v4443
        %v4911 = vpop.f32.mrf.mxu0
        %v4912 = vadd.f32 %v4847, %v4911
        %4913 = vmatmul.f32.gmra.mxu0 %v4447
        %v4914 = vpop.f32.mrf.mxu0
        %v4915 = vadd.f32 %v4850, %v4914
        %4916 = vdwg.mxu0
        %4917 = vmatpush.msra.mxu0 %v1561
        %4918 = vmatpush.msra.mxu0 %v1555
        %4919 = vmatpush.msra.mxu0 %v1549
        %4920 = vmatpush.msra.mxu0 %v1543
        %4921 = vmatpush.msra.mxu0 %v1537
        %4922 = vmatpush.msra.mxu0 %v1531
        %4923 = vmatpush.msra.mxu0 %v1525
        %4924 = vmatpush.msra.mxu0 %v1519
        %4925 = vmatpush.msra.mxu0 %v1513
        %4926 = vmatpush.msra.mxu0 %v1507
        %4927 = vmatpush.msra.mxu0 %v1501
        %4928 = vmatpush.msra.mxu0 %v1495
        %4929 = vmatpush.msra.mxu0 %v1489
        %4930 = vmatpush.msra.mxu0 %v1483
        %4931 = vmatpush.msra.mxu0 %v1477
        %4932 = vmatpush.msra.mxu0 %v1471
        %4933 = vmatmul.f32.gmra.mxu0 %v4388
        %v4934 = vpop.f32.mrf.mxu0
        %v4935 = vadd.f32 %v4870, %v4934
        %4936 = vmatmul.f32.gmra.mxu0 %v4392
        %v4937 = vpop.f32.mrf.mxu0
        %v4938 = vadd.f32 %v4873, %v4937
        %4939 = vmatmul.f32.gmra.mxu0 %v4396
        %v4940 = vpop.f32.mrf.mxu0
        %v4941 = vadd.f32 %v4876, %v4940
        %4942 = vmatmul.f32.gmra.mxu0 %v4400
        %v4943 = vpop.f32.mrf.mxu0
        %v4944 = vadd.f32 %v4879, %v4943
        %4945 = vmatmul.f32.gmra.mxu0 %v4404
        %v4946 = vpop.f32.mrf.mxu0
        %v4947 = vadd.f32 %v4882, %v4946
        %4948 = vmatmul.f32.gmra.mxu0 %v4408
        %v4949 = vpop.f32.mrf.mxu0
        %v4950 = vadd.f32 %v4885, %v4949
        %4951 = vmatmul.f32.gmra.mxu0 %v4412
        %v4952 = vpop.f32.mrf.mxu0
        %v4953 = vadd.f32 %v4888, %v4952
        %4954 = vmatmul.f32.gmra.mxu0 %v4416
        %v4955 = vpop.f32.mrf.mxu0
        %v4956 = vadd.f32 %v4891, %v4955
        %4957 = vmatmul.f32.gmra.mxu0 %v4420
        %v4958 = vpop.f32.mrf.mxu0
        %v4959 = vadd.f32 %v4894, %v4958
        %4960 = vmatmul.f32.gmra.mxu0 %v4424
        %v4961 = vpop.f32.mrf.mxu0
        %v4962 = vadd.f32 %v4897, %v4961
        %4963 = vmatmul.f32.gmra.mxu0 %v4428
        %v4964 = vpop.f32.mrf.mxu0
        %v4965 = vadd.f32 %v4900, %v4964
        %4966 = vmatmul.f32.gmra.mxu0 %v4432
        %v4967 = vpop.f32.mrf.mxu0
        %v4968 = vadd.f32 %v4903, %v4967
        %4969 = vmatmul.f32.gmra.mxu0 %v4436
        %v4970 = vpop.f32.mrf.mxu0
        %v4971 = vadd.f32 %v4906, %v4970
        %4972 = vmatmul.f32.gmra.mxu0 %v4440
        %v4973 = vpop.f32.mrf.mxu0
        %v4974 = vadd.f32 %v4909, %v4973
        %4975 = vmatmul.f32.gmra.mxu0 %v4444
        %v4976 = vpop.f32.mrf.mxu0
        %v4977 = vadd.f32 %v4912, %v4976
        %4978 = vmatmul.f32.gmra.mxu0 %v4448
        %v4979 = vpop.f32.mrf.mxu0
        %v4980 = vadd.f32 %v4915, %v4979
        %4981 = vdwg.mxu0
        %4982 = vmatpush.msra.mxu0 %v1274
        %4983 = vmatpush.msra.mxu0 %v1268
        %4984 = vmatpush.msra.mxu0 %v1262
        %4985 = vmatpush.msra.mxu0 %v1256
        %4986 = vmatpush.msra.mxu0 %v1250
        %4987 = vmatpush.msra.mxu0 %v1244
        %4988 = vmatpush.msra.mxu0 %v1238
        %4989 = vmatpush.msra.mxu0 %v1232
        %4990 = vmatpush.msra.mxu0 %v1226
        %4991 = vmatpush.msra.mxu0 %v1220
        %4992 = vmatpush.msra.mxu0 %v1214
        %4993 = vmatpush.msra.mxu0 %v1208
        %4994 = vmatpush.msra.mxu0 %v1202
        %4995 = vmatpush.msra.mxu0 %v1196
        %4996 = vmatpush.msra.mxu0 %v1190
        %4997 = vmatpush.msra.mxu0 %v1184
        %4998 = vmatmul.f32.gmra.mxu0 %v4385
        %v4999 = vpop.f32.mrf.mxu0
        %v5000 = vadd.f32 %v4452, %v4999
        %5001 = vmatmul.f32.gmra.mxu0 %v4389
        %v5002 = vpop.f32.mrf.mxu0
        %v5003 = vadd.f32 %v4452, %v5002
        %5004 = vmatmul.f32.gmra.mxu0 %v4393
        %v5005 = vpop.f32.mrf.mxu0
        %v5006 = vadd.f32 %v4452, %v5005
        %5007 = vmatmul.f32.gmra.mxu0 %v4397
        %v5008 = vpop.f32.mrf.mxu0
        %v5009 = vadd.f32 %v4452, %v5008
        %5010 = vmatmul.f32.gmra.mxu0 %v4401
        %v5011 = vpop.f32.mrf.mxu0
        %v5012 = vadd.f32 %v4452, %v5011
        %5013 = vmatmul.f32.gmra.mxu0 %v4405
        %v5014 = vpop.f32.mrf.mxu0
        %v5015 = vadd.f32 %v4452, %v5014
        %5016 = vmatmul.f32.gmra.mxu0 %v4409
        %v5017 = vpop.f32.mrf.mxu0
        %v5018 = vadd.f32 %v4452, %v5017
        %5019 = vmatmul.f32.gmra.mxu0 %v4413
        %v5020 = vpop.f32.mrf.mxu0
        %v5021 = vadd.f32 %v4452, %v5020
        %5022 = vmatmul.f32.gmra.mxu0 %v4417
        %v5023 = vpop.f32.mrf.mxu0
        %v5024 = vadd.f32 %v4452, %v5023
        %5025 = vmatmul.f32.gmra.mxu0 %v4421
        %v5026 = vpop.f32.mrf.mxu0
        %v5027 = vadd.f32 %v4452, %v5026
        %5028 = vmatmul.f32.gmra.mxu0 %v4425
        %v5029 = vpop.f32.mrf.mxu0
        %v5030 = vadd.f32 %v4452, %v5029
        %5031 = vmatmul.f32.gmra.mxu0 %v4429
        %v5032 = vpop.f32.mrf.mxu0
        %v5033 = vadd.f32 %v4452, %v5032
        %5034 = vmatmul.f32.gmra.mxu0 %v4433
        %v5035 = vpop.f32.mrf.mxu0
        %v5036 = vadd.f32 %v4452, %v5035
        %5037 = vmatmul.f32.gmra.mxu0 %v4437
        %v5038 = vpop.f32.mrf.mxu0
        %v5039 = vadd.f32 %v4452, %v5038
        %5040 = vmatmul.f32.gmra.mxu0 %v4441
        %v5041 = vpop.f32.mrf.mxu0
        %v5042 = vadd.f32 %v4452, %v5041
        %5043 = vmatmul.f32.gmra.mxu0 %v4445
        %v5044 = vpop.f32.mrf.mxu0
        %v5045 = vadd.f32 %v4452, %v5044
        %5046 = vdwg.mxu0
        %5047 = vmatpush.msra.mxu0 %v1370
        %5048 = vmatpush.msra.mxu0 %v1364
        %5049 = vmatpush.msra.mxu0 %v1358
        %5050 = vmatpush.msra.mxu0 %v1352
        %5051 = vmatpush.msra.mxu0 %v1346
        %5052 = vmatpush.msra.mxu0 %v1340
        %5053 = vmatpush.msra.mxu0 %v1334
        %5054 = vmatpush.msra.mxu0 %v1328
        %5055 = vmatpush.msra.mxu0 %v1322
        %5056 = vmatpush.msra.mxu0 %v1316
        %5057 = vmatpush.msra.mxu0 %v1310
        %5058 = vmatpush.msra.mxu0 %v1304
        %5059 = vmatpush.msra.mxu0 %v1298
        %5060 = vmatpush.msra.mxu0 %v1292
        %5061 = vmatpush.msra.mxu0 %v1286
        %5062 = vmatpush.msra.mxu0 %v1280
        %5063 = vmatmul.f32.gmra.mxu0 %v4386
        %v5064 = vpop.f32.mrf.mxu0
        %v5065 = vadd.f32 %v5000, %v5064
        %5066 = vmatmul.f32.gmra.mxu0 %v4390
        %v5067 = vpop.f32.mrf.mxu0
        %v5068 = vadd.f32 %v5003, %v5067
        %5069 = vmatmul.f32.gmra.mxu0 %v4394
        %v5070 = vpop.f32.mrf.mxu0
        %v5071 = vadd.f32 %v5006, %v5070
        %5072 = vmatmul.f32.gmra.mxu0 %v4398
        %v5073 = vpop.f32.mrf.mxu0
        %v5074 = vadd.f32 %v5009, %v5073
        %5075 = vmatmul.f32.gmra.mxu0 %v4402
        %v5076 = vpop.f32.mrf.mxu0
        %v5077 = vadd.f32 %v5012, %v5076
        %5078 = vmatmul.f32.gmra.mxu0 %v4406
        %v5079 = vpop.f32.mrf.mxu0
        %v5080 = vadd.f32 %v5015, %v5079
        %5081 = vmatmul.f32.gmra.mxu0 %v4410
        %v5082 = vpop.f32.mrf.mxu0
        %v5083 = vadd.f32 %v5018, %v5082
        %5084 = vmatmul.f32.gmra.mxu0 %v4414
        %v5085 = vpop.f32.mrf.mxu0
        %v5086 = vadd.f32 %v5021, %v5085
        %5087 = vmatmul.f32.gmra.mxu0 %v4418
        %v5088 = vpop.f32.mrf.mxu0
        %v5089 = vadd.f32 %v5024, %v5088
        %5090 = vmatmul.f32.gmra.mxu0 %v4422
        %v5091 = vpop.f32.mrf.mxu0
        %v5092 = vadd.f32 %v5027, %v5091
        %5093 = vmatmul.f32.gmra.mxu0 %v4426
        %v5094 = vpop.f32.mrf.mxu0
        %v5095 = vadd.f32 %v5030, %v5094
        %5096 = vmatmul.f32.gmra.mxu0 %v4430
        %v5097 = vpop.f32.mrf.mxu0
        %v5098 = vadd.f32 %v5033, %v5097
        %5099 = vmatmul.f32.gmra.mxu0 %v4434
        %v5100 = vpop.f32.mrf.mxu0
        %v5101 = vadd.f32 %v5036, %v5100
        %5102 = vmatmul.f32.gmra.mxu0 %v4438
        %v5103 = vpop.f32.mrf.mxu0
        %v5104 = vadd.f32 %v5039, %v5103
        %5105 = vmatmul.f32.gmra.mxu0 %v4442
        %v5106 = vpop.f32.mrf.mxu0
        %v5107 = vadd.f32 %v5042, %v5106
        %5108 = vmatmul.f32.gmra.mxu0 %v4446
        %v5109 = vpop.f32.mrf.mxu0
        %v5110 = vadd.f32 %v5045, %v5109
        %5111 = vdwg.mxu0
        %5112 = vmatpush.msra.mxu0 %v1466
        %5113 = vmatpush.msra.mxu0 %v1460
        %5114 = vmatpush.msra.mxu0 %v1454
        %5115 = vmatpush.msra.mxu0 %v1448
        %5116 = vmatpush.msra.mxu0 %v1442
        %5117 = vmatpush.msra.mxu0 %v1436
        %5118 = vmatpush.msra.mxu0 %v1430
        %5119 = vmatpush.msra.mxu0 %v1424
        %5120 = vmatpush.msra.mxu0 %v1418
        %5121 = vmatpush.msra.mxu0 %v1412
        %5122 = vmatpush.msra.mxu0 %v1406
        %5123 = vmatpush.msra.mxu0 %v1400
        %5124 = vmatpush.msra.mxu0 %v1394
        %5125 = vmatpush.msra.mxu0 %v1388
        %5126 = vmatpush.msra.mxu0 %v1382
        %5127 = vmatpush.msra.mxu0 %v1376
        %5128 = vmatmul.f32.gmra.mxu0 %v4387
        %v5129 = vpop.f32.mrf.mxu0
        %v5130 = vadd.f32 %v5065, %v5129
        %5131 = vmatmul.f32.gmra.mxu0 %v4391
        %v5132 = vpop.f32.mrf.mxu0
        %v5133 = vadd.f32 %v5068, %v5132
        %5134 = vmatmul.f32.gmra.mxu0 %v4395
        %v5135 = vpop.f32.mrf.mxu0
        %v5136 = vadd.f32 %v5071, %v5135
        %5137 = vmatmul.f32.gmra.mxu0 %v4399
        %v5138 = vpop.f32.mrf.mxu0
        %v5139 = vadd.f32 %v5074, %v5138
        %5140 = vmatmul.f32.gmra.mxu0 %v4403
        %v5141 = vpop.f32.mrf.mxu0
        %v5142 = vadd.f32 %v5077, %v5141
        %5143 = vmatmul.f32.gmra.mxu0 %v4407
        %v5144 = vpop.f32.mrf.mxu0
        %v5145 = vadd.f32 %v5080, %v5144
        %5146 = vmatmul.f32.gmra.mxu0 %v4411
        %v5147 = vpop.f32.mrf.mxu0
        %v5148 = vadd.f32 %v5083, %v5147
        %5149 = vmatmul.f32.gmra.mxu0 %v4415
        %v5150 = vpop.f32.mrf.mxu0
        %v5151 = vadd.f32 %v5086, %v5150
        %5152 = vmatmul.f32.gmra.mxu0 %v4419
        %v5153 = vpop.f32.mrf.mxu0
        %v5154 = vadd.f32 %v5089, %v5153
        %5155 = vmatmul.f32.gmra.mxu0 %v4423
        %v5156 = vpop.f32.mrf.mxu0
        %v5157 = vadd.f32 %v5092, %v5156
        %5158 = vmatmul.f32.gmra.mxu0 %v4427
        %v5159 = vpop.f32.mrf.mxu0
        %v5160 = vadd.f32 %v5095, %v5159
        %5161 = vmatmul.f32.gmra.mxu0 %v4431
        %v5162 = vpop.f32.mrf.mxu0
        %v5163 = vadd.f32 %v5098, %v5162
        %5164 = vmatmul.f32.gmra.mxu0 %v4435
        %v5165 = vpop.f32.mrf.mxu0
        %v5166 = vadd.f32 %v5101, %v5165
        %5167 = vmatmul.f32.gmra.mxu0 %v4439
        %v5168 = vpop.f32.mrf.mxu0
        %v5169 = vadd.f32 %v5104, %v5168
        %5170 = vmatmul.f32.gmra.mxu0 %v4443
        %v5171 = vpop.f32.mrf.mxu0
        %v5172 = vadd.f32 %v5107, %v5171
        %5173 = vmatmul.f32.gmra.mxu0 %v4447
        %v5174 = vpop.f32.mrf.mxu0
        %v5175 = vadd.f32 %v5110, %v5174
        %5176 = vdwg.mxu0
        %5177 = vmatpush.msra.mxu0 %v1562
        %5178 = vmatpush.msra.mxu0 %v1556
        %5179 = vmatpush.msra.mxu0 %v1550
        %5180 = vmatpush.msra.mxu0 %v1544
        %5181 = vmatpush.msra.mxu0 %v1538
        %5182 = vmatpush.msra.mxu0 %v1532
        %5183 = vmatpush.msra.mxu0 %v1526
        %5184 = vmatpush.msra.mxu0 %v1520
        %5185 = vmatpush.msra.mxu0 %v1514
        %5186 = vmatpush.msra.mxu0 %v1508
        %5187 = vmatpush.msra.mxu0 %v1502
        %5188 = vmatpush.msra.mxu0 %v1496
        %5189 = vmatpush.msra.mxu0 %v1490
        %5190 = vmatpush.msra.mxu0 %v1484
        %5191 = vmatpush.msra.mxu0 %v1478
        %5192 = vmatpush.msra.mxu0 %v1472
        %5193 = vmatmul.f32.gmra.mxu0 %v4388
        %v5194 = vpop.f32.mrf.mxu0
        %v5195 = vadd.f32 %v5130, %v5194
        %5196 = vmatmul.f32.gmra.mxu0 %v4392
        %v5197 = vpop.f32.mrf.mxu0
        %v5198 = vadd.f32 %v5133, %v5197
        %5199 = vmatmul.f32.gmra.mxu0 %v4396
        %v5200 = vpop.f32.mrf.mxu0
        %v5201 = vadd.f32 %v5136, %v5200
        %5202 = vmatmul.f32.gmra.mxu0 %v4400
        %v5203 = vpop.f32.mrf.mxu0
        %v5204 = vadd.f32 %v5139, %v5203
        %5205 = vmatmul.f32.gmra.mxu0 %v4404
        %v5206 = vpop.f32.mrf.mxu0
        %v5207 = vadd.f32 %v5142, %v5206
        %5208 = vmatmul.f32.gmra.mxu0 %v4408
        %v5209 = vpop.f32.mrf.mxu0
        %v5210 = vadd.f32 %v5145, %v5209
        %5211 = vmatmul.f32.gmra.mxu0 %v4412
        %v5212 = vpop.f32.mrf.mxu0
        %v5213 = vadd.f32 %v5148, %v5212
        %5214 = vmatmul.f32.gmra.mxu0 %v4416
        %v5215 = vpop.f32.mrf.mxu0
        %v5216 = vadd.f32 %v5151, %v5215
        %5217 = vmatmul.f32.gmra.mxu0 %v4420
        %v5218 = vpop.f32.mrf.mxu0
        %v5219 = vadd.f32 %v5154, %v5218
        %5220 = vmatmul.f32.gmra.mxu0 %v4424
        %v5221 = vpop.f32.mrf.mxu0
        %v5222 = vadd.f32 %v5157, %v5221
        %5223 = vmatmul.f32.gmra.mxu0 %v4428
        %v5224 = vpop.f32.mrf.mxu0
        %v5225 = vadd.f32 %v5160, %v5224
        %5226 = vmatmul.f32.gmra.mxu0 %v4432
        %v5227 = vpop.f32.mrf.mxu0
        %v5228 = vadd.f32 %v5163, %v5227
        %5229 = vmatmul.f32.gmra.mxu0 %v4436
        %v5230 = vpop.f32.mrf.mxu0
        %v5231 = vadd.f32 %v5166, %v5230
        %5232 = vmatmul.f32.gmra.mxu0 %v4440
        %v5233 = vpop.f32.mrf.mxu0
        %v5234 = vadd.f32 %v5169, %v5233
        %5235 = vmatmul.f32.gmra.mxu0 %v4444
        %v5236 = vpop.f32.mrf.mxu0
        %v5237 = vadd.f32 %v5172, %v5236
        %5238 = vmatmul.f32.gmra.mxu0 %v4448
        %v5239 = vpop.f32.mrf.mxu0
        %v5240 = vadd.f32 %v5175, %v5239
        %5241 = vdwg.mxu0
        %5242 = vmatpush.msra.mxu0 %v1275
        %5243 = vmatpush.msra.mxu0 %v1269
        %5244 = vmatpush.msra.mxu0 %v1263
        %5245 = vmatpush.msra.mxu0 %v1257
        %5246 = vmatpush.msra.mxu0 %v1251
        %5247 = vmatpush.msra.mxu0 %v1245
        %5248 = vmatpush.msra.mxu0 %v1239
        %5249 = vmatpush.msra.mxu0 %v1233
        %5250 = vmatpush.msra.mxu0 %v1227
        %5251 = vmatpush.msra.mxu0 %v1221
        %5252 = vmatpush.msra.mxu0 %v1215
        %5253 = vmatpush.msra.mxu0 %v1209
        %5254 = vmatpush.msra.mxu0 %v1203
        %5255 = vmatpush.msra.mxu0 %v1197
        %5256 = vmatpush.msra.mxu0 %v1191
        %5257 = vmatpush.msra.mxu0 %v1185
        %5258 = vmatmul.f32.gmra.mxu0 %v4385
        %v5259 = vpop.f32.mrf.mxu0
        %v5260 = vadd.f32 %v4453, %v5259
        %5261 = vmatmul.f32.gmra.mxu0 %v4389
        %v5262 = vpop.f32.mrf.mxu0
        %v5263 = vadd.f32 %v4453, %v5262
        %5264 = vmatmul.f32.gmra.mxu0 %v4393
        %v5265 = vpop.f32.mrf.mxu0
        %v5266 = vadd.f32 %v4453, %v5265
        %5267 = vmatmul.f32.gmra.mxu0 %v4397
        %v5268 = vpop.f32.mrf.mxu0
        %v5269 = vadd.f32 %v4453, %v5268
        %5270 = vmatmul.f32.gmra.mxu0 %v4401
        %v5271 = vpop.f32.mrf.mxu0
        %v5272 = vadd.f32 %v4453, %v5271
        %5273 = vmatmul.f32.gmra.mxu0 %v4405
        %v5274 = vpop.f32.mrf.mxu0
        %v5275 = vadd.f32 %v4453, %v5274
        %5276 = vmatmul.f32.gmra.mxu0 %v4409
        %v5277 = vpop.f32.mrf.mxu0
        %v5278 = vadd.f32 %v4453, %v5277
        %5279 = vmatmul.f32.gmra.mxu0 %v4413
        %v5280 = vpop.f32.mrf.mxu0
        %v5281 = vadd.f32 %v4453, %v5280
        %5282 = vmatmul.f32.gmra.mxu0 %v4417
        %v5283 = vpop.f32.mrf.mxu0
        %v5284 = vadd.f32 %v4453, %v5283
        %5285 = vmatmul.f32.gmra.mxu0 %v4421
        %v5286 = vpop.f32.mrf.mxu0
        %v5287 = vadd.f32 %v4453, %v5286
        %5288 = vmatmul.f32.gmra.mxu0 %v4425
        %v5289 = vpop.f32.mrf.mxu0
        %v5290 = vadd.f32 %v4453, %v5289
        %5291 = vmatmul.f32.gmra.mxu0 %v4429
        %v5292 = vpop.f32.mrf.mxu0
        %v5293 = vadd.f32 %v4453, %v5292
        %5294 = vmatmul.f32.gmra.mxu0 %v4433
        %v5295 = vpop.f32.mrf.mxu0
        %v5296 = vadd.f32 %v4453, %v5295
        %5297 = vmatmul.f32.gmra.mxu0 %v4437
        %v5298 = vpop.f32.mrf.mxu0
        %v5299 = vadd.f32 %v4453, %v5298
        %5300 = vmatmul.f32.gmra.mxu0 %v4441
        %v5301 = vpop.f32.mrf.mxu0
        %v5302 = vadd.f32 %v4453, %v5301
        %5303 = vmatmul.f32.gmra.mxu0 %v4445
        %v5304 = vpop.f32.mrf.mxu0
        %v5305 = vadd.f32 %v4453, %v5304
        %5306 = vdwg.mxu0
        %5307 = vmatpush.msra.mxu0 %v1371
        %5308 = vmatpush.msra.mxu0 %v1365
        %5309 = vmatpush.msra.mxu0 %v1359
        %5310 = vmatpush.msra.mxu0 %v1353
        %5311 = vmatpush.msra.mxu0 %v1347
        %5312 = vmatpush.msra.mxu0 %v1341
        %5313 = vmatpush.msra.mxu0 %v1335
        %5314 = vmatpush.msra.mxu0 %v1329
        %5315 = vmatpush.msra.mxu0 %v1323
        %5316 = vmatpush.msra.mxu0 %v1317
        %5317 = vmatpush.msra.mxu0 %v1311
        %5318 = vmatpush.msra.mxu0 %v1305
        %5319 = vmatpush.msra.mxu0 %v1299
        %5320 = vmatpush.msra.mxu0 %v1293
        %5321 = vmatpush.msra.mxu0 %v1287
        %5322 = vmatpush.msra.mxu0 %v1281
        %5323 = vmatmul.f32.gmra.mxu0 %v4386
        %v5324 = vpop.f32.mrf.mxu0
        %v5325 = vadd.f32 %v5260, %v5324
        %5326 = vmatmul.f32.gmra.mxu0 %v4390
        %v5327 = vpop.f32.mrf.mxu0
        %v5328 = vadd.f32 %v5263, %v5327
        %5329 = vmatmul.f32.gmra.mxu0 %v4394
        %v5330 = vpop.f32.mrf.mxu0
        %v5331 = vadd.f32 %v5266, %v5330
        %5332 = vmatmul.f32.gmra.mxu0 %v4398
        %v5333 = vpop.f32.mrf.mxu0
        %v5334 = vadd.f32 %v5269, %v5333
        %5335 = vmatmul.f32.gmra.mxu0 %v4402
        %v5336 = vpop.f32.mrf.mxu0
        %v5337 = vadd.f32 %v5272, %v5336
        %5338 = vmatmul.f32.gmra.mxu0 %v4406
        %v5339 = vpop.f32.mrf.mxu0
        %v5340 = vadd.f32 %v5275, %v5339
        %5341 = vmatmul.f32.gmra.mxu0 %v4410
        %v5342 = vpop.f32.mrf.mxu0
        %v5343 = vadd.f32 %v5278, %v5342
        %5344 = vmatmul.f32.gmra.mxu0 %v4414
        %v5345 = vpop.f32.mrf.mxu0
        %v5346 = vadd.f32 %v5281, %v5345
        %5347 = vmatmul.f32.gmra.mxu0 %v4418
        %v5348 = vpop.f32.mrf.mxu0
        %v5349 = vadd.f32 %v5284, %v5348
        %5350 = vmatmul.f32.gmra.mxu0 %v4422
        %v5351 = vpop.f32.mrf.mxu0
        %v5352 = vadd.f32 %v5287, %v5351
        %5353 = vmatmul.f32.gmra.mxu0 %v4426
        %v5354 = vpop.f32.mrf.mxu0
        %v5355 = vadd.f32 %v5290, %v5354
        %5356 = vmatmul.f32.gmra.mxu0 %v4430
        %v5357 = vpop.f32.mrf.mxu0
        %v5358 = vadd.f32 %v5293, %v5357
        %5359 = vmatmul.f32.gmra.mxu0 %v4434
        %v5360 = vpop.f32.mrf.mxu0
        %v5361 = vadd.f32 %v5296, %v5360
        %5362 = vmatmul.f32.gmra.mxu0 %v4438
        %v5363 = vpop.f32.mrf.mxu0
        %v5364 = vadd.f32 %v5299, %v5363
        %5365 = vmatmul.f32.gmra.mxu0 %v4442
        %v5366 = vpop.f32.mrf.mxu0
        %v5367 = vadd.f32 %v5302, %v5366
        %5368 = vmatmul.f32.gmra.mxu0 %v4446
        %v5369 = vpop.f32.mrf.mxu0
        %v5370 = vadd.f32 %v5305, %v5369
        %5371 = vdwg.mxu0
        %5372 = vmatpush.msra.mxu0 %v1467
        %5373 = vmatpush.msra.mxu0 %v1461
        %5374 = vmatpush.msra.mxu0 %v1455
        %5375 = vmatpush.msra.mxu0 %v1449
        %5376 = vmatpush.msra.mxu0 %v1443
        %5377 = vmatpush.msra.mxu0 %v1437
        %5378 = vmatpush.msra.mxu0 %v1431
        %5379 = vmatpush.msra.mxu0 %v1425
        %5380 = vmatpush.msra.mxu0 %v1419
        %5381 = vmatpush.msra.mxu0 %v1413
        %5382 = vmatpush.msra.mxu0 %v1407
        %5383 = vmatpush.msra.mxu0 %v1401
        %5384 = vmatpush.msra.mxu0 %v1395
        %5385 = vmatpush.msra.mxu0 %v1389
        %5386 = vmatpush.msra.mxu0 %v1383
        %5387 = vmatpush.msra.mxu0 %v1377
        %5388 = vmatmul.f32.gmra.mxu0 %v4387
        %v5389 = vpop.f32.mrf.mxu0
        %v5390 = vadd.f32 %v5325, %v5389
        %5391 = vmatmul.f32.gmra.mxu0 %v4391
        %v5392 = vpop.f32.mrf.mxu0
        %v5393 = vadd.f32 %v5328, %v5392
        %5394 = vmatmul.f32.gmra.mxu0 %v4395
        %v5395 = vpop.f32.mrf.mxu0
        %v5396 = vadd.f32 %v5331, %v5395
        %5397 = vmatmul.f32.gmra.mxu0 %v4399
        %v5398 = vpop.f32.mrf.mxu0
        %v5399 = vadd.f32 %v5334, %v5398
        %5400 = vmatmul.f32.gmra.mxu0 %v4403
        %v5401 = vpop.f32.mrf.mxu0
        %v5402 = vadd.f32 %v5337, %v5401
        %5403 = vmatmul.f32.gmra.mxu0 %v4407
        %v5404 = vpop.f32.mrf.mxu0
        %v5405 = vadd.f32 %v5340, %v5404
        %5406 = vmatmul.f32.gmra.mxu0 %v4411
        %v5407 = vpop.f32.mrf.mxu0
        %v5408 = vadd.f32 %v5343, %v5407
        %5409 = vmatmul.f32.gmra.mxu0 %v4415
        %v5410 = vpop.f32.mrf.mxu0
        %v5411 = vadd.f32 %v5346, %v5410
        %5412 = vmatmul.f32.gmra.mxu0 %v4419
        %v5413 = vpop.f32.mrf.mxu0
        %v5414 = vadd.f32 %v5349, %v5413
        %5415 = vmatmul.f32.gmra.mxu0 %v4423
        %v5416 = vpop.f32.mrf.mxu0
        %v5417 = vadd.f32 %v5352, %v5416
        %5418 = vmatmul.f32.gmra.mxu0 %v4427
        %v5419 = vpop.f32.mrf.mxu0
        %v5420 = vadd.f32 %v5355, %v5419
        %5421 = vmatmul.f32.gmra.mxu0 %v4431
        %v5422 = vpop.f32.mrf.mxu0
        %v5423 = vadd.f32 %v5358, %v5422
        %5424 = vmatmul.f32.gmra.mxu0 %v4435
        %v5425 = vpop.f32.mrf.mxu0
        %v5426 = vadd.f32 %v5361, %v5425
        %5427 = vmatmul.f32.gmra.mxu0 %v4439
        %v5428 = vpop.f32.mrf.mxu0
        %v5429 = vadd.f32 %v5364, %v5428
        %5430 = vmatmul.f32.gmra.mxu0 %v4443
        %v5431 = vpop.f32.mrf.mxu0
        %v5432 = vadd.f32 %v5367, %v5431
        %5433 = vmatmul.f32.gmra.mxu0 %v4447
        %v5434 = vpop.f32.mrf.mxu0
        %v5435 = vadd.f32 %v5370, %v5434
        %5436 = vdwg.mxu0
        %5437 = vmatpush.msra.mxu0 %v1563
        %5438 = vmatpush.msra.mxu0 %v1557
        %5439 = vmatpush.msra.mxu0 %v1551
        %5440 = vmatpush.msra.mxu0 %v1545
        %5441 = vmatpush.msra.mxu0 %v1539
        %5442 = vmatpush.msra.mxu0 %v1533
        %5443 = vmatpush.msra.mxu0 %v1527
        %5444 = vmatpush.msra.mxu0 %v1521
        %5445 = vmatpush.msra.mxu0 %v1515
        %5446 = vmatpush.msra.mxu0 %v1509
        %5447 = vmatpush.msra.mxu0 %v1503
        %5448 = vmatpush.msra.mxu0 %v1497
        %5449 = vmatpush.msra.mxu0 %v1491
        %5450 = vmatpush.msra.mxu0 %v1485
        %5451 = vmatpush.msra.mxu0 %v1479
        %5452 = vmatpush.msra.mxu0 %v1473
        %5453 = vmatmul.f32.gmra.mxu0 %v4388
        %v5454 = vpop.f32.mrf.mxu0
        %v5455 = vadd.f32 %v5390, %v5454
        %5456 = vmatmul.f32.gmra.mxu0 %v4392
        %v5457 = vpop.f32.mrf.mxu0
        %v5458 = vadd.f32 %v5393, %v5457
        %5459 = vmatmul.f32.gmra.mxu0 %v4396
        %v5460 = vpop.f32.mrf.mxu0
        %v5461 = vadd.f32 %v5396, %v5460
        %5462 = vmatmul.f32.gmra.mxu0 %v4400
        %v5463 = vpop.f32.mrf.mxu0
        %v5464 = vadd.f32 %v5399, %v5463
        %5465 = vmatmul.f32.gmra.mxu0 %v4404
        %v5466 = vpop.f32.mrf.mxu0
        %v5467 = vadd.f32 %v5402, %v5466
        %5468 = vmatmul.f32.gmra.mxu0 %v4408
        %v5469 = vpop.f32.mrf.mxu0
        %v5470 = vadd.f32 %v5405, %v5469
        %5471 = vmatmul.f32.gmra.mxu0 %v4412
        %v5472 = vpop.f32.mrf.mxu0
        %v5473 = vadd.f32 %v5408, %v5472
        %5474 = vmatmul.f32.gmra.mxu0 %v4416
        %v5475 = vpop.f32.mrf.mxu0
        %v5476 = vadd.f32 %v5411, %v5475
        %5477 = vmatmul.f32.gmra.mxu0 %v4420
        %v5478 = vpop.f32.mrf.mxu0
        %v5479 = vadd.f32 %v5414, %v5478
        %5480 = vmatmul.f32.gmra.mxu0 %v4424
        %v5481 = vpop.f32.mrf.mxu0
        %v5482 = vadd.f32 %v5417, %v5481
        %5483 = vmatmul.f32.gmra.mxu0 %v4428
        %v5484 = vpop.f32.mrf.mxu0
        %v5485 = vadd.f32 %v5420, %v5484
        %5486 = vmatmul.f32.gmra.mxu0 %v4432
        %v5487 = vpop.f32.mrf.mxu0
        %v5488 = vadd.f32 %v5423, %v5487
        %5489 = vmatmul.f32.gmra.mxu0 %v4436
        %v5490 = vpop.f32.mrf.mxu0
        %v5491 = vadd.f32 %v5426, %v5490
        %5492 = vmatmul.f32.gmra.mxu0 %v4440
        %v5493 = vpop.f32.mrf.mxu0
        %v5494 = vadd.f32 %v5429, %v5493
        %5495 = vmatmul.f32.gmra.mxu0 %v4444
        %v5496 = vpop.f32.mrf.mxu0
        %v5497 = vadd.f32 %v5432, %v5496
        %5498 = vmatmul.f32.gmra.mxu0 %v4448
        %v5499 = vpop.f32.mrf.mxu0
        %v5500 = vadd.f32 %v5435, %v5499
        %5501 = vdwg.mxu0
        %5502 = vmatpush.msra.mxu0 %v1276
        %5503 = vmatpush.msra.mxu0 %v1270
        %5504 = vmatpush.msra.mxu0 %v1264
        %5505 = vmatpush.msra.mxu0 %v1258
        %5506 = vmatpush.msra.mxu0 %v1252
        %5507 = vmatpush.msra.mxu0 %v1246
        %5508 = vmatpush.msra.mxu0 %v1240
        %5509 = vmatpush.msra.mxu0 %v1234
        %5510 = vmatpush.msra.mxu0 %v1228
        %5511 = vmatpush.msra.mxu0 %v1222
        %5512 = vmatpush.msra.mxu0 %v1216
        %5513 = vmatpush.msra.mxu0 %v1210
        %5514 = vmatpush.msra.mxu0 %v1204
        %5515 = vmatpush.msra.mxu0 %v1198
        %5516 = vmatpush.msra.mxu0 %v1192
        %5517 = vmatpush.msra.mxu0 %v1186
        %5518 = vmatmul.f32.gmra.mxu0 %v4385
        %v5519 = vpop.f32.mrf.mxu0
        %v5520 = vadd.f32 %v4454, %v5519
        %5521 = vmatmul.f32.gmra.mxu0 %v4389
        %v5522 = vpop.f32.mrf.mxu0
        %v5523 = vadd.f32 %v4454, %v5522
        %5524 = vmatmul.f32.gmra.mxu0 %v4393
        %v5525 = vpop.f32.mrf.mxu0
        %v5526 = vadd.f32 %v4454, %v5525
        %5527 = vmatmul.f32.gmra.mxu0 %v4397
        %v5528 = vpop.f32.mrf.mxu0
        %v5529 = vadd.f32 %v4454, %v5528
        %5530 = vmatmul.f32.gmra.mxu0 %v4401
        %v5531 = vpop.f32.mrf.mxu0
        %v5532 = vadd.f32 %v4454, %v5531
        %5533 = vmatmul.f32.gmra.mxu0 %v4405
        %v5534 = vpop.f32.mrf.mxu0
        %v5535 = vadd.f32 %v4454, %v5534
        %5536 = vmatmul.f32.gmra.mxu0 %v4409
        %v5537 = vpop.f32.mrf.mxu0
        %v5538 = vadd.f32 %v4454, %v5537
        %5539 = vmatmul.f32.gmra.mxu0 %v4413
        %v5540 = vpop.f32.mrf.mxu0
        %v5541 = vadd.f32 %v4454, %v5540
        %5542 = vmatmul.f32.gmra.mxu0 %v4417
        %v5543 = vpop.f32.mrf.mxu0
        %v5544 = vadd.f32 %v4454, %v5543
        %5545 = vmatmul.f32.gmra.mxu0 %v4421
        %v5546 = vpop.f32.mrf.mxu0
        %v5547 = vadd.f32 %v4454, %v5546
        %5548 = vmatmul.f32.gmra.mxu0 %v4425
        %v5549 = vpop.f32.mrf.mxu0
        %v5550 = vadd.f32 %v4454, %v5549
        %5551 = vmatmul.f32.gmra.mxu0 %v4429
        %v5552 = vpop.f32.mrf.mxu0
        %v5553 = vadd.f32 %v4454, %v5552
        %5554 = vmatmul.f32.gmra.mxu0 %v4433
        %v5555 = vpop.f32.mrf.mxu0
        %v5556 = vadd.f32 %v4454, %v5555
        %5557 = vmatmul.f32.gmra.mxu0 %v4437
        %v5558 = vpop.f32.mrf.mxu0
        %v5559 = vadd.f32 %v4454, %v5558
        %5560 = vmatmul.f32.gmra.mxu0 %v4441
        %v5561 = vpop.f32.mrf.mxu0
        %v5562 = vadd.f32 %v4454, %v5561
        %5563 = vmatmul.f32.gmra.mxu0 %v4445
        %v5564 = vpop.f32.mrf.mxu0
        %v5565 = vadd.f32 %v4454, %v5564
        %5566 = vdwg.mxu0
        %5567 = vmatpush.msra.mxu0 %v1372
        %5568 = vmatpush.msra.mxu0 %v1366
        %5569 = vmatpush.msra.mxu0 %v1360
        %5570 = vmatpush.msra.mxu0 %v1354
        %5571 = vmatpush.msra.mxu0 %v1348
        %5572 = vmatpush.msra.mxu0 %v1342
        %5573 = vmatpush.msra.mxu0 %v1336
        %5574 = vmatpush.msra.mxu0 %v1330
        %5575 = vmatpush.msra.mxu0 %v1324
        %5576 = vmatpush.msra.mxu0 %v1318
        %5577 = vmatpush.msra.mxu0 %v1312
        %5578 = vmatpush.msra.mxu0 %v1306
        %5579 = vmatpush.msra.mxu0 %v1300
        %5580 = vmatpush.msra.mxu0 %v1294
        %5581 = vmatpush.msra.mxu0 %v1288
        %5582 = vmatpush.msra.mxu0 %v1282
        %5583 = vmatmul.f32.gmra.mxu0 %v4386
        %v5584 = vpop.f32.mrf.mxu0
        %v5585 = vadd.f32 %v5520, %v5584
        %5586 = vmatmul.f32.gmra.mxu0 %v4390
        %v5587 = vpop.f32.mrf.mxu0
        %v5588 = vadd.f32 %v5523, %v5587
        %5589 = vmatmul.f32.gmra.mxu0 %v4394
        %v5590 = vpop.f32.mrf.mxu0
        %v5591 = vadd.f32 %v5526, %v5590
        %5592 = vmatmul.f32.gmra.mxu0 %v4398
        %v5593 = vpop.f32.mrf.mxu0
        %v5594 = vadd.f32 %v5529, %v5593
        %5595 = vmatmul.f32.gmra.mxu0 %v4402
        %v5596 = vpop.f32.mrf.mxu0
        %v5597 = vadd.f32 %v5532, %v5596
        %5598 = vmatmul.f32.gmra.mxu0 %v4406
        %v5599 = vpop.f32.mrf.mxu0
        %v5600 = vadd.f32 %v5535, %v5599
        %5601 = vmatmul.f32.gmra.mxu0 %v4410
        %v5602 = vpop.f32.mrf.mxu0
        %v5603 = vadd.f32 %v5538, %v5602
        %5604 = vmatmul.f32.gmra.mxu0 %v4414
        %v5605 = vpop.f32.mrf.mxu0
        %v5606 = vadd.f32 %v5541, %v5605
        %5607 = vmatmul.f32.gmra.mxu0 %v4418
        %v5608 = vpop.f32.mrf.mxu0
        %v5609 = vadd.f32 %v5544, %v5608
        %5610 = vmatmul.f32.gmra.mxu0 %v4422
        %v5611 = vpop.f32.mrf.mxu0
        %v5612 = vadd.f32 %v5547, %v5611
        %5613 = vmatmul.f32.gmra.mxu0 %v4426
        %v5614 = vpop.f32.mrf.mxu0
        %v5615 = vadd.f32 %v5550, %v5614
        %5616 = vmatmul.f32.gmra.mxu0 %v4430
        %v5617 = vpop.f32.mrf.mxu0
        %v5618 = vadd.f32 %v5553, %v5617
        %5619 = vmatmul.f32.gmra.mxu0 %v4434
        %v5620 = vpop.f32.mrf.mxu0
        %v5621 = vadd.f32 %v5556, %v5620
        %5622 = vmatmul.f32.gmra.mxu0 %v4438
        %v5623 = vpop.f32.mrf.mxu0
        %v5624 = vadd.f32 %v5559, %v5623
        %5625 = vmatmul.f32.gmra.mxu0 %v4442
        %v5626 = vpop.f32.mrf.mxu0
        %v5627 = vadd.f32 %v5562, %v5626
        %5628 = vmatmul.f32.gmra.mxu0 %v4446
        %v5629 = vpop.f32.mrf.mxu0
        %v5630 = vadd.f32 %v5565, %v5629
        %5631 = vdwg.mxu0
        %5632 = vmatpush.msra.mxu0 %v1468
        %5633 = vmatpush.msra.mxu0 %v1462
        %5634 = vmatpush.msra.mxu0 %v1456
        %5635 = vmatpush.msra.mxu0 %v1450
        %5636 = vmatpush.msra.mxu0 %v1444
        %5637 = vmatpush.msra.mxu0 %v1438
        %5638 = vmatpush.msra.mxu0 %v1432
        %5639 = vmatpush.msra.mxu0 %v1426
        %5640 = vmatpush.msra.mxu0 %v1420
        %5641 = vmatpush.msra.mxu0 %v1414
        %5642 = vmatpush.msra.mxu0 %v1408
        %5643 = vmatpush.msra.mxu0 %v1402
        %5644 = vmatpush.msra.mxu0 %v1396
        %5645 = vmatpush.msra.mxu0 %v1390
        %5646 = vmatpush.msra.mxu0 %v1384
        %5647 = vmatpush.msra.mxu0 %v1378
        %5648 = vmatmul.f32.gmra.mxu0 %v4387
        %v5649 = vpop.f32.mrf.mxu0
        %v5650 = vadd.f32 %v5585, %v5649
        %5651 = vmatmul.f32.gmra.mxu0 %v4391
        %v5652 = vpop.f32.mrf.mxu0
        %v5653 = vadd.f32 %v5588, %v5652
        %5654 = vmatmul.f32.gmra.mxu0 %v4395
        %v5655 = vpop.f32.mrf.mxu0
        %v5656 = vadd.f32 %v5591, %v5655
        %5657 = vmatmul.f32.gmra.mxu0 %v4399
        %v5658 = vpop.f32.mrf.mxu0
        %v5659 = vadd.f32 %v5594, %v5658
        %5660 = vmatmul.f32.gmra.mxu0 %v4403
        %v5661 = vpop.f32.mrf.mxu0
        %v5662 = vadd.f32 %v5597, %v5661
        %5663 = vmatmul.f32.gmra.mxu0 %v4407
        %v5664 = vpop.f32.mrf.mxu0
        %v5665 = vadd.f32 %v5600, %v5664
        %5666 = vmatmul.f32.gmra.mxu0 %v4411
        %v5667 = vpop.f32.mrf.mxu0
        %v5668 = vadd.f32 %v5603, %v5667
        %5669 = vmatmul.f32.gmra.mxu0 %v4415
        %v5670 = vpop.f32.mrf.mxu0
        %v5671 = vadd.f32 %v5606, %v5670
        %5672 = vmatmul.f32.gmra.mxu0 %v4419
        %v5673 = vpop.f32.mrf.mxu0
        %v5674 = vadd.f32 %v5609, %v5673
        %5675 = vmatmul.f32.gmra.mxu0 %v4423
        %v5676 = vpop.f32.mrf.mxu0
        %v5677 = vadd.f32 %v5612, %v5676
        %5678 = vmatmul.f32.gmra.mxu0 %v4427
        %v5679 = vpop.f32.mrf.mxu0
        %v5680 = vadd.f32 %v5615, %v5679
        %5681 = vmatmul.f32.gmra.mxu0 %v4431
        %v5682 = vpop.f32.mrf.mxu0
        %v5683 = vadd.f32 %v5618, %v5682
        %5684 = vmatmul.f32.gmra.mxu0 %v4435
        %v5685 = vpop.f32.mrf.mxu0
        %v5686 = vadd.f32 %v5621, %v5685
        %5687 = vmatmul.f32.gmra.mxu0 %v4439
        %v5688 = vpop.f32.mrf.mxu0
        %v5689 = vadd.f32 %v5624, %v5688
        %5690 = vmatmul.f32.gmra.mxu0 %v4443
        %v5691 = vpop.f32.mrf.mxu0
        %v5692 = vadd.f32 %v5627, %v5691
        %5693 = vmatmul.f32.gmra.mxu0 %v4447
        %v5694 = vpop.f32.mrf.mxu0
        %v5695 = vadd.f32 %v5630, %v5694
        %5696 = vdwg.mxu0
        %5697 = vmatpush.msra.mxu0 %v1564
        %5698 = vmatpush.msra.mxu0 %v1558
        %5699 = vmatpush.msra.mxu0 %v1552
        %5700 = vmatpush.msra.mxu0 %v1546
        %5701 = vmatpush.msra.mxu0 %v1540
        %5702 = vmatpush.msra.mxu0 %v1534
        %5703 = vmatpush.msra.mxu0 %v1528
        %5704 = vmatpush.msra.mxu0 %v1522
        %5705 = vmatpush.msra.mxu0 %v1516
        %5706 = vmatpush.msra.mxu0 %v1510
        %5707 = vmatpush.msra.mxu0 %v1504
        %5708 = vmatpush.msra.mxu0 %v1498
        %5709 = vmatpush.msra.mxu0 %v1492
        %5710 = vmatpush.msra.mxu0 %v1486
        %5711 = vmatpush.msra.mxu0 %v1480
        %5712 = vmatpush.msra.mxu0 %v1474
        %5713 = vmatmul.f32.gmra.mxu0 %v4388
        %v5714 = vpop.f32.mrf.mxu0
        %v5715 = vadd.f32 %v5650, %v5714
        %5716 = vmatmul.f32.gmra.mxu0 %v4392
        %v5717 = vpop.f32.mrf.mxu0
        %v5718 = vadd.f32 %v5653, %v5717
        %5719 = vmatmul.f32.gmra.mxu0 %v4396
        %v5720 = vpop.f32.mrf.mxu0
        %v5721 = vadd.f32 %v5656, %v5720
        %5722 = vmatmul.f32.gmra.mxu0 %v4400
        %v5723 = vpop.f32.mrf.mxu0
        %v5724 = vadd.f32 %v5659, %v5723
        %5725 = vmatmul.f32.gmra.mxu0 %v4404
        %v5726 = vpop.f32.mrf.mxu0
        %v5727 = vadd.f32 %v5662, %v5726
        %5728 = vmatmul.f32.gmra.mxu0 %v4408
        %v5729 = vpop.f32.mrf.mxu0
        %v5730 = vadd.f32 %v5665, %v5729
        %5731 = vmatmul.f32.gmra.mxu0 %v4412
        %v5732 = vpop.f32.mrf.mxu0
        %v5733 = vadd.f32 %v5668, %v5732
        %5734 = vmatmul.f32.gmra.mxu0 %v4416
        %v5735 = vpop.f32.mrf.mxu0
        %v5736 = vadd.f32 %v5671, %v5735
        %5737 = vmatmul.f32.gmra.mxu0 %v4420
        %v5738 = vpop.f32.mrf.mxu0
        %v5739 = vadd.f32 %v5674, %v5738
        %5740 = vmatmul.f32.gmra.mxu0 %v4424
        %v5741 = vpop.f32.mrf.mxu0
        %v5742 = vadd.f32 %v5677, %v5741
        %5743 = vmatmul.f32.gmra.mxu0 %v4428
        %v5744 = vpop.f32.mrf.mxu0
        %v5745 = vadd.f32 %v5680, %v5744
        %5746 = vmatmul.f32.gmra.mxu0 %v4432
        %v5747 = vpop.f32.mrf.mxu0
        %v5748 = vadd.f32 %v5683, %v5747
        %5749 = vmatmul.f32.gmra.mxu0 %v4436
        %v5750 = vpop.f32.mrf.mxu0
        %v5751 = vadd.f32 %v5686, %v5750
        %5752 = vmatmul.f32.gmra.mxu0 %v4440
        %v5753 = vpop.f32.mrf.mxu0
        %v5754 = vadd.f32 %v5689, %v5753
        %5755 = vmatmul.f32.gmra.mxu0 %v4444
        %v5756 = vpop.f32.mrf.mxu0
        %v5757 = vadd.f32 %v5692, %v5756
        %5758 = vmatmul.f32.gmra.mxu0 %v4448
        %v5759 = vpop.f32.mrf.mxu0
        %v5760 = vadd.f32 %v5695, %v5759
        %5761 = vdwg.mxu0
        %5762 = vmatpush.msra.mxu0 %v1277
        %5763 = vmatpush.msra.mxu0 %v1271
        %5764 = vmatpush.msra.mxu0 %v1265
        %5765 = vmatpush.msra.mxu0 %v1259
        %5766 = vmatpush.msra.mxu0 %v1253
        %5767 = vmatpush.msra.mxu0 %v1247
        %5768 = vmatpush.msra.mxu0 %v1241
        %5769 = vmatpush.msra.mxu0 %v1235
        %5770 = vmatpush.msra.mxu0 %v1229
        %5771 = vmatpush.msra.mxu0 %v1223
        %5772 = vmatpush.msra.mxu0 %v1217
        %5773 = vmatpush.msra.mxu0 %v1211
        %5774 = vmatpush.msra.mxu0 %v1205
        %5775 = vmatpush.msra.mxu0 %v1199
        %5776 = vmatpush.msra.mxu0 %v1193
        %5777 = vmatpush.msra.mxu0 %v1187
        %5778 = vmatmul.f32.gmra.mxu0 %v4385
        %v5779 = vpop.f32.mrf.mxu0
        %v5780 = vadd.f32 %v4455, %v5779
        %5781 = vmatmul.f32.gmra.mxu0 %v4389
        %v5782 = vpop.f32.mrf.mxu0
        %v5783 = vadd.f32 %v4455, %v5782
        %5784 = vmatmul.f32.gmra.mxu0 %v4393
        %v5785 = vpop.f32.mrf.mxu0
        %v5786 = vadd.f32 %v4455, %v5785
        %5787 = vmatmul.f32.gmra.mxu0 %v4397
        %v5788 = vpop.f32.mrf.mxu0
        %v5789 = vadd.f32 %v4455, %v5788
        %5790 = vmatmul.f32.gmra.mxu0 %v4401
        %v5791 = vpop.f32.mrf.mxu0
        %v5792 = vadd.f32 %v4455, %v5791
        %5793 = vmatmul.f32.gmra.mxu0 %v4405
        %v5794 = vpop.f32.mrf.mxu0
        %v5795 = vadd.f32 %v4455, %v5794
        %5796 = vmatmul.f32.gmra.mxu0 %v4409
        %v5797 = vpop.f32.mrf.mxu0
        %v5798 = vadd.f32 %v4455, %v5797
        %5799 = vmatmul.f32.gmra.mxu0 %v4413
        %v5800 = vpop.f32.mrf.mxu0
        %v5801 = vadd.f32 %v4455, %v5800
        %5802 = vmatmul.f32.gmra.mxu0 %v4417
        %v5803 = vpop.f32.mrf.mxu0
        %v5804 = vadd.f32 %v4455, %v5803
        %5805 = vmatmul.f32.gmra.mxu0 %v4421
        %v5806 = vpop.f32.mrf.mxu0
        %v5807 = vadd.f32 %v4455, %v5806
        %5808 = vmatmul.f32.gmra.mxu0 %v4425
        %v5809 = vpop.f32.mrf.mxu0
        %v5810 = vadd.f32 %v4455, %v5809
        %5811 = vmatmul.f32.gmra.mxu0 %v4429
        %v5812 = vpop.f32.mrf.mxu0
        %v5813 = vadd.f32 %v4455, %v5812
        %5814 = vmatmul.f32.gmra.mxu0 %v4433
        %v5815 = vpop.f32.mrf.mxu0
        %v5816 = vadd.f32 %v4455, %v5815
        %5817 = vmatmul.f32.gmra.mxu0 %v4437
        %v5818 = vpop.f32.mrf.mxu0
        %v5819 = vadd.f32 %v4455, %v5818
        %5820 = vmatmul.f32.gmra.mxu0 %v4441
        %v5821 = vpop.f32.mrf.mxu0
        %v5822 = vadd.f32 %v4455, %v5821
        %5823 = vmatmul.f32.gmra.mxu0 %v4445
        %v5824 = vpop.f32.mrf.mxu0
        %v5825 = vadd.f32 %v4455, %v5824
        %5826 = vdwg.mxu0
        %5827 = vmatpush.msra.mxu0 %v1373
        %5828 = vmatpush.msra.mxu0 %v1367
        %5829 = vmatpush.msra.mxu0 %v1361
        %5830 = vmatpush.msra.mxu0 %v1355
        %5831 = vmatpush.msra.mxu0 %v1349
        %5832 = vmatpush.msra.mxu0 %v1343
        %5833 = vmatpush.msra.mxu0 %v1337
        %5834 = vmatpush.msra.mxu0 %v1331
        %5835 = vmatpush.msra.mxu0 %v1325
        %5836 = vmatpush.msra.mxu0 %v1319
        %5837 = vmatpush.msra.mxu0 %v1313
        %5838 = vmatpush.msra.mxu0 %v1307
        %5839 = vmatpush.msra.mxu0 %v1301
        %5840 = vmatpush.msra.mxu0 %v1295
        %5841 = vmatpush.msra.mxu0 %v1289
        %5842 = vmatpush.msra.mxu0 %v1283
        %5843 = vmatmul.f32.gmra.mxu0 %v4386
        %v5844 = vpop.f32.mrf.mxu0
        %v5845 = vadd.f32 %v5780, %v5844
        %5846 = vmatmul.f32.gmra.mxu0 %v4390
        %v5847 = vpop.f32.mrf.mxu0
        %v5848 = vadd.f32 %v5783, %v5847
        %5849 = vmatmul.f32.gmra.mxu0 %v4394
        %v5850 = vpop.f32.mrf.mxu0
        %v5851 = vadd.f32 %v5786, %v5850
        %5852 = vmatmul.f32.gmra.mxu0 %v4398
        %v5853 = vpop.f32.mrf.mxu0
        %v5854 = vadd.f32 %v5789, %v5853
        %5855 = vmatmul.f32.gmra.mxu0 %v4402
        %v5856 = vpop.f32.mrf.mxu0
        %v5857 = vadd.f32 %v5792, %v5856
        %5858 = vmatmul.f32.gmra.mxu0 %v4406
        %v5859 = vpop.f32.mrf.mxu0
        %v5860 = vadd.f32 %v5795, %v5859
        %5861 = vmatmul.f32.gmra.mxu0 %v4410
        %v5862 = vpop.f32.mrf.mxu0
        %v5863 = vadd.f32 %v5798, %v5862
        %5864 = vmatmul.f32.gmra.mxu0 %v4414
        %v5865 = vpop.f32.mrf.mxu0
        %v5866 = vadd.f32 %v5801, %v5865
        %5867 = vmatmul.f32.gmra.mxu0 %v4418
        %v5868 = vpop.f32.mrf.mxu0
        %v5869 = vadd.f32 %v5804, %v5868
        %5870 = vmatmul.f32.gmra.mxu0 %v4422
        %v5871 = vpop.f32.mrf.mxu0
        %v5872 = vadd.f32 %v5807, %v5871
        %5873 = vmatmul.f32.gmra.mxu0 %v4426
        %v5874 = vpop.f32.mrf.mxu0
        %v5875 = vadd.f32 %v5810, %v5874
        %5876 = vmatmul.f32.gmra.mxu0 %v4430
        %v5877 = vpop.f32.mrf.mxu0
        %v5878 = vadd.f32 %v5813, %v5877
        %5879 = vmatmul.f32.gmra.mxu0 %v4434
        %v5880 = vpop.f32.mrf.mxu0
        %v5881 = vadd.f32 %v5816, %v5880
        %5882 = vmatmul.f32.gmra.mxu0 %v4438
        %v5883 = vpop.f32.mrf.mxu0
        %v5884 = vadd.f32 %v5819, %v5883
        %5885 = vmatmul.f32.gmra.mxu0 %v4442
        %v5886 = vpop.f32.mrf.mxu0
        %v5887 = vadd.f32 %v5822, %v5886
        %5888 = vmatmul.f32.gmra.mxu0 %v4446
        %v5889 = vpop.f32.mrf.mxu0
        %v5890 = vadd.f32 %v5825, %v5889
        %5891 = vdwg.mxu0
        %5892 = vmatpush.msra.mxu0 %v1469
        %5893 = vmatpush.msra.mxu0 %v1463
        %5894 = vmatpush.msra.mxu0 %v1457
        %5895 = vmatpush.msra.mxu0 %v1451
        %5896 = vmatpush.msra.mxu0 %v1445
        %5897 = vmatpush.msra.mxu0 %v1439
        %5898 = vmatpush.msra.mxu0 %v1433
        %5899 = vmatpush.msra.mxu0 %v1427
        %5900 = vmatpush.msra.mxu0 %v1421
        %5901 = vmatpush.msra.mxu0 %v1415
        %5902 = vmatpush.msra.mxu0 %v1409
        %5903 = vmatpush.msra.mxu0 %v1403
        %5904 = vmatpush.msra.mxu0 %v1397
        %5905 = vmatpush.msra.mxu0 %v1391
        %5906 = vmatpush.msra.mxu0 %v1385
        %5907 = vmatpush.msra.mxu0 %v1379
        %5908 = vmatmul.f32.gmra.mxu0 %v4387
        %v5909 = vpop.f32.mrf.mxu0
        %v5910 = vadd.f32 %v5845, %v5909
        %5911 = vmatmul.f32.gmra.mxu0 %v4391
        %v5912 = vpop.f32.mrf.mxu0
        %v5913 = vadd.f32 %v5848, %v5912
        %5914 = vmatmul.f32.gmra.mxu0 %v4395
        %v5915 = vpop.f32.mrf.mxu0
        %v5916 = vadd.f32 %v5851, %v5915
        %5917 = vmatmul.f32.gmra.mxu0 %v4399
        %v5918 = vpop.f32.mrf.mxu0
        %v5919 = vadd.f32 %v5854, %v5918
        %5920 = vmatmul.f32.gmra.mxu0 %v4403
        %v5921 = vpop.f32.mrf.mxu0
        %v5922 = vadd.f32 %v5857, %v5921
        %5923 = vmatmul.f32.gmra.mxu0 %v4407
        %v5924 = vpop.f32.mrf.mxu0
        %v5925 = vadd.f32 %v5860, %v5924
        %5926 = vmatmul.f32.gmra.mxu0 %v4411
        %v5927 = vpop.f32.mrf.mxu0
        %v5928 = vadd.f32 %v5863, %v5927
        %5929 = vmatmul.f32.gmra.mxu0 %v4415
        %v5930 = vpop.f32.mrf.mxu0
        %v5931 = vadd.f32 %v5866, %v5930
        %5932 = vmatmul.f32.gmra.mxu0 %v4419
        %v5933 = vpop.f32.mrf.mxu0
        %v5934 = vadd.f32 %v5869, %v5933
        %5935 = vmatmul.f32.gmra.mxu0 %v4423
        %v5936 = vpop.f32.mrf.mxu0
        %v5937 = vadd.f32 %v5872, %v5936
        %5938 = vmatmul.f32.gmra.mxu0 %v4427
        %v5939 = vpop.f32.mrf.mxu0
        %v5940 = vadd.f32 %v5875, %v5939
        %5941 = vmatmul.f32.gmra.mxu0 %v4431
        %v5942 = vpop.f32.mrf.mxu0
        %v5943 = vadd.f32 %v5878, %v5942
        %5944 = vmatmul.f32.gmra.mxu0 %v4435
        %v5945 = vpop.f32.mrf.mxu0
        %v5946 = vadd.f32 %v5881, %v5945
        %5947 = vmatmul.f32.gmra.mxu0 %v4439
        %v5948 = vpop.f32.mrf.mxu0
        %v5949 = vadd.f32 %v5884, %v5948
        %5950 = vmatmul.f32.gmra.mxu0 %v4443
        %v5951 = vpop.f32.mrf.mxu0
        %v5952 = vadd.f32 %v5887, %v5951
        %5953 = vmatmul.f32.gmra.mxu0 %v4447
        %v5954 = vpop.f32.mrf.mxu0
        %v5955 = vadd.f32 %v5890, %v5954
        %5956 = vdwg.mxu0
        %5957 = vmatpush.msra.mxu0 %v1565
        %5958 = vmatpush.msra.mxu0 %v1559
        %5959 = vmatpush.msra.mxu0 %v1553
        %5960 = vmatpush.msra.mxu0 %v1547
        %5961 = vmatpush.msra.mxu0 %v1541
        %5962 = vmatpush.msra.mxu0 %v1535
        %5963 = vmatpush.msra.mxu0 %v1529
        %5964 = vmatpush.msra.mxu0 %v1523
        %5965 = vmatpush.msra.mxu0 %v1517
        %5966 = vmatpush.msra.mxu0 %v1511
        %5967 = vmatpush.msra.mxu0 %v1505
        %5968 = vmatpush.msra.mxu0 %v1499
        %5969 = vmatpush.msra.mxu0 %v1493
        %5970 = vmatpush.msra.mxu0 %v1487
        %5971 = vmatpush.msra.mxu0 %v1481
        %5972 = vmatpush.msra.mxu0 %v1475
        %5973 = vmatmul.f32.gmra.mxu0 %v4388
        %v5974 = vpop.f32.mrf.mxu0
        %v5975 = vadd.f32 %v5910, %v5974
        %5976 = vmatmul.f32.gmra.mxu0 %v4392
        %v5977 = vpop.f32.mrf.mxu0
        %v5978 = vadd.f32 %v5913, %v5977
        %5979 = vmatmul.f32.gmra.mxu0 %v4396
        %v5980 = vpop.f32.mrf.mxu0
        %v5981 = vadd.f32 %v5916, %v5980
        %5982 = vmatmul.f32.gmra.mxu0 %v4400
        %v5983 = vpop.f32.mrf.mxu0
        %v5984 = vadd.f32 %v5919, %v5983
        %5985 = vmatmul.f32.gmra.mxu0 %v4404
        %v5986 = vpop.f32.mrf.mxu0
        %v5987 = vadd.f32 %v5922, %v5986
        %5988 = vmatmul.f32.gmra.mxu0 %v4408
        %v5989 = vpop.f32.mrf.mxu0
        %v5990 = vadd.f32 %v5925, %v5989
        %5991 = vmatmul.f32.gmra.mxu0 %v4412
        %v5992 = vpop.f32.mrf.mxu0
        %v5993 = vadd.f32 %v5928, %v5992
        %5994 = vmatmul.f32.gmra.mxu0 %v4416
        %v5995 = vpop.f32.mrf.mxu0
        %v5996 = vadd.f32 %v5931, %v5995
        %5997 = vmatmul.f32.gmra.mxu0 %v4420
        %v5998 = vpop.f32.mrf.mxu0
        %v5999 = vadd.f32 %v5934, %v5998
        %6000 = vmatmul.f32.gmra.mxu0 %v4424
        %v6001 = vpop.f32.mrf.mxu0
        %v6002 = vadd.f32 %v5937, %v6001
        %6003 = vmatmul.f32.gmra.mxu0 %v4428
        %v6004 = vpop.f32.mrf.mxu0
        %v6005 = vadd.f32 %v5940, %v6004
        %6006 = vmatmul.f32.gmra.mxu0 %v4432
        %v6007 = vpop.f32.mrf.mxu0
        %v6008 = vadd.f32 %v5943, %v6007
        %6009 = vmatmul.f32.gmra.mxu0 %v4436
        %v6010 = vpop.f32.mrf.mxu0
        %v6011 = vadd.f32 %v5946, %v6010
        %6012 = vmatmul.f32.gmra.mxu0 %v4440
        %v6013 = vpop.f32.mrf.mxu0
        %v6014 = vadd.f32 %v5949, %v6013
        %6015 = vmatmul.f32.gmra.mxu0 %v4444
        %v6016 = vpop.f32.mrf.mxu0
        %v6017 = vadd.f32 %v5952, %v6016
        %6018 = vmatmul.f32.gmra.mxu0 %v4448
        %v6019 = vpop.f32.mrf.mxu0
        %v6020 = vadd.f32 %v5955, %v6019
        %6021 = vdwg.mxu0
        %6022 = vst [vmem:[%s523] sm:$0xff] %v4675
        %6023 = vst [vmem:[%s523 + $0x8] sm:$0xff] %v4935
        %6024 = vst [vmem:[%s523 + $0x10] sm:$0xff] %v5195
        %6025 = vst [vmem:[%s523 + $0x18] sm:$0xff] %v5455
        %6026 = vst [vmem:[%s523 + $0x20] sm:$0xff] %v5715
        %6027 = vst [vmem:[%s523 + $0x28] sm:$0xff] %v5975
        %6028 = vst [vmem:[%s523 + $0x30] sm:$0xff] %v4678
        %6029 = vst [vmem:[%s523 + $0x38] sm:$0xff] %v4938
        %6030 = vst [vmem:[%s523 + $0x40] sm:$0xff] %v5198
        %6031 = vst [vmem:[%s523 + $0x48] sm:$0xff] %v5458
        %6032 = vst [vmem:[%s523 + $0x50] sm:$0xff] %v5718
        %6033 = vst [vmem:[%s523 + $0x58] sm:$0xff] %v5978
        %6034 = vst [vmem:[%s523 + $0x60] sm:$0xff] %v4681
        %6035 = vst [vmem:[%s523 + $0x68] sm:$0xff] %v4941
        %6036 = vst [vmem:[%s523 + $0x70] sm:$0xff] %v5201
        %6037 = vst [vmem:[%s523 + $0x78] sm:$0xff] %v5461
        %6038 = vst [vmem:[%s523 + $0x80] sm:$0xff] %v5721
        %6039 = vst [vmem:[%s523 + $0x88] sm:$0xff] %v5981
        %6040 = vst [vmem:[%s523 + $0x90] sm:$0xff] %v4684
        %6041 = vst [vmem:[%s523 + $0x98] sm:$0xff] %v4944
        %6042 = vst [vmem:[%s523 + $0xa0] sm:$0xff] %v5204
        %6043 = vst [vmem:[%s523 + $0xa8] sm:$0xff] %v5464
        %6044 = vst [vmem:[%s523 + $0xb0] sm:$0xff] %v5724
        %6045 = vst [vmem:[%s523 + $0xb8] sm:$0xff] %v5984
        %6046 = vst [vmem:[%s523 + $0xc0] sm:$0xff] %v4687
        %6047 = vst [vmem:[%s523 + $0xc8] sm:$0xff] %v4947
        %6048 = vst [vmem:[%s523 + $0xd0] sm:$0xff] %v5207
        %6049 = vst [vmem:[%s523 + $0xd8] sm:$0xff] %v5467
        %6050 = vst [vmem:[%s523 + $0xe0] sm:$0xff] %v5727
        %6051 = vst [vmem:[%s523 + $0xe8] sm:$0xff] %v5987
        %6052 = vst [vmem:[%s523 + $0xf0] sm:$0xff] %v4690
        %6053 = vst [vmem:[%s523 + $0xf8] sm:$0xff] %v4950
        %6054 = vst [vmem:[%s523 + $0x100] sm:$0xff] %v5210
        %6055 = vst [vmem:[%s523 + $0x108] sm:$0xff] %v5470
        %6056 = vst [vmem:[%s523 + $0x110] sm:$0xff] %v5730
        %6057 = vst [vmem:[%s523 + $0x118] sm:$0xff] %v5990
        %6058 = vst [vmem:[%s523 + $0x120] sm:$0xff] %v4693
        %6059 = vst [vmem:[%s523 + $0x128] sm:$0xff] %v4953
        %6060 = vst [vmem:[%s523 + $0x130] sm:$0xff] %v5213
        %6061 = vst [vmem:[%s523 + $0x138] sm:$0xff] %v5473
        %6062 = vst [vmem:[%s523 + $0x140] sm:$0xff] %v5733
        %6063 = vst [vmem:[%s523 + $0x148] sm:$0xff] %v5993
        %6064 = vst [vmem:[%s523 + $0x150] sm:$0xff] %v4696
        %6065 = vst [vmem:[%s523 + $0x158] sm:$0xff] %v4956
        %6066 = vst [vmem:[%s523 + $0x160] sm:$0xff] %v5216
        %6067 = vst [vmem:[%s523 + $0x168] sm:$0xff] %v5476
        %6068 = vst [vmem:[%s523 + $0x170] sm:$0xff] %v5736
        %6069 = vst [vmem:[%s523 + $0x178] sm:$0xff] %v5996
        %6070 = vst [vmem:[%s523 + $0x180] sm:$0xff] %v4699
        %6071 = vst [vmem:[%s523 + $0x188] sm:$0xff] %v4959
        %6072 = vst [vmem:[%s523 + $0x190] sm:$0xff] %v5219
        %6073 = vst [vmem:[%s523 + $0x198] sm:$0xff] %v5479
        %6074 = vst [vmem:[%s523 + $0x1a0] sm:$0xff] %v5739
        %6075 = vst [vmem:[%s523 + $0x1a8] sm:$0xff] %v5999
        %6076 = vst [vmem:[%s523 + $0x1b0] sm:$0xff] %v4702
        %6077 = vst [vmem:[%s523 + $0x1b8] sm:$0xff] %v4962
        %6078 = vst [vmem:[%s523 + $0x1c0] sm:$0xff] %v5222
        %6079 = vst [vmem:[%s523 + $0x1c8] sm:$0xff] %v5482
        %6080 = vst [vmem:[%s523 + $0x1d0] sm:$0xff] %v5742
        %6081 = vst [vmem:[%s523 + $0x1d8] sm:$0xff] %v6002
        %6082 = vst [vmem:[%s523 + $0x1e0] sm:$0xff] %v4705
        %6083 = vst [vmem:[%s523 + $0x1e8] sm:$0xff] %v4965
        %6084 = vst [vmem:[%s523 + $0x1f0] sm:$0xff] %v5225
        %6085 = vst [vmem:[%s523 + $0x1f8] sm:$0xff] %v5485
        %6086 = vst [vmem:[%s523 + $0x200] sm:$0xff] %v5745
        %6087 = vst [vmem:[%s523 + $0x208] sm:$0xff] %v6005
        %6088 = vst [vmem:[%s523 + $0x210] sm:$0xff] %v4708
        %6089 = vst [vmem:[%s523 + $0x218] sm:$0xff] %v4968
        %6090 = vst [vmem:[%s523 + $0x220] sm:$0xff] %v5228
        %6091 = vst [vmem:[%s523 + $0x228] sm:$0xff] %v5488
        %6092 = vst [vmem:[%s523 + $0x230] sm:$0xff] %v5748
        %6093 = vst [vmem:[%s523 + $0x238] sm:$0xff] %v6008
        %6094 = vst [vmem:[%s523 + $0x240] sm:$0xff] %v4711
        %6095 = vst [vmem:[%s523 + $0x248] sm:$0xff] %v4971
        %6096 = vst [vmem:[%s523 + $0x250] sm:$0xff] %v5231
        %6097 = vst [vmem:[%s523 + $0x258] sm:$0xff] %v5491
        %6098 = vst [vmem:[%s523 + $0x260] sm:$0xff] %v5751
        %6099 = vst [vmem:[%s523 + $0x268] sm:$0xff] %v6011
        %6100 = vst [vmem:[%s523 + $0x270] sm:$0xff] %v4714
        %6101 = vst [vmem:[%s523 + $0x278] sm:$0xff] %v4974
        %6102 = vst [vmem:[%s523 + $0x280] sm:$0xff] %v5234
        %6103 = vst [vmem:[%s523 + $0x288] sm:$0xff] %v5494
        %6104 = vst [vmem:[%s523 + $0x290] sm:$0xff] %v5754
        %6105 = vst [vmem:[%s523 + $0x298] sm:$0xff] %v6014
        %6106 = vst [vmem:[%s523 + $0x2a0] sm:$0xff] %v4717
        %6107 = vst [vmem:[%s523 + $0x2a8] sm:$0xff] %v4977
        %6108 = vst [vmem:[%s523 + $0x2b0] sm:$0xff] %v5237
        %6109 = vst [vmem:[%s523 + $0x2b8] sm:$0xff] %v5497
        %6110 = vst [vmem:[%s523 + $0x2c0] sm:$0xff] %v5757
        %6111 = vst [vmem:[%s523 + $0x2c8] sm:$0xff] %v6017
        %6112 = vst [vmem:[%s523 + $0x2d0] sm:$0xff] %v4720
        %6113 = vst [vmem:[%s523 + $0x2d8] sm:$0xff] %v4980
        %6114 = vst [vmem:[%s523 + $0x2e0] sm:$0xff] %v5240
        %6115 = vst [vmem:[%s523 + $0x2e8] sm:$0xff] %v5500
        %6116 = vst [vmem:[%s523 + $0x2f0] sm:$0xff] %v5760
        %6117 = vst [vmem:[%s523 + $0x2f8] sm:$0xff] %v6020
        %s6118 = sand.u32 %s237, 1
        %s6119 = scalar_lea.sflag [#allocation4], %s6118
        %s6120 = sand.u32 %s237, 1
        %s6121 = smul.addr %s6120, 256
        %s6122 = scalar_lea.vmem [#allocation17], %s6121
        %s6123 = sand.u32 %s263, 1
        %s6124 = scalar_lea.sflag [#allocation19], %s6123
        %s6125 = sand.u32 %s263, 1
        %s6126 = smul.addr %s6125, 768
        %s6127 = scalar_lea.vmem [#allocation18], %s6126
        // Predicated region
        $region93: #{contrastive_autoencoder_forward.1} parent=55 // pred_check
          %p6128 = pneg %p247
        $region94: #{contrastive_autoencoder_forward.1} parent=55 // pred_check_branch
          %6130 = sbr.rel (%p6128) target = $region96
        $region95: #{contrastive_autoencoder_forward.1} parent=55 // pred_region
          %s6131 = smul.u32 16, %s35
          %s6132 = ssub.s32 25, %s6131
          %p6133 = scmp.lt.s32.totalorder %s6132, 16
          %s6134 = scalar_select %p6133, %s6132, 16
          %s6135 = smul.u32 8, %s6134
          %s6136 = smul.u32 %s6135, 2
          %s6137 = ssub.s32 256, %s6136
          %s6138 = sshll.u32 %s6137, 4
          %6139 = vsyncadd %s6119, %s6138
          %p6140 = scmp.ne.s32.totalorder 0, %s6136
          %s6141 = smul.addr %s6131, 2
          %s6142 = smul.addr %s6141, 8
          %s6143 = scalar_lea.hbm %s9, %s6142
          %s6144 = smul.u32 16, %s6134
          %s6145 = sshll.u32 %s6122, 4
          %s6146 = int_to_ptr.vmem [resolvable:$true] %s6145
          %s6147 = sshll.u32 %s6143, 4
          %s6148 = int_to_ptr.hbm [resolvable:$true] %s6147
          %s6149 = sshll.u32 %s6144, 4
          %6153 = dma.vmem_to_hbm [thread:$0]  (%p6140), %s6146, %s6149, %s6148, %s6119, 256, 256, 16
        $region96: #{contrastive_autoencoder_forward.1} parent=55 // pred_fallthru
          _
        // Predicated region
        $region97: #{contrastive_autoencoder_forward.1} parent=55 // pred_check
          %p6154 = pneg %p273
        $region98: #{contrastive_autoencoder_forward.1} parent=55 // pred_check_branch
          %6156 = sbr.rel (%p6154) target = $region100
        $region99: #{contrastive_autoencoder_forward.1} parent=55 // pred_region
          %s6157 = smul.u32 16, %s35
          %s6158 = ssub.s32 25, %s6157
          %p6159 = scmp.lt.s32.totalorder %s6158, 16
          %s6160 = scalar_select %p6159, %s6158, 16
          %s6161 = smul.u32 8, %s6160
          %s6162 = smul.u32 %s6161, 6
          %s6163 = ssub.s32 768, %s6162
          %s6164 = sshll.u32 %s6163, 4
          %6165 = vsyncadd %s6124, %s6164
          %p6166 = scmp.ne.s32.totalorder 0, %s6162
          %s6167 = smul.addr %s6157, 6
          %s6168 = smul.addr %s6167, 8
          %s6169 = scalar_lea.hbm %s10, %s6168
          %s6170 = smul.u32 48, %s6160
          %s6171 = sshll.u32 %s6127, 4
          %s6172 = int_to_ptr.vmem [resolvable:$true] %s6171
          %s6173 = sshll.u32 %s6169, 4
          %s6174 = int_to_ptr.hbm [resolvable:$true] %s6173
          %s6175 = sshll.u32 %s6170, 4
          %6179 = dma.vmem_to_hbm [thread:$0]  (%p6166), %s6172, %s6175, %s6174, %s6124, 768, 768, 48
        $region100: #{contrastive_autoencoder_forward.1} parent=55 // pred_fallthru
          _
      $region56: #{contrastive_autoencoder_forward.1} parent=5 // pred_fallthru
        _
      %p6180 = scmp.le.s32.totalorder 2, %s30
      // Predicated region
      $region101: #{contrastive_autoencoder_forward.1} parent=5 // pred_check
        %p6181 = pneg %p6180
      $region102: #{contrastive_autoencoder_forward.1} parent=5 // pred_check_branch
        %6183 = sbr.rel (%p6181) target = $region104
      $region103: #{contrastive_autoencoder_forward.1} parent=5 // pred_region
        %s6184 = ssub.s32 %s30, 2
        // Predicated region
        $region105: #{contrastive_autoencoder_forward.1} parent=103 // pred_check
          %p6185 = pneg %p253
        $region106: #{contrastive_autoencoder_forward.1} parent=103 // pred_check_branch
          %6187 = sbr.rel (%p6185) target = $region108
        $region107: #{contrastive_autoencoder_forward.1} parent=103 // pred_region
          %s6188 = sand.u32 %s238, 1
          %s6189 = scalar_lea.sflag [#allocation4], %s6188
          %s6190 = sand.u32 %s238, 1
          %s6191 = smul.addr %s6190, 256
          %s6192 = scalar_lea.vmem [#allocation17], %s6191
          %6194 = dma.done %s6189, 4096
        $region108: #{contrastive_autoencoder_forward.1} parent=103 // pred_fallthru
          _
        // Predicated region
        $region109: #{contrastive_autoencoder_forward.1} parent=103 // pred_check
          %p6195 = pneg %p279
        $region110: #{contrastive_autoencoder_forward.1} parent=103 // pred_check_branch
          %6197 = sbr.rel (%p6195) target = $region112
        $region111: #{contrastive_autoencoder_forward.1} parent=103 // pred_region
          %s6198 = sand.u32 %s264, 1
          %s6199 = scalar_lea.sflag [#allocation19], %s6198
          %s6200 = sand.u32 %s264, 1
          %s6201 = smul.addr %s6200, 768
          %s6202 = scalar_lea.vmem [#allocation18], %s6201
          %6204 = dma.done %s6199, 12288
        $region112: #{contrastive_autoencoder_forward.1} parent=103 // pred_fallthru
          _
      $region104: #{contrastive_autoencoder_forward.1} parent=5 // pred_fallthru
        _
    $region6: #{contrastive_autoencoder_forward.1} parent=1 // loop_footer
      %s34 = sadd.s32 1, %s30
    $region7: #{contrastive_autoencoder_forward.1} parent=1 // loop_footer_branch
      %29 = sbr.rel target = $region3
    $region8: #{contrastive_autoencoder_forward.1} parent=1 // loop_exit
      _
    %6205 = vsyncpa [#allocation3], 1
    %s6206 = scalar_lea.sflag [#allocation3], 1
    %6207 = vsyncpa %s6206, 1
    %6208 = vsyncpa [#allocation6], 1
    %6209 = vsyncpa [#allocation9], 1
    %6210 = vsyncpa [#allocation12], 1
    %6211 = vsyncpa [#allocation15], 1
    %6212 = vsyncpa [#allocation4], 1
    %s6213 = scalar_lea.sflag [#allocation4], 1
    %6214 = vsyncpa %s6213, 1
    %6215 = vsyncpa [#allocation19], 1
    %s6216 = scalar_lea.sflag [#allocation19], 1
    %6217 = vsyncpa %s6216, 1

</llo_original>
